<compile_context>
chip_gen: v6e
topology: v6e:2x2x1
jax: 0.10.0
libtpu: 0.0.40
codegen_flags: <defaults>
</compile_context>

<pallas_src>
import jax
import jax.numpy as jnp
import numpy as np
from jax.experimental import pallas as pl
from jax.experimental.pallas import tpu as pltpu

# ------------------------- model hyper-parameters ---------------------------
N_EMBD = 256
N_HEAD = 4
N_LAYER = 4
HEAD_SIZE = N_EMBD // N_HEAD
VOCAB_SIZE = 512          # stands in for sp.get_piece_size()
BLOCK_SIZE = 256          # max context (position table size)
LN_EPS = 1e-5
MASK_VALUE = -1e30        # finite large-negative (avoids -inf softmax edge case)
VOCAB_TILE = 256          # lane-dense lm_head output tile (multiple of 128)


# ------------------------------ kernels --------------------------------------
def _layernorm(x, gamma, beta):
    mu = jnp.mean(x, axis=-1, keepdims=True)
    var = jnp.mean((x - mu) ** 2, axis=-1, keepdims=True)
    return (x - mu) * jax.lax.rsqrt(var + LN_EPS) * gamma + beta


def fused_blocks_kernel(
    x_ref,              # (1, T, C)  f32   token+pos embeddings
    mask_ref,           # (T, T)     f32   additive causal mask (0 / -1e30)
    g1_ref, b1_ref,     # (1, 1, C)  f32   ln1
    wqkv_ref,           # (1, C, 3C) bf16  fused q|k|v projection (q pre-scaled)
    wo_ref,             # (1, H, D, C) bf16 attention output projection, per head
    bo_ref,             # (1, 1, C)  f32
    g2_ref, b2_ref,     # (1, 1, C)  f32   ln2
    w1_ref, bf1_ref,    # (1, C, 4C) bf16 / (1, 1, 4C) f32
    w2_ref, bf2_ref,    # (1, 4C, C) bf16 / (1, 1, C)  f32
    o_ref,              # (1, T, C)  f32   residual stream, resident across layers
):
    layer = pl.program_id(1)

    # Layer 0: load the embeddings into the resident output block.
    @pl.when(layer == 0)
    def _():
        o_ref[0] = x_ref[0]

    x = o_ref[0]                                    # (T, C) f32
    T, C = x.shape
    D = HEAD_SIZE

    # ---- ln1 + fused QKV projection (one bf16 MXU matmul, f32 accumulation) ----
    h = _layernorm(x, g1_ref[0], b1_ref[0]).astype(jnp.bfloat16)
    qkv = jnp.dot(h, wqkv_ref[0], preferred_element_type=jnp.float32)   # (T, 3C)

    # Split into per-head (H, T, D) operands (1/sqrt(D) already folded into Wq).
    qh = jnp.stack([qkv[:, i * D:(i + 1) * D] for i in range(N_HEAD)], axis=0)
    kh = jnp.stack([qkv[:, C + i * D:C + (i + 1) * D] for i in range(N_HEAD)], axis=0)
    vh = jnp.stack([qkv[:, 2 * C + i * D:2 * C + (i + 1) * D] for i in range(N_HEAD)], axis=0)
    qh = qh.astype(jnp.bfloat16)
    kh = kh.astype(jnp.bfloat16)
    vh = vh.astype(jnp.bfloat16)

    # All heads in one batched contraction; contract on d (no explicit k.T).
    s = jnp.einsum("hqd,hkd->hqk", qh, kh, preferred_element_type=jnp.float32)
    s = s + mask_ref[...]                           # causal mask, broadcast over heads

    # Explicit softmax: max-subtract / exp / EUP reciprocal.
    m = jnp.max(s, axis=-1, keepdims=True)
    e = jnp.exp(s - m)
    p = e * pl.reciprocal(jnp.sum(e, axis=-1, keepdims=True), approx=True)

    a = jnp.einsum("hqk,hkd->hqd", p.astype(jnp.bfloat16), vh,
                   preferred_element_type=jnp.float32)              # (H, T, D)

    # Output projection with per-head (D, C) weight slices, summed over heads
    # (equivalent to concat(heads) @ Wo but without the lane-axis concatenate).
    attn = jnp.einsum("htd,hdc->htc", a.astype(jnp.bfloat16), wo_ref[0],
                      preferred_element_type=jnp.float32).sum(axis=0)  # (T, C)
    x = x + attn + bo_ref[0]                        # residual 1

    # ---- ln2 + feed-forward ----
    h2 = _layernorm(x, g2_ref[0], b2_ref[0]).astype(jnp.bfloat16)
    f = jnp.dot(h2, w1_ref[0], preferred_element_type=jnp.float32) + bf1_ref[0]
    f = jnp.maximum(f, 0.0).astype(jnp.bfloat16)
    f = jnp.dot(f, w2_ref[0], preferred_element_type=jnp.float32) + bf2_ref[0]
    o_ref[0] = x + f                                # residual 2 (stays in VMEM)


def final_head_kernel(x_ref, g_ref, b_ref, w_ref, bw_ref, o_ref):
    # ln_f + lm_head, one vocab tile per grid step:  (1,T,C) -> (1,T,TV)
    h = _layernorm(x_ref[0], g_ref[...], b_ref[...]).astype(jnp.bfloat16)
    o_ref[0] = jnp.dot(h, w_ref[...], preferred_element_type=jnp.float32) + bw_ref[...]


# ------------------------------ wrappers --------------------------------------
def _layer_spec(shape):
    """BlockSpec selecting layer `l` from a (N_LAYER, ...)-stacked parameter."""
    rest = tuple(int(d) for d in shape[1:])
    zeros = (0,) * len(rest)
    return pl.BlockSpec((1,) + rest, lambda b, l, z=zeros: (l,) + z)


def run_blocks(x, mask, p):
    """All N_LAYER transformer blocks in a single pallas_call."""
    B, T, C = x.shape
    L = p["wqkv"].shape[0]
    act_spec = pl.BlockSpec((1, T, C), lambda b, l: (b, 0, 0))
    weight_names = ["ln1_g", "ln1_b", "wqkv", "wo", "bo",
                    "ln2_g", "ln2_b", "w1", "b1", "w2", "b2"]
    in_specs = [act_spec, pl.BlockSpec((T, T), lambda b, l: (0, 0))]
    in_specs += [_layer_spec(p[n].shape) for n in weight_names]
    return pl.pallas_call(
        fused_blocks_kernel,
        out_shape=jax.ShapeDtypeStruct((B, T, C), jnp.float32),
        grid_spec=pltpu.PrefetchScalarGridSpec(
            num_scalar_prefetch=0,
            grid=(B, L),                   # layer axis last + arbitrary (resident out)
            in_specs=in_specs,
            out_specs=act_spec,
        ),
        compiler_params=pltpu.CompilerParams(
            dimension_semantics=("parallel", "arbitrary")),
    )(x, mask, *[p[n] for n in weight_names])


def run_final_head(x, gamma, beta, lm_w, lm_b):
    B, T, C = x.shape
    V = lm_w.shape[-1]
    TV = VOCAB_TILE if V % VOCAB_TILE == 0 else V
    return pl.pallas_call(
        final_head_kernel,
        out_shape=jax.ShapeDtypeStruct((B, T, V), jnp.float32),
        grid_spec=pltpu.PrefetchScalarGridSpec(
            num_scalar_prefetch=0,
            grid=(B, V // TV),
            in_specs=[
                pl.BlockSpec((1, T, C), lambda b, v: (b, 0, 0)),
                pl.BlockSpec((1, C), lambda b, v: (0, 0)),
                pl.BlockSpec((1, C), lambda b, v: (0, 0)),
                pl.BlockSpec((C, TV), lambda b, v: (0, v)),
                pl.BlockSpec((1, TV), lambda b, v: (0, v)),
            ],
            out_specs=pl.BlockSpec((1, T, TV), lambda b, v: (b, 0, v)),
        ),
        compiler_params=pltpu.CompilerParams(
            dimension_semantics=("parallel", "parallel")),
    )(x, gamma, beta, lm_w, lm_b)


# --------------------------- parameter creation --------------------------------
def init_params(key):
    """Deterministic f32 init mirroring GPTLanguageModel._init_weights."""
    C, V, Hf = N_EMBD, VOCAB_SIZE, 4 * N_EMBD
    keys = iter(jax.random.split(key, 64))
    nrm = lambda shape: 0.02 * jax.random.normal(next(keys), shape, jnp.float32)

    params = {
        "tok_emb": nrm((V, C)),
        "pos_emb": nrm((BLOCK_SIZE, C)),
        "blocks": [],
        "ln_f_g": jnp.ones((1, C), jnp.float32),
        "ln_f_b": jnp.zeros((1, C), jnp.float32),
        "lm_w": nrm((C, V)),
        "lm_b": jnp.zeros((1, V), jnp.float32),
    }
    for _ in range(N_LAYER):
        params["blocks"].append((
            jnp.ones((1, C), jnp.float32),    # 0  ln1 gamma
            jnp.zeros((1, C), jnp.float32),   # 1  ln1 beta
            nrm((C, C)),                      # 2  Wq (heads stacked on out dim)
            nrm((C, C)),                      # 3  Wk
            nrm((C, C)),                      # 4  Wv
            nrm((C, C)),                      # 5  attn out proj W
            jnp.zeros((1, C), jnp.float32),   # 6  attn out proj b
            jnp.ones((1, C), jnp.float32),    # 7  ln2 gamma
            jnp.zeros((1, C), jnp.float32),   # 8  ln2 beta
            nrm((C, Hf)),                     # 9  ffn W1
            jnp.zeros((1, Hf), jnp.float32),  # 10 ffn b1
            nrm((Hf, C)),                     # 11 ffn W2
            jnp.zeros((1, C), jnp.float32),   # 12 ffn b2
        ))
    return params


def pack_params(params):
    """Stack per-layer weights on a leading axis, fuse QKV, cast matmul weights bf16."""
    L = len(params["blocks"])
    C = N_EMBD

    def stk(i):
        return jnp.stack([blk[i] for blk in params["blocks"]], axis=0)

    wq, wk, wv = stk(2), stk(3), stk(4)                        # (L, C, C)
    scale = HEAD_SIZE ** -0.5
    wqkv = jnp.concatenate([wq * scale, wk, wv], axis=-1)      # (L, C, 3C), q pre-scaled
    wo = stk(5).reshape(L, N_HEAD, HEAD_SIZE, C)               # (L, H, D, C)

    return {
        "tok_emb": params["tok_emb"],
        "pos_emb": params["pos_emb"],
        "ln1_g": stk(0), "ln1_b": stk(1),
        "wqkv": wqkv.astype(jnp.bfloat16),
        "wo": wo.astype(jnp.bfloat16),
        "bo": stk(6),
        "ln2_g": stk(7), "ln2_b": stk(8),
        "w1": stk(9).astype(jnp.bfloat16), "b1": stk(10),
        "w2": stk(11).astype(jnp.bfloat16), "b2": stk(12),
        "ln_f_g": params["ln_f_g"], "ln_f_b": params["ln_f_b"],
        "lm_w": params["lm_w"].astype(jnp.bfloat16),
        "lm_b": params["lm_b"],
    }


# ------------------------------- forward --------------------------------------
@jax.jit
def gpt_forward(idx, packed):
    """idx: (B, T) int32 token ids -> logits (B, T, VOCAB_SIZE) f32 (targets=None path)."""
    B, T = idx.shape
    tok_emb = packed["tok_emb"][idx]                 # gather (plain-JAX glue)
    pos_emb = packed["pos_emb"][:T]
    x = tok_emb + pos_emb[None, :, :]

    # Causal mask computed once, passed into the fused-blocks kernel.
    row = jax.lax.broadcasted_iota(jnp.int32, (T, T), 0)
    col = jax.lax.broadcasted_iota(jnp.int32, (T, T), 1)
    mask = jnp.where(col <= row, 0.0, MASK_VALUE).astype(jnp.float32)

    x = run_blocks(x, mask, packed)
    return run_final_head(x, packed["ln_f_g"], packed["ln_f_b"],
                          packed["lm_w"], packed["lm_b"])


# pure-JAX f32 reference for a correctness spot-check
def gpt_forward_ref(idx, params):
    def ln(z, g, b):
        mu = z.mean(-1, keepdims=True)
        var = ((z - mu) ** 2).mean(-1, keepdims=True)
        return (z - mu) / jnp.sqrt(var + LN_EPS) * g + b

    B, T = idx.shape
    x = params["tok_emb"][idx] + params["pos_emb"][:T][None]
    for (g1, b1, wq, wk, wv, wo, bo, g2, b2, w1, bf1, w2, bf2) in params["blocks"]:
        h = ln(x, g1, b1)
        q, k, v = h @ wq, h @ wk, h @ wv
        q = q.reshape(B, T, N_HEAD, HEAD_SIZE).transpose(0, 2, 1, 3)
        k = k.reshape(B, T, N_HEAD, HEAD_SIZE).transpose(0, 2, 1, 3)
        v = v.reshape(B, T, N_HEAD, HEAD_SIZE).transpose(0, 2, 1, 3)
        s = jnp.einsum("bhqd,bhkd->bhqk", q, k) * HEAD_SIZE ** -0.5
        mask = jnp.tril(jnp.ones((T, T), bool))
        s = jnp.where(mask, s, -jnp.inf)
        p = jax.nn.softmax(s, axis=-1)
        a = jnp.einsum("bhqk,bhkd->bhqd", p, v).transpose(0, 2, 1, 3).reshape(B, T, N_EMBD)
        x = x + a @ wo + bo
        h2 = ln(x, g2, b2)
        f = jnp.maximum(h2 @ w1 + bf1, 0.0)
        x = x + f @ w2 + bf2
    x = ln(x, params["ln_f_g"], params["ln_f_b"])
    return x @ params["lm_w"] + params["lm_b"]


# --------------------------------- main ----------------------------------------
if __name__ == "__main__":
    key = jax.random.PRNGKey(0)
    pkey, ikey = jax.random.split(key)
    params = init_params(pkey)
    packed = pack_params(params)

    B, T = 2, 64                                     # small test shapes (T <= BLOCK_SIZE)
    idx = jax.random.randint(ikey, (B, T), 0, VOCAB_SIZE, dtype=jnp.int32)

    logits = gpt_forward(idx, packed)
    jax.block_until_ready(logits)

    ref = gpt_forward_ref(idx, params)
    np.testing.assert_allclose(np.asarray(logits), np.asarray(ref), rtol=2e-2, atol=2e-2)
    assert logits.shape == (B, T, VOCAB_SIZE) and logits.dtype == jnp.float32
    print("KERNEL_OK")
</pallas_src>

<mosaic_0001>
module attributes {stable_mosaic.version = 11 : i64} {
  func.func @final_head_kernel(%arg0: i32, %arg1: i32, %arg2: memref<1x64x256xf32, #tpu.memory_space<vmem>>, %arg3: memref<1x256xf32, #tpu.memory_space<vmem>>, %arg4: memref<1x256xf32, #tpu.memory_space<vmem>>, %arg5: memref<256x256xbf16, #tpu.memory_space<vmem>>, %arg6: memref<1x256xf32, #tpu.memory_space<vmem>>, %arg7: memref<1x64x256xf32, #tpu.memory_space<vmem>>) attributes {dimension_semantics = [#tpu.dimension_semantics<parallel>, #tpu.dimension_semantics<parallel>], iteration_bounds = array<i64: 2, 2>, scalar_prefetch = 0 : i64, scratch_operands = 0 : i64, tpu.core_type = #tpu.core_type<tc>, window_params = [{transform_indices = @transform_0, window_bounds = array<i64: 1, 64, 256>}, {pipeline_mode = #tpu.pipeline_mode<synchronous>, transform_indices = @transform_1, window_bounds = array<i64: 1, 256>}, {pipeline_mode = #tpu.pipeline_mode<synchronous>, transform_indices = @transform_2, window_bounds = array<i64: 1, 256>}, {transform_indices = @transform_3, window_bounds = array<i64: 256, 256>}, {transform_indices = @transform_4, window_bounds = array<i64: 1, 256>}, {transform_indices = @transform_5, window_bounds = array<i64: 1, 64, 256>}]} {
    %c0 = arith.constant 0 : index
    %c0_0 = arith.constant 0 : index
    %c0_1 = arith.constant 0 : index
    %0 = vector.load %arg2[%c0, %c0_0, %c0_1] : memref<1x64x256xf32, #tpu.memory_space<vmem>>, vector<1x64x256xf32>
    %1 = vector.shape_cast %0 : vector<1x64x256xf32> to vector<64x256xf32>
    %c0_2 = arith.constant 0 : index
    %c0_3 = arith.constant 0 : index
    %2 = vector.load %arg3[%c0_2, %c0_3] : memref<1x256xf32, #tpu.memory_space<vmem>>, vector<1x256xf32>
    %c0_4 = arith.constant 0 : index
    %c0_5 = arith.constant 0 : index
    %3 = vector.load %arg4[%c0_4, %c0_5] : memref<1x256xf32, #tpu.memory_space<vmem>>, vector<1x256xf32>
    %cst = arith.constant dense<0.000000e+00> : vector<64xf32>
    %4 = vector.multi_reduction <add>, %1, %cst [1] : vector<64x256xf32> to vector<64xf32>
    %5 = vector.shape_cast %4 : vector<64xf32> to vector<64x1xf32>
    %cst_6 = arith.constant 2.560000e+02 : f32
    %6 = vector.broadcast %cst_6 : f32 to vector<64x1xf32>
    %7 = arith.divf %5, %6 : vector<64x1xf32>
    %8 = vector.broadcast %7 : vector<64x1xf32> to vector<64x256xf32>
    %9 = arith.subf %1, %8 : vector<64x256xf32>
    %10 = arith.mulf %9, %9 : vector<64x256xf32>
    %cst_7 = arith.constant dense<0.000000e+00> : vector<64xf32>
    %11 = vector.multi_reduction <add>, %10, %cst_7 [1] : vector<64x256xf32> to vector<64xf32>
    %12 = vector.shape_cast %11 : vector<64xf32> to vector<64x1xf32>
    %cst_8 = arith.constant 2.560000e+02 : f32
    %13 = vector.broadcast %cst_8 : f32 to vector<64x1xf32>
    %14 = arith.divf %12, %13 : vector<64x1xf32>
    %15 = vector.broadcast %7 : vector<64x1xf32> to vector<64x256xf32>
    %16 = arith.subf %1, %15 : vector<64x256xf32>
    %cst_9 = arith.constant 9.99999974E-6 : f32
    %17 = vector.broadcast %cst_9 : f32 to vector<64x1xf32>
    %18 = arith.addf %14, %17 : vector<64x1xf32>
    %19 = math.rsqrt %18 : vector<64x1xf32>
    %20 = vector.broadcast %19 : vector<64x1xf32> to vector<64x256xf32>
    %21 = arith.mulf %16, %20 : vector<64x256xf32>
    %22 = vector.broadcast %2 : vector<1x256xf32> to vector<64x256xf32>
    %23 = arith.mulf %21, %22 : vector<64x256xf32>
    %24 = vector.broadcast %3 : vector<1x256xf32> to vector<64x256xf32>
    %25 = arith.addf %23, %24 : vector<64x256xf32>
    %26 = arith.truncf %25 : vector<64x256xf32> to vector<64x256xbf16>
    %c0_10 = arith.constant 0 : index
    %c0_11 = arith.constant 0 : index
    %27 = vector.load %arg5[%c0_10, %c0_11] : memref<256x256xbf16, #tpu.memory_space<vmem>>, vector<256x256xbf16>
    %cst_12 = arith.constant dense<0.000000e+00> : vector<64x256xf32>
    %28 = tpu.matmul %26, %27, %cst_12 {dimension_numbers = #tpu.dot_dimension_numbers<[1], [0], [0], [1], [0, 0, 1, 1], [], []>} : vector<64x256xbf16>, vector<256x256xbf16>, vector<64x256xf32> -> vector<64x256xf32>
    %c0_13 = arith.constant 0 : index
    %c0_14 = arith.constant 0 : index
    %29 = vector.load %arg6[%c0_13, %c0_14] : memref<1x256xf32, #tpu.memory_space<vmem>>, vector<1x256xf32>
    %30 = vector.broadcast %29 : vector<1x256xf32> to vector<64x256xf32>
    %31 = arith.addf %28, %30 : vector<64x256xf32>
    %c0_15 = arith.constant 0 : index
    %c0_16 = arith.constant 0 : index
    %c0_17 = arith.constant 0 : index
    %32 = vector.load %arg7[%c0_15, %c0_16, %c0_17] : memref<1x64x256xf32, #tpu.memory_space<vmem>>, vector<1x64x256xf32>
    %33 = vector.shape_cast %32 : vector<1x64x256xf32> to vector<64x256xf32>
    %34 = vector.shape_cast %31 : vector<64x256xf32> to vector<1x64x256xf32>
    tpu.vector_store %arg7[%c0_15, %c0_16, %c0_17], %34 {strides = array<i32>} : memref<1x64x256xf32, #tpu.memory_space<vmem>>, vector<1x64x256xf32>,
    return
  }
  func.func @transform_0(%arg0: i32, %arg1: i32) -> (i32, i32, i32) {
    %c0_i32 = arith.constant 0 : i32
    %c0_i32_0 = arith.constant 0 : i32
    %c0_i32_1 = arith.constant 0 : i32
    return %arg0, %c0_i32, %c0_i32_0 : i32, i32, i32
  }
  func.func @transform_1(%arg0: i32, %arg1: i32) -> (i32, i32) {
    %c0_i32 = arith.constant 0 : i32
    %c0_i32_0 = arith.constant 0 : i32
    %c0_i32_1 = arith.constant 0 : i32
    return %c0_i32, %c0_i32_0 : i32, i32
  }
  func.func @transform_2(%arg0: i32, %arg1: i32) -> (i32, i32) {
    %c0_i32 = arith.constant 0 : i32
    %c0_i32_0 = arith.constant 0 : i32
    %c0_i32_1 = arith.constant 0 : i32
    return %c0_i32, %c0_i32_0 : i32, i32
  }
  func.func @transform_3(%arg0: i32, %arg1: i32) -> (i32, i32) {
    %c0_i32 = arith.constant 0 : i32
    %c0_i32_0 = arith.constant 0 : i32
    return %c0_i32, %arg1 : i32, i32
  }
  func.func @transform_4(%arg0: i32, %arg1: i32) -> (i32, i32) {
    %c0_i32 = arith.constant 0 : i32
    %c0_i32_0 = arith.constant 0 : i32
    return %c0_i32, %arg1 : i32, i32
  }
  func.func @transform_5(%arg0: i32, %arg1: i32) -> (i32, i32, i32) {
    %c0_i32 = arith.constant 0 : i32
    %c0_i32_0 = arith.constant 0 : i32
    return %arg0, %c0_i32, %arg1 : i32, i32, i32
  }
}

module attributes {stable_mosaic.version = 11 : i64} {
  func.func @fused_blocks_kernel(%arg0: i32, %arg1: i32, %arg2: memref<1x64x256xf32, #tpu.memory_space<vmem>>, %arg3: memref<64x64xf32, #tpu.memory_space<vmem>>, %arg4: memref<1x1x256xf32, #tpu.memory_space<vmem>>, %arg5: memref<1x1x256xf32, #tpu.memory_space<vmem>>, %arg6: memref<1x256x768xbf16, #tpu.memory_space<vmem>>, %arg7: memref<1x4x64x256xbf16, #tpu.memory_space<vmem>>, %arg8: memref<1x1x256xf32, #tpu.memory_space<vmem>>, %arg9: memref<1x1x256xf32, #tpu.memory_space<vmem>>, %arg10: memref<1x1x256xf32, #tpu.memory_space<vmem>>, %arg11: memref<1x256x1024xbf16, #tpu.memory_space<vmem>>, %arg12: memref<1x1x1024xf32, #tpu.memory_space<vmem>>, %arg13: memref<1x1024x256xbf16, #tpu.memory_space<vmem>>, %arg14: memref<1x1x256xf32, #tpu.memory_space<vmem>>, %arg15: memref<1x64x256xf32, #tpu.memory_space<vmem>>) attributes {dimension_semantics = [#tpu.dimension_semantics<parallel>, #tpu.dimension_semantics<arbitrary>], iteration_bounds = array<i64: 2, 4>, scalar_prefetch = 0 : i64, scratch_operands = 0 : i64, tpu.core_type = #tpu.core_type<tc>, window_params = [{transform_indices = @transform_0, window_bounds = array<i64: 1, 64, 256>}, {pipeline_mode = #tpu.pipeline_mode<synchronous>, transform_indices = @transform_1, window_bounds = array<i64: 64, 64>}, {transform_indices = @transform_2, window_bounds = array<i64: 1, 1, 256>}, {transform_indices = @transform_3, window_bounds = array<i64: 1, 1, 256>}, {transform_indices = @transform_4, window_bounds = array<i64: 1, 256, 768>}, {transform_indices = @transform_5, window_bounds = array<i64: 1, 4, 64, 256>}, {transform_indices = @transform_6, window_bounds = array<i64: 1, 1, 256>}, {transform_indices = @transform_7, window_bounds = array<i64: 1, 1, 256>}, {transform_indices = @transform_8, window_bounds = array<i64: 1, 1, 256>}, {transform_indices = @transform_9, window_bounds = array<i64: 1, 256, 1024>}, {transform_indices = @transform_10, window_bounds = array<i64: 1, 1, 1024>}, {transform_indices = @transform_11, window_bounds = array<i64: 1, 1024, 256>}, {transform_indices = @transform_12, window_bounds = array<i64: 1, 1, 256>}, {transform_indices = @transform_13, window_bounds = array<i64: 1, 64, 256>}]} {
    %c0_i32 = arith.constant 0 : i32
    %0 = arith.cmpi eq, %arg1, %c0_i32 : i32
    %1 = arith.extui %0 : i1 to i32
    %c0_i32_0 = arith.constant 0 : i32
    %2 = arith.cmpi ne, %1, %c0_i32_0 : i32
    scf.if %2 {
      %c0_61 = arith.constant 0 : index
      %c0_62 = arith.constant 0 : index
      %c0_63 = arith.constant 0 : index
      %140 = vector.load %arg2[%c0_61, %c0_62, %c0_63] : memref<1x64x256xf32, #tpu.memory_space<vmem>>, vector<1x64x256xf32>
      %141 = vector.shape_cast %140 : vector<1x64x256xf32> to vector<64x256xf32>
      %c0_64 = arith.constant 0 : index
      %c0_65 = arith.constant 0 : index
      %c0_66 = arith.constant 0 : index
      %142 = vector.load %arg15[%c0_64, %c0_65, %c0_66] : memref<1x64x256xf32, #tpu.memory_space<vmem>>, vector<1x64x256xf32>
      %143 = vector.shape_cast %142 : vector<1x64x256xf32> to vector<64x256xf32>
      %144 = vector.shape_cast %141 : vector<64x256xf32> to vector<1x64x256xf32>
      tpu.vector_store %arg15[%c0_64, %c0_65, %c0_66], %144 {strides = array<i32>} : memref<1x64x256xf32, #tpu.memory_space<vmem>>, vector<1x64x256xf32>,
    } else {
    }
    %c0 = arith.constant 0 : index
    %c0_1 = arith.constant 0 : index
    %c0_2 = arith.constant 0 : index
    %3 = vector.load %arg15[%c0, %c0_1, %c0_2] : memref<1x64x256xf32, #tpu.memory_space<vmem>>, vector<1x64x256xf32>
    %4 = vector.shape_cast %3 : vector<1x64x256xf32> to vector<64x256xf32>
    %c0_3 = arith.constant 0 : index
    %c0_4 = arith.constant 0 : index
    %c0_5 = arith.constant 0 : index
    %5 = vector.load %arg4[%c0_3, %c0_4, %c0_5] : memref<1x1x256xf32, #tpu.memory_space<vmem>>, vector<1x1x256xf32>
    %6 = vector.shape_cast %5 : vector<1x1x256xf32> to vector<1x256xf32>
    %c0_6 = arith.constant 0 : index
    %c0_7 = arith.constant 0 : index
    %c0_8 = arith.constant 0 : index
    %7 = vector.load %arg5[%c0_6, %c0_7, %c0_8] : memref<1x1x256xf32, #tpu.memory_space<vmem>>, vector<1x1x256xf32>
    %8 = vector.shape_cast %7 : vector<1x1x256xf32> to vector<1x256xf32>
    %cst = arith.constant dense<0.000000e+00> : vector<64xf32>
    %9 = vector.multi_reduction <add>, %4, %cst [1] : vector<64x256xf32> to vector<64xf32>
    %10 = vector.shape_cast %9 : vector<64xf32> to vector<64x1xf32>
    %cst_9 = arith.constant 2.560000e+02 : f32
    %11 = vector.broadcast %cst_9 : f32 to vector<64x1xf32>
    %12 = arith.divf %10, %11 : vector<64x1xf32>
    %13 = vector.broadcast %12 : vector<64x1xf32> to vector<64x256xf32>
    %14 = arith.subf %4, %13 : vector<64x256xf32>
    %15 = arith.mulf %14, %14 : vector<64x256xf32>
    %cst_10 = arith.constant dense<0.000000e+00> : vector<64xf32>
    %16 = vector.multi_reduction <add>, %15, %cst_10 [1] : vector<64x256xf32> to vector<64xf32>
    %17 = vector.shape_cast %16 : vector<64xf32> to vector<64x1xf32>
    %cst_11 = arith.constant 2.560000e+02 : f32
    %18 = vector.broadcast %cst_11 : f32 to vector<64x1xf32>
    %19 = arith.divf %17, %18 : vector<64x1xf32>
    %20 = vector.broadcast %12 : vector<64x1xf32> to vector<64x256xf32>
    %21 = arith.subf %4, %20 : vector<64x256xf32>
    %cst_12 = arith.constant 9.99999974E-6 : f32
    %22 = vector.broadcast %cst_12 : f32 to vector<64x1xf32>
    %23 = arith.addf %19, %22 : vector<64x1xf32>
    %24 = math.rsqrt %23 : vector<64x1xf32>
    %25 = vector.broadcast %24 : vector<64x1xf32> to vector<64x256xf32>
    %26 = arith.mulf %21, %25 : vector<64x256xf32>
    %27 = vector.broadcast %6 : vector<1x256xf32> to vector<64x256xf32>
    %28 = arith.mulf %26, %27 : vector<64x256xf32>
    %29 = vector.broadcast %8 : vector<1x256xf32> to vector<64x256xf32>
    %30 = arith.addf %28, %29 : vector<64x256xf32>
    %31 = arith.truncf %30 : vector<64x256xf32> to vector<64x256xbf16>
    %c0_13 = arith.constant 0 : index
    %c0_14 = arith.constant 0 : index
    %c0_15 = arith.constant 0 : index
    %32 = vector.load %arg6[%c0_13, %c0_14, %c0_15] : memref<1x256x768xbf16, #tpu.memory_space<vmem>>, vector<1x256x768xbf16>
    %33 = vector.shape_cast %32 : vector<1x256x768xbf16> to vector<256x768xbf16>
    %cst_16 = arith.constant dense<0.000000e+00> : vector<64x768xf32>
    %34 = tpu.matmul %31, %33, %cst_16 {dimension_numbers = #tpu.dot_dimension_numbers<[1], [0], [0], [1], [0, 0, 1, 1], [], []>} : vector<64x256xbf16>, vector<256x768xbf16>, vector<64x768xf32> -> vector<64x768xf32>
    %35 = vector.extract_strided_slice %34 {offsets = [0, 0], sizes = [64, 64], strides = [1, 1]} : vector<64x768xf32> to vector<64x64xf32>
    %36 = vector.extract_strided_slice %34 {offsets = [0, 64], sizes = [64, 64], strides = [1, 1]} : vector<64x768xf32> to vector<64x64xf32>
    %37 = vector.extract_strided_slice %34 {offsets = [0, 128], sizes = [64, 64], strides = [1, 1]} : vector<64x768xf32> to vector<64x64xf32>
    %38 = vector.extract_strided_slice %34 {offsets = [0, 192], sizes = [64, 64], strides = [1, 1]} : vector<64x768xf32> to vector<64x64xf32>
    %39 = vector.shape_cast %35 : vector<64x64xf32> to vector<1x64x64xf32>
    %40 = vector.shape_cast %36 : vector<64x64xf32> to vector<1x64x64xf32>
    %41 = vector.shape_cast %37 : vector<64x64xf32> to vector<1x64x64xf32>
    %42 = vector.shape_cast %38 : vector<64x64xf32> to vector<1x64x64xf32>
    %43 = tpu.concatenate %39, %40, %41, %42 in 0 : vector<1x64x64xf32>, vector<1x64x64xf32>, vector<1x64x64xf32>, vector<1x64x64xf32> -> vector<4x64x64xf32>
    %44 = vector.extract_strided_slice %34 {offsets = [0, 256], sizes = [64, 64], strides = [1, 1]} : vector<64x768xf32> to vector<64x64xf32>
    %45 = vector.extract_strided_slice %34 {offsets = [0, 320], sizes = [64, 64], strides = [1, 1]} : vector<64x768xf32> to vector<64x64xf32>
    %46 = vector.extract_strided_slice %34 {offsets = [0, 384], sizes = [64, 64], strides = [1, 1]} : vector<64x768xf32> to vector<64x64xf32>
    %47 = vector.extract_strided_slice %34 {offsets = [0, 448], sizes = [64, 64], strides = [1, 1]} : vector<64x768xf32> to vector<64x64xf32>
    %48 = vector.shape_cast %44 : vector<64x64xf32> to vector<1x64x64xf32>
    %49 = vector.shape_cast %45 : vector<64x64xf32> to vector<1x64x64xf32>
    %50 = vector.shape_cast %46 : vector<64x64xf32> to vector<1x64x64xf32>
    %51 = vector.shape_cast %47 : vector<64x64xf32> to vector<1x64x64xf32>
    %52 = tpu.concatenate %48, %49, %50, %51 in 0 : vector<1x64x64xf32>, vector<1x64x64xf32>, vector<1x64x64xf32>, vector<1x64x64xf32> -> vector<4x64x64xf32>
    %53 = vector.extract_strided_slice %34 {offsets = [0, 512], sizes = [64, 64], strides = [1, 1]} : vector<64x768xf32> to vector<64x64xf32>
    %54 = vector.extract_strided_slice %34 {offsets = [0, 576], sizes = [64, 64], strides = [1, 1]} : vector<64x768xf32> to vector<64x64xf32>
    %55 = vector.extract_strided_slice %34 {offsets = [0, 640], sizes = [64, 64], strides = [1, 1]} : vector<64x768xf32> to vector<64x64xf32>
    %56 = vector.extract_strided_slice %34 {offsets = [0, 704], sizes = [64, 64], strides = [1, 1]} : vector<64x768xf32> to vector<64x64xf32>
    %57 = vector.shape_cast %53 : vector<64x64xf32> to vector<1x64x64xf32>
    %58 = vector.shape_cast %54 : vector<64x64xf32> to vector<1x64x64xf32>
    %59 = vector.shape_cast %55 : vector<64x64xf32> to vector<1x64x64xf32>
    %60 = vector.shape_cast %56 : vector<64x64xf32> to vector<1x64x64xf32>
    %61 = tpu.concatenate %57, %58, %59, %60 in 0 : vector<1x64x64xf32>, vector<1x64x64xf32>, vector<1x64x64xf32>, vector<1x64x64xf32> -> vector<4x64x64xf32>
    %62 = arith.truncf %43 : vector<4x64x64xf32> to vector<4x64x64xbf16>
    %63 = arith.truncf %52 : vector<4x64x64xf32> to vector<4x64x64xbf16>
    %64 = arith.truncf %61 : vector<4x64x64xf32> to vector<4x64x64xbf16>
    "tpu.trace_start"() <{level = 10 : i32, message = "hqd,hkd->hqk"}> : () -> ()
    %cst_17 = arith.constant dense<0.000000e+00> : vector<4x64x64xf32>
    %65 = tpu.matmul %62, %63, %cst_17 {dimension_numbers = #tpu.dot_dimension_numbers<[2], [2], [1], [1], [0, 0, 0, 1, 1, 1], [0], [0]>} : vector<4x64x64xbf16>, vector<4x64x64xbf16>, vector<4x64x64xf32> -> vector<4x64x64xf32>
    "tpu.trace_stop"() : () -> ()
    %c0_18 = arith.constant 0 : index
    %c0_19 = arith.constant 0 : index
    %66 = vector.load %arg3[%c0_18, %c0_19] : memref<64x64xf32, #tpu.memory_space<vmem>>, vector<64x64xf32>
    %67 = vector.shape_cast %66 : vector<64x64xf32> to vector<1x64x64xf32>
    %68 = vector.broadcast %67 : vector<1x64x64xf32> to vector<4x64x64xf32>
    %69 = arith.addf %65, %68 : vector<4x64x64xf32>
    %cst_20 = arith.constant dense<0xFF800000> : vector<4x64xf32>
    %70 = vector.multi_reduction <maximumf>, %69, %cst_20 [2] : vector<4x64x64xf32> to vector<4x64xf32>
    %71 = vector.shape_cast %70 : vector<4x64xf32> to vector<4x64x1xf32>
    %72 = vector.broadcast %71 : vector<4x64x1xf32> to vector<4x64x64xf32>
    %73 = arith.subf %69, %72 : vector<4x64x64xf32>
    %74 = math.exp %73 : vector<4x64x64xf32>
    %cst_21 = arith.constant dense<0.000000e+00> : vector<4x64xf32>
    %75 = vector.multi_reduction <add>, %74, %cst_21 [2] : vector<4x64x64xf32> to vector<4x64xf32>
    %76 = vector.shape_cast %75 : vector<4x64xf32> to vector<4x64x1xf32>
    %77 = tpu.reciprocal %76 {approx = true} : vector<4x64x1xf32> -> vector<4x64x1xf32>
    %78 = vector.broadcast %77 : vector<4x64x1xf32> to vector<4x64x64xf32>
    %79 = arith.mulf %74, %78 : vector<4x64x64xf32>
    %80 = arith.truncf %79 : vector<4x64x64xf32> to vector<4x64x64xbf16>
    "tpu.trace_start"() <{level = 10 : i32, message = "hqk,hkd->hqd"}> : () -> ()
    %cst_22 = arith.constant dense<0.000000e+00> : vector<4x64x64xf32>
    %81 = tpu.matmul %80, %64, %cst_22 {dimension_numbers = #tpu.dot_dimension_numbers<[2], [1], [1], [2], [0, 0, 0, 1, 1, 2], [0], [0]>} : vector<4x64x64xbf16>, vector<4x64x64xbf16>, vector<4x64x64xf32> -> vector<4x64x64xf32>
    "tpu.trace_stop"() : () -> ()
    %82 = arith.truncf %81 : vector<4x64x64xf32> to vector<4x64x64xbf16>
    %c0_23 = arith.constant 0 : index
    %c0_24 = arith.constant 0 : index
    %c0_25 = arith.constant 0 : index
    %c0_26 = arith.constant 0 : index
    %83 = vector.load %arg7[%c0_23, %c0_24, %c0_25, %c0_26] : memref<1x4x64x256xbf16, #tpu.memory_space<vmem>>, vector<1x4x64x256xbf16>
    %84 = vector.shape_cast %83 : vector<1x4x64x256xbf16> to vector<4x64x256xbf16>
    "tpu.trace_start"() <{level = 10 : i32, message = "htd,hdc->htc"}> : () -> ()
    %cst_27 = arith.constant dense<0.000000e+00> : vector<4x64x256xf32>
    %85 = tpu.matmul %82, %84, %cst_27 {dimension_numbers = #tpu.dot_dimension_numbers<[2], [1], [1], [2], [0, 0, 0, 1, 1, 2], [0], [0]>} : vector<4x64x64xbf16>, vector<4x64x256xbf16>, vector<4x64x256xf32> -> vector<4x64x256xf32>
    "tpu.trace_stop"() : () -> ()
    %cst_28 = arith.constant dense<0.000000e+00> : vector<64x256xf32>
    %86 = vector.multi_reduction <add>, %85, %cst_28 [0] : vector<4x64x256xf32> to vector<64x256xf32>
    %87 = arith.addf %4, %86 : vector<64x256xf32>
    %c0_29 = arith.constant 0 : index
    %c0_30 = arith.constant 0 : index
    %c0_31 = arith.constant 0 : index
    %88 = vector.load %arg8[%c0_29, %c0_30, %c0_31] : memref<1x1x256xf32, #tpu.memory_space<vmem>>, vector<1x1x256xf32>
    %89 = vector.shape_cast %88 : vector<1x1x256xf32> to vector<1x256xf32>
    %90 = vector.broadcast %89 : vector<1x256xf32> to vector<64x256xf32>
    %91 = arith.addf %87, %90 : vector<64x256xf32>
    %c0_32 = arith.constant 0 : index
    %c0_33 = arith.constant 0 : index
    %c0_34 = arith.constant 0 : index
    %92 = vector.load %arg9[%c0_32, %c0_33, %c0_34] : memref<1x1x256xf32, #tpu.memory_space<vmem>>, vector<1x1x256xf32>
    %93 = vector.shape_cast %92 : vector<1x1x256xf32> to vector<1x256xf32>
    %c0_35 = arith.constant 0 : index
    %c0_36 = arith.constant 0 : index
    %c0_37 = arith.constant 0 : index
    %94 = vector.load %arg10[%c0_35, %c0_36, %c0_37] : memref<1x1x256xf32, #tpu.memory_space<vmem>>, vector<1x1x256xf32>
    %95 = vector.shape_cast %94 : vector<1x1x256xf32> to vector<1x256xf32>
    %cst_38 = arith.constant dense<0.000000e+00> : vector<64xf32>
    %96 = vector.multi_reduction <add>, %91, %cst_38 [1] : vector<64x256xf32> to vector<64xf32>
    %97 = vector.shape_cast %96 : vector<64xf32> to vector<64x1xf32>
    %cst_39 = arith.constant 2.560000e+02 : f32
    %98 = vector.broadcast %cst_39 : f32 to vector<64x1xf32>
    %99 = arith.divf %97, %98 : vector<64x1xf32>
    %100 = vector.broadcast %99 : vector<64x1xf32> to vector<64x256xf32>
    %101 = arith.subf %91, %100 : vector<64x256xf32>
    %102 = arith.mulf %101, %101 : vector<64x256xf32>
    %cst_40 = arith.constant dense<0.000000e+00> : vector<64xf32>
    %103 = vector.multi_reduction <add>, %102, %cst_40 [1] : vector<64x256xf32> to vector<64xf32>
    %104 = vector.shape_cast %103 : vector<64xf32> to vector<64x1xf32>
    %cst_41 = arith.constant 2.560000e+02 : f32
    %105 = vector.broadcast %cst_41 : f32 to vector<64x1xf32>
    %106 = arith.divf %104, %105 : vector<64x1xf32>
    %107 = vector.broadcast %99 : vector<64x1xf32> to vector<64x256xf32>
    %108 = arith.subf %91, %107 : vector<64x256xf32>
    %cst_42 = arith.constant 9.99999974E-6 : f32
    %109 = vector.broadcast %cst_42 : f32 to vector<64x1xf32>
    %110 = arith.addf %106, %109 : vector<64x1xf32>
    %111 = math.rsqrt %110 : vector<64x1xf32>
    %112 = vector.broadcast %111 : vector<64x1xf32> to vector<64x256xf32>
    %113 = arith.mulf %108, %112 : vector<64x256xf32>
    %114 = vector.broadcast %93 : vector<1x256xf32> to vector<64x256xf32>
    %115 = arith.mulf %113, %114 : vector<64x256xf32>
    %116 = vector.broadcast %95 : vector<1x256xf32> to vector<64x256xf32>
    %117 = arith.addf %115, %116 : vector<64x256xf32>
    %118 = arith.truncf %117 : vector<64x256xf32> to vector<64x256xbf16>
    %c0_43 = arith.constant 0 : index
    %c0_44 = arith.constant 0 : index
    %c0_45 = arith.constant 0 : index
    %119 = vector.load %arg11[%c0_43, %c0_44, %c0_45] : memref<1x256x1024xbf16, #tpu.memory_space<vmem>>, vector<1x256x1024xbf16>
    %120 = vector.shape_cast %119 : vector<1x256x1024xbf16> to vector<256x1024xbf16>
    %cst_46 = arith.constant dense<0.000000e+00> : vector<64x1024xf32>
    %121 = tpu.matmul %118, %120, %cst_46 {dimension_numbers = #tpu.dot_dimension_numbers<[1], [0], [0], [1], [0, 0, 1, 1], [], []>} : vector<64x256xbf16>, vector<256x1024xbf16>, vector<64x1024xf32> -> vector<64x1024xf32>
    %c0_47 = arith.constant 0 : index
    %c0_48 = arith.constant 0 : index
    %c0_49 = arith.constant 0 : index
    %122 = vector.load %arg12[%c0_47, %c0_48, %c0_49] : memref<1x1x1024xf32, #tpu.memory_space<vmem>>, vector<1x1x1024xf32>
    %123 = vector.shape_cast %122 : vector<1x1x1024xf32> to vector<1x1024xf32>
    %124 = vector.broadcast %123 : vector<1x1024xf32> to vector<64x1024xf32>
    %125 = arith.addf %121, %124 : vector<64x1024xf32>
    %cst_50 = arith.constant 0.000000e+00 : f32
    %126 = vector.broadcast %cst_50 : f32 to vector<64x1024xf32>
    %127 = arith.maximumf %125, %126 : vector<64x1024xf32>
    %128 = arith.truncf %127 : vector<64x1024xf32> to vector<64x1024xbf16>
    %c0_51 = arith.constant 0 : index
    %c0_52 = arith.constant 0 : index
    %c0_53 = arith.constant 0 : index
    %129 = vector.load %arg13[%c0_51, %c0_52, %c0_53] : memref<1x1024x256xbf16, #tpu.memory_space<vmem>>, vector<1x1024x256xbf16>
    %130 = vector.shape_cast %129 : vector<1x1024x256xbf16> to vector<1024x256xbf16>
    %cst_54 = arith.constant dense<0.000000e+00> : vector<64x256xf32>
    %131 = tpu.matmul %128, %130, %cst_54 {dimension_numbers = #tpu.dot_dimension_numbers<[1], [0], [0], [1], [0, 0, 1, 1], [], []>} : vector<64x1024xbf16>, vector<1024x256xbf16>, vector<64x256xf32> -> vector<64x256xf32>
    %c0_55 = arith.constant 0 : index
    %c0_56 = arith.constant 0 : index
    %c0_57 = arith.constant 0 : index
    %132 = vector.load %arg14[%c0_55, %c0_56, %c0_57] : memref<1x1x256xf32, #tpu.memory_space<vmem>>, vector<1x1x256xf32>
    %133 = vector.shape_cast %132 : vector<1x1x256xf32> to vector<1x256xf32>
    %134 = vector.broadcast %133 : vector<1x256xf32> to vector<64x256xf32>
    %135 = arith.addf %131, %134 : vector<64x256xf32>
    %136 = arith.addf %91, %135 : vector<64x256xf32>
    %c0_58 = arith.constant 0 : index
    %c0_59 = arith.constant 0 : index
    %c0_60 = arith.constant 0 : index
    %137 = vector.load %arg15[%c0_58, %c0_59, %c0_60] : memref<1x64x256xf32, #tpu.memory_space<vmem>>, vector<1x64x256xf32>
    %138 = vector.shape_cast %137 : vector<1x64x256xf32> to vector<64x256xf32>
    %139 = vector.shape_cast %136 : vector<64x256xf32> to vector<1x64x256xf32>
    tpu.vector_store %arg15[%c0_58, %c0_59, %c0_60], %139 {strides = array<i32>} : memref<1x64x256xf32, #tpu.memory_space<vmem>>, vector<1x64x256xf32>,
    return
  }
  func.func @transform_0(%arg0: i32, %arg1: i32) -> (i32, i32, i32) {
    %c0_i32 = arith.constant 0 : i32
    %c0_i32_0 = arith.constant 0 : i32
    %c0_i32_1 = arith.constant 0 : i32
    return %arg0, %c0_i32, %c0_i32_0 : i32, i32, i32
  }
  func.func @transform_1(%arg0: i32, %arg1: i32) -> (i32, i32) {
    %c0_i32 = arith.constant 0 : i32
    %c0_i32_0 = arith.constant 0 : i32
    %c0_i32_1 = arith.constant 0 : i32
    return %c0_i32, %c0_i32_0 : i32, i32
  }
  func.func @transform_2(%arg0: i32, %arg1: i32) -> (i32, i32, i32) {
    %c0_i32 = arith.constant 0 : i32
    %c0_i32_0 = arith.constant 0 : i32
    %c0_i32_1 = arith.constant 0 : i32
    return %arg1, %c0_i32, %c0_i32_0 : i32, i32, i32
  }
  func.func @transform_3(%arg0: i32, %arg1: i32) -> (i32, i32, i32) {
    %c0_i32 = arith.constant 0 : i32
    %c0_i32_0 = arith.constant 0 : i32
    %c0_i32_1 = arith.constant 0 : i32
    return %arg1, %c0_i32, %c0_i32_0 : i32, i32, i32
  }
  func.func @transform_4(%arg0: i32, %arg1: i32) -> (i32, i32, i32) {
    %c0_i32 = arith.constant 0 : i32
    %c0_i32_0 = arith.constant 0 : i32
    %c0_i32_1 = arith.constant 0 : i32
    return %arg1, %c0_i32, %c0_i32_0 : i32, i32, i32
  }
  func.func @transform_5(%arg0: i32, %arg1: i32) -> (i32, i32, i32, i32) {
    %c0_i32 = arith.constant 0 : i32
    %c0_i32_0 = arith.constant 0 : i32
    %c0_i32_1 = arith.constant 0 : i32
    %c0_i32_2 = arith.constant 0 : i32
    return %arg1, %c0_i32, %c0_i32_0, %c0_i32_1 : i32, i32, i32, i32
  }
  func.func @transform_6(%arg0: i32, %arg1: i32) -> (i32, i32, i32) {
    %c0_i32 = arith.constant 0 : i32
    %c0_i32_0 = arith.constant 0 : i32
    %c0_i32_1 = arith.constant 0 : i32
    return %arg1, %c0_i32, %c0_i32_0 : i32, i32, i32
  }
  func.func @transform_7(%arg0: i32, %arg1: i32) -> (i32, i32, i32) {
    %c0_i32 = arith.constant 0 : i32
    %c0_i32_0 = arith.constant 0 : i32
    %c0_i32_1 = arith.constant 0 : i32
    return %arg1, %c0_i32, %c0_i32_0 : i32, i32, i32
  }
  func.func @transform_8(%arg0: i32, %arg1: i32) -> (i32, i32, i32) {
    %c0_i32 = arith.constant 0 : i32
    %c0_i32_0 = arith.constant 0 : i32
    %c0_i32_1 = arith.constant 0 : i32
    return %arg1, %c0_i32, %c0_i32_0 : i32, i32, i32
  }
  func.func @transform_9(%arg0: i32, %arg1: i32) -> (i32, i32, i32) {
    %c0_i32 = arith.constant 0 : i32
    %c0_i32_0 = arith.constant 0 : i32
    %c0_i32_1 = arith.constant 0 : i32
    return %arg1, %c0_i32, %c0_i32_0 : i32, i32, i32
  }
  func.func @transform_10(%arg0: i32, %arg1: i32) -> (i32, i32, i32) {
    %c0_i32 = arith.constant 0 : i32
    %c0_i32_0 = arith.constant 0 : i32
    %c0_i32_1 = arith.constant 0 : i32
    return %arg1, %c0_i32, %c0_i32_0 : i32, i32, i32
  }
  func.func @transform_11(%arg0: i32, %arg1: i32) -> (i32, i32, i32) {
    %c0_i32 = arith.constant 0 : i32
    %c0_i32_0 = arith.constant 0 : i32
    %c0_i32_1 = arith.constant 0 : i32
    return %arg1, %c0_i32, %c0_i32_0 : i32, i32, i32
  }
  func.func @transform_12(%arg0: i32, %arg1: i32) -> (i32, i32, i32) {
    %c0_i32 = arith.constant 0 : i32
    %c0_i32_0 = arith.constant 0 : i32
    %c0_i32_1 = arith.constant 0 : i32
    return %arg1, %c0_i32, %c0_i32_0 : i32, i32, i32
  }
  func.func @transform_13(%arg0: i32, %arg1: i32) -> (i32, i32, i32) {
    %c0_i32 = arith.constant 0 : i32
    %c0_i32_0 = arith.constant 0 : i32
    %c0_i32_1 = arith.constant 0 : i32
    return %arg0, %c0_i32, %c0_i32_0 : i32, i32, i32
  }
}

</mosaic_0001>

<llo_original>
// kernel: gpt_forward.3
$region0: #{gpt_forward.3}
  #allocation0 [shape = 'u32[]', space=smem, size = 0x4, offset = 0x4, fixed_abs, tag = 'smem constant byte address 0x4 - core index']
  #allocation1 [shape = 'u32[144,128]{1,0:T(1,128)}', space=vmem, size = 0x12000, scoped, tag = 'internal scratch']
  %s0 = inlined_call_operand.vmem [shape: f32[2,64,256], index: 0, kind: input, shape index: {}]
  %s1 = inlined_call_operand.vmem [shape: f32[1,256], index: 1, kind: input, shape index: {}]
  %s2 = inlined_call_operand.vmem [shape: f32[1,256], index: 2, kind: input, shape index: {}]
  %s3 = inlined_call_operand.vmem [shape: bf16[256,512], index: 3, kind: input, shape index: {}]
  %s4 = inlined_call_operand.vmem [shape: f32[1,512], index: 4, kind: input, shape index: {}]
  %s5 = inlined_call_operand.hbm [shape: f32[2,64,512], index: 5, kind: output, shape index: {}]
  %s6 = sld [smem:[#allocation0]]
  $region91: #{gpt_forward.3} parent=0
    _
  %s8 = ssub.s32 1, %s6
  %s9 = scalar_select 0, %s8, %s6
  $region1: #{gpt_forward.3} parent=0
    #allocation2 [shape = 'u8[262144]{0}', space=vmem, size = 0x40000, scoped, tag = 'input window, operand 3']
    #allocation3 [shape = 'u8[131072]{0}', space=vmem, size = 0x20000, scoped, tag = 'output window, operand 0']
    #allocation4 [shape = 's32[2]{0}', space=sflag, size = 0x8, scoped, tag = 'scoped memory for gpt_forward.3']
    %10 = vsyncpa [#allocation4], 0
    %s11 = scalar_lea.sflag [#allocation4], 1
    %12 = vsyncpa %s11, 0
    loop: start=0, step=1, limit=6
    $region2: #{gpt_forward.3} parent=1 // loop_pre_header
      _
    $region3: #{gpt_forward.3} parent=1 // loop_header
      %s14 = sphi 0, %s18
      %p15 = scmp.ge.s32.totalorder %s14, 6
      %s21 = sphi 0, %s33
      %s22 = sphi 0, %s29
      %s23 = sphi 0, %s21
      %s24 = sphi 0, %s22
      %s25 = sphi 0, %s23
      %s26 = sphi 0, %s24
      %s36 = sphi 0, %s38
      %s39 = sphi 0, %s36
      %s40 = sphi 0, %s39
      %s56 = sphi 0, %s40
      %s60 = sphi 0, %s60
      %s62 = sphi 0, %s60
      %s63 = sphi 0, %s62
      %s77 = sphi 0, %s63
      %s81 = sphi 0, %s81
      %s83 = sphi 0, %s81
      %s84 = sphi 0, %s83
      %s98 = sphi 0, %s84
      %s104 = sphi 0, %s106
      %s107 = sphi 0, %s104
      %s108 = sphi 0, %s107
      %s124 = sphi 0, %s108
      %s130 = sphi 0, %s132
      %s133 = sphi 0, %s130
      %s134 = sphi 0, %s133
      %s150 = sphi 0, %s134
      %s158 = sphi 0, %s160
      %s161 = sphi 0, %s158
      %s162 = sphi 0, %s161
      %s178 = sphi 0, %s162
    $region4: #{gpt_forward.3} parent=1 // loop_header_branch
      %17 = sbr.rel (%p15) target = $region8
    $region5: #{gpt_forward.3} parent=1 // loop_body
      %s19 = ssub.s32 %s14, 1
      %s20 = ssub.s32 %s14, 2
      %s27 = sadd.s32 1, %s22
      %p28 = scmp.ge.s32.totalorder %s27, 2
      %s29 = scalar_select %p28, 0, %s27
      %s30 = sadd.s32 1, %s21
      %s31 = scalar_select %p28, %s30, %s21
      %p32 = scmp.ge.s32.totalorder %s31, 2
      %s33 = scalar_select %p32, 0, %s31
      %s34 = ssub.s32 %s21, %s33
      %p35 = scmp.eq.s32.totalorder %s34, 0
      %s37 = sadd.s32 %s36, 1
      %s38 = scalar_select %p35, %s36, %s37
      %p41 = pneg %p35
      %p42 = scmp.eq.s32.totalorder %s14, 3
      %p43 = por %p41, %p42
      %p44 = scmp.ne.s32.totalorder %s36, %s39
      %p45 = scmp.eq.s32.totalorder %s14, 0
      %p46 = por %p44, %p45
      %p47 = scmp.ne.s32.totalorder %s36, %s39
      %p48 = scmp.eq.s32.totalorder %s19, 3
      %p49 = por %p47, %p48
      %p50 = scmp.ne.s32.totalorder %s39, %s40
      %p51 = scmp.eq.s32.totalorder %s19, 0
      %p52 = por %p50, %p51
      %p53 = scmp.ne.s32.totalorder %s39, %s40
      %p54 = scmp.eq.s32.totalorder %s20, 3
      %p55 = por %p53, %p54
      %p57 = scmp.ne.s32.totalorder %s40, %s56
      %p58 = scmp.eq.s32.totalorder %s20, 0
      %p59 = por %p57, %p58
      %s61 = sadd.s32 %s60, 1
      %p64 = scmp.eq.s32.totalorder %s14, 3
      %p65 = scmp.ne.s32.totalorder %s60, %s62
      %p66 = scmp.eq.s32.totalorder %s14, 0
      %p67 = por %p65, %p66
      %p68 = scmp.ne.s32.totalorder %s60, %s62
      %p69 = scmp.eq.s32.totalorder %s19, 3
      %p70 = por %p68, %p69
      %p71 = scmp.ne.s32.totalorder %s62, %s63
      %p72 = scmp.eq.s32.totalorder %s19, 0
      %p73 = por %p71, %p72
      %p74 = scmp.ne.s32.totalorder %s62, %s63
      %p75 = scmp.eq.s32.totalorder %s20, 3
      %p76 = por %p74, %p75
      %p78 = scmp.ne.s32.totalorder %s63, %s77
      %p79 = scmp.eq.s32.totalorder %s20, 0
      %p80 = por %p78, %p79
      %s82 = sadd.s32 %s81, 1
      %p85 = scmp.eq.s32.totalorder %s14, 3
      %p86 = scmp.ne.s32.totalorder %s81, %s83
      %p87 = scmp.eq.s32.totalorder %s14, 0
      %p88 = por %p86, %p87
      %p89 = scmp.ne.s32.totalorder %s81, %s83
      %p90 = scmp.eq.s32.totalorder %s19, 3
      %p91 = por %p89, %p90
      %p92 = scmp.ne.s32.totalorder %s83, %s84
      %p93 = scmp.eq.s32.totalorder %s19, 0
      %p94 = por %p92, %p93
      %p95 = scmp.ne.s32.totalorder %s83, %s84
      %p96 = scmp.eq.s32.totalorder %s20, 3
      %p97 = por %p95, %p96
      %p99 = scmp.ne.s32.totalorder %s84, %s98
      %p100 = scmp.eq.s32.totalorder %s20, 0
      %p101 = por %p99, %p100
      %s102 = ssub.s32 %s22, %s29
      %p103 = scmp.eq.s32.totalorder %s102, 0
      %s105 = sadd.s32 %s104, 1
      %s106 = scalar_select %p103, %s104, %s105
      %p109 = pneg %p103
      %p110 = scmp.eq.s32.totalorder %s14, 3
      %p111 = por %p109, %p110
      %p112 = scmp.ne.s32.totalorder %s104, %s107
      %p113 = scmp.eq.s32.totalorder %s14, 0
      %p114 = por %p112, %p113
      %p115 = scmp.ne.s32.totalorder %s104, %s107
      %p116 = scmp.eq.s32.totalorder %s19, 3
      %p117 = por %p115, %p116
      %p118 = scmp.ne.s32.totalorder %s107, %s108
      %p119 = scmp.eq.s32.totalorder %s19, 0
      %p120 = por %p118, %p119
      %p121 = scmp.ne.s32.totalorder %s107, %s108
      %p122 = scmp.eq.s32.totalorder %s20, 3
      %p123 = por %p121, %p122
      %p125 = scmp.ne.s32.totalorder %s108, %s124
      %p126 = scmp.eq.s32.totalorder %s20, 0
      %p127 = por %p125, %p126
      %s128 = ssub.s32 %s22, %s29
      %p129 = scmp.eq.s32.totalorder %s128, 0
      %s131 = sadd.s32 %s130, 1
      %s132 = scalar_select %p129, %s130, %s131
      %p135 = pneg %p129
      %p136 = scmp.eq.s32.totalorder %s14, 3
      %p137 = por %p135, %p136
      %p138 = scmp.ne.s32.totalorder %s130, %s133
      %p139 = scmp.eq.s32.totalorder %s14, 0
      %p140 = por %p138, %p139
      %p141 = scmp.ne.s32.totalorder %s130, %s133
      %p142 = scmp.eq.s32.totalorder %s19, 3
      %p143 = por %p141, %p142
      %p144 = scmp.ne.s32.totalorder %s133, %s134
      %p145 = scmp.eq.s32.totalorder %s19, 0
      %p146 = por %p144, %p145
      %p147 = scmp.ne.s32.totalorder %s133, %s134
      %p148 = scmp.eq.s32.totalorder %s20, 3
      %p149 = por %p147, %p148
      %p151 = scmp.ne.s32.totalorder %s134, %s150
      %p152 = scmp.eq.s32.totalorder %s20, 0
      %p153 = por %p151, %p152
      %s154 = ssub.s32 %s21, %s33
      %s155 = ssub.s32 %s22, %s29
      %s156 = sor.u32 %s154, %s155
      %p157 = scmp.eq.s32.totalorder %s156, 0
      %s159 = sadd.s32 %s158, 1
      %s160 = scalar_select %p157, %s158, %s159
      %p163 = pneg %p157
      %p164 = scmp.eq.s32.totalorder %s14, 3
      %p165 = por %p163, %p164
      %p166 = scmp.ne.s32.totalorder %s158, %s161
      %p167 = scmp.eq.s32.totalorder %s14, 0
      %p168 = por %p166, %p167
      %p169 = scmp.ne.s32.totalorder %s158, %s161
      %p170 = scmp.eq.s32.totalorder %s19, 3
      %p171 = por %p169, %p170
      %p172 = scmp.ne.s32.totalorder %s161, %s162
      %p173 = scmp.eq.s32.totalorder %s19, 0
      %p174 = por %p172, %p173
      %p175 = scmp.ne.s32.totalorder %s161, %s162
      %p176 = scmp.eq.s32.totalorder %s20, 3
      %p177 = por %p175, %p176
      %p179 = scmp.ne.s32.totalorder %s162, %s178
      %p180 = scmp.eq.s32.totalorder %s20, 0
      %p181 = por %p179, %p180
      %p182 = scmp.le.s32.totalorder 1, %s14
      %p183 = scmp.lt.s32.totalorder %s14, 5
      %p184 = pnand %p182, %p183
      %p185 = pneg %p184
      // Predicated region
      $region9: #{gpt_forward.3} parent=5 // pred_check
        _
      $region10: #{gpt_forward.3} parent=5 // pred_check_branch
        %187 = sbr.rel (%p184) target = $region12
      $region11: #{gpt_forward.3} parent=5 // pred_region
        %s188 = ssub.s32 %s14, 1
        // Predicated region
        $region13: #{gpt_forward.3} parent=11 // pred_check
          %p189 = pneg %p73
        $region14: #{gpt_forward.3} parent=11 // pred_check_branch
          %191 = sbr.rel (%p189) target = $region16
        $region15: #{gpt_forward.3} parent=11 // pred_region
          _
        $region16: #{gpt_forward.3} parent=11 // pred_fallthru
          _
        // Predicated region
        $region17: #{gpt_forward.3} parent=11 // pred_check
          %p192 = pneg %p94
        $region18: #{gpt_forward.3} parent=11 // pred_check_branch
          %194 = sbr.rel (%p192) target = $region20
        $region19: #{gpt_forward.3} parent=11 // pred_region
          _
        $region20: #{gpt_forward.3} parent=11 // pred_fallthru
          _
      $region12: #{gpt_forward.3} parent=5 // pred_fallthru
        _
      %p195 = scmp.lt.s32.totalorder %s14, 4
      // Predicated region
      $region21: #{gpt_forward.3} parent=5 // pred_check
        %p196 = pneg %p195
      $region22: #{gpt_forward.3} parent=5 // pred_check_branch
        %198 = sbr.rel (%p196) target = $region24
      $region23: #{gpt_forward.3} parent=5 // pred_region
        // Predicated region
        $region25: #{gpt_forward.3} parent=23 // pred_check
          %p199 = pneg %p46
        $region26: #{gpt_forward.3} parent=23 // pred_check_branch
          %201 = sbr.rel (%p199) target = $region28
        $region27: #{gpt_forward.3} parent=23 // pred_region
          %p202 = scmp.lt.s32.totalorder %s21, 1
          %s203 = scalar_select %p202, %s21, 1
          %s204 = smul.addr %s203, 16
          %s205 = smul.addr %s204, 8
          %s206 = scalar_lea.vmem %s0, %s205
        $region28: #{gpt_forward.3} parent=23 // pred_fallthru
          _
        // Predicated region
        $region29: #{gpt_forward.3} parent=23 // pred_check
          %p207 = pneg %p114
        $region30: #{gpt_forward.3} parent=23 // pred_check_branch
          %209 = sbr.rel (%p207) target = $region32
        $region31: #{gpt_forward.3} parent=23 // pred_region
          %s210 = sand.u32 %s104, 1
          %s211 = sand.u32 %s104, 1
          %s212 = smul.addr %s211, 256
          %s213 = scalar_lea.vmem [#allocation2], %s212
          %s214 = smul.u32 2, %s22
          %s215 = smul.addr %s214, 4
          %s216 = scalar_lea.vmem %s3, %s215
          // Predicated region
          $region33: #{gpt_forward.3} parent=31 // pred_check
            _
          $region34: #{gpt_forward.3} parent=31 // pred_check_branch
            %218 = sbr.rel (0) target = $region36
          $region35: #{gpt_forward.3} parent=31 // pred_region
            // Predicated region
            $region37: #{gpt_forward.3} parent=35 // pred_check
              _
            $region38: #{gpt_forward.3} parent=35 // pred_check_branch
              %220 = sbr.rel (0) target = $region40
            $region39: #{gpt_forward.3} parent=35 // pred_region
              // Predicated region
              $region52: #{gpt_forward.3} parent=39 // pred_check
                _
              $region53: #{gpt_forward.3} parent=39 // pred_check_branch
                %298 = sbr.rel (0) target = $region55
              $region54: #{gpt_forward.3} parent=39 // pred_region
                loop: start=0, step=1, limit=1
                $region56: #{gpt_forward.3} parent=54 // loop_pre_header
                  _
                $region57: #{gpt_forward.3} parent=54 // loop_header
                  %s300 = sphi 0, %s304
                  %p301 = scmp.ge.s32.totalorder %s300, 1
                  %s305 = sphi %s216, %s216
                  %s306 = sphi %s213, %s213
                $region58: #{gpt_forward.3} parent=54 // loop_header_branch
                  %303 = sbr.rel (%p301) target = $region62
                $region59: #{gpt_forward.3} parent=54 // loop_body
                  %v307 = vld [vmem:[%s305] sm:$0xff]
                  %308 = vst [vmem:[%s306] sm:$0xff] %v307
                  %v309 = vld [vmem:[%s305 + $0x10] sm:$0xff]
                  %310 = vst [vmem:[%s306 + $0x8] sm:$0xff] %v309
                  %v311 = vld [vmem:[%s305 + $0x20] sm:$0xff]
                  %312 = vst [vmem:[%s306 + $0x10] sm:$0xff] %v311
                  %v313 = vld [vmem:[%s305 + $0x30] sm:$0xff]
                  %314 = vst [vmem:[%s306 + $0x18] sm:$0xff] %v313
                  %v315 = vld [vmem:[%s305 + $0x40] sm:$0xff]
                  %316 = vst [vmem:[%s306 + $0x20] sm:$0xff] %v315
                  %v317 = vld [vmem:[%s305 + $0x50] sm:$0xff]
                  %318 = vst [vmem:[%s306 + $0x28] sm:$0xff] %v317
                  %v319 = vld [vmem:[%s305 + $0x60] sm:$0xff]
                  %320 = vst [vmem:[%s306 + $0x30] sm:$0xff] %v319
                  %v321 = vld [vmem:[%s305 + $0x70] sm:$0xff]
                  %322 = vst [vmem:[%s306 + $0x38] sm:$0xff] %v321
                  %v323 = vld [vmem:[%s305 + $0x80] sm:$0xff]
                  %324 = vst [vmem:[%s306 + $0x40] sm:$0xff] %v323
                  %v325 = vld [vmem:[%s305 + $0x90] sm:$0xff]
                  %326 = vst [vmem:[%s306 + $0x48] sm:$0xff] %v325
                  %v327 = vld [vmem:[%s305 + $0xa0] sm:$0xff]
                  %328 = vst [vmem:[%s306 + $0x50] sm:$0xff] %v327
                  %v329 = vld [vmem:[%s305 + $0xb0] sm:$0xff]
                  %330 = vst [vmem:[%s306 + $0x58] sm:$0xff] %v329
                  %v331 = vld [vmem:[%s305 + $0xc0] sm:$0xff]
                  %332 = vst [vmem:[%s306 + $0x60] sm:$0xff] %v331
                  %v333 = vld [vmem:[%s305 + $0xd0] sm:$0xff]
                  %334 = vst [vmem:[%s306 + $0x68] sm:$0xff] %v333
                  %v335 = vld [vmem:[%s305 + $0xe0] sm:$0xff]
                  %336 = vst [vmem:[%s306 + $0x70] sm:$0xff] %v335
                  %v337 = vld [vmem:[%s305 + $0xf0] sm:$0xff]
                  %338 = vst [vmem:[%s306 + $0x78] sm:$0xff] %v337
                  %v339 = vld [vmem:[%s305 + $0x100] sm:$0xff]
                  %340 = vst [vmem:[%s306 + $0x80] sm:$0xff] %v339
                  %v341 = vld [vmem:[%s305 + $0x110] sm:$0xff]
                  %342 = vst [vmem:[%s306 + $0x88] sm:$0xff] %v341
                  %v343 = vld [vmem:[%s305 + $0x120] sm:$0xff]
                  %344 = vst [vmem:[%s306 + $0x90] sm:$0xff] %v343
                  %v345 = vld [vmem:[%s305 + $0x130] sm:$0xff]
                  %346 = vst [vmem:[%s306 + $0x98] sm:$0xff] %v345
                  %v347 = vld [vmem:[%s305 + $0x140] sm:$0xff]
                  %348 = vst [vmem:[%s306 + $0xa0] sm:$0xff] %v347
                  %v349 = vld [vmem:[%s305 + $0x150] sm:$0xff]
                  %350 = vst [vmem:[%s306 + $0xa8] sm:$0xff] %v349
                  %v351 = vld [vmem:[%s305 + $0x160] sm:$0xff]
                  %352 = vst [vmem:[%s306 + $0xb0] sm:$0xff] %v351
                  %v353 = vld [vmem:[%s305 + $0x170] sm:$0xff]
                  %354 = vst [vmem:[%s306 + $0xb8] sm:$0xff] %v353
                  %v355 = vld [vmem:[%s305 + $0x180] sm:$0xff]
                  %356 = vst [vmem:[%s306 + $0xc0] sm:$0xff] %v355
                  %v357 = vld [vmem:[%s305 + $0x190] sm:$0xff]
                  %358 = vst [vmem:[%s306 + $0xc8] sm:$0xff] %v357
                  %v359 = vld [vmem:[%s305 + $0x1a0] sm:$0xff]
                  %360 = vst [vmem:[%s306 + $0xd0] sm:$0xff] %v359
                  %v361 = vld [vmem:[%s305 + $0x1b0] sm:$0xff]
                  %362 = vst [vmem:[%s306 + $0xd8] sm:$0xff] %v361
                  %v363 = vld [vmem:[%s305 + $0x1c0] sm:$0xff]
                  %364 = vst [vmem:[%s306 + $0xe0] sm:$0xff] %v363
                  %v365 = vld [vmem:[%s305 + $0x1d0] sm:$0xff]
                  %366 = vst [vmem:[%s306 + $0xe8] sm:$0xff] %v365
                  %v367 = vld [vmem:[%s305 + $0x1e0] sm:$0xff]
                  %368 = vst [vmem:[%s306 + $0xf0] sm:$0xff] %v367
                  %v369 = vld [vmem:[%s305 + $0x1f0] sm:$0xff]
                  %370 = vst [vmem:[%s306 + $0xf8] sm:$0xff] %v369
                $region60: #{gpt_forward.3} parent=54 // loop_footer
                  %s304 = sadd.s32 1, %s300
                $region61: #{gpt_forward.3} parent=54 // loop_footer_branch
                  %299 = sbr.rel target = $region57
                $region62: #{gpt_forward.3} parent=54 // loop_exit
                  _
              $region55: #{gpt_forward.3} parent=39 // pred_fallthru
                _
              // Predicated region
              $region63: #{gpt_forward.3} parent=39 // pred_check
                _
              $region64: #{gpt_forward.3} parent=39 // pred_check_branch
                %372 = sbr.rel target = $region66
              $region65: #{gpt_forward.3} parent=39 // pred_region
                _
              $region66: #{gpt_forward.3} parent=39 // pred_fallthru
                _
            $region40: #{gpt_forward.3} parent=35 // pred_fallthru
              _
            // Predicated region
            $region41: #{gpt_forward.3} parent=35 // pred_check
              _
            $region42: #{gpt_forward.3} parent=35 // pred_check_branch
              %222 = sbr.rel target = $region44
            $region43: #{gpt_forward.3} parent=35 // pred_region
              %s224 = ssub.s32 256, 1
              loop: start=0, step=1, limit=1
              $region45: #{gpt_forward.3} parent=43 // loop_pre_header
                _
              $region46: #{gpt_forward.3} parent=43 // loop_header
                %s226 = sphi 0, %s230
                %p227 = scmp.ge.s32.totalorder %s226, 1
                %s231 = sphi %s216, %s216
                %s232 = sphi %s213, %s213
              $region47: #{gpt_forward.3} parent=43 // loop_header_branch
                %229 = sbr.rel (%p227) target = $region51
              $region48: #{gpt_forward.3} parent=43 // loop_body
                %v233 = vld [vmem:[%s231] sm:%s224]
                %234 = vst [vmem:[%s232] sm:%s224] %v233
                %v235 = vld [vmem:[%s231 + $0x10] sm:%s224]
                %236 = vst [vmem:[%s232 + $0x8] sm:%s224] %v235
                %v237 = vld [vmem:[%s231 + $0x20] sm:%s224]
                %238 = vst [vmem:[%s232 + $0x10] sm:%s224] %v237
                %v239 = vld [vmem:[%s231 + $0x30] sm:%s224]
                %240 = vst [vmem:[%s232 + $0x18] sm:%s224] %v239
                %v241 = vld [vmem:[%s231 + $0x40] sm:%s224]
                %242 = vst [vmem:[%s232 + $0x20] sm:%s224] %v241
                %v243 = vld [vmem:[%s231 + $0x50] sm:%s224]
                %244 = vst [vmem:[%s232 + $0x28] sm:%s224] %v243
                %v245 = vld [vmem:[%s231 + $0x60] sm:%s224]
                %246 = vst [vmem:[%s232 + $0x30] sm:%s224] %v245
                %v247 = vld [vmem:[%s231 + $0x70] sm:%s224]
                %248 = vst [vmem:[%s232 + $0x38] sm:%s224] %v247
                %v249 = vld [vmem:[%s231 + $0x80] sm:%s224]
                %250 = vst [vmem:[%s232 + $0x40] sm:%s224] %v249
                %v251 = vld [vmem:[%s231 + $0x90] sm:%s224]
                %252 = vst [vmem:[%s232 + $0x48] sm:%s224] %v251
                %v253 = vld [vmem:[%s231 + $0xa0] sm:%s224]
                %254 = vst [vmem:[%s232 + $0x50] sm:%s224] %v253
                %v255 = vld [vmem:[%s231 + $0xb0] sm:%s224]
                %256 = vst [vmem:[%s232 + $0x58] sm:%s224] %v255
                %v257 = vld [vmem:[%s231 + $0xc0] sm:%s224]
                %258 = vst [vmem:[%s232 + $0x60] sm:%s224] %v257
                %v259 = vld [vmem:[%s231 + $0xd0] sm:%s224]
                %260 = vst [vmem:[%s232 + $0x68] sm:%s224] %v259
                %v261 = vld [vmem:[%s231 + $0xe0] sm:%s224]
                %262 = vst [vmem:[%s232 + $0x70] sm:%s224] %v261
                %v263 = vld [vmem:[%s231 + $0xf0] sm:%s224]
                %264 = vst [vmem:[%s232 + $0x78] sm:%s224] %v263
                %v265 = vld [vmem:[%s231 + $0x100] sm:%s224]
                %266 = vst [vmem:[%s232 + $0x80] sm:%s224] %v265
                %v267 = vld [vmem:[%s231 + $0x110] sm:%s224]
                %268 = vst [vmem:[%s232 + $0x88] sm:%s224] %v267
                %v269 = vld [vmem:[%s231 + $0x120] sm:%s224]
                %270 = vst [vmem:[%s232 + $0x90] sm:%s224] %v269
                %v271 = vld [vmem:[%s231 + $0x130] sm:%s224]
                %272 = vst [vmem:[%s232 + $0x98] sm:%s224] %v271
                %v273 = vld [vmem:[%s231 + $0x140] sm:%s224]
                %274 = vst [vmem:[%s232 + $0xa0] sm:%s224] %v273
                %v275 = vld [vmem:[%s231 + $0x150] sm:%s224]
                %276 = vst [vmem:[%s232 + $0xa8] sm:%s224] %v275
                %v277 = vld [vmem:[%s231 + $0x160] sm:%s224]
                %278 = vst [vmem:[%s232 + $0xb0] sm:%s224] %v277
                %v279 = vld [vmem:[%s231 + $0x170] sm:%s224]
                %280 = vst [vmem:[%s232 + $0xb8] sm:%s224] %v279
                %v281 = vld [vmem:[%s231 + $0x180] sm:%s224]
                %282 = vst [vmem:[%s232 + $0xc0] sm:%s224] %v281
                %v283 = vld [vmem:[%s231 + $0x190] sm:%s224]
                %284 = vst [vmem:[%s232 + $0xc8] sm:%s224] %v283
                %v285 = vld [vmem:[%s231 + $0x1a0] sm:%s224]
                %286 = vst [vmem:[%s232 + $0xd0] sm:%s224] %v285
                %v287 = vld [vmem:[%s231 + $0x1b0] sm:%s224]
                %288 = vst [vmem:[%s232 + $0xd8] sm:%s224] %v287
                %v289 = vld [vmem:[%s231 + $0x1c0] sm:%s224]
                %290 = vst [vmem:[%s232 + $0xe0] sm:%s224] %v289
                %v291 = vld [vmem:[%s231 + $0x1d0] sm:%s224]
                %292 = vst [vmem:[%s232 + $0xe8] sm:%s224] %v291
                %v293 = vld [vmem:[%s231 + $0x1e0] sm:%s224]
                %294 = vst [vmem:[%s232 + $0xf0] sm:%s224] %v293
                %v295 = vld [vmem:[%s231 + $0x1f0] sm:%s224]
                %296 = vst [vmem:[%s232 + $0xf8] sm:%s224] %v295
              $region49: #{gpt_forward.3} parent=43 // loop_footer
                %s230 = sadd.s32 1, %s226
              $region50: #{gpt_forward.3} parent=43 // loop_footer_branch
                %225 = sbr.rel target = $region46
              $region51: #{gpt_forward.3} parent=43 // loop_exit
                _
            $region44: #{gpt_forward.3} parent=35 // pred_fallthru
              _
          $region36: #{gpt_forward.3} parent=31 // pred_fallthru
            _
          %373 = vnop
        $region32: #{gpt_forward.3} parent=23 // pred_fallthru
          _
        // Predicated region
        $region67: #{gpt_forward.3} parent=23 // pred_check
          %p374 = pneg %p140
        $region68: #{gpt_forward.3} parent=23 // pred_check_branch
          %376 = sbr.rel (%p374) target = $region70
        $region69: #{gpt_forward.3} parent=23 // pred_region
          %s377 = smul.u32 2, %s22
          %p378 = scmp.lt.s32.totalorder %s377, 3
          %s379 = scalar_select %p378, %s377, 3
          %s380 = scalar_lea.vmem %s4, %s379
          %s381 = smul.u32 2, %s22
        $region70: #{gpt_forward.3} parent=23 // pred_fallthru
          _
      $region24: #{gpt_forward.3} parent=5 // pred_fallthru
        _
      %p382 = scmp.le.s32.totalorder 1, %s14
      %p383 = scmp.lt.s32.totalorder %s14, 5
      %p384 = pnand %p382, %p383
      %p385 = pneg %p384
      // Predicated region
      $region71: #{gpt_forward.3} parent=5 // pred_check
        _
      $region72: #{gpt_forward.3} parent=5 // pred_check_branch
        %387 = sbr.rel (%p384) target = $region74
      $region73: #{gpt_forward.3} parent=5 // pred_region
        %s388 = ssub.s32 %s14, 1
        %s389 = sand.u32 %s107, 1
        %s390 = sand.u32 %s107, 1
        %s391 = smul.addr %s390, 256
        %s392 = scalar_lea.vmem [#allocation2], %s391
        // Predicated region
        $region75: #{gpt_forward.3} parent=73 // pred_check
          %p393 = pneg %p120
        $region76: #{gpt_forward.3} parent=73 // pred_check_branch
          %395 = sbr.rel (%p393) target = $region78
        $region77: #{gpt_forward.3} parent=73 // pred_region
          _
        $region78: #{gpt_forward.3} parent=73 // pred_fallthru
          _
        %p396 = scmp.lt.s32.totalorder %s23, 1
        %s397 = scalar_select %p396, %s23, 1
        %s398 = smul.addr %s397, 16
        %s399 = smul.addr %s398, 8
        %s400 = scalar_lea.vmem %s0, %s399
        %p401 = pneg %p52
        %p402 = pneg %p49
        %p403 = pneg %p73
        %p404 = pneg %p70
        %p405 = pneg %p94
        %p406 = pneg %p91
        %s407 = sand.u32 %s107, 1
        %s408 = sand.u32 %s107, 1
        %s409 = smul.addr %s408, 256
        %s410 = scalar_lea.vmem [#allocation2], %s409
        %p411 = pneg %p120
        %p412 = pneg %p117
        %s413 = smul.u32 2, %s24
        %p414 = scmp.lt.s32.totalorder %s413, 3
        %s415 = scalar_select %p414, %s413, 3
        %s416 = scalar_lea.vmem %s4, %s415
        %p417 = pneg %p146
        %p418 = pneg %p143
        %p419 = pneg %p174
        %p420 = pneg %p171
        %s421 = sand.u32 %s161, 1
        %s422 = scalar_lea.sflag [#allocation4], %s421
        %s423 = sand.u32 %s161, 1
        %s424 = smul.addr %s423, 128
        %s425 = scalar_lea.vmem [#allocation3], %s424
        %p426 = scmp.lt.s32.totalorder %s23, 1
        %s427 = scalar_select %p426, %s23, 1
        %s428 = smul.addr %s427, 16
        %s429 = smul.addr %s428, 8
        %s430 = scalar_lea.vmem %s0, %s429
        %s431 = smul.u32 2, %s24
        %s432 = smul.u32 2, %s24
        %p433 = scmp.lt.s32.totalorder %s432, 3
        %s434 = scalar_select %p433, %s432, 3
        %s435 = scalar_lea.vmem %s4, %s434
        %s436 = smul.u32 2, %s24
        %s437 = smul.u32 2, %s24
        %v438 = vld [vmem:[%s430] sm:$0xff]
        %v439 = vld [vmem:[%s430 + $0x8] sm:$0xff]
        %v440 = vld [vmem:[%s430 + $0x10] sm:$0xff]
        %v441 = vld [vmem:[%s430 + $0x18] sm:$0xff]
        %v442 = vld [vmem:[%s430 + $0x20] sm:$0xff]
        %v443 = vld [vmem:[%s430 + $0x28] sm:$0xff]
        %v444 = vld [vmem:[%s430 + $0x30] sm:$0xff]
        %v445 = vld [vmem:[%s430 + $0x38] sm:$0xff]
        %v446 = vld [vmem:[%s430 + $0x40] sm:$0xff]
        %v447 = vld [vmem:[%s430 + $0x48] sm:$0xff]
        %v448 = vld [vmem:[%s430 + $0x50] sm:$0xff]
        %v449 = vld [vmem:[%s430 + $0x58] sm:$0xff]
        %v450 = vld [vmem:[%s430 + $0x60] sm:$0xff]
        %v451 = vld [vmem:[%s430 + $0x68] sm:$0xff]
        %v452 = vld [vmem:[%s430 + $0x70] sm:$0xff]
        %v453 = vld [vmem:[%s430 + $0x78] sm:$0xff]
        %v454 = vld [vmem:[%s1] sm:$0x3]
        %v455 = vld [vmem:[%s2] sm:$0x3]
        %v456 = vadd.f32 %v438, %v439
        %457 = vadd.xlane.f32.xlu0 %v456
        %v458 = vpop.xlane.xlu0 %457
        %v459 = vadd.f32 %v440, %v441
        %460 = vadd.xlane.f32.xlu0 %v459
        %v461 = vpop.xlane.xlu0 %460
        %v462 = vadd.f32 %v442, %v443
        %463 = vadd.xlane.f32.xlu0 %v462
        %v464 = vpop.xlane.xlu0 %463
        %v465 = vadd.f32 %v444, %v445
        %466 = vadd.xlane.f32.xlu0 %v465
        %v467 = vpop.xlane.xlu0 %466
        %v468 = vadd.f32 %v446, %v447
        %469 = vadd.xlane.f32.xlu0 %v468
        %v470 = vpop.xlane.xlu0 %469
        %v471 = vadd.f32 %v448, %v449
        %472 = vadd.xlane.f32.xlu0 %v471
        %v473 = vpop.xlane.xlu0 %472
        %v474 = vadd.f32 %v450, %v451
        %475 = vadd.xlane.f32.xlu0 %v474
        %v476 = vpop.xlane.xlu0 %475
        %v477 = vadd.f32 %v452, %v453
        %478 = vadd.xlane.f32.xlu0 %v477
        %v479 = vpop.xlane.xlu0 %478
        %v480 = vrcp.pop 256.0
        %v481 = vmul.f32 %v458, %v480
        %v482 = vmul.f32 %v461, %v480
        %v483 = vmul.f32 %v464, %v480
        %v484 = vmul.f32 %v467, %v480
        %v485 = vmul.f32 %v470, %v480
        %v486 = vmul.f32 %v473, %v480
        %v487 = vmul.f32 %v476, %v480
        %v488 = vmul.f32 %v479, %v480
        %v489 = vsub.f32 %v438, %v481
        %v490 = vsub.f32 %v439, %v481
        %v491 = vsub.f32 %v440, %v482
        %v492 = vsub.f32 %v441, %v482
        %v493 = vsub.f32 %v442, %v483
        %v494 = vsub.f32 %v443, %v483
        %v495 = vsub.f32 %v444, %v484
        %v496 = vsub.f32 %v445, %v484
        %v497 = vsub.f32 %v446, %v485
        %v498 = vsub.f32 %v447, %v485
        %v499 = vsub.f32 %v448, %v486
        %v500 = vsub.f32 %v449, %v486
        %v501 = vsub.f32 %v450, %v487
        %v502 = vsub.f32 %v451, %v487
        %v503 = vsub.f32 %v452, %v488
        %v504 = vsub.f32 %v453, %v488
        %v505 = vmul.f32 %v489, %v489
        %v506 = vmul.f32 %v490, %v490
        %v507 = vmul.f32 %v491, %v491
        %v508 = vmul.f32 %v492, %v492
        %v509 = vmul.f32 %v493, %v493
        %v510 = vmul.f32 %v494, %v494
        %v511 = vmul.f32 %v495, %v495
        %v512 = vmul.f32 %v496, %v496
        %v513 = vmul.f32 %v497, %v497
        %v514 = vmul.f32 %v498, %v498
        %v515 = vmul.f32 %v499, %v499
        %v516 = vmul.f32 %v500, %v500
        %v517 = vmul.f32 %v501, %v501
        %v518 = vmul.f32 %v502, %v502
        %v519 = vmul.f32 %v503, %v503
        %v520 = vmul.f32 %v504, %v504
        %v521 = vadd.f32 %v505, %v506
        %522 = vadd.xlane.f32.xlu0 %v521
        %v523 = vpop.xlane.xlu0 %522
        %v524 = vadd.f32 %v507, %v508
        %525 = vadd.xlane.f32.xlu0 %v524
        %v526 = vpop.xlane.xlu0 %525
        %v527 = vadd.f32 %v509, %v510
        %528 = vadd.xlane.f32.xlu0 %v527
        %v529 = vpop.xlane.xlu0 %528
        %v530 = vadd.f32 %v511, %v512
        %531 = vadd.xlane.f32.xlu0 %v530
        %v532 = vpop.xlane.xlu0 %531
        %v533 = vadd.f32 %v513, %v514
        %534 = vadd.xlane.f32.xlu0 %v533
        %v535 = vpop.xlane.xlu0 %534
        %v536 = vadd.f32 %v515, %v516
        %537 = vadd.xlane.f32.xlu0 %v536
        %v538 = vpop.xlane.xlu0 %537
        %v539 = vadd.f32 %v517, %v518
        %540 = vadd.xlane.f32.xlu0 %v539
        %v541 = vpop.xlane.xlu0 %540
        %v542 = vadd.f32 %v519, %v520
        %543 = vadd.xlane.f32.xlu0 %v542
        %v544 = vpop.xlane.xlu0 %543
        %v545 = vmul.f32 %v523, %v480
        %v546 = vmul.f32 %v526, %v480
        %v547 = vmul.f32 %v529, %v480
        %v548 = vmul.f32 %v532, %v480
        %v549 = vmul.f32 %v535, %v480
        %v550 = vmul.f32 %v538, %v480
        %v551 = vmul.f32 %v541, %v480
        %v552 = vmul.f32 %v544, %v480
        %v553 = vadd.f32 %v545, 1e-05
        %v554 = vadd.f32 %v546, 1e-05
        %v555 = vadd.f32 %v547, 1e-05
        %v556 = vadd.f32 %v548, 1e-05
        %v557 = vadd.f32 %v549, 1e-05
        %v558 = vadd.f32 %v550, 1e-05
        %v559 = vadd.f32 %v551, 1e-05
        %v560 = vadd.f32 %v552, 1e-05
        %v561 = vrsqrt.pop %v553
        %v562 = vrsqrt.pop %v554
        %v563 = vrsqrt.pop %v555
        %v564 = vrsqrt.pop %v556
        %v565 = vrsqrt.pop %v557
        %v566 = vrsqrt.pop %v558
        %v567 = vrsqrt.pop %v559
        %v568 = vrsqrt.pop %v560
        %v569 = vmul.f32 %v489, %v561
        %v570 = vmul.f32 %v490, %v561
        %v571 = vmul.f32 %v491, %v562
        %v572 = vmul.f32 %v492, %v562
        %v573 = vmul.f32 %v493, %v563
        %v574 = vmul.f32 %v494, %v563
        %v575 = vmul.f32 %v495, %v564
        %v576 = vmul.f32 %v496, %v564
        %v577 = vmul.f32 %v497, %v565
        %v578 = vmul.f32 %v498, %v565
        %v579 = vmul.f32 %v499, %v566
        %v580 = vmul.f32 %v500, %v566
        %v581 = vmul.f32 %v501, %v567
        %v582 = vmul.f32 %v502, %v567
        %v583 = vmul.f32 %v503, %v568
        %v584 = vmul.f32 %v504, %v568
        %v586 = vlaneseq
        %v587 = vshrl.u32 %v586, 7
        %v588 = vsub.s32 0, %v587
        %v589 = vrot.slane %v454, %v588
        %v590 = vlaneseq
        %v591 = vshrl.u32 %v590, 7
        %v592 = vsub.s32 1, %v591
        %v593 = vrot.slane %v454, %v592
        %v596 = vmul.f32 %v569, %v589
        %v597 = vmul.f32 %v570, %v593
        %v598 = vmul.f32 %v571, %v589
        %v599 = vmul.f32 %v572, %v593
        %v600 = vmul.f32 %v573, %v589
        %v601 = vmul.f32 %v574, %v593
        %v602 = vmul.f32 %v575, %v589
        %v603 = vmul.f32 %v576, %v593
        %v604 = vmul.f32 %v577, %v589
        %v605 = vmul.f32 %v578, %v593
        %v606 = vmul.f32 %v579, %v589
        %v607 = vmul.f32 %v580, %v593
        %v608 = vmul.f32 %v581, %v589
        %v609 = vmul.f32 %v582, %v593
        %v610 = vmul.f32 %v583, %v589
        %v611 = vmul.f32 %v584, %v593
        %v613 = vlaneseq
        %v614 = vshrl.u32 %v613, 7
        %v615 = vsub.s32 0, %v614
        %v616 = vrot.slane %v455, %v615
        %v617 = vlaneseq
        %v618 = vshrl.u32 %v617, 7
        %v619 = vsub.s32 1, %v618
        %v620 = vrot.slane %v455, %v619
        %v623 = vadd.f32 %v596, %v616
        %v624 = vadd.f32 %v597, %v620
        %v625 = vadd.f32 %v598, %v616
        %v626 = vadd.f32 %v599, %v620
        %v627 = vadd.f32 %v600, %v616
        %v628 = vadd.f32 %v601, %v620
        %v629 = vadd.f32 %v602, %v616
        %v630 = vadd.f32 %v603, %v620
        %v631 = vadd.f32 %v604, %v616
        %v632 = vadd.f32 %v605, %v620
        %v633 = vadd.f32 %v606, %v616
        %v634 = vadd.f32 %v607, %v620
        %v635 = vadd.f32 %v608, %v616
        %v636 = vadd.f32 %v609, %v620
        %v637 = vadd.f32 %v610, %v616
        %v638 = vadd.f32 %v611, %v620
        %v639 = vpack.c.bf16 %v625, %v623
        %v640 = vpack.c.bf16 %v626, %v624
        %v641 = vpack.c.bf16 %v629, %v627
        %v642 = vpack.c.bf16 %v630, %v628
        %v643 = vpack.c.bf16 %v633, %v631
        %v644 = vpack.c.bf16 %v634, %v632
        %v645 = vpack.c.bf16 %v637, %v635
        %v646 = vpack.c.bf16 %v638, %v636
        %v647 = vld [vmem:[%s392] sm:$0xff]
        %v648 = vld [vmem:[%s392 + $0x8] sm:$0xff]
        %v649 = vld [vmem:[%s392 + $0x10] sm:$0xff]
        %v650 = vld [vmem:[%s392 + $0x18] sm:$0xff]
        %v651 = vld [vmem:[%s392 + $0x20] sm:$0xff]
        %v652 = vld [vmem:[%s392 + $0x28] sm:$0xff]
        %v653 = vld [vmem:[%s392 + $0x30] sm:$0xff]
        %v654 = vld [vmem:[%s392 + $0x38] sm:$0xff]
        %v655 = vld [vmem:[%s392 + $0x40] sm:$0xff]
        %v656 = vld [vmem:[%s392 + $0x48] sm:$0xff]
        %v657 = vld [vmem:[%s392 + $0x50] sm:$0xff]
        %v658 = vld [vmem:[%s392 + $0x58] sm:$0xff]
        %v659 = vld [vmem:[%s392 + $0x60] sm:$0xff]
        %v660 = vld [vmem:[%s392 + $0x68] sm:$0xff]
        %v661 = vld [vmem:[%s392 + $0x70] sm:$0xff]
        %v662 = vld [vmem:[%s392 + $0x78] sm:$0xff]
        %v663 = vld [vmem:[%s392 + $0x80] sm:$0xff]
        %v664 = vld [vmem:[%s392 + $0x88] sm:$0xff]
        %v665 = vld [vmem:[%s392 + $0x90] sm:$0xff]
        %v666 = vld [vmem:[%s392 + $0x98] sm:$0xff]
        %v667 = vld [vmem:[%s392 + $0xa0] sm:$0xff]
        %v668 = vld [vmem:[%s392 + $0xa8] sm:$0xff]
        %v669 = vld [vmem:[%s392 + $0xb0] sm:$0xff]
        %v670 = vld [vmem:[%s392 + $0xb8] sm:$0xff]
        %v671 = vld [vmem:[%s392 + $0xc0] sm:$0xff]
        %v672 = vld [vmem:[%s392 + $0xc8] sm:$0xff]
        %v673 = vld [vmem:[%s392 + $0xd0] sm:$0xff]
        %v674 = vld [vmem:[%s392 + $0xd8] sm:$0xff]
        %v675 = vld [vmem:[%s392 + $0xe0] sm:$0xff]
        %v676 = vld [vmem:[%s392 + $0xe8] sm:$0xff]
        %v677 = vld [vmem:[%s392 + $0xf0] sm:$0xff]
        %v678 = vld [vmem:[%s392 + $0xf8] sm:$0xff]
        %v679 = vld [vmem:[%s435] sm:$0x3]
        %v681 = vlaneseq
        %v682 = vshrl.u32 %v681, 7
        %v683 = vsub.s32 0, %v682
        %v684 = vrot.slane %v679, %v683
        %v685 = vlaneseq
        %v686 = vshrl.u32 %v685, 7
        %v687 = vsub.s32 1, %v686
        %v688 = vrot.slane %v679, %v687
        %v723 = vunpack.c.l.b16 %v647
        %v724 = vunpack.c.h.b16 %v647
        %v725 = vunpack.c.l.b16 %v648
        %v726 = vunpack.c.h.b16 %v648
        %v727 = vunpack.c.l.b16 %v649
        %v728 = vunpack.c.h.b16 %v649
        %v729 = vunpack.c.l.b16 %v650
        %v730 = vunpack.c.h.b16 %v650
        %v731 = vunpack.c.l.b16 %v651
        %v732 = vunpack.c.h.b16 %v651
        %v733 = vunpack.c.l.b16 %v652
        %v734 = vunpack.c.h.b16 %v652
        %v735 = vunpack.c.l.b16 %v653
        %v736 = vunpack.c.h.b16 %v653
        %v737 = vunpack.c.l.b16 %v654
        %v738 = vunpack.c.h.b16 %v654
        %v739 = vunpack.c.l.b16 %v655
        %v740 = vunpack.c.h.b16 %v655
        %v741 = vunpack.c.l.b16 %v656
        %v742 = vunpack.c.h.b16 %v656
        %v743 = vunpack.c.l.b16 %v657
        %v744 = vunpack.c.h.b16 %v657
        %v745 = vunpack.c.l.b16 %v658
        %v746 = vunpack.c.h.b16 %v658
        %v747 = vunpack.c.l.b16 %v659
        %v748 = vunpack.c.h.b16 %v659
        %v749 = vunpack.c.l.b16 %v660
        %v750 = vunpack.c.h.b16 %v660
        %v751 = vunpack.c.l.b16 %v661
        %v752 = vunpack.c.h.b16 %v661
        %v753 = vunpack.c.l.b16 %v662
        %v754 = vunpack.c.h.b16 %v662
        %v755 = vunpack.c.l.b16 %v663
        %v756 = vunpack.c.h.b16 %v663
        %v757 = vunpack.c.l.b16 %v664
        %v758 = vunpack.c.h.b16 %v664
        %v759 = vunpack.c.l.b16 %v665
        %v760 = vunpack.c.h.b16 %v665
        %v761 = vunpack.c.l.b16 %v666
        %v762 = vunpack.c.h.b16 %v666
        %v763 = vunpack.c.l.b16 %v667
        %v764 = vunpack.c.h.b16 %v667
        %v765 = vunpack.c.l.b16 %v668
        %v766 = vunpack.c.h.b16 %v668
        %v767 = vunpack.c.l.b16 %v669
        %v768 = vunpack.c.h.b16 %v669
        %v769 = vunpack.c.l.b16 %v670
        %v770 = vunpack.c.h.b16 %v670
        %v771 = vunpack.c.l.b16 %v671
        %v772 = vunpack.c.h.b16 %v671
        %v773 = vunpack.c.l.b16 %v672
        %v774 = vunpack.c.h.b16 %v672
        %v775 = vunpack.c.l.b16 %v673
        %v776 = vunpack.c.h.b16 %v673
        %v777 = vunpack.c.l.b16 %v674
        %v778 = vunpack.c.h.b16 %v674
        %v779 = vunpack.c.l.b16 %v675
        %v780 = vunpack.c.h.b16 %v675
        %v781 = vunpack.c.l.b16 %v676
        %v782 = vunpack.c.h.b16 %v676
        %v783 = vunpack.c.l.b16 %v677
        %v784 = vunpack.c.h.b16 %v677
        %v785 = vunpack.c.l.b16 %v678
        %v786 = vunpack.c.h.b16 %v678
        %v787 = vpack.c.b16 %v725, %v723
        %v788 = vpack.c.b16 %v726, %v724
        %v789 = vpack.c.b16 %v729, %v727
        %v790 = vpack.c.b16 %v730, %v728
        %v791 = vpack.c.b16 %v733, %v731
        %v792 = vpack.c.b16 %v734, %v732
        %v793 = vpack.c.b16 %v737, %v735
        %v794 = vpack.c.b16 %v738, %v736
        %v795 = vpack.c.b16 %v741, %v739
        %v796 = vpack.c.b16 %v742, %v740
        %v797 = vpack.c.b16 %v745, %v743
        %v798 = vpack.c.b16 %v746, %v744
        %v799 = vpack.c.b16 %v749, %v747
        %v800 = vpack.c.b16 %v750, %v748
        %v801 = vpack.c.b16 %v753, %v751
        %v802 = vpack.c.b16 %v754, %v752
        %v803 = vpack.c.b16 %v757, %v755
        %v804 = vpack.c.b16 %v758, %v756
        %v805 = vpack.c.b16 %v761, %v759
        %v806 = vpack.c.b16 %v762, %v760
        %v807 = vpack.c.b16 %v765, %v763
        %v808 = vpack.c.b16 %v766, %v764
        %v809 = vpack.c.b16 %v769, %v767
        %v810 = vpack.c.b16 %v770, %v768
        %v811 = vpack.c.b16 %v773, %v771
        %v812 = vpack.c.b16 %v774, %v772
        %v813 = vpack.c.b16 %v777, %v775
        %v814 = vpack.c.b16 %v778, %v776
        %v815 = vpack.c.b16 %v781, %v779
        %v816 = vpack.c.b16 %v782, %v780
        %v817 = vpack.c.b16 %v785, %v783
        %v818 = vpack.c.b16 %v786, %v784
        %851 = vmatprep.subr.bf16.mxu0 %v802
        %852 = vmatpush1.bf16.msra.mxu0 %v801
        %853 = vmatprep.subr.bf16.mxu0 %v800
        %854 = vmatpush1.bf16.msra.mxu0 %v799
        %855 = vmatprep.subr.bf16.mxu0 %v798
        %856 = vmatpush1.bf16.msra.mxu0 %v797
        %857 = vmatprep.subr.bf16.mxu0 %v796
        %858 = vmatpush1.bf16.msra.mxu0 %v795
        %859 = vmatprep.subr.bf16.mxu0 %v794
        %860 = vmatpush1.bf16.msra.mxu0 %v793
        %861 = vmatprep.subr.bf16.mxu0 %v792
        %862 = vmatpush1.bf16.msra.mxu0 %v791
        %863 = vmatprep.subr.bf16.mxu0 %v790
        %864 = vmatpush1.bf16.msra.mxu0 %v789
        %865 = vmatprep.subr.bf16.mxu0 %v788
        %866 = vmatpush1.bf16.msra.mxu0 %v787
        %867 = vmatprep.subr.bf16.mxu0 %v818
        %868 = vmatpush2.bf16.msra.mxu0 %v817
        %869 = vmatprep.subr.bf16.mxu0 %v816
        %870 = vmatpush2.bf16.msra.mxu0 %v815
        %871 = vmatprep.subr.bf16.mxu0 %v814
        %872 = vmatpush2.bf16.msra.mxu0 %v813
        %873 = vmatprep.subr.bf16.mxu0 %v812
        %874 = vmatpush2.bf16.msra.mxu0 %v811
        %875 = vmatprep.subr.bf16.mxu0 %v810
        %876 = vmatpush2.bf16.msra.mxu0 %v809
        %877 = vmatprep.subr.bf16.mxu0 %v808
        %878 = vmatpush2.bf16.msra.mxu0 %v807
        %879 = vmatprep.subr.bf16.mxu0 %v806
        %880 = vmatpush2.bf16.msra.mxu0 %v805
        %881 = vmatprep.subr.bf16.mxu0 %v804
        %882 = vmatpush2.bf16.msra.mxu0 %v803
        %883 = vmatprep.mubr.bf16.mxu0 %v640
        %884 = vmatmul.mubr.bf16.gmra.mxu0 %v639
        %v885 = vpop.f32.mrf.mxu0
        %v886 = vadd.f32 %v684, %v885
        %v887 = vpop.f32.mrf.mxu0
        %v888 = vadd.f32 %v688, %v887
        %v889 = vpop.f32.mrf.mxu0
        %v890 = vadd.f32 %v684, %v889
        %v891 = vpop.f32.mrf.mxu0
        %v892 = vadd.f32 %v688, %v891
        %893 = vmatprep.mubr.bf16.mxu0 %v642
        %894 = vmatmul.mubr.bf16.gmra.mxu0 %v641
        %v895 = vpop.f32.mrf.mxu0
        %v896 = vadd.f32 %v684, %v895
        %v897 = vpop.f32.mrf.mxu0
        %v898 = vadd.f32 %v688, %v897
        %v899 = vpop.f32.mrf.mxu0
        %v900 = vadd.f32 %v684, %v899
        %v901 = vpop.f32.mrf.mxu0
        %v902 = vadd.f32 %v688, %v901
        %903 = vmatprep.mubr.bf16.mxu0 %v644
        %904 = vmatmul.mubr.bf16.gmra.mxu0 %v643
        %v905 = vpop.f32.mrf.mxu0
        %v906 = vadd.f32 %v684, %v905
        %v907 = vpop.f32.mrf.mxu0
        %v908 = vadd.f32 %v688, %v907
        %v909 = vpop.f32.mrf.mxu0
        %v910 = vadd.f32 %v684, %v909
        %v911 = vpop.f32.mrf.mxu0
        %v912 = vadd.f32 %v688, %v911
        %913 = vmatprep.mubr.bf16.mxu0 %v646
        %914 = vmatmul.mubr.bf16.gmra.mxu0 %v645
        %v915 = vpop.f32.mrf.mxu0
        %v916 = vadd.f32 %v684, %v915
        %v917 = vpop.f32.mrf.mxu0
        %v918 = vadd.f32 %v688, %v917
        %v919 = vpop.f32.mrf.mxu0
        %v920 = vadd.f32 %v684, %v919
        %v921 = vpop.f32.mrf.mxu0
        %v922 = vadd.f32 %v688, %v921
        %923 = vdwg.mxu0
        %924 = vst [vmem:[%s425] sm:$0xff] %v886
        %925 = vst [vmem:[%s425 + $0x8] sm:$0xff] %v888
        %926 = vst [vmem:[%s425 + $0x10] sm:$0xff] %v890
        %927 = vst [vmem:[%s425 + $0x18] sm:$0xff] %v892
        %928 = vst [vmem:[%s425 + $0x20] sm:$0xff] %v896
        %929 = vst [vmem:[%s425 + $0x28] sm:$0xff] %v898
        %930 = vst [vmem:[%s425 + $0x30] sm:$0xff] %v900
        %931 = vst [vmem:[%s425 + $0x38] sm:$0xff] %v902
        %932 = vst [vmem:[%s425 + $0x40] sm:$0xff] %v906
        %933 = vst [vmem:[%s425 + $0x48] sm:$0xff] %v908
        %934 = vst [vmem:[%s425 + $0x50] sm:$0xff] %v910
        %935 = vst [vmem:[%s425 + $0x58] sm:$0xff] %v912
        %936 = vst [vmem:[%s425 + $0x60] sm:$0xff] %v916
        %937 = vst [vmem:[%s425 + $0x68] sm:$0xff] %v918
        %938 = vst [vmem:[%s425 + $0x70] sm:$0xff] %v920
        %939 = vst [vmem:[%s425 + $0x78] sm:$0xff] %v922
        %s940 = sand.u32 %s161, 1
        %s941 = scalar_lea.sflag [#allocation4], %s940
        %s942 = sand.u32 %s161, 1
        %s943 = smul.addr %s942, 128
        %s944 = scalar_lea.vmem [#allocation3], %s943
        // Predicated region
        $region79: #{gpt_forward.3} parent=73 // pred_check
          %p945 = pneg %p171
        $region80: #{gpt_forward.3} parent=73 // pred_check_branch
          %947 = sbr.rel (%p945) target = $region82
        $region81: #{gpt_forward.3} parent=73 // pred_region
          %s948 = smul.u32 2, %s24
          %s950 = ssub.s32 2048, 2048
          %951 = vsyncadd %s941, %s950
          %s952 = smul.addr %s23, 32
          %s953 = sadd.s32 %s948, %s952
          %s954 = smul.addr %s953, 128
          %s955 = scalar_lea.hbm %s5, %s954
          %s956 = sshll.u32 %s944, 4
          %s957 = int_to_ptr.vmem [resolvable:$true] %s956
          %962 = dma.vmem_to_hbm [thread:$0]  %s957, 2048, %s955, %s941, 256, 512, 16
        $region82: #{gpt_forward.3} parent=73 // pred_fallthru
          _
      $region74: #{gpt_forward.3} parent=5 // pred_fallthru
        _
      %p963 = scmp.le.s32.totalorder 2, %s14
      // Predicated region
      $region83: #{gpt_forward.3} parent=5 // pred_check
        %p964 = pneg %p963
      $region84: #{gpt_forward.3} parent=5 // pred_check_branch
        %966 = sbr.rel (%p964) target = $region86
      $region85: #{gpt_forward.3} parent=5 // pred_region
        %s967 = ssub.s32 %s14, 2
        // Predicated region
        $region87: #{gpt_forward.3} parent=85 // pred_check
          %p968 = pneg %p177
        $region88: #{gpt_forward.3} parent=85 // pred_check_branch
          %970 = sbr.rel (%p968) target = $region90
        $region89: #{gpt_forward.3} parent=85 // pred_region
          %s971 = sand.u32 %s162, 1
          %s972 = scalar_lea.sflag [#allocation4], %s971
          %s973 = sand.u32 %s162, 1
          %s974 = smul.addr %s973, 128
          %s975 = scalar_lea.vmem [#allocation3], %s974
          %976 = dma.done %s972, 2048
        $region90: #{gpt_forward.3} parent=85 // pred_fallthru
          _
      $region86: #{gpt_forward.3} parent=5 // pred_fallthru
        _
    $region6: #{gpt_forward.3} parent=1 // loop_footer
      %s18 = sadd.s32 1, %s14
    $region7: #{gpt_forward.3} parent=1 // loop_footer_branch
      %13 = sbr.rel target = $region3
    $region8: #{gpt_forward.3} parent=1 // loop_exit
      _
    %977 = vsyncpa [#allocation4], 1
    %s978 = scalar_lea.sflag [#allocation4], 1
    %979 = vsyncpa %s978, 1

// kernel: gpt_forward.2
$region0: #{gpt_forward.2}
  #allocation0 [shape = 'u32[]', space=smem, size = 0x4, offset = 0x4, fixed_abs, tag = 'smem constant byte address 0x4 - core index']
  #allocation1 [shape = 'u32[144,128]{1,0:T(1,128)}', space=vmem, size = 0x12000, scoped, tag = 'internal scratch']
  %s0 = inlined_call_operand.vmem [shape: f32[2,64,256], index: 0, kind: input, shape index: {}]
  %s1 = inlined_call_operand.vmem [shape: f32[64,64], index: 1, kind: input, shape index: {}]
  %s2 = inlined_call_operand.hbm [shape: f32[4,1,256], index: 2, kind: input, shape index: {}]
  %s3 = inlined_call_operand.hbm [shape: f32[4,1,256], index: 3, kind: input, shape index: {}]
  %s4 = inlined_call_operand.vmem [shape: bf16[4,256,768], index: 4, kind: input, shape index: {}]
  %s5 = inlined_call_operand.hbm [shape: bf16[4,4,64,256], index: 5, kind: input, shape index: {}]
  %s6 = inlined_call_operand.hbm [shape: f32[4,1,256], index: 6, kind: input, shape index: {}]
  %s7 = inlined_call_operand.hbm [shape: f32[4,1,256], index: 7, kind: input, shape index: {}]
  %s8 = inlined_call_operand.hbm [shape: f32[4,1,256], index: 8, kind: input, shape index: {}]
  %s9 = inlined_call_operand.hbm [shape: bf16[4,256,1024], index: 9, kind: input, shape index: {}]
  %s10 = inlined_call_operand.hbm [shape: f32[4,1,1024], index: 10, kind: input, shape index: {}]
  %s11 = inlined_call_operand.hbm [shape: bf16[4,1024,256], index: 11, kind: input, shape index: {}]
  %s12 = inlined_call_operand.hbm [shape: f32[4,1,256], index: 12, kind: input, shape index: {}]
  %s13 = inlined_call_operand.vmem [shape: f32[2,64,256], index: 13, kind: output, shape index: {}]
  %s14 = sld [smem:[#allocation0]]
  $region129: #{gpt_forward.2} parent=0
    _
  %s16 = ssub.s32 1, %s14
  %s17 = scalar_select 0, %s16, %s14
  $region1: #{gpt_forward.2} parent=0
    #allocation2 [shape = 'u8[2048]{0}', space=vmem, size = 0x800, scoped, tag = 'input window, operand 2']
    #allocation3 [shape = 's32[2]{0}', space=sflag, size = 0x8, scoped, tag = 'scoped memory for gpt_forward.2']
    #allocation4 [shape = 'u8[2048]{0}', space=vmem, size = 0x800, scoped, tag = 'input window, operand 3']
    #allocation5 [shape = 's32[2]{0}', space=sflag, size = 0x8, scoped, tag = 'scoped memory for gpt_forward.2']
    #allocation6 [shape = 'u8[262144]{0}', space=vmem, size = 0x40000, scoped, tag = 'input window, operand 5']
    #allocation7 [shape = 'u8[2048]{0}', space=vmem, size = 0x800, scoped, tag = 'input window, operand 6']
    #allocation8 [shape = 's32[2]{0}', space=sflag, size = 0x8, scoped, tag = 'scoped memory for gpt_forward.2']
    #allocation9 [shape = 'u8[2048]{0}', space=vmem, size = 0x800, scoped, tag = 'input window, operand 7']
    #allocation10 [shape = 'u8[2048]{0}', space=vmem, size = 0x800, scoped, tag = 'input window, operand 8']
    #allocation11 [shape = 's32[2]{0}', space=sflag, size = 0x8, scoped, tag = 'scoped memory for gpt_forward.2']
    #allocation12 [shape = 'u8[1048576]{0}', space=vmem, size = 0x100000, scoped, tag = 'input window, operand 9']
    #allocation13 [shape = 'u8[8192]{0}', space=vmem, size = 0x2000, scoped, tag = 'input window, operand 10']
    #allocation14 [shape = 's32[2]{0}', space=sflag, size = 0x8, scoped, tag = 'scoped memory for gpt_forward.2']
    #allocation15 [shape = 'u8[1048576]{0}', space=vmem, size = 0x100000, scoped, tag = 'input window, operand 11']
    #allocation16 [shape = 'u8[2048]{0}', space=vmem, size = 0x800, scoped, tag = 'input window, operand 12']
    #allocation17 [shape = 's32[2]{0}', space=sflag, size = 0x8, scoped, tag = 'scoped memory for gpt_forward.2']
    %18 = vsyncpa [#allocation3], 0
    %s19 = scalar_lea.sflag [#allocation3], 1
    %20 = vsyncpa %s19, 0
    %21 = vsyncpa [#allocation5], 0
    %s22 = scalar_lea.sflag [#allocation5], 1
    %23 = vsyncpa %s22, 0
    %24 = vsyncpa [#allocation8], 0
    %s25 = scalar_lea.sflag [#allocation8], 1
    %26 = vsyncpa %s25, 0
    %27 = vsyncpa [#allocation11], 0
    %s28 = scalar_lea.sflag [#allocation11], 1
    %29 = vsyncpa %s28, 0
    %30 = vsyncpa [#allocation14], 0
    %s31 = scalar_lea.sflag [#allocation14], 1
    %32 = vsyncpa %s31, 0
    %33 = vsyncpa [#allocation17], 0
    %s34 = scalar_lea.sflag [#allocation17], 1
    %35 = vsyncpa %s34, 0
    loop: start=0, step=1, limit=10
    $region2: #{gpt_forward.2} parent=1 // loop_pre_header
      _
    $region3: #{gpt_forward.2} parent=1 // loop_header
      %s37 = sphi 0, %s41
      %p38 = scmp.ge.s32.totalorder %s37, 10
      %s44 = sphi 0, %s56
      %s45 = sphi 0, %s52
      %s46 = sphi 0, %s44
      %s47 = sphi 0, %s45
      %s48 = sphi 0, %s46
      %s49 = sphi 0, %s47
      %s59 = sphi 0, %s61
      %s62 = sphi 0, %s59
      %s63 = sphi 0, %s62
      %s79 = sphi 0, %s63
      %s83 = sphi 0, %s83
      %s85 = sphi 0, %s83
      %s86 = sphi 0, %s85
      %s100 = sphi 0, %s86
      %s106 = sphi 0, %s108
      %s109 = sphi 0, %s106
      %s110 = sphi 0, %s109
      %s126 = sphi 0, %s110
      %s132 = sphi 0, %s134
      %s135 = sphi 0, %s132
      %s136 = sphi 0, %s135
      %s152 = sphi 0, %s136
      %s158 = sphi 0, %s160
      %s161 = sphi 0, %s158
      %s162 = sphi 0, %s161
      %s178 = sphi 0, %s162
      %s184 = sphi 0, %s186
      %s187 = sphi 0, %s184
      %s188 = sphi 0, %s187
      %s204 = sphi 0, %s188
      %s210 = sphi 0, %s212
      %s213 = sphi 0, %s210
      %s214 = sphi 0, %s213
      %s230 = sphi 0, %s214
      %s236 = sphi 0, %s238
      %s239 = sphi 0, %s236
      %s240 = sphi 0, %s239
      %s256 = sphi 0, %s240
      %s262 = sphi 0, %s264
      %s265 = sphi 0, %s262
      %s266 = sphi 0, %s265
      %s282 = sphi 0, %s266
      %s288 = sphi 0, %s290
      %s291 = sphi 0, %s288
      %s292 = sphi 0, %s291
      %s308 = sphi 0, %s292
      %s314 = sphi 0, %s316
      %s317 = sphi 0, %s314
      %s318 = sphi 0, %s317
      %s334 = sphi 0, %s318
      %s340 = sphi 0, %s342
      %s343 = sphi 0, %s340
      %s344 = sphi 0, %s343
      %s360 = sphi 0, %s344
      %s366 = sphi 0, %s368
      %s369 = sphi 0, %s366
      %s370 = sphi 0, %s369
      %s386 = sphi 0, %s370
      %s392 = sphi 0, %s394
      %s395 = sphi 0, %s392
      %s396 = sphi 0, %s395
      %s412 = sphi 0, %s396
    $region4: #{gpt_forward.2} parent=1 // loop_header_branch
      %40 = sbr.rel (%p38) target = $region8
    $region5: #{gpt_forward.2} parent=1 // loop_body
      %s42 = ssub.s32 %s37, 1
      %s43 = ssub.s32 %s37, 2
      %s50 = sadd.s32 1, %s45
      %p51 = scmp.ge.s32.totalorder %s50, 4
      %s52 = scalar_select %p51, 0, %s50
      %s53 = sadd.s32 1, %s44
      %s54 = scalar_select %p51, %s53, %s44
      %p55 = scmp.ge.s32.totalorder %s54, 2
      %s56 = scalar_select %p55, 0, %s54
      %s57 = ssub.s32 %s44, %s56
      %p58 = scmp.eq.s32.totalorder %s57, 0
      %s60 = sadd.s32 %s59, 1
      %s61 = scalar_select %p58, %s59, %s60
      %p64 = pneg %p58
      %p65 = scmp.eq.s32.totalorder %s37, 7
      %p66 = por %p64, %p65
      %p67 = scmp.ne.s32.totalorder %s59, %s62
      %p68 = scmp.eq.s32.totalorder %s37, 0
      %p69 = por %p67, %p68
      %p70 = scmp.ne.s32.totalorder %s59, %s62
      %p71 = scmp.eq.s32.totalorder %s42, 7
      %p72 = por %p70, %p71
      %p73 = scmp.ne.s32.totalorder %s62, %s63
      %p74 = scmp.eq.s32.totalorder %s42, 0
      %p75 = por %p73, %p74
      %p76 = scmp.ne.s32.totalorder %s62, %s63
      %p77 = scmp.eq.s32.totalorder %s43, 7
      %p78 = por %p76, %p77
      %p80 = scmp.ne.s32.totalorder %s63, %s79
      %p81 = scmp.eq.s32.totalorder %s43, 0
      %p82 = por %p80, %p81
      %s84 = sadd.s32 %s83, 1
      %p87 = scmp.eq.s32.totalorder %s37, 7
      %p88 = scmp.ne.s32.totalorder %s83, %s85
      %p89 = scmp.eq.s32.totalorder %s37, 0
      %p90 = por %p88, %p89
      %p91 = scmp.ne.s32.totalorder %s83, %s85
      %p92 = scmp.eq.s32.totalorder %s42, 7
      %p93 = por %p91, %p92
      %p94 = scmp.ne.s32.totalorder %s85, %s86
      %p95 = scmp.eq.s32.totalorder %s42, 0
      %p96 = por %p94, %p95
      %p97 = scmp.ne.s32.totalorder %s85, %s86
      %p98 = scmp.eq.s32.totalorder %s43, 7
      %p99 = por %p97, %p98
      %p101 = scmp.ne.s32.totalorder %s86, %s100
      %p102 = scmp.eq.s32.totalorder %s43, 0
      %p103 = por %p101, %p102
      %s104 = ssub.s32 %s45, %s52
      %p105 = scmp.eq.s32.totalorder %s104, 0
      %s107 = sadd.s32 %s106, 1
      %s108 = scalar_select %p105, %s106, %s107
      %p111 = pneg %p105
      %p112 = scmp.eq.s32.totalorder %s37, 7
      %p113 = por %p111, %p112
      %p114 = scmp.ne.s32.totalorder %s106, %s109
      %p115 = scmp.eq.s32.totalorder %s37, 0
      %p116 = por %p114, %p115
      %p117 = scmp.ne.s32.totalorder %s106, %s109
      %p118 = scmp.eq.s32.totalorder %s42, 7
      %p119 = por %p117, %p118
      %p120 = scmp.ne.s32.totalorder %s109, %s110
      %p121 = scmp.eq.s32.totalorder %s42, 0
      %p122 = por %p120, %p121
      %p123 = scmp.ne.s32.totalorder %s109, %s110
      %p124 = scmp.eq.s32.totalorder %s43, 7
      %p125 = por %p123, %p124
      %p127 = scmp.ne.s32.totalorder %s110, %s126
      %p128 = scmp.eq.s32.totalorder %s43, 0
      %p129 = por %p127, %p128
      %s130 = ssub.s32 %s45, %s52
      %p131 = scmp.eq.s32.totalorder %s130, 0
      %s133 = sadd.s32 %s132, 1
      %s134 = scalar_select %p131, %s132, %s133
      %p137 = pneg %p131
      %p138 = scmp.eq.s32.totalorder %s37, 7
      %p139 = por %p137, %p138
      %p140 = scmp.ne.s32.totalorder %s132, %s135
      %p141 = scmp.eq.s32.totalorder %s37, 0
      %p142 = por %p140, %p141
      %p143 = scmp.ne.s32.totalorder %s132, %s135
      %p144 = scmp.eq.s32.totalorder %s42, 7
      %p145 = por %p143, %p144
      %p146 = scmp.ne.s32.totalorder %s135, %s136
      %p147 = scmp.eq.s32.totalorder %s42, 0
      %p148 = por %p146, %p147
      %p149 = scmp.ne.s32.totalorder %s135, %s136
      %p150 = scmp.eq.s32.totalorder %s43, 7
      %p151 = por %p149, %p150
      %p153 = scmp.ne.s32.totalorder %s136, %s152
      %p154 = scmp.eq.s32.totalorder %s43, 0
      %p155 = por %p153, %p154
      %s156 = ssub.s32 %s45, %s52
      %p157 = scmp.eq.s32.totalorder %s156, 0
      %s159 = sadd.s32 %s158, 1
      %s160 = scalar_select %p157, %s158, %s159
      %p163 = pneg %p157
      %p164 = scmp.eq.s32.totalorder %s37, 7
      %p165 = por %p163, %p164
      %p166 = scmp.ne.s32.totalorder %s158, %s161
      %p167 = scmp.eq.s32.totalorder %s37, 0
      %p168 = por %p166, %p167
      %p169 = scmp.ne.s32.totalorder %s158, %s161
      %p170 = scmp.eq.s32.totalorder %s42, 7
      %p171 = por %p169, %p170
      %p172 = scmp.ne.s32.totalorder %s161, %s162
      %p173 = scmp.eq.s32.totalorder %s42, 0
      %p174 = por %p172, %p173
      %p175 = scmp.ne.s32.totalorder %s161, %s162
      %p176 = scmp.eq.s32.totalorder %s43, 7
      %p177 = por %p175, %p176
      %p179 = scmp.ne.s32.totalorder %s162, %s178
      %p180 = scmp.eq.s32.totalorder %s43, 0
      %p181 = por %p179, %p180
      %s182 = ssub.s32 %s45, %s52
      %p183 = scmp.eq.s32.totalorder %s182, 0
      %s185 = sadd.s32 %s184, 1
      %s186 = scalar_select %p183, %s184, %s185
      %p189 = pneg %p183
      %p190 = scmp.eq.s32.totalorder %s37, 7
      %p191 = por %p189, %p190
      %p192 = scmp.ne.s32.totalorder %s184, %s187
      %p193 = scmp.eq.s32.totalorder %s37, 0
      %p194 = por %p192, %p193
      %p195 = scmp.ne.s32.totalorder %s184, %s187
      %p196 = scmp.eq.s32.totalorder %s42, 7
      %p197 = por %p195, %p196
      %p198 = scmp.ne.s32.totalorder %s187, %s188
      %p199 = scmp.eq.s32.totalorder %s42, 0
      %p200 = por %p198, %p199
      %p201 = scmp.ne.s32.totalorder %s187, %s188
      %p202 = scmp.eq.s32.totalorder %s43, 7
      %p203 = por %p201, %p202
      %p205 = scmp.ne.s32.totalorder %s188, %s204
      %p206 = scmp.eq.s32.totalorder %s43, 0
      %p207 = por %p205, %p206
      %s208 = ssub.s32 %s45, %s52
      %p209 = scmp.eq.s32.totalorder %s208, 0
      %s211 = sadd.s32 %s210, 1
      %s212 = scalar_select %p209, %s210, %s211
      %p215 = pneg %p209
      %p216 = scmp.eq.s32.totalorder %s37, 7
      %p217 = por %p215, %p216
      %p218 = scmp.ne.s32.totalorder %s210, %s213
      %p219 = scmp.eq.s32.totalorder %s37, 0
      %p220 = por %p218, %p219
      %p221 = scmp.ne.s32.totalorder %s210, %s213
      %p222 = scmp.eq.s32.totalorder %s42, 7
      %p223 = por %p221, %p222
      %p224 = scmp.ne.s32.totalorder %s213, %s214
      %p225 = scmp.eq.s32.totalorder %s42, 0
      %p226 = por %p224, %p225
      %p227 = scmp.ne.s32.totalorder %s213, %s214
      %p228 = scmp.eq.s32.totalorder %s43, 7
      %p229 = por %p227, %p228
      %p231 = scmp.ne.s32.totalorder %s214, %s230
      %p232 = scmp.eq.s32.totalorder %s43, 0
      %p233 = por %p231, %p232
      %s234 = ssub.s32 %s45, %s52
      %p235 = scmp.eq.s32.totalorder %s234, 0
      %s237 = sadd.s32 %s236, 1
      %s238 = scalar_select %p235, %s236, %s237
      %p241 = pneg %p235
      %p242 = scmp.eq.s32.totalorder %s37, 7
      %p243 = por %p241, %p242
      %p244 = scmp.ne.s32.totalorder %s236, %s239
      %p245 = scmp.eq.s32.totalorder %s37, 0
      %p246 = por %p244, %p245
      %p247 = scmp.ne.s32.totalorder %s236, %s239
      %p248 = scmp.eq.s32.totalorder %s42, 7
      %p249 = por %p247, %p248
      %p250 = scmp.ne.s32.totalorder %s239, %s240
      %p251 = scmp.eq.s32.totalorder %s42, 0
      %p252 = por %p250, %p251
      %p253 = scmp.ne.s32.totalorder %s239, %s240
      %p254 = scmp.eq.s32.totalorder %s43, 7
      %p255 = por %p253, %p254
      %p257 = scmp.ne.s32.totalorder %s240, %s256
      %p258 = scmp.eq.s32.totalorder %s43, 0
      %p259 = por %p257, %p258
      %s260 = ssub.s32 %s45, %s52
      %p261 = scmp.eq.s32.totalorder %s260, 0
      %s263 = sadd.s32 %s262, 1
      %s264 = scalar_select %p261, %s262, %s263
      %p267 = pneg %p261
      %p268 = scmp.eq.s32.totalorder %s37, 7
      %p269 = por %p267, %p268
      %p270 = scmp.ne.s32.totalorder %s262, %s265
      %p271 = scmp.eq.s32.totalorder %s37, 0
      %p272 = por %p270, %p271
      %p273 = scmp.ne.s32.totalorder %s262, %s265
      %p274 = scmp.eq.s32.totalorder %s42, 7
      %p275 = por %p273, %p274
      %p276 = scmp.ne.s32.totalorder %s265, %s266
      %p277 = scmp.eq.s32.totalorder %s42, 0
      %p278 = por %p276, %p277
      %p279 = scmp.ne.s32.totalorder %s265, %s266
      %p280 = scmp.eq.s32.totalorder %s43, 7
      %p281 = por %p279, %p280
      %p283 = scmp.ne.s32.totalorder %s266, %s282
      %p284 = scmp.eq.s32.totalorder %s43, 0
      %p285 = por %p283, %p284
      %s286 = ssub.s32 %s45, %s52
      %p287 = scmp.eq.s32.totalorder %s286, 0
      %s289 = sadd.s32 %s288, 1
      %s290 = scalar_select %p287, %s288, %s289
      %p293 = pneg %p287
      %p294 = scmp.eq.s32.totalorder %s37, 7
      %p295 = por %p293, %p294
      %p296 = scmp.ne.s32.totalorder %s288, %s291
      %p297 = scmp.eq.s32.totalorder %s37, 0
      %p298 = por %p296, %p297
      %p299 = scmp.ne.s32.totalorder %s288, %s291
      %p300 = scmp.eq.s32.totalorder %s42, 7
      %p301 = por %p299, %p300
      %p302 = scmp.ne.s32.totalorder %s291, %s292
      %p303 = scmp.eq.s32.totalorder %s42, 0
      %p304 = por %p302, %p303
      %p305 = scmp.ne.s32.totalorder %s291, %s292
      %p306 = scmp.eq.s32.totalorder %s43, 7
      %p307 = por %p305, %p306
      %p309 = scmp.ne.s32.totalorder %s292, %s308
      %p310 = scmp.eq.s32.totalorder %s43, 0
      %p311 = por %p309, %p310
      %s312 = ssub.s32 %s45, %s52
      %p313 = scmp.eq.s32.totalorder %s312, 0
      %s315 = sadd.s32 %s314, 1
      %s316 = scalar_select %p313, %s314, %s315
      %p319 = pneg %p313
      %p320 = scmp.eq.s32.totalorder %s37, 7
      %p321 = por %p319, %p320
      %p322 = scmp.ne.s32.totalorder %s314, %s317
      %p323 = scmp.eq.s32.totalorder %s37, 0
      %p324 = por %p322, %p323
      %p325 = scmp.ne.s32.totalorder %s314, %s317
      %p326 = scmp.eq.s32.totalorder %s42, 7
      %p327 = por %p325, %p326
      %p328 = scmp.ne.s32.totalorder %s317, %s318
      %p329 = scmp.eq.s32.totalorder %s42, 0
      %p330 = por %p328, %p329
      %p331 = scmp.ne.s32.totalorder %s317, %s318
      %p332 = scmp.eq.s32.totalorder %s43, 7
      %p333 = por %p331, %p332
      %p335 = scmp.ne.s32.totalorder %s318, %s334
      %p336 = scmp.eq.s32.totalorder %s43, 0
      %p337 = por %p335, %p336
      %s338 = ssub.s32 %s45, %s52
      %p339 = scmp.eq.s32.totalorder %s338, 0
      %s341 = sadd.s32 %s340, 1
      %s342 = scalar_select %p339, %s340, %s341
      %p345 = pneg %p339
      %p346 = scmp.eq.s32.totalorder %s37, 7
      %p347 = por %p345, %p346
      %p348 = scmp.ne.s32.totalorder %s340, %s343
      %p349 = scmp.eq.s32.totalorder %s37, 0
      %p350 = por %p348, %p349
      %p351 = scmp.ne.s32.totalorder %s340, %s343
      %p352 = scmp.eq.s32.totalorder %s42, 7
      %p353 = por %p351, %p352
      %p354 = scmp.ne.s32.totalorder %s343, %s344
      %p355 = scmp.eq.s32.totalorder %s42, 0
      %p356 = por %p354, %p355
      %p357 = scmp.ne.s32.totalorder %s343, %s344
      %p358 = scmp.eq.s32.totalorder %s43, 7
      %p359 = por %p357, %p358
      %p361 = scmp.ne.s32.totalorder %s344, %s360
      %p362 = scmp.eq.s32.totalorder %s43, 0
      %p363 = por %p361, %p362
      %s364 = ssub.s32 %s45, %s52
      %p365 = scmp.eq.s32.totalorder %s364, 0
      %s367 = sadd.s32 %s366, 1
      %s368 = scalar_select %p365, %s366, %s367
      %p371 = pneg %p365
      %p372 = scmp.eq.s32.totalorder %s37, 7
      %p373 = por %p371, %p372
      %p374 = scmp.ne.s32.totalorder %s366, %s369
      %p375 = scmp.eq.s32.totalorder %s37, 0
      %p376 = por %p374, %p375
      %p377 = scmp.ne.s32.totalorder %s366, %s369
      %p378 = scmp.eq.s32.totalorder %s42, 7
      %p379 = por %p377, %p378
      %p380 = scmp.ne.s32.totalorder %s369, %s370
      %p381 = scmp.eq.s32.totalorder %s42, 0
      %p382 = por %p380, %p381
      %p383 = scmp.ne.s32.totalorder %s369, %s370
      %p384 = scmp.eq.s32.totalorder %s43, 7
      %p385 = por %p383, %p384
      %p387 = scmp.ne.s32.totalorder %s370, %s386
      %p388 = scmp.eq.s32.totalorder %s43, 0
      %p389 = por %p387, %p388
      %s390 = ssub.s32 %s44, %s56
      %p391 = scmp.eq.s32.totalorder %s390, 0
      %s393 = sadd.s32 %s392, 1
      %s394 = scalar_select %p391, %s392, %s393
      %p397 = pneg %p391
      %p398 = scmp.eq.s32.totalorder %s37, 7
      %p399 = por %p397, %p398
      %p400 = scmp.ne.s32.totalorder %s392, %s395
      %p401 = scmp.eq.s32.totalorder %s37, 0
      %p402 = por %p400, %p401
      %p403 = scmp.ne.s32.totalorder %s392, %s395
      %p404 = scmp.eq.s32.totalorder %s42, 7
      %p405 = por %p403, %p404
      %p406 = scmp.ne.s32.totalorder %s395, %s396
      %p407 = scmp.eq.s32.totalorder %s42, 0
      %p408 = por %p406, %p407
      %p409 = scmp.ne.s32.totalorder %s395, %s396
      %p410 = scmp.eq.s32.totalorder %s43, 7
      %p411 = por %p409, %p410
      %p413 = scmp.ne.s32.totalorder %s396, %s412
      %p414 = scmp.eq.s32.totalorder %s43, 0
      %p415 = por %p413, %p414
      %p416 = scmp.le.s32.totalorder 1, %s37
      %p417 = scmp.lt.s32.totalorder %s37, 9
      %p418 = pnand %p416, %p417
      %p419 = pneg %p418
      // Predicated region
      $region9: #{gpt_forward.2} parent=5 // pred_check
        _
      $region10: #{gpt_forward.2} parent=5 // pred_check_branch
        %421 = sbr.rel (%p418) target = $region12
      $region11: #{gpt_forward.2} parent=5 // pred_region
        %s422 = ssub.s32 %s37, 1
        // Predicated region
        $region13: #{gpt_forward.2} parent=11 // pred_check
          %p423 = pneg %p96
        $region14: #{gpt_forward.2} parent=11 // pred_check_branch
          %425 = sbr.rel (%p423) target = $region16
        $region15: #{gpt_forward.2} parent=11 // pred_region
          _
        $region16: #{gpt_forward.2} parent=11 // pred_fallthru
          _
      $region12: #{gpt_forward.2} parent=5 // pred_fallthru
        _
      %p426 = scmp.lt.s32.totalorder %s37, 8
      // Predicated region
      $region17: #{gpt_forward.2} parent=5 // pred_check
        %p427 = pneg %p426
      $region18: #{gpt_forward.2} parent=5 // pred_check_branch
        %429 = sbr.rel (%p427) target = $region20
      $region19: #{gpt_forward.2} parent=5 // pred_region
        // Predicated region
        $region21: #{gpt_forward.2} parent=19 // pred_check
          %p430 = pneg %p69
        $region22: #{gpt_forward.2} parent=19 // pred_check_branch
          %432 = sbr.rel (%p430) target = $region24
        $region23: #{gpt_forward.2} parent=19 // pred_region
          %p433 = scmp.lt.s32.totalorder %s44, 1
          %s434 = scalar_select %p433, %s44, 1
          %s435 = smul.addr %s434, 16
          %s436 = smul.addr %s435, 8
          %s437 = scalar_lea.vmem %s0, %s436
        $region24: #{gpt_forward.2} parent=19 // pred_fallthru
          _
        // Predicated region
        $region25: #{gpt_forward.2} parent=19 // pred_check
          %p438 = pneg %p116
        $region26: #{gpt_forward.2} parent=19 // pred_check_branch
          %440 = sbr.rel (%p438) target = $region28
        $region27: #{gpt_forward.2} parent=19 // pred_region
          %s441 = sand.u32 %s106, 1
          %s442 = scalar_lea.sflag [#allocation3], %s441
          %s443 = sand.u32 %s106, 1
          %s444 = smul.addr %s443, 2
          %s445 = scalar_lea.vmem [#allocation2], %s444
          %s447 = ssub.s32 32, 32
          %448 = vsyncadd %s442, %s447
          %s449 = smul.addr %s45, 2
          %s450 = smul.addr %s449, 16
          %s451 = scalar_lea.hbm %s2, %s450
          %s453 = sshll.u32 %s445, 4
          %s454 = int_to_ptr.vmem [resolvable:$true] %s453
          %456 = dma.hbm_to_vmem [thread:$0]  %s451, 32, %s454, %s442
        $region28: #{gpt_forward.2} parent=19 // pred_fallthru
          _
        // Predicated region
        $region29: #{gpt_forward.2} parent=19 // pred_check
          %p457 = pneg %p142
        $region30: #{gpt_forward.2} parent=19 // pred_check_branch
          %459 = sbr.rel (%p457) target = $region32
        $region31: #{gpt_forward.2} parent=19 // pred_region
          %s460 = sand.u32 %s37, 1
          %s461 = scalar_lea.sflag [#allocation5], %s460
          %s462 = sand.u32 %s132, 1
          %s463 = smul.addr %s462, 2
          %s464 = scalar_lea.vmem [#allocation4], %s463
          %s466 = ssub.s32 32, 32
          %467 = vsyncadd %s461, %s466
          %s468 = smul.addr %s45, 2
          %s469 = smul.addr %s468, 16
          %s470 = scalar_lea.hbm %s3, %s469
          %s472 = sshll.u32 %s464, 4
          %s473 = int_to_ptr.vmem [resolvable:$true] %s472
          %475 = dma.hbm_to_vmem [thread:$0]  %s470, 32, %s473, %s461
        $region32: #{gpt_forward.2} parent=19 // pred_fallthru
          _
        // Predicated region
        $region33: #{gpt_forward.2} parent=19 // pred_check
          %p476 = pneg %p168
        $region34: #{gpt_forward.2} parent=19 // pred_check_branch
          %478 = sbr.rel (%p476) target = $region36
        $region35: #{gpt_forward.2} parent=19 // pred_region
          %p479 = scmp.lt.s32.totalorder %s45, 3
          %s480 = scalar_select %p479, %s45, 3
          %s481 = smul.addr %s480, 192
          %s482 = smul.addr %s481, 4
          %s483 = scalar_lea.vmem %s4, %s482
        $region36: #{gpt_forward.2} parent=19 // pred_fallthru
          _
        // Predicated region
        $region37: #{gpt_forward.2} parent=19 // pred_check
          %p484 = pneg %p194
        $region38: #{gpt_forward.2} parent=19 // pred_check_branch
          %486 = sbr.rel (%p484) target = $region40
        $region39: #{gpt_forward.2} parent=19 // pred_region
          %s487 = sand.u32 %s37, 1
          %s488 = scalar_lea.sflag [#allocation5], %s487
          %s489 = sand.u32 %s184, 1
          %s490 = smul.addr %s489, 256
          %s491 = scalar_lea.vmem [#allocation6], %s490
          %s493 = ssub.s32 4096, 4096
          %494 = vsyncadd %s488, %s493
          %s495 = smul.addr %s45, 64
          %s496 = smul.addr %s495, 64
          %s497 = scalar_lea.hbm %s5, %s496
          %s498 = sshll.u32 %s491, 4
          %s499 = int_to_ptr.vmem [resolvable:$true] %s498
          %504 = dma.hbm_to_vmem [thread:$0]  %s497, 4096, %s499, %s488, 128, 128, 8
        $region40: #{gpt_forward.2} parent=19 // pred_fallthru
          _
        // Predicated region
        $region41: #{gpt_forward.2} parent=19 // pred_check
          %p505 = pneg %p220
        $region42: #{gpt_forward.2} parent=19 // pred_check_branch
          %507 = sbr.rel (%p505) target = $region44
        $region43: #{gpt_forward.2} parent=19 // pred_region
          %s508 = sand.u32 %s37, 1
          %s509 = scalar_lea.sflag [#allocation8], %s508
          %s510 = sand.u32 %s210, 1
          %s511 = smul.addr %s510, 2
          %s512 = scalar_lea.vmem [#allocation7], %s511
          %s514 = ssub.s32 32, 32
          %515 = vsyncadd %s509, %s514
          %s516 = smul.addr %s45, 2
          %s517 = smul.addr %s516, 16
          %s518 = scalar_lea.hbm %s6, %s517
          %s520 = sshll.u32 %s512, 4
          %s521 = int_to_ptr.vmem [resolvable:$true] %s520
          %523 = dma.hbm_to_vmem [thread:$0]  %s518, 32, %s521, %s509
        $region44: #{gpt_forward.2} parent=19 // pred_fallthru
          _
        // Predicated region
        $region45: #{gpt_forward.2} parent=19 // pred_check
          %p524 = pneg %p246
        $region46: #{gpt_forward.2} parent=19 // pred_check_branch
          %526 = sbr.rel (%p524) target = $region48
        $region47: #{gpt_forward.2} parent=19 // pred_region
          %s527 = sand.u32 %s37, 1
          %s528 = scalar_lea.sflag [#allocation8], %s527
          %s529 = sand.u32 %s236, 1
          %s530 = smul.addr %s529, 2
          %s531 = scalar_lea.vmem [#allocation9], %s530
          %s533 = ssub.s32 32, 32
          %534 = vsyncadd %s528, %s533
          %s535 = smul.addr %s45, 2
          %s536 = smul.addr %s535, 16
          %s537 = scalar_lea.hbm %s7, %s536
          %s539 = sshll.u32 %s531, 4
          %s540 = int_to_ptr.vmem [resolvable:$true] %s539
          %542 = dma.hbm_to_vmem [thread:$0]  %s537, 32, %s540, %s528
        $region48: #{gpt_forward.2} parent=19 // pred_fallthru
          _
        // Predicated region
        $region49: #{gpt_forward.2} parent=19 // pred_check
          %p543 = pneg %p272
        $region50: #{gpt_forward.2} parent=19 // pred_check_branch
          %545 = sbr.rel (%p543) target = $region52
        $region51: #{gpt_forward.2} parent=19 // pred_region
          %s546 = sand.u32 %s37, 1
          %s547 = scalar_lea.sflag [#allocation11], %s546
          %s548 = sand.u32 %s262, 1
          %s549 = smul.addr %s548, 2
          %s550 = scalar_lea.vmem [#allocation10], %s549
          %s552 = ssub.s32 32, 32
          %553 = vsyncadd %s547, %s552
          %s554 = smul.addr %s45, 2
          %s555 = smul.addr %s554, 16
          %s556 = scalar_lea.hbm %s8, %s555
          %s558 = sshll.u32 %s550, 4
          %s559 = int_to_ptr.vmem [resolvable:$true] %s558
          %561 = dma.hbm_to_vmem [thread:$0]  %s556, 32, %s559, %s547
        $region52: #{gpt_forward.2} parent=19 // pred_fallthru
          _
        // Predicated region
        $region53: #{gpt_forward.2} parent=19 // pred_check
          %p562 = pneg %p298
        $region54: #{gpt_forward.2} parent=19 // pred_check_branch
          %564 = sbr.rel (%p562) target = $region56
        $region55: #{gpt_forward.2} parent=19 // pred_region
          %s565 = sand.u32 %s37, 1
          %s566 = scalar_lea.sflag [#allocation11], %s565
          %s567 = sand.u32 %s288, 1
          %s568 = smul.addr %s567, 1024
          %s569 = scalar_lea.vmem [#allocation12], %s568
          %s571 = ssub.s32 16384, 16384
          %572 = vsyncadd %s566, %s571
          %s573 = smul.addr %s45, 256
          %s574 = smul.addr %s573, 64
          %s575 = scalar_lea.hbm %s9, %s574
          %s576 = sshll.u32 %s569, 4
          %s577 = int_to_ptr.vmem [resolvable:$true] %s576
          %582 = dma.hbm_to_vmem [thread:$0]  %s575, 16384, %s577, %s566, 512, 512, 32
        $region56: #{gpt_forward.2} parent=19 // pred_fallthru
          _
        // Predicated region
        $region57: #{gpt_forward.2} parent=19 // pred_check
          %p583 = pneg %p324
        $region58: #{gpt_forward.2} parent=19 // pred_check_branch
          %585 = sbr.rel (%p583) target = $region60
        $region59: #{gpt_forward.2} parent=19 // pred_region
          %s586 = sand.u32 %s37, 1
          %s587 = scalar_lea.sflag [#allocation14], %s586
          %s588 = sand.u32 %s314, 1
          %s589 = smul.addr %s588, 8
          %s590 = scalar_lea.vmem [#allocation13], %s589
          %s592 = ssub.s32 128, 128
          %593 = vsyncadd %s587, %s592
          %s594 = smul.addr %s45, 8
          %s595 = smul.addr %s594, 16
          %s596 = scalar_lea.hbm %s10, %s595
          %s598 = sshll.u32 %s590, 4
          %s599 = int_to_ptr.vmem [resolvable:$true] %s598
          %601 = dma.hbm_to_vmem [thread:$0]  %s596, 128, %s599, %s587
        $region60: #{gpt_forward.2} parent=19 // pred_fallthru
          _
        // Predicated region
        $region61: #{gpt_forward.2} parent=19 // pred_check
          %p602 = pneg %p350
        $region62: #{gpt_forward.2} parent=19 // pred_check_branch
          %604 = sbr.rel (%p602) target = $region64
        $region63: #{gpt_forward.2} parent=19 // pred_region
          %s605 = sand.u32 %s37, 1
          %s606 = scalar_lea.sflag [#allocation14], %s605
          %s607 = sand.u32 %s340, 1
          %s608 = smul.addr %s607, 1024
          %s609 = scalar_lea.vmem [#allocation15], %s608
          %s611 = ssub.s32 16384, 16384
          %612 = vsyncadd %s606, %s611
          %s613 = smul.addr %s45, 256
          %s614 = smul.addr %s613, 64
          %s615 = scalar_lea.hbm %s11, %s614
          %s616 = sshll.u32 %s609, 4
          %s617 = int_to_ptr.vmem [resolvable:$true] %s616
          %622 = dma.hbm_to_vmem [thread:$0]  %s615, 16384, %s617, %s606, 128, 128, 8
        $region64: #{gpt_forward.2} parent=19 // pred_fallthru
          _
        // Predicated region
        $region65: #{gpt_forward.2} parent=19 // pred_check
          %p623 = pneg %p376
        $region66: #{gpt_forward.2} parent=19 // pred_check_branch
          %625 = sbr.rel (%p623) target = $region68
        $region67: #{gpt_forward.2} parent=19 // pred_region
          %s626 = sand.u32 %s366, 1
          %s627 = scalar_lea.sflag [#allocation17], %s626
          %s628 = sand.u32 %s366, 1
          %s629 = smul.addr %s628, 2
          %s630 = scalar_lea.vmem [#allocation16], %s629
          %s632 = ssub.s32 32, 32
          %633 = vsyncadd %s627, %s632
          %s634 = smul.addr %s45, 2
          %s635 = smul.addr %s634, 16
          %s636 = scalar_lea.hbm %s12, %s635
          %s638 = sshll.u32 %s630, 4
          %s639 = int_to_ptr.vmem [resolvable:$true] %s638
          %641 = dma.hbm_to_vmem [thread:$0]  %s636, 32, %s639, %s627
        $region68: #{gpt_forward.2} parent=19 // pred_fallthru
          _
      $region20: #{gpt_forward.2} parent=5 // pred_fallthru
        _
      %p642 = scmp.le.s32.totalorder 1, %s37
      %p643 = scmp.lt.s32.totalorder %s37, 9
      %p644 = pnand %p642, %p643
      %p645 = pneg %p644
      // Predicated region
      $region69: #{gpt_forward.2} parent=5 // pred_check
        _
      $region70: #{gpt_forward.2} parent=5 // pred_check_branch
        %647 = sbr.rel (%p644) target = $region72
      $region71: #{gpt_forward.2} parent=5 // pred_region
        %s648 = ssub.s32 %s37, 1
        %s649 = sand.u32 %s109, 1
        %s650 = scalar_lea.sflag [#allocation3], %s649
        %s651 = sand.u32 %s109, 1
        %s652 = smul.addr %s651, 2
        %s653 = scalar_lea.vmem [#allocation2], %s652
        // Predicated region
        $region73: #{gpt_forward.2} parent=71 // pred_check
          %p654 = pneg %p122
        $region74: #{gpt_forward.2} parent=71 // pred_check_branch
          %656 = sbr.rel (%p654) target = $region76
        $region75: #{gpt_forward.2} parent=71 // pred_region
          %657 = dma.done %s650, 32
        $region76: #{gpt_forward.2} parent=71 // pred_fallthru
          _
        %s658 = sand.u32 %s42, 1
        %s659 = scalar_lea.sflag [#allocation5], %s658
        %s660 = sand.u32 %s135, 1
        %s661 = smul.addr %s660, 2
        %s662 = scalar_lea.vmem [#allocation4], %s661
        // Predicated region
        $region77: #{gpt_forward.2} parent=71 // pred_check
          %p663 = pneg %p148
        $region78: #{gpt_forward.2} parent=71 // pred_check_branch
          %665 = sbr.rel (%p663) target = $region80
        $region79: #{gpt_forward.2} parent=71 // pred_region
          %666 = dma.done %s659, 32
        $region80: #{gpt_forward.2} parent=71 // pred_fallthru
          _
        %s667 = sand.u32 %s42, 1
        %s668 = scalar_lea.sflag [#allocation5], %s667
        %s669 = sand.u32 %s187, 1
        %s670 = smul.addr %s669, 256
        %s671 = scalar_lea.vmem [#allocation6], %s670
        // Predicated region
        $region81: #{gpt_forward.2} parent=71 // pred_check
          %p672 = pneg %p200
        $region82: #{gpt_forward.2} parent=71 // pred_check_branch
          %674 = sbr.rel (%p672) target = $region84
        $region83: #{gpt_forward.2} parent=71 // pred_region
          %675 = dma.done %s668, 4096
        $region84: #{gpt_forward.2} parent=71 // pred_fallthru
          _
        %s676 = sand.u32 %s42, 1
        %s677 = scalar_lea.sflag [#allocation8], %s676
        %s678 = sand.u32 %s213, 1
        %s679 = smul.addr %s678, 2
        %s680 = scalar_lea.vmem [#allocation7], %s679
        // Predicated region
        $region85: #{gpt_forward.2} parent=71 // pred_check
          %p681 = pneg %p226
        $region86: #{gpt_forward.2} parent=71 // pred_check_branch
          %683 = sbr.rel (%p681) target = $region88
        $region87: #{gpt_forward.2} parent=71 // pred_region
          %684 = dma.done %s677, 32
        $region88: #{gpt_forward.2} parent=71 // pred_fallthru
          _
        %s685 = sand.u32 %s42, 1
        %s686 = scalar_lea.sflag [#allocation8], %s685
        %s687 = sand.u32 %s239, 1
        %s688 = smul.addr %s687, 2
        %s689 = scalar_lea.vmem [#allocation9], %s688
        // Predicated region
        $region89: #{gpt_forward.2} parent=71 // pred_check
          %p690 = pneg %p252
        $region90: #{gpt_forward.2} parent=71 // pred_check_branch
          %692 = sbr.rel (%p690) target = $region92
        $region91: #{gpt_forward.2} parent=71 // pred_region
          %693 = dma.done %s686, 32
        $region92: #{gpt_forward.2} parent=71 // pred_fallthru
          _
        %s694 = sand.u32 %s42, 1
        %s695 = scalar_lea.sflag [#allocation11], %s694
        %s696 = sand.u32 %s265, 1
        %s697 = smul.addr %s696, 2
        %s698 = scalar_lea.vmem [#allocation10], %s697
        // Predicated region
        $region93: #{gpt_forward.2} parent=71 // pred_check
          %p699 = pneg %p278
        $region94: #{gpt_forward.2} parent=71 // pred_check_branch
          %701 = sbr.rel (%p699) target = $region96
        $region95: #{gpt_forward.2} parent=71 // pred_region
          %702 = dma.done %s695, 32
        $region96: #{gpt_forward.2} parent=71 // pred_fallthru
          _
        %s703 = sand.u32 %s42, 1
        %s704 = scalar_lea.sflag [#allocation11], %s703
        %s705 = sand.u32 %s291, 1
        %s706 = smul.addr %s705, 1024
        %s707 = scalar_lea.vmem [#allocation12], %s706
        // Predicated region
        $region97: #{gpt_forward.2} parent=71 // pred_check
          %p708 = pneg %p304
        $region98: #{gpt_forward.2} parent=71 // pred_check_branch
          %710 = sbr.rel (%p708) target = $region100
        $region99: #{gpt_forward.2} parent=71 // pred_region
          %711 = dma.done %s704, 16384
        $region100: #{gpt_forward.2} parent=71 // pred_fallthru
          _
        %s712 = sand.u32 %s42, 1
        %s713 = scalar_lea.sflag [#allocation14], %s712
        %s714 = sand.u32 %s317, 1
        %s715 = smul.addr %s714, 8
        %s716 = scalar_lea.vmem [#allocation13], %s715
        // Predicated region
        $region101: #{gpt_forward.2} parent=71 // pred_check
          %p717 = pneg %p330
        $region102: #{gpt_forward.2} parent=71 // pred_check_branch
          %719 = sbr.rel (%p717) target = $region104
        $region103: #{gpt_forward.2} parent=71 // pred_region
          %720 = dma.done %s713, 128
        $region104: #{gpt_forward.2} parent=71 // pred_fallthru
          _
        %s721 = sand.u32 %s42, 1
        %s722 = scalar_lea.sflag [#allocation14], %s721
        %s723 = sand.u32 %s343, 1
        %s724 = smul.addr %s723, 1024
        %s725 = scalar_lea.vmem [#allocation15], %s724
        // Predicated region
        $region105: #{gpt_forward.2} parent=71 // pred_check
          %p726 = pneg %p356
        $region106: #{gpt_forward.2} parent=71 // pred_check_branch
          %728 = sbr.rel (%p726) target = $region108
        $region107: #{gpt_forward.2} parent=71 // pred_region
          %729 = dma.done %s722, 16384
        $region108: #{gpt_forward.2} parent=71 // pred_fallthru
          _
        %s730 = sand.u32 %s369, 1
        %s731 = scalar_lea.sflag [#allocation17], %s730
        %s732 = sand.u32 %s369, 1
        %s733 = smul.addr %s732, 2
        %s734 = scalar_lea.vmem [#allocation16], %s733
        // Predicated region
        $region109: #{gpt_forward.2} parent=71 // pred_check
          %p735 = pneg %p382
        $region110: #{gpt_forward.2} parent=71 // pred_check_branch
          %737 = sbr.rel (%p735) target = $region112
        $region111: #{gpt_forward.2} parent=71 // pred_region
          %738 = dma.done %s731, 32
        $region112: #{gpt_forward.2} parent=71 // pred_fallthru
          _
        %p739 = scmp.lt.s32.totalorder %s46, 1
        %s740 = scalar_select %p739, %s46, 1
        %s741 = smul.addr %s740, 16
        %s742 = smul.addr %s741, 8
        %s743 = scalar_lea.vmem %s0, %s742
        %p744 = pneg %p75
        %p745 = pneg %p72
        %p746 = pneg %p96
        %p747 = pneg %p93
        %s748 = sand.u32 %s109, 1
        %s749 = scalar_lea.sflag [#allocation3], %s748
        %s750 = sand.u32 %s109, 1
        %s751 = smul.addr %s750, 2
        %s752 = scalar_lea.vmem [#allocation2], %s751
        %p753 = pneg %p122
        %p754 = pneg %p119
        %s755 = sand.u32 %s42, 1
        %s756 = scalar_lea.sflag [#allocation5], %s755
        %s757 = sand.u32 %s135, 1
        %s758 = smul.addr %s757, 2
        %s759 = scalar_lea.vmem [#allocation4], %s758
        %p760 = pneg %p148
        %p761 = pneg %p145
        %p762 = scmp.lt.s32.totalorder %s47, 3
        %s763 = scalar_select %p762, %s47, 3
        %s764 = smul.addr %s763, 192
        %s765 = smul.addr %s764, 4
        %s766 = scalar_lea.vmem %s4, %s765
        %p767 = pneg %p174
        %p768 = pneg %p171
        %s769 = sand.u32 %s42, 1
        %s770 = scalar_lea.sflag [#allocation5], %s769
        %s771 = sand.u32 %s187, 1
        %s772 = smul.addr %s771, 256
        %s773 = scalar_lea.vmem [#allocation6], %s772
        %p774 = pneg %p200
        %p775 = pneg %p197
        %s776 = sand.u32 %s42, 1
        %s777 = scalar_lea.sflag [#allocation8], %s776
        %s778 = sand.u32 %s213, 1
        %s779 = smul.addr %s778, 2
        %s780 = scalar_lea.vmem [#allocation7], %s779
        %p781 = pneg %p226
        %p782 = pneg %p223
        %s783 = sand.u32 %s42, 1
        %s784 = scalar_lea.sflag [#allocation8], %s783
        %s785 = sand.u32 %s239, 1
        %s786 = smul.addr %s785, 2
        %s787 = scalar_lea.vmem [#allocation9], %s786
        %p788 = pneg %p252
        %p789 = pneg %p249
        %s790 = sand.u32 %s42, 1
        %s791 = scalar_lea.sflag [#allocation11], %s790
        %s792 = sand.u32 %s265, 1
        %s793 = smul.addr %s792, 2
        %s794 = scalar_lea.vmem [#allocation10], %s793
        %p795 = pneg %p278
        %p796 = pneg %p275
        %s797 = sand.u32 %s42, 1
        %s798 = scalar_lea.sflag [#allocation11], %s797
        %s799 = sand.u32 %s291, 1
        %s800 = smul.addr %s799, 1024
        %s801 = scalar_lea.vmem [#allocation12], %s800
        %p802 = pneg %p304
        %p803 = pneg %p301
        %s804 = sand.u32 %s42, 1
        %s805 = scalar_lea.sflag [#allocation14], %s804
        %s806 = sand.u32 %s317, 1
        %s807 = smul.addr %s806, 8
        %s808 = scalar_lea.vmem [#allocation13], %s807
        %p809 = pneg %p330
        %p810 = pneg %p327
        %s811 = sand.u32 %s42, 1
        %s812 = scalar_lea.sflag [#allocation14], %s811
        %s813 = sand.u32 %s343, 1
        %s814 = smul.addr %s813, 1024
        %s815 = scalar_lea.vmem [#allocation15], %s814
        %p816 = pneg %p356
        %p817 = pneg %p353
        %s818 = sand.u32 %s369, 1
        %s819 = scalar_lea.sflag [#allocation17], %s818
        %s820 = sand.u32 %s369, 1
        %s821 = smul.addr %s820, 2
        %s822 = scalar_lea.vmem [#allocation16], %s821
        %p823 = pneg %p382
        %p824 = pneg %p379
        %p825 = pneg %p408
        %p826 = pneg %p405
        %p827 = scmp.lt.s32.totalorder %s46, 1
        %s828 = scalar_select %p827, %s46, 1
        %s829 = smul.addr %s828, 16
        %s830 = smul.addr %s829, 8
        %s831 = scalar_lea.vmem %s13, %s830
        %p832 = scmp.lt.s32.totalorder %s46, 1
        %s833 = scalar_select %p832, %s46, 1
        %s834 = smul.addr %s833, 16
        %s835 = smul.addr %s834, 8
        %s836 = scalar_lea.vmem %s0, %s835
        %p837 = scmp.lt.s32.totalorder %s47, 3
        %s838 = scalar_select %p837, %s47, 3
        %s839 = smul.addr %s838, 192
        %s840 = smul.addr %s839, 4
        %s841 = scalar_lea.vmem %s4, %s840
        %p842 = scmp.lt.s32.totalorder %s46, 1
        %s843 = scalar_select %p842, %s46, 1
        %s844 = smul.addr %s843, 16
        %s845 = smul.addr %s844, 8
        %s846 = scalar_lea.vmem %s13, %s845
        %p848 = scmp.eq.s32.totalorder %s47, 0
        // Predicated region
        $region113: #{gpt_forward.2} parent=71 // pred_check
          %p849 = pneg %p848
        $region114: #{gpt_forward.2} parent=71 // pred_check_branch
          %851 = sbr.rel (%p849) target = $region116
        $region115: #{gpt_forward.2} parent=71 // pred_region
          %v852 = vld [vmem:[%s836] sm:$0xff]
          %v853 = vld [vmem:[%s836 + $0x8] sm:$0xff]
          %v854 = vld [vmem:[%s836 + $0x10] sm:$0xff]
          %v855 = vld [vmem:[%s836 + $0x18] sm:$0xff]
          %v856 = vld [vmem:[%s836 + $0x20] sm:$0xff]
          %v857 = vld [vmem:[%s836 + $0x28] sm:$0xff]
          %v858 = vld [vmem:[%s836 + $0x30] sm:$0xff]
          %v859 = vld [vmem:[%s836 + $0x38] sm:$0xff]
          %v860 = vld [vmem:[%s836 + $0x40] sm:$0xff]
          %v861 = vld [vmem:[%s836 + $0x48] sm:$0xff]
          %v862 = vld [vmem:[%s836 + $0x50] sm:$0xff]
          %v863 = vld [vmem:[%s836 + $0x58] sm:$0xff]
          %v864 = vld [vmem:[%s836 + $0x60] sm:$0xff]
          %v865 = vld [vmem:[%s836 + $0x68] sm:$0xff]
          %v866 = vld [vmem:[%s836 + $0x70] sm:$0xff]
          %v867 = vld [vmem:[%s836 + $0x78] sm:$0xff]
          %868 = vst [vmem:[%s846] sm:$0xff] %v852
          %869 = vst [vmem:[%s846 + $0x8] sm:$0xff] %v853
          %870 = vst [vmem:[%s846 + $0x10] sm:$0xff] %v854
          %871 = vst [vmem:[%s846 + $0x18] sm:$0xff] %v855
          %872 = vst [vmem:[%s846 + $0x20] sm:$0xff] %v856
          %873 = vst [vmem:[%s846 + $0x28] sm:$0xff] %v857
          %874 = vst [vmem:[%s846 + $0x30] sm:$0xff] %v858
          %875 = vst [vmem:[%s846 + $0x38] sm:$0xff] %v859
          %876 = vst [vmem:[%s846 + $0x40] sm:$0xff] %v860
          %877 = vst [vmem:[%s846 + $0x48] sm:$0xff] %v861
          %878 = vst [vmem:[%s846 + $0x50] sm:$0xff] %v862
          %879 = vst [vmem:[%s846 + $0x58] sm:$0xff] %v863
          %880 = vst [vmem:[%s846 + $0x60] sm:$0xff] %v864
          %881 = vst [vmem:[%s846 + $0x68] sm:$0xff] %v865
          %882 = vst [vmem:[%s846 + $0x70] sm:$0xff] %v866
          %883 = vst [vmem:[%s846 + $0x78] sm:$0xff] %v867
        $region116: #{gpt_forward.2} parent=71 // pred_fallthru
          _
        %v884 = vld [vmem:[%s846] sm:$0xff]
        %v885 = vld [vmem:[%s846 + $0x8] sm:$0xff]
        %v886 = vld [vmem:[%s846 + $0x10] sm:$0xff]
        %v887 = vld [vmem:[%s846 + $0x18] sm:$0xff]
        %v888 = vld [vmem:[%s846 + $0x20] sm:$0xff]
        %v889 = vld [vmem:[%s846 + $0x28] sm:$0xff]
        %v890 = vld [vmem:[%s846 + $0x30] sm:$0xff]
        %v891 = vld [vmem:[%s846 + $0x38] sm:$0xff]
        %v892 = vld [vmem:[%s846 + $0x40] sm:$0xff]
        %v893 = vld [vmem:[%s846 + $0x48] sm:$0xff]
        %v894 = vld [vmem:[%s846 + $0x50] sm:$0xff]
        %v895 = vld [vmem:[%s846 + $0x58] sm:$0xff]
        %v896 = vld [vmem:[%s846 + $0x60] sm:$0xff]
        %v897 = vld [vmem:[%s846 + $0x68] sm:$0xff]
        %v898 = vld [vmem:[%s846 + $0x70] sm:$0xff]
        %v899 = vld [vmem:[%s846 + $0x78] sm:$0xff]
        %v900 = vld [vmem:[%s653] sm:$0x3]
        %v901 = vld [vmem:[%s662] sm:$0x3]
        %v902 = vadd.f32 %v884, %v885
        %903 = vadd.xlane.f32.xlu0 %v902
        %v904 = vpop.xlane.xlu0 %903
        %v905 = vadd.f32 %v886, %v887
        %906 = vadd.xlane.f32.xlu0 %v905
        %v907 = vpop.xlane.xlu0 %906
        %v908 = vadd.f32 %v888, %v889
        %909 = vadd.xlane.f32.xlu0 %v908
        %v910 = vpop.xlane.xlu0 %909
        %v911 = vadd.f32 %v890, %v891
        %912 = vadd.xlane.f32.xlu0 %v911
        %v913 = vpop.xlane.xlu0 %912
        %v914 = vadd.f32 %v892, %v893
        %915 = vadd.xlane.f32.xlu0 %v914
        %v916 = vpop.xlane.xlu0 %915
        %v917 = vadd.f32 %v894, %v895
        %918 = vadd.xlane.f32.xlu0 %v917
        %v919 = vpop.xlane.xlu0 %918
        %v920 = vadd.f32 %v896, %v897
        %921 = vadd.xlane.f32.xlu0 %v920
        %v922 = vpop.xlane.xlu0 %921
        %v923 = vadd.f32 %v898, %v899
        %924 = vadd.xlane.f32.xlu0 %v923
        %v925 = vpop.xlane.xlu0 %924
        %v926 = vrcp.pop 256.0
        %v927 = vmul.f32 %v904, %v926
        %v928 = vmul.f32 %v907, %v926
        %v929 = vmul.f32 %v910, %v926
        %v930 = vmul.f32 %v913, %v926
        %v931 = vmul.f32 %v916, %v926
        %v932 = vmul.f32 %v919, %v926
        %v933 = vmul.f32 %v922, %v926
        %v934 = vmul.f32 %v925, %v926
        %v935 = vsub.f32 %v884, %v927
        %v936 = vsub.f32 %v885, %v927
        %v937 = vsub.f32 %v886, %v928
        %v938 = vsub.f32 %v887, %v928
        %v939 = vsub.f32 %v888, %v929
        %v940 = vsub.f32 %v889, %v929
        %v941 = vsub.f32 %v890, %v930
        %v942 = vsub.f32 %v891, %v930
        %v943 = vsub.f32 %v892, %v931
        %v944 = vsub.f32 %v893, %v931
        %v945 = vsub.f32 %v894, %v932
        %v946 = vsub.f32 %v895, %v932
        %v947 = vsub.f32 %v896, %v933
        %v948 = vsub.f32 %v897, %v933
        %v949 = vsub.f32 %v898, %v934
        %v950 = vsub.f32 %v899, %v934
        %v951 = vmul.f32 %v935, %v935
        %v952 = vmul.f32 %v936, %v936
        %v953 = vmul.f32 %v937, %v937
        %v954 = vmul.f32 %v938, %v938
        %v955 = vmul.f32 %v939, %v939
        %v956 = vmul.f32 %v940, %v940
        %v957 = vmul.f32 %v941, %v941
        %v958 = vmul.f32 %v942, %v942
        %v959 = vmul.f32 %v943, %v943
        %v960 = vmul.f32 %v944, %v944
        %v961 = vmul.f32 %v945, %v945
        %v962 = vmul.f32 %v946, %v946
        %v963 = vmul.f32 %v947, %v947
        %v964 = vmul.f32 %v948, %v948
        %v965 = vmul.f32 %v949, %v949
        %v966 = vmul.f32 %v950, %v950
        %v967 = vadd.f32 %v951, %v952
        %968 = vadd.xlane.f32.xlu0 %v967
        %v969 = vpop.xlane.xlu0 %968
        %v970 = vadd.f32 %v953, %v954
        %971 = vadd.xlane.f32.xlu0 %v970
        %v972 = vpop.xlane.xlu0 %971
        %v973 = vadd.f32 %v955, %v956
        %974 = vadd.xlane.f32.xlu0 %v973
        %v975 = vpop.xlane.xlu0 %974
        %v976 = vadd.f32 %v957, %v958
        %977 = vadd.xlane.f32.xlu0 %v976
        %v978 = vpop.xlane.xlu0 %977
        %v979 = vadd.f32 %v959, %v960
        %980 = vadd.xlane.f32.xlu0 %v979
        %v981 = vpop.xlane.xlu0 %980
        %v982 = vadd.f32 %v961, %v962
        %983 = vadd.xlane.f32.xlu0 %v982
        %v984 = vpop.xlane.xlu0 %983
        %v985 = vadd.f32 %v963, %v964
        %986 = vadd.xlane.f32.xlu0 %v985
        %v987 = vpop.xlane.xlu0 %986
        %v988 = vadd.f32 %v965, %v966
        %989 = vadd.xlane.f32.xlu0 %v988
        %v990 = vpop.xlane.xlu0 %989
        %v991 = vmul.f32 %v969, %v926
        %v992 = vmul.f32 %v972, %v926
        %v993 = vmul.f32 %v975, %v926
        %v994 = vmul.f32 %v978, %v926
        %v995 = vmul.f32 %v981, %v926
        %v996 = vmul.f32 %v984, %v926
        %v997 = vmul.f32 %v987, %v926
        %v998 = vmul.f32 %v990, %v926
        %v999 = vadd.f32 %v991, 1e-05
        %v1000 = vadd.f32 %v992, 1e-05
        %v1001 = vadd.f32 %v993, 1e-05
        %v1002 = vadd.f32 %v994, 1e-05
        %v1003 = vadd.f32 %v995, 1e-05
        %v1004 = vadd.f32 %v996, 1e-05
        %v1005 = vadd.f32 %v997, 1e-05
        %v1006 = vadd.f32 %v998, 1e-05
        %v1007 = vrsqrt.pop %v999
        %v1008 = vrsqrt.pop %v1000
        %v1009 = vrsqrt.pop %v1001
        %v1010 = vrsqrt.pop %v1002
        %v1011 = vrsqrt.pop %v1003
        %v1012 = vrsqrt.pop %v1004
        %v1013 = vrsqrt.pop %v1005
        %v1014 = vrsqrt.pop %v1006
        %v1015 = vmul.f32 %v935, %v1007
        %v1016 = vmul.f32 %v936, %v1007
        %v1017 = vmul.f32 %v937, %v1008
        %v1018 = vmul.f32 %v938, %v1008
        %v1019 = vmul.f32 %v939, %v1009
        %v1020 = vmul.f32 %v940, %v1009
        %v1021 = vmul.f32 %v941, %v1010
        %v1022 = vmul.f32 %v942, %v1010
        %v1023 = vmul.f32 %v943, %v1011
        %v1024 = vmul.f32 %v944, %v1011
        %v1025 = vmul.f32 %v945, %v1012
        %v1026 = vmul.f32 %v946, %v1012
        %v1027 = vmul.f32 %v947, %v1013
        %v1028 = vmul.f32 %v948, %v1013
        %v1029 = vmul.f32 %v949, %v1014
        %v1030 = vmul.f32 %v950, %v1014
        %v1032 = vlaneseq
        %v1033 = vshrl.u32 %v1032, 7
        %v1034 = vsub.s32 0, %v1033
        %v1035 = vrot.slane %v900, %v1034
        %v1036 = vlaneseq
        %v1037 = vshrl.u32 %v1036, 7
        %v1038 = vsub.s32 1, %v1037
        %v1039 = vrot.slane %v900, %v1038
        %v1042 = vmul.f32 %v1015, %v1035
        %v1043 = vmul.f32 %v1016, %v1039
        %v1044 = vmul.f32 %v1017, %v1035
        %v1045 = vmul.f32 %v1018, %v1039
        %v1046 = vmul.f32 %v1019, %v1035
        %v1047 = vmul.f32 %v1020, %v1039
        %v1048 = vmul.f32 %v1021, %v1035
        %v1049 = vmul.f32 %v1022, %v1039
        %v1050 = vmul.f32 %v1023, %v1035
        %v1051 = vmul.f32 %v1024, %v1039
        %v1052 = vmul.f32 %v1025, %v1035
        %v1053 = vmul.f32 %v1026, %v1039
        %v1054 = vmul.f32 %v1027, %v1035
        %v1055 = vmul.f32 %v1028, %v1039
        %v1056 = vmul.f32 %v1029, %v1035
        %v1057 = vmul.f32 %v1030, %v1039
        %v1059 = vlaneseq
        %v1060 = vshrl.u32 %v1059, 7
        %v1061 = vsub.s32 0, %v1060
        %v1062 = vrot.slane %v901, %v1061
        %v1063 = vlaneseq
        %v1064 = vshrl.u32 %v1063, 7
        %v1065 = vsub.s32 1, %v1064
        %v1066 = vrot.slane %v901, %v1065
        %v1069 = vadd.f32 %v1042, %v1062
        %v1070 = vadd.f32 %v1043, %v1066
        %v1071 = vadd.f32 %v1044, %v1062
        %v1072 = vadd.f32 %v1045, %v1066
        %v1073 = vadd.f32 %v1046, %v1062
        %v1074 = vadd.f32 %v1047, %v1066
        %v1075 = vadd.f32 %v1048, %v1062
        %v1076 = vadd.f32 %v1049, %v1066
        %v1077 = vadd.f32 %v1050, %v1062
        %v1078 = vadd.f32 %v1051, %v1066
        %v1079 = vadd.f32 %v1052, %v1062
        %v1080 = vadd.f32 %v1053, %v1066
        %v1081 = vadd.f32 %v1054, %v1062
        %v1082 = vadd.f32 %v1055, %v1066
        %v1083 = vadd.f32 %v1056, %v1062
        %v1084 = vadd.f32 %v1057, %v1066
        %v1085 = vpack.c.bf16 %v1071, %v1069
        %v1086 = vpack.c.bf16 %v1072, %v1070
        %v1087 = vpack.c.bf16 %v1075, %v1073
        %v1088 = vpack.c.bf16 %v1076, %v1074
        %v1089 = vpack.c.bf16 %v1079, %v1077
        %v1090 = vpack.c.bf16 %v1080, %v1078
        %v1091 = vpack.c.bf16 %v1083, %v1081
        %v1092 = vpack.c.bf16 %v1084, %v1082
        %v1093 = vld [vmem:[%s841] sm:$0xff]
        %v1094 = vld [vmem:[%s841 + $0x8] sm:$0xff]
        %v1095 = vld [vmem:[%s841 + $0x10] sm:$0xff]
        %v1096 = vld [vmem:[%s841 + $0x18] sm:$0xff]
        %v1097 = vld [vmem:[%s841 + $0x20] sm:$0xff]
        %v1098 = vld [vmem:[%s841 + $0x28] sm:$0xff]
        %v1099 = vld [vmem:[%s841 + $0x30] sm:$0xff]
        %v1100 = vld [vmem:[%s841 + $0x38] sm:$0xff]
        %v1101 = vld [vmem:[%s841 + $0x40] sm:$0xff]
        %v1102 = vld [vmem:[%s841 + $0x48] sm:$0xff]
        %v1103 = vld [vmem:[%s841 + $0x50] sm:$0xff]
        %v1104 = vld [vmem:[%s841 + $0x58] sm:$0xff]
        %v1105 = vld [vmem:[%s841 + $0x60] sm:$0xff]
        %v1106 = vld [vmem:[%s841 + $0x68] sm:$0xff]
        %v1107 = vld [vmem:[%s841 + $0x70] sm:$0xff]
        %v1108 = vld [vmem:[%s841 + $0x78] sm:$0xff]
        %v1109 = vld [vmem:[%s841 + $0x80] sm:$0xff]
        %v1110 = vld [vmem:[%s841 + $0x88] sm:$0xff]
        %v1111 = vld [vmem:[%s841 + $0x90] sm:$0xff]
        %v1112 = vld [vmem:[%s841 + $0x98] sm:$0xff]
        %v1113 = vld [vmem:[%s841 + $0xa0] sm:$0xff]
        %v1114 = vld [vmem:[%s841 + $0xa8] sm:$0xff]
        %v1115 = vld [vmem:[%s841 + $0xb0] sm:$0xff]
        %v1116 = vld [vmem:[%s841 + $0xb8] sm:$0xff]
        %v1117 = vld [vmem:[%s841 + $0xc0] sm:$0xff]
        %v1118 = vld [vmem:[%s841 + $0xc8] sm:$0xff]
        %v1119 = vld [vmem:[%s841 + $0xd0] sm:$0xff]
        %v1120 = vld [vmem:[%s841 + $0xd8] sm:$0xff]
        %v1121 = vld [vmem:[%s841 + $0xe0] sm:$0xff]
        %v1122 = vld [vmem:[%s841 + $0xe8] sm:$0xff]
        %v1123 = vld [vmem:[%s841 + $0xf0] sm:$0xff]
        %v1124 = vld [vmem:[%s841 + $0xf8] sm:$0xff]
        %v1125 = vld [vmem:[%s841 + $0x100] sm:$0xff]
        %v1126 = vld [vmem:[%s841 + $0x108] sm:$0xff]
        %v1127 = vld [vmem:[%s841 + $0x110] sm:$0xff]
        %v1128 = vld [vmem:[%s841 + $0x118] sm:$0xff]
        %v1129 = vld [vmem:[%s841 + $0x120] sm:$0xff]
        %v1130 = vld [vmem:[%s841 + $0x128] sm:$0xff]
        %v1131 = vld [vmem:[%s841 + $0x130] sm:$0xff]
        %v1132 = vld [vmem:[%s841 + $0x138] sm:$0xff]
        %v1133 = vld [vmem:[%s841 + $0x140] sm:$0xff]
        %v1134 = vld [vmem:[%s841 + $0x148] sm:$0xff]
        %v1135 = vld [vmem:[%s841 + $0x150] sm:$0xff]
        %v1136 = vld [vmem:[%s841 + $0x158] sm:$0xff]
        %v1137 = vld [vmem:[%s841 + $0x160] sm:$0xff]
        %v1138 = vld [vmem:[%s841 + $0x168] sm:$0xff]
        %v1139 = vld [vmem:[%s841 + $0x170] sm:$0xff]
        %v1140 = vld [vmem:[%s841 + $0x178] sm:$0xff]
        %v1141 = vld [vmem:[%s841 + $0x180] sm:$0xff]
        %v1142 = vld [vmem:[%s841 + $0x188] sm:$0xff]
        %v1143 = vld [vmem:[%s841 + $0x190] sm:$0xff]
        %v1144 = vld [vmem:[%s841 + $0x198] sm:$0xff]
        %v1145 = vld [vmem:[%s841 + $0x1a0] sm:$0xff]
        %v1146 = vld [vmem:[%s841 + $0x1a8] sm:$0xff]
        %v1147 = vld [vmem:[%s841 + $0x1b0] sm:$0xff]
        %v1148 = vld [vmem:[%s841 + $0x1b8] sm:$0xff]
        %v1149 = vld [vmem:[%s841 + $0x1c0] sm:$0xff]
        %v1150 = vld [vmem:[%s841 + $0x1c8] sm:$0xff]
        %v1151 = vld [vmem:[%s841 + $0x1d0] sm:$0xff]
        %v1152 = vld [vmem:[%s841 + $0x1d8] sm:$0xff]
        %v1153 = vld [vmem:[%s841 + $0x1e0] sm:$0xff]
        %v1154 = vld [vmem:[%s841 + $0x1e8] sm:$0xff]
        %v1155 = vld [vmem:[%s841 + $0x1f0] sm:$0xff]
        %v1156 = vld [vmem:[%s841 + $0x1f8] sm:$0xff]
        %v1157 = vld [vmem:[%s841 + $0x200] sm:$0xff]
        %v1158 = vld [vmem:[%s841 + $0x208] sm:$0xff]
        %v1159 = vld [vmem:[%s841 + $0x210] sm:$0xff]
        %v1160 = vld [vmem:[%s841 + $0x218] sm:$0xff]
        %v1161 = vld [vmem:[%s841 + $0x220] sm:$0xff]
        %v1162 = vld [vmem:[%s841 + $0x228] sm:$0xff]
        %v1163 = vld [vmem:[%s841 + $0x230] sm:$0xff]
        %v1164 = vld [vmem:[%s841 + $0x238] sm:$0xff]
        %v1165 = vld [vmem:[%s841 + $0x240] sm:$0xff]
        %v1166 = vld [vmem:[%s841 + $0x248] sm:$0xff]
        %v1167 = vld [vmem:[%s841 + $0x250] sm:$0xff]
        %v1168 = vld [vmem:[%s841 + $0x258] sm:$0xff]
        %v1169 = vld [vmem:[%s841 + $0x260] sm:$0xff]
        %v1170 = vld [vmem:[%s841 + $0x268] sm:$0xff]
        %v1171 = vld [vmem:[%s841 + $0x270] sm:$0xff]
        %v1172 = vld [vmem:[%s841 + $0x278] sm:$0xff]
        %v1173 = vld [vmem:[%s841 + $0x280] sm:$0xff]
        %v1174 = vld [vmem:[%s841 + $0x288] sm:$0xff]
        %v1175 = vld [vmem:[%s841 + $0x290] sm:$0xff]
        %v1176 = vld [vmem:[%s841 + $0x298] sm:$0xff]
        %v1177 = vld [vmem:[%s841 + $0x2a0] sm:$0xff]
        %v1178 = vld [vmem:[%s841 + $0x2a8] sm:$0xff]
        %v1179 = vld [vmem:[%s841 + $0x2b0] sm:$0xff]
        %v1180 = vld [vmem:[%s841 + $0x2b8] sm:$0xff]
        %v1181 = vld [vmem:[%s841 + $0x2c0] sm:$0xff]
        %v1182 = vld [vmem:[%s841 + $0x2c8] sm:$0xff]
        %v1183 = vld [vmem:[%s841 + $0x2d0] sm:$0xff]
        %v1184 = vld [vmem:[%s841 + $0x2d8] sm:$0xff]
        %v1185 = vld [vmem:[%s841 + $0x2e0] sm:$0xff]
        %v1186 = vld [vmem:[%s841 + $0x2e8] sm:$0xff]
        %v1187 = vld [vmem:[%s841 + $0x2f0] sm:$0xff]
        %v1188 = vld [vmem:[%s841 + $0x2f8] sm:$0xff]
        %v1285 = vunpack.c.l.b16 %v1093
        %v1286 = vunpack.c.h.b16 %v1093
        %v1287 = vunpack.c.l.b16 %v1094
        %v1288 = vunpack.c.h.b16 %v1094
        %v1289 = vunpack.c.l.b16 %v1095
        %v1290 = vunpack.c.h.b16 %v1095
        %v1291 = vunpack.c.l.b16 %v1096
        %v1292 = vunpack.c.h.b16 %v1096
        %v1293 = vunpack.c.l.b16 %v1097
        %v1294 = vunpack.c.h.b16 %v1097
        %v1295 = vunpack.c.l.b16 %v1098
        %v1296 = vunpack.c.h.b16 %v1098
        %v1297 = vunpack.c.l.b16 %v1099
        %v1298 = vunpack.c.h.b16 %v1099
        %v1299 = vunpack.c.l.b16 %v1100
        %v1300 = vunpack.c.h.b16 %v1100
        %v1301 = vunpack.c.l.b16 %v1101
        %v1302 = vunpack.c.h.b16 %v1101
        %v1303 = vunpack.c.l.b16 %v1102
        %v1304 = vunpack.c.h.b16 %v1102
        %v1305 = vunpack.c.l.b16 %v1103
        %v1306 = vunpack.c.h.b16 %v1103
        %v1307 = vunpack.c.l.b16 %v1104
        %v1308 = vunpack.c.h.b16 %v1104
        %v1309 = vunpack.c.l.b16 %v1105
        %v1310 = vunpack.c.h.b16 %v1105
        %v1311 = vunpack.c.l.b16 %v1106
        %v1312 = vunpack.c.h.b16 %v1106
        %v1313 = vunpack.c.l.b16 %v1107
        %v1314 = vunpack.c.h.b16 %v1107
        %v1315 = vunpack.c.l.b16 %v1108
        %v1316 = vunpack.c.h.b16 %v1108
        %v1317 = vunpack.c.l.b16 %v1109
        %v1318 = vunpack.c.h.b16 %v1109
        %v1319 = vunpack.c.l.b16 %v1110
        %v1320 = vunpack.c.h.b16 %v1110
        %v1321 = vunpack.c.l.b16 %v1111
        %v1322 = vunpack.c.h.b16 %v1111
        %v1323 = vunpack.c.l.b16 %v1112
        %v1324 = vunpack.c.h.b16 %v1112
        %v1325 = vunpack.c.l.b16 %v1113
        %v1326 = vunpack.c.h.b16 %v1113
        %v1327 = vunpack.c.l.b16 %v1114
        %v1328 = vunpack.c.h.b16 %v1114
        %v1329 = vunpack.c.l.b16 %v1115
        %v1330 = vunpack.c.h.b16 %v1115
        %v1331 = vunpack.c.l.b16 %v1116
        %v1332 = vunpack.c.h.b16 %v1116
        %v1333 = vunpack.c.l.b16 %v1117
        %v1334 = vunpack.c.h.b16 %v1117
        %v1335 = vunpack.c.l.b16 %v1118
        %v1336 = vunpack.c.h.b16 %v1118
        %v1337 = vunpack.c.l.b16 %v1119
        %v1338 = vunpack.c.h.b16 %v1119
        %v1339 = vunpack.c.l.b16 %v1120
        %v1340 = vunpack.c.h.b16 %v1120
        %v1341 = vunpack.c.l.b16 %v1121
        %v1342 = vunpack.c.h.b16 %v1121
        %v1343 = vunpack.c.l.b16 %v1122
        %v1344 = vunpack.c.h.b16 %v1122
        %v1345 = vunpack.c.l.b16 %v1123
        %v1346 = vunpack.c.h.b16 %v1123
        %v1347 = vunpack.c.l.b16 %v1124
        %v1348 = vunpack.c.h.b16 %v1124
        %v1349 = vunpack.c.l.b16 %v1125
        %v1350 = vunpack.c.h.b16 %v1125
        %v1351 = vunpack.c.l.b16 %v1126
        %v1352 = vunpack.c.h.b16 %v1126
        %v1353 = vunpack.c.l.b16 %v1127
        %v1354 = vunpack.c.h.b16 %v1127
        %v1355 = vunpack.c.l.b16 %v1128
        %v1356 = vunpack.c.h.b16 %v1128
        %v1357 = vunpack.c.l.b16 %v1129
        %v1358 = vunpack.c.h.b16 %v1129
        %v1359 = vunpack.c.l.b16 %v1130
        %v1360 = vunpack.c.h.b16 %v1130
        %v1361 = vunpack.c.l.b16 %v1131
        %v1362 = vunpack.c.h.b16 %v1131
        %v1363 = vunpack.c.l.b16 %v1132
        %v1364 = vunpack.c.h.b16 %v1132
        %v1365 = vunpack.c.l.b16 %v1133
        %v1366 = vunpack.c.h.b16 %v1133
        %v1367 = vunpack.c.l.b16 %v1134
        %v1368 = vunpack.c.h.b16 %v1134
        %v1369 = vunpack.c.l.b16 %v1135
        %v1370 = vunpack.c.h.b16 %v1135
        %v1371 = vunpack.c.l.b16 %v1136
        %v1372 = vunpack.c.h.b16 %v1136
        %v1373 = vunpack.c.l.b16 %v1137
        %v1374 = vunpack.c.h.b16 %v1137
        %v1375 = vunpack.c.l.b16 %v1138
        %v1376 = vunpack.c.h.b16 %v1138
        %v1377 = vunpack.c.l.b16 %v1139
        %v1378 = vunpack.c.h.b16 %v1139
        %v1379 = vunpack.c.l.b16 %v1140
        %v1380 = vunpack.c.h.b16 %v1140
        %v1381 = vunpack.c.l.b16 %v1141
        %v1382 = vunpack.c.h.b16 %v1141
        %v1383 = vunpack.c.l.b16 %v1142
        %v1384 = vunpack.c.h.b16 %v1142
        %v1385 = vunpack.c.l.b16 %v1143
        %v1386 = vunpack.c.h.b16 %v1143
        %v1387 = vunpack.c.l.b16 %v1144
        %v1388 = vunpack.c.h.b16 %v1144
        %v1389 = vunpack.c.l.b16 %v1145
        %v1390 = vunpack.c.h.b16 %v1145
        %v1391 = vunpack.c.l.b16 %v1146
        %v1392 = vunpack.c.h.b16 %v1146
        %v1393 = vunpack.c.l.b16 %v1147
        %v1394 = vunpack.c.h.b16 %v1147
        %v1395 = vunpack.c.l.b16 %v1148
        %v1396 = vunpack.c.h.b16 %v1148
        %v1397 = vunpack.c.l.b16 %v1149
        %v1398 = vunpack.c.h.b16 %v1149
        %v1399 = vunpack.c.l.b16 %v1150
        %v1400 = vunpack.c.h.b16 %v1150
        %v1401 = vunpack.c.l.b16 %v1151
        %v1402 = vunpack.c.h.b16 %v1151
        %v1403 = vunpack.c.l.b16 %v1152
        %v1404 = vunpack.c.h.b16 %v1152
        %v1405 = vunpack.c.l.b16 %v1153
        %v1406 = vunpack.c.h.b16 %v1153
        %v1407 = vunpack.c.l.b16 %v1154
        %v1408 = vunpack.c.h.b16 %v1154
        %v1409 = vunpack.c.l.b16 %v1155
        %v1410 = vunpack.c.h.b16 %v1155
        %v1411 = vunpack.c.l.b16 %v1156
        %v1412 = vunpack.c.h.b16 %v1156
        %v1413 = vunpack.c.l.b16 %v1157
        %v1414 = vunpack.c.h.b16 %v1157
        %v1415 = vunpack.c.l.b16 %v1158
        %v1416 = vunpack.c.h.b16 %v1158
        %v1417 = vunpack.c.l.b16 %v1159
        %v1418 = vunpack.c.h.b16 %v1159
        %v1419 = vunpack.c.l.b16 %v1160
        %v1420 = vunpack.c.h.b16 %v1160
        %v1421 = vunpack.c.l.b16 %v1161
        %v1422 = vunpack.c.h.b16 %v1161
        %v1423 = vunpack.c.l.b16 %v1162
        %v1424 = vunpack.c.h.b16 %v1162
        %v1425 = vunpack.c.l.b16 %v1163
        %v1426 = vunpack.c.h.b16 %v1163
        %v1427 = vunpack.c.l.b16 %v1164
        %v1428 = vunpack.c.h.b16 %v1164
        %v1429 = vunpack.c.l.b16 %v1165
        %v1430 = vunpack.c.h.b16 %v1165
        %v1431 = vunpack.c.l.b16 %v1166
        %v1432 = vunpack.c.h.b16 %v1166
        %v1433 = vunpack.c.l.b16 %v1167
        %v1434 = vunpack.c.h.b16 %v1167
        %v1435 = vunpack.c.l.b16 %v1168
        %v1436 = vunpack.c.h.b16 %v1168
        %v1437 = vunpack.c.l.b16 %v1169
        %v1438 = vunpack.c.h.b16 %v1169
        %v1439 = vunpack.c.l.b16 %v1170
        %v1440 = vunpack.c.h.b16 %v1170
        %v1441 = vunpack.c.l.b16 %v1171
        %v1442 = vunpack.c.h.b16 %v1171
        %v1443 = vunpack.c.l.b16 %v1172
        %v1444 = vunpack.c.h.b16 %v1172
        %v1445 = vunpack.c.l.b16 %v1173
        %v1446 = vunpack.c.h.b16 %v1173
        %v1447 = vunpack.c.l.b16 %v1174
        %v1448 = vunpack.c.h.b16 %v1174
        %v1449 = vunpack.c.l.b16 %v1175
        %v1450 = vunpack.c.h.b16 %v1175
        %v1451 = vunpack.c.l.b16 %v1176
        %v1452 = vunpack.c.h.b16 %v1176
        %v1453 = vunpack.c.l.b16 %v1177
        %v1454 = vunpack.c.h.b16 %v1177
        %v1455 = vunpack.c.l.b16 %v1178
        %v1456 = vunpack.c.h.b16 %v1178
        %v1457 = vunpack.c.l.b16 %v1179
        %v1458 = vunpack.c.h.b16 %v1179
        %v1459 = vunpack.c.l.b16 %v1180
        %v1460 = vunpack.c.h.b16 %v1180
        %v1461 = vunpack.c.l.b16 %v1181
        %v1462 = vunpack.c.h.b16 %v1181
        %v1463 = vunpack.c.l.b16 %v1182
        %v1464 = vunpack.c.h.b16 %v1182
        %v1465 = vunpack.c.l.b16 %v1183
        %v1466 = vunpack.c.h.b16 %v1183
        %v1467 = vunpack.c.l.b16 %v1184
        %v1468 = vunpack.c.h.b16 %v1184
        %v1469 = vunpack.c.l.b16 %v1185
        %v1470 = vunpack.c.h.b16 %v1185
        %v1471 = vunpack.c.l.b16 %v1186
        %v1472 = vunpack.c.h.b16 %v1186
        %v1473 = vunpack.c.l.b16 %v1187
        %v1474 = vunpack.c.h.b16 %v1187
        %v1475 = vunpack.c.l.b16 %v1188
        %v1476 = vunpack.c.h.b16 %v1188
        %v1477 = vpack.c.b16 %v1291, %v1285
        %v1478 = vpack.c.b16 %v1292, %v1286
        %v1479 = vpack.c.b16 %v1293, %v1287
        %v1480 = vpack.c.b16 %v1294, %v1288
        %v1481 = vpack.c.b16 %v1295, %v1289
        %v1482 = vpack.c.b16 %v1296, %v1290
        %v1483 = vpack.c.b16 %v1303, %v1297
        %v1484 = vpack.c.b16 %v1304, %v1298
        %v1485 = vpack.c.b16 %v1305, %v1299
        %v1486 = vpack.c.b16 %v1306, %v1300
        %v1487 = vpack.c.b16 %v1307, %v1301
        %v1488 = vpack.c.b16 %v1308, %v1302
        %v1489 = vpack.c.b16 %v1315, %v1309
        %v1490 = vpack.c.b16 %v1316, %v1310
        %v1491 = vpack.c.b16 %v1317, %v1311
        %v1492 = vpack.c.b16 %v1318, %v1312
        %v1493 = vpack.c.b16 %v1319, %v1313
        %v1494 = vpack.c.b16 %v1320, %v1314
        %v1495 = vpack.c.b16 %v1327, %v1321
        %v1496 = vpack.c.b16 %v1328, %v1322
        %v1497 = vpack.c.b16 %v1329, %v1323
        %v1498 = vpack.c.b16 %v1330, %v1324
        %v1499 = vpack.c.b16 %v1331, %v1325
        %v1500 = vpack.c.b16 %v1332, %v1326
        %v1501 = vpack.c.b16 %v1339, %v1333
        %v1502 = vpack.c.b16 %v1340, %v1334
        %v1503 = vpack.c.b16 %v1341, %v1335
        %v1504 = vpack.c.b16 %v1342, %v1336
        %v1505 = vpack.c.b16 %v1343, %v1337
        %v1506 = vpack.c.b16 %v1344, %v1338
        %v1507 = vpack.c.b16 %v1351, %v1345
        %v1508 = vpack.c.b16 %v1352, %v1346
        %v1509 = vpack.c.b16 %v1353, %v1347
        %v1510 = vpack.c.b16 %v1354, %v1348
        %v1511 = vpack.c.b16 %v1355, %v1349
        %v1512 = vpack.c.b16 %v1356, %v1350
        %v1513 = vpack.c.b16 %v1363, %v1357
        %v1514 = vpack.c.b16 %v1364, %v1358
        %v1515 = vpack.c.b16 %v1365, %v1359
        %v1516 = vpack.c.b16 %v1366, %v1360
        %v1517 = vpack.c.b16 %v1367, %v1361
        %v1518 = vpack.c.b16 %v1368, %v1362
        %v1519 = vpack.c.b16 %v1375, %v1369
        %v1520 = vpack.c.b16 %v1376, %v1370
        %v1521 = vpack.c.b16 %v1377, %v1371
        %v1522 = vpack.c.b16 %v1378, %v1372
        %v1523 = vpack.c.b16 %v1379, %v1373
        %v1524 = vpack.c.b16 %v1380, %v1374
        %v1525 = vpack.c.b16 %v1387, %v1381
        %v1526 = vpack.c.b16 %v1388, %v1382
        %v1527 = vpack.c.b16 %v1389, %v1383
        %v1528 = vpack.c.b16 %v1390, %v1384
        %v1529 = vpack.c.b16 %v1391, %v1385
        %v1530 = vpack.c.b16 %v1392, %v1386
        %v1531 = vpack.c.b16 %v1399, %v1393
        %v1532 = vpack.c.b16 %v1400, %v1394
        %v1533 = vpack.c.b16 %v1401, %v1395
        %v1534 = vpack.c.b16 %v1402, %v1396
        %v1535 = vpack.c.b16 %v1403, %v1397
        %v1536 = vpack.c.b16 %v1404, %v1398
        %v1537 = vpack.c.b16 %v1411, %v1405
        %v1538 = vpack.c.b16 %v1412, %v1406
        %v1539 = vpack.c.b16 %v1413, %v1407
        %v1540 = vpack.c.b16 %v1414, %v1408
        %v1541 = vpack.c.b16 %v1415, %v1409
        %v1542 = vpack.c.b16 %v1416, %v1410
        %v1543 = vpack.c.b16 %v1423, %v1417
        %v1544 = vpack.c.b16 %v1424, %v1418
        %v1545 = vpack.c.b16 %v1425, %v1419
        %v1546 = vpack.c.b16 %v1426, %v1420
        %v1547 = vpack.c.b16 %v1427, %v1421
        %v1548 = vpack.c.b16 %v1428, %v1422
        %v1549 = vpack.c.b16 %v1435, %v1429
        %v1550 = vpack.c.b16 %v1436, %v1430
        %v1551 = vpack.c.b16 %v1437, %v1431
        %v1552 = vpack.c.b16 %v1438, %v1432
        %v1553 = vpack.c.b16 %v1439, %v1433
        %v1554 = vpack.c.b16 %v1440, %v1434
        %v1555 = vpack.c.b16 %v1447, %v1441
        %v1556 = vpack.c.b16 %v1448, %v1442
        %v1557 = vpack.c.b16 %v1449, %v1443
        %v1558 = vpack.c.b16 %v1450, %v1444
        %v1559 = vpack.c.b16 %v1451, %v1445
        %v1560 = vpack.c.b16 %v1452, %v1446
        %v1561 = vpack.c.b16 %v1459, %v1453
        %v1562 = vpack.c.b16 %v1460, %v1454
        %v1563 = vpack.c.b16 %v1461, %v1455
        %v1564 = vpack.c.b16 %v1462, %v1456
        %v1565 = vpack.c.b16 %v1463, %v1457
        %v1566 = vpack.c.b16 %v1464, %v1458
        %v1567 = vpack.c.b16 %v1471, %v1465
        %v1568 = vpack.c.b16 %v1472, %v1466
        %v1569 = vpack.c.b16 %v1473, %v1467
        %v1570 = vpack.c.b16 %v1474, %v1468
        %v1571 = vpack.c.b16 %v1475, %v1469
        %v1572 = vpack.c.b16 %v1476, %v1470
        %1669 = vmatprep.subr.bf16.mxu0 %v1520
        %1670 = vmatpush1.bf16.msra.mxu0 %v1519
        %1671 = vmatprep.subr.bf16.mxu0 %v1514
        %1672 = vmatpush1.bf16.msra.mxu0 %v1513
        %1673 = vmatprep.subr.bf16.mxu0 %v1508
        %1674 = vmatpush1.bf16.msra.mxu0 %v1507
        %1675 = vmatprep.subr.bf16.mxu0 %v1502
        %1676 = vmatpush1.bf16.msra.mxu0 %v1501
        %1677 = vmatprep.subr.bf16.mxu0 %v1496
        %1678 = vmatpush1.bf16.msra.mxu0 %v1495
        %1679 = vmatprep.subr.bf16.mxu0 %v1490
        %1680 = vmatpush1.bf16.msra.mxu0 %v1489
        %1681 = vmatprep.subr.bf16.mxu0 %v1484
        %1682 = vmatpush1.bf16.msra.mxu0 %v1483
        %1683 = vmatprep.subr.bf16.mxu0 %v1478
        %1684 = vmatpush1.bf16.msra.mxu0 %v1477
        %1685 = vmatprep.subr.bf16.mxu0 %v1568
        %1686 = vmatpush2.bf16.msra.mxu0 %v1567
        %1687 = vmatprep.subr.bf16.mxu0 %v1562
        %1688 = vmatpush2.bf16.msra.mxu0 %v1561
        %1689 = vmatprep.subr.bf16.mxu0 %v1556
        %1690 = vmatpush2.bf16.msra.mxu0 %v1555
        %1691 = vmatprep.subr.bf16.mxu0 %v1550
        %1692 = vmatpush2.bf16.msra.mxu0 %v1549
        %1693 = vmatprep.subr.bf16.mxu0 %v1544
        %1694 = vmatpush2.bf16.msra.mxu0 %v1543
        %1695 = vmatprep.subr.bf16.mxu0 %v1538
        %1696 = vmatpush2.bf16.msra.mxu0 %v1537
        %1697 = vmatprep.subr.bf16.mxu0 %v1532
        %1698 = vmatpush2.bf16.msra.mxu0 %v1531
        %1699 = vmatprep.subr.bf16.mxu0 %v1526
        %1700 = vmatpush2.bf16.msra.mxu0 %v1525
        %1701 = vmatprep.mubr.bf16.mxu0 %v1086
        %1702 = vmatmul.mubr.bf16.gmra.mxu0 %v1085
        %v1703 = vpop.f32.mrf.mxu0
        %v1704 = vadd.f32 0.0, %v1703
        %v1705 = vpop.f32.mrf.mxu0
        %v1706 = vadd.f32 0.0, %v1705
        %v1707 = vpop.f32.mrf.mxu0
        %v1708 = vadd.f32 0.0, %v1707
        %v1709 = vpop.f32.mrf.mxu0
        %v1710 = vadd.f32 0.0, %v1709
        %1711 = vmatprep.mubr.bf16.mxu0 %v1088
        %1712 = vmatmul.mubr.bf16.gmra.mxu0 %v1087
        %v1713 = vpop.f32.mrf.mxu0
        %v1714 = vadd.f32 0.0, %v1713
        %v1715 = vpop.f32.mrf.mxu0
        %v1716 = vadd.f32 0.0, %v1715
        %v1717 = vpop.f32.mrf.mxu0
        %v1718 = vadd.f32 0.0, %v1717
        %v1719 = vpop.f32.mrf.mxu0
        %v1720 = vadd.f32 0.0, %v1719
        %1721 = vmatprep.mubr.bf16.mxu0 %v1090
        %1722 = vmatmul.mubr.bf16.gmra.mxu0 %v1089
        %v1723 = vpop.f32.mrf.mxu0
        %v1724 = vadd.f32 0.0, %v1723
        %v1725 = vpop.f32.mrf.mxu0
        %v1726 = vadd.f32 0.0, %v1725
        %v1727 = vpop.f32.mrf.mxu0
        %v1728 = vadd.f32 0.0, %v1727
        %v1729 = vpop.f32.mrf.mxu0
        %v1730 = vadd.f32 0.0, %v1729
        %1731 = vmatprep.mubr.bf16.mxu0 %v1092
        %1732 = vmatmul.mubr.bf16.gmra.mxu0 %v1091
        %v1733 = vpop.f32.mrf.mxu0
        %v1734 = vadd.f32 0.0, %v1733
        %v1735 = vpop.f32.mrf.mxu0
        %v1736 = vadd.f32 0.0, %v1735
        %v1737 = vpop.f32.mrf.mxu0
        %v1738 = vadd.f32 0.0, %v1737
        %v1739 = vpop.f32.mrf.mxu0
        %v1740 = vadd.f32 0.0, %v1739
        %1741 = vdwg.mxu0
        %1742 = vmatprep.subr.bf16.mxu0 %v1522
        %1743 = vmatpush1.bf16.msra.mxu0 %v1521
        %1744 = vmatprep.subr.bf16.mxu0 %v1516
        %1745 = vmatpush1.bf16.msra.mxu0 %v1515
        %1746 = vmatprep.subr.bf16.mxu0 %v1510
        %1747 = vmatpush1.bf16.msra.mxu0 %v1509
        %1748 = vmatprep.subr.bf16.mxu0 %v1504
        %1749 = vmatpush1.bf16.msra.mxu0 %v1503
        %1750 = vmatprep.subr.bf16.mxu0 %v1498
        %1751 = vmatpush1.bf16.msra.mxu0 %v1497
        %1752 = vmatprep.subr.bf16.mxu0 %v1492
        %1753 = vmatpush1.bf16.msra.mxu0 %v1491
        %1754 = vmatprep.subr.bf16.mxu0 %v1486
        %1755 = vmatpush1.bf16.msra.mxu0 %v1485
        %1756 = vmatprep.subr.bf16.mxu0 %v1480
        %1757 = vmatpush1.bf16.msra.mxu0 %v1479
        %1758 = vmatprep.subr.bf16.mxu0 %v1570
        %1759 = vmatpush2.bf16.msra.mxu0 %v1569
        %1760 = vmatprep.subr.bf16.mxu0 %v1564
        %1761 = vmatpush2.bf16.msra.mxu0 %v1563
        %1762 = vmatprep.subr.bf16.mxu0 %v1558
        %1763 = vmatpush2.bf16.msra.mxu0 %v1557
        %1764 = vmatprep.subr.bf16.mxu0 %v1552
        %1765 = vmatpush2.bf16.msra.mxu0 %v1551
        %1766 = vmatprep.subr.bf16.mxu0 %v1546
        %1767 = vmatpush2.bf16.msra.mxu0 %v1545
        %1768 = vmatprep.subr.bf16.mxu0 %v1540
        %1769 = vmatpush2.bf16.msra.mxu0 %v1539
        %1770 = vmatprep.subr.bf16.mxu0 %v1534
        %1771 = vmatpush2.bf16.msra.mxu0 %v1533
        %1772 = vmatprep.subr.bf16.mxu0 %v1528
        %1773 = vmatpush2.bf16.msra.mxu0 %v1527
        %1774 = vmatprep.mubr.bf16.mxu0 %v1086
        %1775 = vmatmul.mubr.bf16.gmra.mxu0 %v1085
        %v1776 = vpop.f32.mrf.mxu0
        %v1777 = vadd.f32 0.0, %v1776
        %v1778 = vpop.f32.mrf.mxu0
        %v1779 = vadd.f32 0.0, %v1778
        %v1780 = vpop.f32.mrf.mxu0
        %v1781 = vadd.f32 0.0, %v1780
        %v1782 = vpop.f32.mrf.mxu0
        %v1783 = vadd.f32 0.0, %v1782
        %1784 = vmatprep.mubr.bf16.mxu0 %v1088
        %1785 = vmatmul.mubr.bf16.gmra.mxu0 %v1087
        %v1786 = vpop.f32.mrf.mxu0
        %v1787 = vadd.f32 0.0, %v1786
        %v1788 = vpop.f32.mrf.mxu0
        %v1789 = vadd.f32 0.0, %v1788
        %v1790 = vpop.f32.mrf.mxu0
        %v1791 = vadd.f32 0.0, %v1790
        %v1792 = vpop.f32.mrf.mxu0
        %v1793 = vadd.f32 0.0, %v1792
        %1794 = vmatprep.mubr.bf16.mxu0 %v1090
        %1795 = vmatmul.mubr.bf16.gmra.mxu0 %v1089
        %v1796 = vpop.f32.mrf.mxu0
        %v1797 = vadd.f32 0.0, %v1796
        %v1798 = vpop.f32.mrf.mxu0
        %v1799 = vadd.f32 0.0, %v1798
        %v1800 = vpop.f32.mrf.mxu0
        %v1801 = vadd.f32 0.0, %v1800
        %v1802 = vpop.f32.mrf.mxu0
        %v1803 = vadd.f32 0.0, %v1802
        %1804 = vmatprep.mubr.bf16.mxu0 %v1092
        %1805 = vmatmul.mubr.bf16.gmra.mxu0 %v1091
        %v1806 = vpop.f32.mrf.mxu0
        %v1807 = vadd.f32 0.0, %v1806
        %v1808 = vpop.f32.mrf.mxu0
        %v1809 = vadd.f32 0.0, %v1808
        %v1810 = vpop.f32.mrf.mxu0
        %v1811 = vadd.f32 0.0, %v1810
        %v1812 = vpop.f32.mrf.mxu0
        %v1813 = vadd.f32 0.0, %v1812
        %1814 = vdwg.mxu0
        %1815 = vmatprep.subr.bf16.mxu0 %v1524
        %1816 = vmatpush1.bf16.msra.mxu0 %v1523
        %1817 = vmatprep.subr.bf16.mxu0 %v1518
        %1818 = vmatpush1.bf16.msra.mxu0 %v1517
        %1819 = vmatprep.subr.bf16.mxu0 %v1512
        %1820 = vmatpush1.bf16.msra.mxu0 %v1511
        %1821 = vmatprep.subr.bf16.mxu0 %v1506
        %1822 = vmatpush1.bf16.msra.mxu0 %v1505
        %1823 = vmatprep.subr.bf16.mxu0 %v1500
        %1824 = vmatpush1.bf16.msra.mxu0 %v1499
        %1825 = vmatprep.subr.bf16.mxu0 %v1494
        %1826 = vmatpush1.bf16.msra.mxu0 %v1493
        %1827 = vmatprep.subr.bf16.mxu0 %v1488
        %1828 = vmatpush1.bf16.msra.mxu0 %v1487
        %1829 = vmatprep.subr.bf16.mxu0 %v1482
        %1830 = vmatpush1.bf16.msra.mxu0 %v1481
        %1831 = vmatprep.subr.bf16.mxu0 %v1572
        %1832 = vmatpush2.bf16.msra.mxu0 %v1571
        %1833 = vmatprep.subr.bf16.mxu0 %v1566
        %1834 = vmatpush2.bf16.msra.mxu0 %v1565
        %1835 = vmatprep.subr.bf16.mxu0 %v1560
        %1836 = vmatpush2.bf16.msra.mxu0 %v1559
        %1837 = vmatprep.subr.bf16.mxu0 %v1554
        %1838 = vmatpush2.bf16.msra.mxu0 %v1553
        %1839 = vmatprep.subr.bf16.mxu0 %v1548
        %1840 = vmatpush2.bf16.msra.mxu0 %v1547
        %1841 = vmatprep.subr.bf16.mxu0 %v1542
        %1842 = vmatpush2.bf16.msra.mxu0 %v1541
        %1843 = vmatprep.subr.bf16.mxu0 %v1536
        %1844 = vmatpush2.bf16.msra.mxu0 %v1535
        %1845 = vmatprep.subr.bf16.mxu0 %v1530
        %1846 = vmatpush2.bf16.msra.mxu0 %v1529
        %1847 = vmatprep.mubr.bf16.mxu0 %v1086
        %1848 = vmatmul.mubr.bf16.gmra.mxu0 %v1085
        %v1849 = vpop.f32.mrf.mxu0
        %v1850 = vadd.f32 0.0, %v1849
        %v1851 = vpop.f32.mrf.mxu0
        %v1852 = vadd.f32 0.0, %v1851
        %v1853 = vpop.f32.mrf.mxu0
        %v1854 = vadd.f32 0.0, %v1853
        %v1855 = vpop.f32.mrf.mxu0
        %v1856 = vadd.f32 0.0, %v1855
        %1857 = vmatprep.mubr.bf16.mxu0 %v1088
        %1858 = vmatmul.mubr.bf16.gmra.mxu0 %v1087
        %v1859 = vpop.f32.mrf.mxu0
        %v1860 = vadd.f32 0.0, %v1859
        %v1861 = vpop.f32.mrf.mxu0
        %v1862 = vadd.f32 0.0, %v1861
        %v1863 = vpop.f32.mrf.mxu0
        %v1864 = vadd.f32 0.0, %v1863
        %v1865 = vpop.f32.mrf.mxu0
        %v1866 = vadd.f32 0.0, %v1865
        %1867 = vmatprep.mubr.bf16.mxu0 %v1090
        %1868 = vmatmul.mubr.bf16.gmra.mxu0 %v1089
        %v1869 = vpop.f32.mrf.mxu0
        %v1870 = vadd.f32 0.0, %v1869
        %v1871 = vpop.f32.mrf.mxu0
        %v1872 = vadd.f32 0.0, %v1871
        %v1873 = vpop.f32.mrf.mxu0
        %v1874 = vadd.f32 0.0, %v1873
        %v1875 = vpop.f32.mrf.mxu0
        %v1876 = vadd.f32 0.0, %v1875
        %1877 = vmatprep.mubr.bf16.mxu0 %v1092
        %1878 = vmatmul.mubr.bf16.gmra.mxu0 %v1091
        %v1879 = vpop.f32.mrf.mxu0
        %v1880 = vadd.f32 0.0, %v1879
        %v1881 = vpop.f32.mrf.mxu0
        %v1882 = vadd.f32 0.0, %v1881
        %v1883 = vpop.f32.mrf.mxu0
        %v1884 = vadd.f32 0.0, %v1883
        %v1885 = vpop.f32.mrf.mxu0
        %v1886 = vadd.f32 0.0, %v1885
        %1887 = vdwg.mxu0
        %1896 = vrot.lane.b32.xlu0 %v1704, 64
        %v1897 = vpop.permute.xlu0 %1896
        %1898 = vrot.lane.b32.xlu0 %v1708, 64
        %v1899 = vpop.permute.xlu0 %1898
        %1900 = vrot.lane.b32.xlu0 %v1714, 64
        %v1901 = vpop.permute.xlu0 %1900
        %1902 = vrot.lane.b32.xlu0 %v1718, 64
        %v1903 = vpop.permute.xlu0 %1902
        %1904 = vrot.lane.b32.xlu0 %v1724, 64
        %v1905 = vpop.permute.xlu0 %1904
        %1906 = vrot.lane.b32.xlu0 %v1728, 64
        %v1907 = vpop.permute.xlu0 %1906
        %1908 = vrot.lane.b32.xlu0 %v1734, 64
        %v1909 = vpop.permute.xlu0 %1908
        %1910 = vrot.lane.b32.xlu0 %v1738, 64
        %v1911 = vpop.permute.xlu0 %1910
        %1928 = vrot.lane.b32.xlu0 %v1706, 64
        %v1929 = vpop.permute.xlu0 %1928
        %1930 = vrot.lane.b32.xlu0 %v1710, 64
        %v1931 = vpop.permute.xlu0 %1930
        %1932 = vrot.lane.b32.xlu0 %v1716, 64
        %v1933 = vpop.permute.xlu0 %1932
        %1934 = vrot.lane.b32.xlu0 %v1720, 64
        %v1935 = vpop.permute.xlu0 %1934
        %1936 = vrot.lane.b32.xlu0 %v1726, 64
        %v1937 = vpop.permute.xlu0 %1936
        %1938 = vrot.lane.b32.xlu0 %v1730, 64
        %v1939 = vpop.permute.xlu0 %1938
        %1940 = vrot.lane.b32.xlu0 %v1736, 64
        %v1941 = vpop.permute.xlu0 %1940
        %1942 = vrot.lane.b32.xlu0 %v1740, 64
        %v1943 = vpop.permute.xlu0 %1942
        %1960 = vrot.lane.b32.xlu0 %v1777, 64
        %v1961 = vpop.permute.xlu0 %1960
        %1962 = vrot.lane.b32.xlu0 %v1781, 64
        %v1963 = vpop.permute.xlu0 %1962
        %1964 = vrot.lane.b32.xlu0 %v1787, 64
        %v1965 = vpop.permute.xlu0 %1964
        %1966 = vrot.lane.b32.xlu0 %v1791, 64
        %v1967 = vpop.permute.xlu0 %1966
        %1968 = vrot.lane.b32.xlu0 %v1797, 64
        %v1969 = vpop.permute.xlu0 %1968
        %1970 = vrot.lane.b32.xlu0 %v1801, 64
        %v1971 = vpop.permute.xlu0 %1970
        %1972 = vrot.lane.b32.xlu0 %v1807, 64
        %v1973 = vpop.permute.xlu0 %1972
        %1974 = vrot.lane.b32.xlu0 %v1811, 64
        %v1975 = vpop.permute.xlu0 %1974
        %1992 = vrot.lane.b32.xlu0 %v1779, 64
        %v1993 = vpop.permute.xlu0 %1992
        %1994 = vrot.lane.b32.xlu0 %v1783, 64
        %v1995 = vpop.permute.xlu0 %1994
        %1996 = vrot.lane.b32.xlu0 %v1789, 64
        %v1997 = vpop.permute.xlu0 %1996
        %1998 = vrot.lane.b32.xlu0 %v1793, 64
        %v1999 = vpop.permute.xlu0 %1998
        %2000 = vrot.lane.b32.xlu0 %v1799, 64
        %v2001 = vpop.permute.xlu0 %2000
        %2002 = vrot.lane.b32.xlu0 %v1803, 64
        %v2003 = vpop.permute.xlu0 %2002
        %2004 = vrot.lane.b32.xlu0 %v1809, 64
        %v2005 = vpop.permute.xlu0 %2004
        %2006 = vrot.lane.b32.xlu0 %v1813, 64
        %v2007 = vpop.permute.xlu0 %2006
        %2024 = vrot.lane.b32.xlu0 %v1850, 64
        %v2025 = vpop.permute.xlu0 %2024
        %2026 = vrot.lane.b32.xlu0 %v1854, 64
        %v2027 = vpop.permute.xlu0 %2026
        %2028 = vrot.lane.b32.xlu0 %v1860, 64
        %v2029 = vpop.permute.xlu0 %2028
        %2030 = vrot.lane.b32.xlu0 %v1864, 64
        %v2031 = vpop.permute.xlu0 %2030
        %2032 = vrot.lane.b32.xlu0 %v1870, 64
        %v2033 = vpop.permute.xlu0 %2032
        %2034 = vrot.lane.b32.xlu0 %v1874, 64
        %v2035 = vpop.permute.xlu0 %2034
        %2036 = vrot.lane.b32.xlu0 %v1880, 64
        %v2037 = vpop.permute.xlu0 %2036
        %2038 = vrot.lane.b32.xlu0 %v1884, 64
        %v2039 = vpop.permute.xlu0 %2038
        %2056 = vrot.lane.b32.xlu0 %v1852, 64
        %v2057 = vpop.permute.xlu0 %2056
        %2058 = vrot.lane.b32.xlu0 %v1856, 64
        %v2059 = vpop.permute.xlu0 %2058
        %2060 = vrot.lane.b32.xlu0 %v1862, 64
        %v2061 = vpop.permute.xlu0 %2060
        %2062 = vrot.lane.b32.xlu0 %v1866, 64
        %v2063 = vpop.permute.xlu0 %2062
        %2064 = vrot.lane.b32.xlu0 %v1872, 64
        %v2065 = vpop.permute.xlu0 %2064
        %2066 = vrot.lane.b32.xlu0 %v1876, 64
        %v2067 = vpop.permute.xlu0 %2066
        %2068 = vrot.lane.b32.xlu0 %v1882, 64
        %v2069 = vpop.permute.xlu0 %2068
        %2070 = vrot.lane.b32.xlu0 %v1886, 64
        %v2071 = vpop.permute.xlu0 %2070
        %v2080 = vpack.c.bf16 %v1708, %v1704
        %v2081 = vpack.c.bf16 %v1718, %v1714
        %v2082 = vpack.c.bf16 %v1728, %v1724
        %v2083 = vpack.c.bf16 %v1738, %v1734
        %v2084 = vpack.c.bf16 %v1899, %v1897
        %v2085 = vpack.c.bf16 %v1903, %v1901
        %v2086 = vpack.c.bf16 %v1907, %v1905
        %v2087 = vpack.c.bf16 %v1911, %v1909
        %v2088 = vpack.c.bf16 %v1710, %v1706
        %v2089 = vpack.c.bf16 %v1720, %v1716
        %v2090 = vpack.c.bf16 %v1730, %v1726
        %v2091 = vpack.c.bf16 %v1740, %v1736
        %v2092 = vpack.c.bf16 %v1931, %v1929
        %v2093 = vpack.c.bf16 %v1935, %v1933
        %v2094 = vpack.c.bf16 %v1939, %v1937
        %v2095 = vpack.c.bf16 %v1943, %v1941
        %v2096 = vpack.c.bf16 %v1781, %v1777
        %v2097 = vpack.c.bf16 %v1791, %v1787
        %v2098 = vpack.c.bf16 %v1801, %v1797
        %v2099 = vpack.c.bf16 %v1811, %v1807
        %v2100 = vpack.c.bf16 %v1963, %v1961
        %v2101 = vpack.c.bf16 %v1967, %v1965
        %v2102 = vpack.c.bf16 %v1971, %v1969
        %v2103 = vpack.c.bf16 %v1975, %v1973
        %v2104 = vpack.c.bf16 %v1783, %v1779
        %v2105 = vpack.c.bf16 %v1793, %v1789
        %v2106 = vpack.c.bf16 %v1803, %v1799
        %v2107 = vpack.c.bf16 %v1813, %v1809
        %v2108 = vpack.c.bf16 %v1995, %v1993
        %v2109 = vpack.c.bf16 %v1999, %v1997
        %v2110 = vpack.c.bf16 %v2003, %v2001
        %v2111 = vpack.c.bf16 %v2007, %v2005
        %v2112 = vpack.c.bf16 %v1854, %v1850
        %v2113 = vpack.c.bf16 %v1864, %v1860
        %v2114 = vpack.c.bf16 %v1874, %v1870
        %v2115 = vpack.c.bf16 %v1884, %v1880
        %v2116 = vpack.c.bf16 %v2027, %v2025
        %v2117 = vpack.c.bf16 %v2031, %v2029
        %v2118 = vpack.c.bf16 %v2035, %v2033
        %v2119 = vpack.c.bf16 %v2039, %v2037
        %v2120 = vpack.c.bf16 %v1856, %v1852
        %v2121 = vpack.c.bf16 %v1866, %v1862
        %v2122 = vpack.c.bf16 %v1876, %v1872
        %v2123 = vpack.c.bf16 %v1886, %v1882
        %v2124 = vpack.c.bf16 %v2059, %v2057
        %v2125 = vpack.c.bf16 %v2063, %v2061
        %v2126 = vpack.c.bf16 %v2067, %v2065
        %v2127 = vpack.c.bf16 %v2071, %v2069
        %v2128 = vld [vmem:[%s1] sm:$0xff]
        %v2129 = vld [vmem:[%s1 + $0x8] sm:$0xff]
        %v2130 = vld [vmem:[%s1 + $0x10] sm:$0xff]
        %v2131 = vld [vmem:[%s1 + $0x18] sm:$0xff]
        %v2132 = vld [vmem:[%s1 + $0x20] sm:$0xff]
        %v2133 = vld [vmem:[%s1 + $0x28] sm:$0xff]
        %v2134 = vld [vmem:[%s1 + $0x30] sm:$0xff]
        %v2135 = vld [vmem:[%s1 + $0x38] sm:$0xff]
        %vm2136 = vcmask 523264
        %v2138 = vsel %vm2136, %v2080, 0
        %v2141 = vsel %vm2136, %v2081, 0
        %v2144 = vsel %vm2136, %v2082, 0
        %v2147 = vsel %vm2136, %v2083, 0
        %v2150 = vsel %vm2136, %v2096, 0
        %v2153 = vsel %vm2136, %v2097, 0
        %v2156 = vsel %vm2136, %v2098, 0
        %v2159 = vsel %vm2136, %v2099, 0
        %2161 = vmatprep.subr.bf16.mxu0 0
        %2162 = vmatpush1.bf16.xpose.msra.mxu0 0
        %2163 = vmatprep.subr.bf16.mxu0 0
        %2164 = vmatpush1.bf16.xpose.msra.mxu0 0
        %2165 = vmatprep.subr.bf16.mxu0 0
        %2166 = vmatpush1.bf16.xpose.msra.mxu0 0
        %2167 = vmatprep.subr.bf16.mxu0 0
        %2168 = vmatpush1.bf16.xpose.msra.mxu0 0
        %2169 = vmatprep.subr.bf16.mxu0 0
        %2170 = vmatpush1.bf16.xpose.msra.mxu0 %v2159
        %2171 = vmatprep.subr.bf16.mxu0 0
        %2172 = vmatpush1.bf16.xpose.msra.mxu0 %v2156
        %2173 = vmatprep.subr.bf16.mxu0 0
        %2174 = vmatpush1.bf16.xpose.msra.mxu0 %v2153
        %2175 = vmatprep.subr.bf16.mxu0 0
        %2176 = vmatpush1.bf16.xpose.msra.mxu0 %v2150
        %2177 = vmatprep.subr.bf16.mxu0 0
        %2178 = vmatpush2.bf16.xpose.msra.mxu0 0
        %2179 = vmatprep.subr.bf16.mxu0 0
        %2180 = vmatpush2.bf16.xpose.msra.mxu0 0
        %2181 = vmatprep.subr.bf16.mxu0 0
        %2182 = vmatpush2.bf16.xpose.msra.mxu0 0
        %2183 = vmatprep.subr.bf16.mxu0 0
        %2184 = vmatpush2.bf16.xpose.msra.mxu0 0
        %2185 = vmatprep.subr.bf16.mxu0 0
        %2186 = vmatpush2.bf16.xpose.msra.mxu0 0
        %2187 = vmatprep.subr.bf16.mxu0 0
        %2188 = vmatpush2.bf16.xpose.msra.mxu0 0
        %2189 = vmatprep.subr.bf16.mxu0 0
        %2190 = vmatpush2.bf16.xpose.msra.mxu0 0
        %2191 = vmatprep.subr.bf16.mxu0 0
        %2192 = vmatpush2.bf16.xpose.msra.mxu0 0
        %2193 = vmatprep.mubr.bf16.mxu0 0
        %2194 = vmatmul.mubr.bf16.gmra.mxu0 %v2138
        %v2195 = vpop.f32.mrf.mxu0
        %v2196 = vadd.f32 %v2128, %v2195
        %v2197 = vpop.f32.mrf.mxu0
        %v2198 = vpop.f32.mrf.mxu0
        %v2199 = vadd.f32 %v2129, %v2198
        %v2200 = vpop.f32.mrf.mxu0
        %2201 = vmatprep.mubr.bf16.mxu0 0
        %2202 = vmatmul.mubr.bf16.gmra.mxu0 %v2141
        %v2203 = vpop.f32.mrf.mxu0
        %v2204 = vadd.f32 %v2130, %v2203
        %v2205 = vpop.f32.mrf.mxu0
        %v2206 = vpop.f32.mrf.mxu0
        %v2207 = vadd.f32 %v2131, %v2206
        %v2208 = vpop.f32.mrf.mxu0
        %2209 = vmatprep.mubr.bf16.mxu0 0
        %2210 = vmatmul.mubr.bf16.gmra.mxu0 %v2144
        %v2211 = vpop.f32.mrf.mxu0
        %v2212 = vadd.f32 %v2132, %v2211
        %v2213 = vpop.f32.mrf.mxu0
        %v2214 = vpop.f32.mrf.mxu0
        %v2215 = vadd.f32 %v2133, %v2214
        %v2216 = vpop.f32.mrf.mxu0
        %2217 = vmatprep.mubr.bf16.mxu0 0
        %2218 = vmatmul.mubr.bf16.gmra.mxu0 %v2147
        %v2219 = vpop.f32.mrf.mxu0
        %v2220 = vadd.f32 %v2134, %v2219
        %v2221 = vpop.f32.mrf.mxu0
        %v2222 = vpop.f32.mrf.mxu0
        %v2223 = vadd.f32 %v2135, %v2222
        %v2224 = vpop.f32.mrf.mxu0
        %2225 = vdwg.mxu0
        %v2227 = vsel %vm2136, %v2084, 0
        %v2230 = vsel %vm2136, %v2085, 0
        %v2233 = vsel %vm2136, %v2086, 0
        %v2236 = vsel %vm2136, %v2087, 0
        %v2239 = vsel %vm2136, %v2100, 0
        %v2242 = vsel %vm2136, %v2101, 0
        %v2245 = vsel %vm2136, %v2102, 0
        %v2248 = vsel %vm2136, %v2103, 0
        %2250 = vmatprep.subr.bf16.mxu0 0
        %2251 = vmatpush1.bf16.xpose.msra.mxu0 0
        %2252 = vmatprep.subr.bf16.mxu0 0
        %2253 = vmatpush1.bf16.xpose.msra.mxu0 0
        %2254 = vmatprep.subr.bf16.mxu0 0
        %2255 = vmatpush1.bf16.xpose.msra.mxu0 0
        %2256 = vmatprep.subr.bf16.mxu0 0
        %2257 = vmatpush1.bf16.xpose.msra.mxu0 0
        %2258 = vmatprep.subr.bf16.mxu0 0
        %2259 = vmatpush1.bf16.xpose.msra.mxu0 %v2248
        %2260 = vmatprep.subr.bf16.mxu0 0
        %2261 = vmatpush1.bf16.xpose.msra.mxu0 %v2245
        %2262 = vmatprep.subr.bf16.mxu0 0
        %2263 = vmatpush1.bf16.xpose.msra.mxu0 %v2242
        %2264 = vmatprep.subr.bf16.mxu0 0
        %2265 = vmatpush1.bf16.xpose.msra.mxu0 %v2239
        %2266 = vmatprep.subr.bf16.mxu0 0
        %2267 = vmatpush2.bf16.xpose.msra.mxu0 0
        %2268 = vmatprep.subr.bf16.mxu0 0
        %2269 = vmatpush2.bf16.xpose.msra.mxu0 0
        %2270 = vmatprep.subr.bf16.mxu0 0
        %2271 = vmatpush2.bf16.xpose.msra.mxu0 0
        %2272 = vmatprep.subr.bf16.mxu0 0
        %2273 = vmatpush2.bf16.xpose.msra.mxu0 0
        %2274 = vmatprep.subr.bf16.mxu0 0
        %2275 = vmatpush2.bf16.xpose.msra.mxu0 0
        %2276 = vmatprep.subr.bf16.mxu0 0
        %2277 = vmatpush2.bf16.xpose.msra.mxu0 0
        %2278 = vmatprep.subr.bf16.mxu0 0
        %2279 = vmatpush2.bf16.xpose.msra.mxu0 0
        %2280 = vmatprep.subr.bf16.mxu0 0
        %2281 = vmatpush2.bf16.xpose.msra.mxu0 0
        %2282 = vmatprep.mubr.bf16.mxu0 0
        %2283 = vmatmul.mubr.bf16.gmra.mxu0 %v2227
        %v2284 = vpop.f32.mrf.mxu0
        %v2285 = vadd.f32 %v2128, %v2284
        %v2286 = vpop.f32.mrf.mxu0
        %v2287 = vpop.f32.mrf.mxu0
        %v2288 = vadd.f32 %v2129, %v2287
        %v2289 = vpop.f32.mrf.mxu0
        %2290 = vmatprep.mubr.bf16.mxu0 0
        %2291 = vmatmul.mubr.bf16.gmra.mxu0 %v2230
        %v2292 = vpop.f32.mrf.mxu0
        %v2293 = vadd.f32 %v2130, %v2292
        %v2294 = vpop.f32.mrf.mxu0
        %v2295 = vpop.f32.mrf.mxu0
        %v2296 = vadd.f32 %v2131, %v2295
        %v2297 = vpop.f32.mrf.mxu0
        %2298 = vmatprep.mubr.bf16.mxu0 0
        %2299 = vmatmul.mubr.bf16.gmra.mxu0 %v2233
        %v2300 = vpop.f32.mrf.mxu0
        %v2301 = vadd.f32 %v2132, %v2300
        %v2302 = vpop.f32.mrf.mxu0
        %v2303 = vpop.f32.mrf.mxu0
        %v2304 = vadd.f32 %v2133, %v2303
        %v2305 = vpop.f32.mrf.mxu0
        %2306 = vmatprep.mubr.bf16.mxu0 0
        %2307 = vmatmul.mubr.bf16.gmra.mxu0 %v2236
        %v2308 = vpop.f32.mrf.mxu0
        %v2309 = vadd.f32 %v2134, %v2308
        %v2310 = vpop.f32.mrf.mxu0
        %v2311 = vpop.f32.mrf.mxu0
        %v2312 = vadd.f32 %v2135, %v2311
        %v2313 = vpop.f32.mrf.mxu0
        %2314 = vdwg.mxu0
        %v2316 = vsel %vm2136, %v2088, 0
        %v2319 = vsel %vm2136, %v2089, 0
        %v2322 = vsel %vm2136, %v2090, 0
        %v2325 = vsel %vm2136, %v2091, 0
        %v2328 = vsel %vm2136, %v2104, 0
        %v2331 = vsel %vm2136, %v2105, 0
        %v2334 = vsel %vm2136, %v2106, 0
        %v2337 = vsel %vm2136, %v2107, 0
        %2339 = vmatprep.subr.bf16.mxu0 0
        %2340 = vmatpush1.bf16.xpose.msra.mxu0 0
        %2341 = vmatprep.subr.bf16.mxu0 0
        %2342 = vmatpush1.bf16.xpose.msra.mxu0 0
        %2343 = vmatprep.subr.bf16.mxu0 0
        %2344 = vmatpush1.bf16.xpose.msra.mxu0 0
        %2345 = vmatprep.subr.bf16.mxu0 0
        %2346 = vmatpush1.bf16.xpose.msra.mxu0 0
        %2347 = vmatprep.subr.bf16.mxu0 0
        %2348 = vmatpush1.bf16.xpose.msra.mxu0 %v2337
        %2349 = vmatprep.subr.bf16.mxu0 0
        %2350 = vmatpush1.bf16.xpose.msra.mxu0 %v2334
        %2351 = vmatprep.subr.bf16.mxu0 0
        %2352 = vmatpush1.bf16.xpose.msra.mxu0 %v2331
        %2353 = vmatprep.subr.bf16.mxu0 0
        %2354 = vmatpush1.bf16.xpose.msra.mxu0 %v2328
        %2355 = vmatprep.subr.bf16.mxu0 0
        %2356 = vmatpush2.bf16.xpose.msra.mxu0 0
        %2357 = vmatprep.subr.bf16.mxu0 0
        %2358 = vmatpush2.bf16.xpose.msra.mxu0 0
        %2359 = vmatprep.subr.bf16.mxu0 0
        %2360 = vmatpush2.bf16.xpose.msra.mxu0 0
        %2361 = vmatprep.subr.bf16.mxu0 0
        %2362 = vmatpush2.bf16.xpose.msra.mxu0 0
        %2363 = vmatprep.subr.bf16.mxu0 0
        %2364 = vmatpush2.bf16.xpose.msra.mxu0 0
        %2365 = vmatprep.subr.bf16.mxu0 0
        %2366 = vmatpush2.bf16.xpose.msra.mxu0 0
        %2367 = vmatprep.subr.bf16.mxu0 0
        %2368 = vmatpush2.bf16.xpose.msra.mxu0 0
        %2369 = vmatprep.subr.bf16.mxu0 0
        %2370 = vmatpush2.bf16.xpose.msra.mxu0 0
        %2371 = vmatprep.mubr.bf16.mxu0 0
        %2372 = vmatmul.mubr.bf16.gmra.mxu0 %v2316
        %v2373 = vpop.f32.mrf.mxu0
        %v2374 = vadd.f32 %v2128, %v2373
        %v2375 = vpop.f32.mrf.mxu0
        %v2376 = vpop.f32.mrf.mxu0
        %v2377 = vadd.f32 %v2129, %v2376
        %v2378 = vpop.f32.mrf.mxu0
        %2379 = vmatprep.mubr.bf16.mxu0 0
        %2380 = vmatmul.mubr.bf16.gmra.mxu0 %v2319
        %v2381 = vpop.f32.mrf.mxu0
        %v2382 = vadd.f32 %v2130, %v2381
        %v2383 = vpop.f32.mrf.mxu0
        %v2384 = vpop.f32.mrf.mxu0
        %v2385 = vadd.f32 %v2131, %v2384
        %v2386 = vpop.f32.mrf.mxu0
        %2387 = vmatprep.mubr.bf16.mxu0 0
        %2388 = vmatmul.mubr.bf16.gmra.mxu0 %v2322
        %v2389 = vpop.f32.mrf.mxu0
        %v2390 = vadd.f32 %v2132, %v2389
        %v2391 = vpop.f32.mrf.mxu0
        %v2392 = vpop.f32.mrf.mxu0
        %v2393 = vadd.f32 %v2133, %v2392
        %v2394 = vpop.f32.mrf.mxu0
        %2395 = vmatprep.mubr.bf16.mxu0 0
        %2396 = vmatmul.mubr.bf16.gmra.mxu0 %v2325
        %v2397 = vpop.f32.mrf.mxu0
        %v2398 = vadd.f32 %v2134, %v2397
        %v2399 = vpop.f32.mrf.mxu0
        %v2400 = vpop.f32.mrf.mxu0
        %v2401 = vadd.f32 %v2135, %v2400
        %v2402 = vpop.f32.mrf.mxu0
        %2403 = vdwg.mxu0
        %v2405 = vsel %vm2136, %v2092, 0
        %v2408 = vsel %vm2136, %v2093, 0
        %v2411 = vsel %vm2136, %v2094, 0
        %v2414 = vsel %vm2136, %v2095, 0
        %v2417 = vsel %vm2136, %v2108, 0
        %v2420 = vsel %vm2136, %v2109, 0
        %v2423 = vsel %vm2136, %v2110, 0
        %v2426 = vsel %vm2136, %v2111, 0
        %2428 = vmatprep.subr.bf16.mxu0 0
        %2429 = vmatpush1.bf16.xpose.msra.mxu0 0
        %2430 = vmatprep.subr.bf16.mxu0 0
        %2431 = vmatpush1.bf16.xpose.msra.mxu0 0
        %2432 = vmatprep.subr.bf16.mxu0 0
        %2433 = vmatpush1.bf16.xpose.msra.mxu0 0
        %2434 = vmatprep.subr.bf16.mxu0 0
        %2435 = vmatpush1.bf16.xpose.msra.mxu0 0
        %2436 = vmatprep.subr.bf16.mxu0 0
        %2437 = vmatpush1.bf16.xpose.msra.mxu0 %v2426
        %2438 = vmatprep.subr.bf16.mxu0 0
        %2439 = vmatpush1.bf16.xpose.msra.mxu0 %v2423
        %2440 = vmatprep.subr.bf16.mxu0 0
        %2441 = vmatpush1.bf16.xpose.msra.mxu0 %v2420
        %2442 = vmatprep.subr.bf16.mxu0 0
        %2443 = vmatpush1.bf16.xpose.msra.mxu0 %v2417
        %2444 = vmatprep.subr.bf16.mxu0 0
        %2445 = vmatpush2.bf16.xpose.msra.mxu0 0
        %2446 = vmatprep.subr.bf16.mxu0 0
        %2447 = vmatpush2.bf16.xpose.msra.mxu0 0
        %2448 = vmatprep.subr.bf16.mxu0 0
        %2449 = vmatpush2.bf16.xpose.msra.mxu0 0
        %2450 = vmatprep.subr.bf16.mxu0 0
        %2451 = vmatpush2.bf16.xpose.msra.mxu0 0
        %2452 = vmatprep.subr.bf16.mxu0 0
        %2453 = vmatpush2.bf16.xpose.msra.mxu0 0
        %2454 = vmatprep.subr.bf16.mxu0 0
        %2455 = vmatpush2.bf16.xpose.msra.mxu0 0
        %2456 = vmatprep.subr.bf16.mxu0 0
        %2457 = vmatpush2.bf16.xpose.msra.mxu0 0
        %2458 = vmatprep.subr.bf16.mxu0 0
        %2459 = vmatpush2.bf16.xpose.msra.mxu0 0
        %2460 = vmatprep.mubr.bf16.mxu0 0
        %2461 = vmatmul.mubr.bf16.gmra.mxu0 %v2405
        %v2462 = vpop.f32.mrf.mxu0
        %v2463 = vadd.f32 %v2128, %v2462
        %v2464 = vpop.f32.mrf.mxu0
        %v2465 = vpop.f32.mrf.mxu0
        %v2466 = vadd.f32 %v2129, %v2465
        %v2467 = vpop.f32.mrf.mxu0
        %2468 = vmatprep.mubr.bf16.mxu0 0
        %2469 = vmatmul.mubr.bf16.gmra.mxu0 %v2408
        %v2470 = vpop.f32.mrf.mxu0
        %v2471 = vadd.f32 %v2130, %v2470
        %v2472 = vpop.f32.mrf.mxu0
        %v2473 = vpop.f32.mrf.mxu0
        %v2474 = vadd.f32 %v2131, %v2473
        %v2475 = vpop.f32.mrf.mxu0
        %2476 = vmatprep.mubr.bf16.mxu0 0
        %2477 = vmatmul.mubr.bf16.gmra.mxu0 %v2411
        %v2478 = vpop.f32.mrf.mxu0
        %v2479 = vadd.f32 %v2132, %v2478
        %v2480 = vpop.f32.mrf.mxu0
        %v2481 = vpop.f32.mrf.mxu0
        %v2482 = vadd.f32 %v2133, %v2481
        %v2483 = vpop.f32.mrf.mxu0
        %2484 = vmatprep.mubr.bf16.mxu0 0
        %2485 = vmatmul.mubr.bf16.gmra.mxu0 %v2414
        %v2486 = vpop.f32.mrf.mxu0
        %v2487 = vadd.f32 %v2134, %v2486
        %v2488 = vpop.f32.mrf.mxu0
        %v2489 = vpop.f32.mrf.mxu0
        %v2490 = vadd.f32 %v2135, %v2489
        %v2491 = vpop.f32.mrf.mxu0
        %2492 = vdwg.mxu0
        %v2493 = vsel %vm2136, %v2196, -inf
        %2494 = vmax.xlane.f32.xlu0 %v2493
        %v2495 = vpop.xlane.xlu0 %2494
        %v2496 = vsel %vm2136, %v2199, -inf
        %2497 = vmax.xlane.f32.xlu0 %v2496
        %v2498 = vpop.xlane.xlu0 %2497
        %v2499 = vsel %vm2136, %v2204, -inf
        %2500 = vmax.xlane.f32.xlu0 %v2499
        %v2501 = vpop.xlane.xlu0 %2500
        %v2502 = vsel %vm2136, %v2207, -inf
        %2503 = vmax.xlane.f32.xlu0 %v2502
        %v2504 = vpop.xlane.xlu0 %2503
        %v2505 = vsel %vm2136, %v2212, -inf
        %2506 = vmax.xlane.f32.xlu0 %v2505
        %v2507 = vpop.xlane.xlu0 %2506
        %v2508 = vsel %vm2136, %v2215, -inf
        %2509 = vmax.xlane.f32.xlu0 %v2508
        %v2510 = vpop.xlane.xlu0 %2509
        %v2511 = vsel %vm2136, %v2220, -inf
        %2512 = vmax.xlane.f32.xlu0 %v2511
        %v2513 = vpop.xlane.xlu0 %2512
        %v2514 = vsel %vm2136, %v2223, -inf
        %2515 = vmax.xlane.f32.xlu0 %v2514
        %v2516 = vpop.xlane.xlu0 %2515
        %v2517 = vsel %vm2136, %v2285, -inf
        %2518 = vmax.xlane.f32.xlu0 %v2517
        %v2519 = vpop.xlane.xlu0 %2518
        %v2520 = vsel %vm2136, %v2288, -inf
        %2521 = vmax.xlane.f32.xlu0 %v2520
        %v2522 = vpop.xlane.xlu0 %2521
        %v2523 = vsel %vm2136, %v2293, -inf
        %2524 = vmax.xlane.f32.xlu0 %v2523
        %v2525 = vpop.xlane.xlu0 %2524
        %v2526 = vsel %vm2136, %v2296, -inf
        %2527 = vmax.xlane.f32.xlu0 %v2526
        %v2528 = vpop.xlane.xlu0 %2527
        %v2529 = vsel %vm2136, %v2301, -inf
        %2530 = vmax.xlane.f32.xlu0 %v2529
        %v2531 = vpop.xlane.xlu0 %2530
        %v2532 = vsel %vm2136, %v2304, -inf
        %2533 = vmax.xlane.f32.xlu0 %v2532
        %v2534 = vpop.xlane.xlu0 %2533
        %v2535 = vsel %vm2136, %v2309, -inf
        %2536 = vmax.xlane.f32.xlu0 %v2535
        %v2537 = vpop.xlane.xlu0 %2536
        %v2538 = vsel %vm2136, %v2312, -inf
        %2539 = vmax.xlane.f32.xlu0 %v2538
        %v2540 = vpop.xlane.xlu0 %2539
        %v2541 = vsel %vm2136, %v2374, -inf
        %2542 = vmax.xlane.f32.xlu0 %v2541
        %v2543 = vpop.xlane.xlu0 %2542
        %v2544 = vsel %vm2136, %v2377, -inf
        %2545 = vmax.xlane.f32.xlu0 %v2544
        %v2546 = vpop.xlane.xlu0 %2545
        %v2547 = vsel %vm2136, %v2382, -inf
        %2548 = vmax.xlane.f32.xlu0 %v2547
        %v2549 = vpop.xlane.xlu0 %2548
        %v2550 = vsel %vm2136, %v2385, -inf
        %2551 = vmax.xlane.f32.xlu0 %v2550
        %v2552 = vpop.xlane.xlu0 %2551
        %v2553 = vsel %vm2136, %v2390, -inf
        %2554 = vmax.xlane.f32.xlu0 %v2553
        %v2555 = vpop.xlane.xlu0 %2554
        %v2556 = vsel %vm2136, %v2393, -inf
        %2557 = vmax.xlane.f32.xlu0 %v2556
        %v2558 = vpop.xlane.xlu0 %2557
        %v2559 = vsel %vm2136, %v2398, -inf
        %2560 = vmax.xlane.f32.xlu0 %v2559
        %v2561 = vpop.xlane.xlu0 %2560
        %v2562 = vsel %vm2136, %v2401, -inf
        %2563 = vmax.xlane.f32.xlu0 %v2562
        %v2564 = vpop.xlane.xlu0 %2563
        %v2565 = vsel %vm2136, %v2463, -inf
        %2566 = vmax.xlane.f32.xlu0 %v2565
        %v2567 = vpop.xlane.xlu0 %2566
        %v2568 = vsel %vm2136, %v2466, -inf
        %2569 = vmax.xlane.f32.xlu0 %v2568
        %v2570 = vpop.xlane.xlu0 %2569
        %v2571 = vsel %vm2136, %v2471, -inf
        %2572 = vmax.xlane.f32.xlu0 %v2571
        %v2573 = vpop.xlane.xlu0 %2572
        %v2574 = vsel %vm2136, %v2474, -inf
        %2575 = vmax.xlane.f32.xlu0 %v2574
        %v2576 = vpop.xlane.xlu0 %2575
        %v2577 = vsel %vm2136, %v2479, -inf
        %2578 = vmax.xlane.f32.xlu0 %v2577
        %v2579 = vpop.xlane.xlu0 %2578
        %v2580 = vsel %vm2136, %v2482, -inf
        %2581 = vmax.xlane.f32.xlu0 %v2580
        %v2582 = vpop.xlane.xlu0 %2581
        %v2583 = vsel %vm2136, %v2487, -inf
        %2584 = vmax.xlane.f32.xlu0 %v2583
        %v2585 = vpop.xlane.xlu0 %2584
        %v2586 = vsel %vm2136, %v2490, -inf
        %2587 = vmax.xlane.f32.xlu0 %v2586
        %v2588 = vpop.xlane.xlu0 %2587
        %v2589 = vsub.f32 %v2196, %v2495
        %v2590 = vsub.f32 %v2199, %v2498
        %v2591 = vsub.f32 %v2204, %v2501
        %v2592 = vsub.f32 %v2207, %v2504
        %v2593 = vsub.f32 %v2212, %v2507
        %v2594 = vsub.f32 %v2215, %v2510
        %v2595 = vsub.f32 %v2220, %v2513
        %v2596 = vsub.f32 %v2223, %v2516
        %v2597 = vsub.f32 %v2285, %v2519
        %v2598 = vsub.f32 %v2288, %v2522
        %v2599 = vsub.f32 %v2293, %v2525
        %v2600 = vsub.f32 %v2296, %v2528
        %v2601 = vsub.f32 %v2301, %v2531
        %v2602 = vsub.f32 %v2304, %v2534
        %v2603 = vsub.f32 %v2309, %v2537
        %v2604 = vsub.f32 %v2312, %v2540
        %v2605 = vsub.f32 %v2374, %v2543
        %v2606 = vsub.f32 %v2377, %v2546
        %v2607 = vsub.f32 %v2382, %v2549
        %v2608 = vsub.f32 %v2385, %v2552
        %v2609 = vsub.f32 %v2390, %v2555
        %v2610 = vsub.f32 %v2393, %v2558
        %v2611 = vsub.f32 %v2398, %v2561
        %v2612 = vsub.f32 %v2401, %v2564
        %v2613 = vsub.f32 %v2463, %v2567
        %v2614 = vsub.f32 %v2466, %v2570
        %v2615 = vsub.f32 %v2471, %v2573
        %v2616 = vsub.f32 %v2474, %v2576
        %v2617 = vsub.f32 %v2479, %v2579
        %v2618 = vsub.f32 %v2482, %v2582
        %v2619 = vsub.f32 %v2487, %v2585
        %v2620 = vsub.f32 %v2490, %v2588
        %v2621 = vmul.f32 %v2589, 1.442695
        %v2622 = vpow.pop %v2621
        %v2623 = vmul.f32 %v2590, 1.442695
        %v2624 = vpow.pop %v2623
        %v2625 = vmul.f32 %v2591, 1.442695
        %v2626 = vpow.pop %v2625
        %v2627 = vmul.f32 %v2592, 1.442695
        %v2628 = vpow.pop %v2627
        %v2629 = vmul.f32 %v2593, 1.442695
        %v2630 = vpow.pop %v2629
        %v2631 = vmul.f32 %v2594, 1.442695
        %v2632 = vpow.pop %v2631
        %v2633 = vmul.f32 %v2595, 1.442695
        %v2634 = vpow.pop %v2633
        %v2635 = vmul.f32 %v2596, 1.442695
        %v2636 = vpow.pop %v2635
        %v2637 = vmul.f32 %v2597, 1.442695
        %v2638 = vpow.pop %v2637
        %v2639 = vmul.f32 %v2598, 1.442695
        %v2640 = vpow.pop %v2639
        %v2641 = vmul.f32 %v2599, 1.442695
        %v2642 = vpow.pop %v2641
        %v2643 = vmul.f32 %v2600, 1.442695
        %v2644 = vpow.pop %v2643
        %v2645 = vmul.f32 %v2601, 1.442695
        %v2646 = vpow.pop %v2645
        %v2647 = vmul.f32 %v2602, 1.442695
        %v2648 = vpow.pop %v2647
        %v2649 = vmul.f32 %v2603, 1.442695
        %v2650 = vpow.pop %v2649
        %v2651 = vmul.f32 %v2604, 1.442695
        %v2652 = vpow.pop %v2651
        %v2653 = vmul.f32 %v2605, 1.442695
        %v2654 = vpow.pop %v2653
        %v2655 = vmul.f32 %v2606, 1.442695
        %v2656 = vpow.pop %v2655
        %v2657 = vmul.f32 %v2607, 1.442695
        %v2658 = vpow.pop %v2657
        %v2659 = vmul.f32 %v2608, 1.442695
        %v2660 = vpow.pop %v2659
        %v2661 = vmul.f32 %v2609, 1.442695
        %v2662 = vpow.pop %v2661
        %v2663 = vmul.f32 %v2610, 1.442695
        %v2664 = vpow.pop %v2663
        %v2665 = vmul.f32 %v2611, 1.442695
        %v2666 = vpow.pop %v2665
        %v2667 = vmul.f32 %v2612, 1.442695
        %v2668 = vpow.pop %v2667
        %v2669 = vmul.f32 %v2613, 1.442695
        %v2670 = vpow.pop %v2669
        %v2671 = vmul.f32 %v2614, 1.442695
        %v2672 = vpow.pop %v2671
        %v2673 = vmul.f32 %v2615, 1.442695
        %v2674 = vpow.pop %v2673
        %v2675 = vmul.f32 %v2616, 1.442695
        %v2676 = vpow.pop %v2675
        %v2677 = vmul.f32 %v2617, 1.442695
        %v2678 = vpow.pop %v2677
        %v2679 = vmul.f32 %v2618, 1.442695
        %v2680 = vpow.pop %v2679
        %v2681 = vmul.f32 %v2619, 1.442695
        %v2682 = vpow.pop %v2681
        %v2683 = vmul.f32 %v2620, 1.442695
        %v2684 = vpow.pop %v2683
        %v2685 = vsel %vm2136, %v2622, 0.0
        %2686 = vadd.xlane.f32.xlu0 %v2685
        %v2687 = vpop.xlane.xlu0 %2686
        %v2688 = vsel %vm2136, %v2624, 0.0
        %2689 = vadd.xlane.f32.xlu0 %v2688
        %v2690 = vpop.xlane.xlu0 %2689
        %v2691 = vsel %vm2136, %v2626, 0.0
        %2692 = vadd.xlane.f32.xlu0 %v2691
        %v2693 = vpop.xlane.xlu0 %2692
        %v2694 = vsel %vm2136, %v2628, 0.0
        %2695 = vadd.xlane.f32.xlu0 %v2694
        %v2696 = vpop.xlane.xlu0 %2695
        %v2697 = vsel %vm2136, %v2630, 0.0
        %2698 = vadd.xlane.f32.xlu0 %v2697
        %v2699 = vpop.xlane.xlu0 %2698
        %v2700 = vsel %vm2136, %v2632, 0.0
        %2701 = vadd.xlane.f32.xlu0 %v2700
        %v2702 = vpop.xlane.xlu0 %2701
        %v2703 = vsel %vm2136, %v2634, 0.0
        %2704 = vadd.xlane.f32.xlu0 %v2703
        %v2705 = vpop.xlane.xlu0 %2704
        %v2706 = vsel %vm2136, %v2636, 0.0
        %2707 = vadd.xlane.f32.xlu0 %v2706
        %v2708 = vpop.xlane.xlu0 %2707
        %v2709 = vsel %vm2136, %v2638, 0.0
        %2710 = vadd.xlane.f32.xlu0 %v2709
        %v2711 = vpop.xlane.xlu0 %2710
        %v2712 = vsel %vm2136, %v2640, 0.0
        %2713 = vadd.xlane.f32.xlu0 %v2712
        %v2714 = vpop.xlane.xlu0 %2713
        %v2715 = vsel %vm2136, %v2642, 0.0
        %2716 = vadd.xlane.f32.xlu0 %v2715
        %v2717 = vpop.xlane.xlu0 %2716
        %v2718 = vsel %vm2136, %v2644, 0.0
        %2719 = vadd.xlane.f32.xlu0 %v2718
        %v2720 = vpop.xlane.xlu0 %2719
        %v2721 = vsel %vm2136, %v2646, 0.0
        %2722 = vadd.xlane.f32.xlu0 %v2721
        %v2723 = vpop.xlane.xlu0 %2722
        %v2724 = vsel %vm2136, %v2648, 0.0
        %2725 = vadd.xlane.f32.xlu0 %v2724
        %v2726 = vpop.xlane.xlu0 %2725
        %v2727 = vsel %vm2136, %v2650, 0.0
        %2728 = vadd.xlane.f32.xlu0 %v2727
        %v2729 = vpop.xlane.xlu0 %2728
        %v2730 = vsel %vm2136, %v2652, 0.0
        %2731 = vadd.xlane.f32.xlu0 %v2730
        %v2732 = vpop.xlane.xlu0 %2731
        %v2733 = vsel %vm2136, %v2654, 0.0
        %2734 = vadd.xlane.f32.xlu0 %v2733
        %v2735 = vpop.xlane.xlu0 %2734
        %v2736 = vsel %vm2136, %v2656, 0.0
        %2737 = vadd.xlane.f32.xlu0 %v2736
        %v2738 = vpop.xlane.xlu0 %2737
        %v2739 = vsel %vm2136, %v2658, 0.0
        %2740 = vadd.xlane.f32.xlu0 %v2739
        %v2741 = vpop.xlane.xlu0 %2740
        %v2742 = vsel %vm2136, %v2660, 0.0
        %2743 = vadd.xlane.f32.xlu0 %v2742
        %v2744 = vpop.xlane.xlu0 %2743
        %v2745 = vsel %vm2136, %v2662, 0.0
        %2746 = vadd.xlane.f32.xlu0 %v2745
        %v2747 = vpop.xlane.xlu0 %2746
        %v2748 = vsel %vm2136, %v2664, 0.0
        %2749 = vadd.xlane.f32.xlu0 %v2748
        %v2750 = vpop.xlane.xlu0 %2749
        %v2751 = vsel %vm2136, %v2666, 0.0
        %2752 = vadd.xlane.f32.xlu0 %v2751
        %v2753 = vpop.xlane.xlu0 %2752
        %v2754 = vsel %vm2136, %v2668, 0.0
        %2755 = vadd.xlane.f32.xlu0 %v2754
        %v2756 = vpop.xlane.xlu0 %2755
        %v2757 = vsel %vm2136, %v2670, 0.0
        %2758 = vadd.xlane.f32.xlu0 %v2757
        %v2759 = vpop.xlane.xlu0 %2758
        %v2760 = vsel %vm2136, %v2672, 0.0
        %2761 = vadd.xlane.f32.xlu0 %v2760
        %v2762 = vpop.xlane.xlu0 %2761
        %v2763 = vsel %vm2136, %v2674, 0.0
        %2764 = vadd.xlane.f32.xlu0 %v2763
        %v2765 = vpop.xlane.xlu0 %2764
        %v2766 = vsel %vm2136, %v2676, 0.0
        %2767 = vadd.xlane.f32.xlu0 %v2766
        %v2768 = vpop.xlane.xlu0 %2767
        %v2769 = vsel %vm2136, %v2678, 0.0
        %2770 = vadd.xlane.f32.xlu0 %v2769
        %v2771 = vpop.xlane.xlu0 %2770
        %v2772 = vsel %vm2136, %v2680, 0.0
        %2773 = vadd.xlane.f32.xlu0 %v2772
        %v2774 = vpop.xlane.xlu0 %2773
        %v2775 = vsel %vm2136, %v2682, 0.0
        %2776 = vadd.xlane.f32.xlu0 %v2775
        %v2777 = vpop.xlane.xlu0 %2776
        %v2778 = vsel %vm2136, %v2684, 0.0
        %2779 = vadd.xlane.f32.xlu0 %v2778
        %v2780 = vpop.xlane.xlu0 %2779
        %v2781 = vrcp.pop %v2687
        %v2782 = vrcp.pop %v2690
        %v2783 = vrcp.pop %v2693
        %v2784 = vrcp.pop %v2696
        %v2785 = vrcp.pop %v2699
        %v2786 = vrcp.pop %v2702
        %v2787 = vrcp.pop %v2705
        %v2788 = vrcp.pop %v2708
        %v2789 = vrcp.pop %v2711
        %v2790 = vrcp.pop %v2714
        %v2791 = vrcp.pop %v2717
        %v2792 = vrcp.pop %v2720
        %v2793 = vrcp.pop %v2723
        %v2794 = vrcp.pop %v2726
        %v2795 = vrcp.pop %v2729
        %v2796 = vrcp.pop %v2732
        %v2797 = vrcp.pop %v2735
        %v2798 = vrcp.pop %v2738
        %v2799 = vrcp.pop %v2741
        %v2800 = vrcp.pop %v2744
        %v2801 = vrcp.pop %v2747
        %v2802 = vrcp.pop %v2750
        %v2803 = vrcp.pop %v2753
        %v2804 = vrcp.pop %v2756
        %v2805 = vrcp.pop %v2759
        %v2806 = vrcp.pop %v2762
        %v2807 = vrcp.pop %v2765
        %v2808 = vrcp.pop %v2768
        %v2809 = vrcp.pop %v2771
        %v2810 = vrcp.pop %v2774
        %v2811 = vrcp.pop %v2777
        %v2812 = vrcp.pop %v2780
        %v2813 = vmul.f32 %v2622, %v2781
        %v2814 = vmul.f32 %v2624, %v2782
        %v2815 = vmul.f32 %v2626, %v2783
        %v2816 = vmul.f32 %v2628, %v2784
        %v2817 = vmul.f32 %v2630, %v2785
        %v2818 = vmul.f32 %v2632, %v2786
        %v2819 = vmul.f32 %v2634, %v2787
        %v2820 = vmul.f32 %v2636, %v2788
        %v2821 = vmul.f32 %v2638, %v2789
        %v2822 = vmul.f32 %v2640, %v2790
        %v2823 = vmul.f32 %v2642, %v2791
        %v2824 = vmul.f32 %v2644, %v2792
        %v2825 = vmul.f32 %v2646, %v2793
        %v2826 = vmul.f32 %v2648, %v2794
        %v2827 = vmul.f32 %v2650, %v2795
        %v2828 = vmul.f32 %v2652, %v2796
        %v2829 = vmul.f32 %v2654, %v2797
        %v2830 = vmul.f32 %v2656, %v2798
        %v2831 = vmul.f32 %v2658, %v2799
        %v2832 = vmul.f32 %v2660, %v2800
        %v2833 = vmul.f32 %v2662, %v2801
        %v2834 = vmul.f32 %v2664, %v2802
        %v2835 = vmul.f32 %v2666, %v2803
        %v2836 = vmul.f32 %v2668, %v2804
        %v2837 = vmul.f32 %v2670, %v2805
        %v2838 = vmul.f32 %v2672, %v2806
        %v2839 = vmul.f32 %v2674, %v2807
        %v2840 = vmul.f32 %v2676, %v2808
        %v2841 = vmul.f32 %v2678, %v2809
        %v2842 = vmul.f32 %v2680, %v2810
        %v2843 = vmul.f32 %v2682, %v2811
        %v2844 = vmul.f32 %v2684, %v2812
        %v2845 = vpack.c.bf16 %v2814, %v2813
        %v2846 = vpack.c.bf16 %v2816, %v2815
        %v2847 = vpack.c.bf16 %v2818, %v2817
        %v2848 = vpack.c.bf16 %v2820, %v2819
        %v2849 = vpack.c.bf16 %v2822, %v2821
        %v2850 = vpack.c.bf16 %v2824, %v2823
        %v2851 = vpack.c.bf16 %v2826, %v2825
        %v2852 = vpack.c.bf16 %v2828, %v2827
        %v2853 = vpack.c.bf16 %v2830, %v2829
        %v2854 = vpack.c.bf16 %v2832, %v2831
        %v2855 = vpack.c.bf16 %v2834, %v2833
        %v2856 = vpack.c.bf16 %v2836, %v2835
        %v2857 = vpack.c.bf16 %v2838, %v2837
        %v2858 = vpack.c.bf16 %v2840, %v2839
        %v2859 = vpack.c.bf16 %v2842, %v2841
        %v2860 = vpack.c.bf16 %v2844, %v2843
        %v2862 = vsel %vm2136, %v2845, 0
        %v2865 = vsel %vm2136, %v2846, 0
        %v2868 = vsel %vm2136, %v2847, 0
        %v2871 = vsel %vm2136, %v2848, 0
        %2873 = vmatprep.subr.bf16.mxu0 0
        %2874 = vmatpush1.bf16.msra.mxu0 0
        %2875 = vmatprep.subr.bf16.mxu0 0
        %2876 = vmatpush1.bf16.msra.mxu0 0
        %2877 = vmatprep.subr.bf16.mxu0 0
        %2878 = vmatpush1.bf16.msra.mxu0 0
        %2879 = vmatprep.subr.bf16.mxu0 0
        %2880 = vmatpush1.bf16.msra.mxu0 0
        %2881 = vmatprep.subr.bf16.mxu0 0
        %2882 = vmatpush1.bf16.msra.mxu0 %v2115
        %2883 = vmatprep.subr.bf16.mxu0 0
        %2884 = vmatpush1.bf16.msra.mxu0 %v2114
        %2885 = vmatprep.subr.bf16.mxu0 0
        %2886 = vmatpush1.bf16.msra.mxu0 %v2113
        %2887 = vmatprep.subr.bf16.mxu0 0
        %2888 = vmatpush1.bf16.msra.mxu0 %v2112
        %2889 = vmatprep.subr.bf16.mxu0 0
        %2890 = vmatpush2.bf16.msra.mxu0 0
        %2891 = vmatprep.subr.bf16.mxu0 0
        %2892 = vmatpush2.bf16.msra.mxu0 0
        %2893 = vmatprep.subr.bf16.mxu0 0
        %2894 = vmatpush2.bf16.msra.mxu0 0
        %2895 = vmatprep.subr.bf16.mxu0 0
        %2896 = vmatpush2.bf16.msra.mxu0 0
        %2897 = vmatprep.subr.bf16.mxu0 0
        %2898 = vmatpush2.bf16.msra.mxu0 0
        %2899 = vmatprep.subr.bf16.mxu0 0
        %2900 = vmatpush2.bf16.msra.mxu0 0
        %2901 = vmatprep.subr.bf16.mxu0 0
        %2902 = vmatpush2.bf16.msra.mxu0 0
        %2903 = vmatprep.subr.bf16.mxu0 0
        %2904 = vmatpush2.bf16.msra.mxu0 0
        %2905 = vmatprep.mubr.bf16.mxu0 0
        %2906 = vmatmul.mubr.bf16.gmra.mxu0 %v2862
        %v2907 = vpop.f32.mrf.mxu0
        %v2908 = vadd.f32 0.0, %v2907
        %v2909 = vpop.f32.mrf.mxu0
        %v2910 = vpop.f32.mrf.mxu0
        %v2911 = vadd.f32 0.0, %v2910
        %v2912 = vpop.f32.mrf.mxu0
        %2913 = vmatprep.mubr.bf16.mxu0 0
        %2914 = vmatmul.mubr.bf16.gmra.mxu0 %v2865
        %v2915 = vpop.f32.mrf.mxu0
        %v2916 = vadd.f32 0.0, %v2915
        %v2917 = vpop.f32.mrf.mxu0
        %v2918 = vpop.f32.mrf.mxu0
        %v2919 = vadd.f32 0.0, %v2918
        %v2920 = vpop.f32.mrf.mxu0
        %2921 = vmatprep.mubr.bf16.mxu0 0
        %2922 = vmatmul.mubr.bf16.gmra.mxu0 %v2868
        %v2923 = vpop.f32.mrf.mxu0
        %v2924 = vadd.f32 0.0, %v2923
        %v2925 = vpop.f32.mrf.mxu0
        %v2926 = vpop.f32.mrf.mxu0
        %v2927 = vadd.f32 0.0, %v2926
        %v2928 = vpop.f32.mrf.mxu0
        %2929 = vmatprep.mubr.bf16.mxu0 0
        %2930 = vmatmul.mubr.bf16.gmra.mxu0 %v2871
        %v2931 = vpop.f32.mrf.mxu0
        %v2932 = vadd.f32 0.0, %v2931
        %v2933 = vpop.f32.mrf.mxu0
        %v2934 = vpop.f32.mrf.mxu0
        %v2935 = vadd.f32 0.0, %v2934
        %v2936 = vpop.f32.mrf.mxu0
        %2937 = vdwg.mxu0
        %v2939 = vsel %vm2136, %v2849, 0
        %v2942 = vsel %vm2136, %v2850, 0
        %v2945 = vsel %vm2136, %v2851, 0
        %v2948 = vsel %vm2136, %v2852, 0
        %2950 = vmatprep.subr.bf16.mxu0 0
        %2951 = vmatpush1.bf16.msra.mxu0 0
        %2952 = vmatprep.subr.bf16.mxu0 0
        %2953 = vmatpush1.bf16.msra.mxu0 0
        %2954 = vmatprep.subr.bf16.mxu0 0
        %2955 = vmatpush1.bf16.msra.mxu0 0
        %2956 = vmatprep.subr.bf16.mxu0 0
        %2957 = vmatpush1.bf16.msra.mxu0 0
        %2958 = vmatprep.subr.bf16.mxu0 0
        %2959 = vmatpush1.bf16.msra.mxu0 %v2119
        %2960 = vmatprep.subr.bf16.mxu0 0
        %2961 = vmatpush1.bf16.msra.mxu0 %v2118
        %2962 = vmatprep.subr.bf16.mxu0 0
        %2963 = vmatpush1.bf16.msra.mxu0 %v2117
        %2964 = vmatprep.subr.bf16.mxu0 0
        %2965 = vmatpush1.bf16.msra.mxu0 %v2116
        %2966 = vmatprep.subr.bf16.mxu0 0
        %2967 = vmatpush2.bf16.msra.mxu0 0
        %2968 = vmatprep.subr.bf16.mxu0 0
        %2969 = vmatpush2.bf16.msra.mxu0 0
        %2970 = vmatprep.subr.bf16.mxu0 0
        %2971 = vmatpush2.bf16.msra.mxu0 0
        %2972 = vmatprep.subr.bf16.mxu0 0
        %2973 = vmatpush2.bf16.msra.mxu0 0
        %2974 = vmatprep.subr.bf16.mxu0 0
        %2975 = vmatpush2.bf16.msra.mxu0 0
        %2976 = vmatprep.subr.bf16.mxu0 0
        %2977 = vmatpush2.bf16.msra.mxu0 0
        %2978 = vmatprep.subr.bf16.mxu0 0
        %2979 = vmatpush2.bf16.msra.mxu0 0
        %2980 = vmatprep.subr.bf16.mxu0 0
        %2981 = vmatpush2.bf16.msra.mxu0 0
        %2982 = vmatprep.mubr.bf16.mxu0 0
        %2983 = vmatmul.mubr.bf16.gmra.mxu0 %v2939
        %v2984 = vpop.f32.mrf.mxu0
        %v2985 = vadd.f32 0.0, %v2984
        %v2986 = vpop.f32.mrf.mxu0
        %v2987 = vpop.f32.mrf.mxu0
        %v2988 = vadd.f32 0.0, %v2987
        %v2989 = vpop.f32.mrf.mxu0
        %2990 = vmatprep.mubr.bf16.mxu0 0
        %2991 = vmatmul.mubr.bf16.gmra.mxu0 %v2942
        %v2992 = vpop.f32.mrf.mxu0
        %v2993 = vadd.f32 0.0, %v2992
        %v2994 = vpop.f32.mrf.mxu0
        %v2995 = vpop.f32.mrf.mxu0
        %v2996 = vadd.f32 0.0, %v2995
        %v2997 = vpop.f32.mrf.mxu0
        %2998 = vmatprep.mubr.bf16.mxu0 0
        %2999 = vmatmul.mubr.bf16.gmra.mxu0 %v2945
        %v3000 = vpop.f32.mrf.mxu0
        %v3001 = vadd.f32 0.0, %v3000
        %v3002 = vpop.f32.mrf.mxu0
        %v3003 = vpop.f32.mrf.mxu0
        %v3004 = vadd.f32 0.0, %v3003
        %v3005 = vpop.f32.mrf.mxu0
        %3006 = vmatprep.mubr.bf16.mxu0 0
        %3007 = vmatmul.mubr.bf16.gmra.mxu0 %v2948
        %v3008 = vpop.f32.mrf.mxu0
        %v3009 = vadd.f32 0.0, %v3008
        %v3010 = vpop.f32.mrf.mxu0
        %v3011 = vpop.f32.mrf.mxu0
        %v3012 = vadd.f32 0.0, %v3011
        %v3013 = vpop.f32.mrf.mxu0
        %3014 = vdwg.mxu0
        %v3016 = vsel %vm2136, %v2853, 0
        %v3019 = vsel %vm2136, %v2854, 0
        %v3022 = vsel %vm2136, %v2855, 0
        %v3025 = vsel %vm2136, %v2856, 0
        %3027 = vmatprep.subr.bf16.mxu0 0
        %3028 = vmatpush1.bf16.msra.mxu0 0
        %3029 = vmatprep.subr.bf16.mxu0 0
        %3030 = vmatpush1.bf16.msra.mxu0 0
        %3031 = vmatprep.subr.bf16.mxu0 0
        %3032 = vmatpush1.bf16.msra.mxu0 0
        %3033 = vmatprep.subr.bf16.mxu0 0
        %3034 = vmatpush1.bf16.msra.mxu0 0
        %3035 = vmatprep.subr.bf16.mxu0 0
        %3036 = vmatpush1.bf16.msra.mxu0 %v2123
        %3037 = vmatprep.subr.bf16.mxu0 0
        %3038 = vmatpush1.bf16.msra.mxu0 %v2122
        %3039 = vmatprep.subr.bf16.mxu0 0
        %3040 = vmatpush1.bf16.msra.mxu0 %v2121
        %3041 = vmatprep.subr.bf16.mxu0 0
        %3042 = vmatpush1.bf16.msra.mxu0 %v2120
        %3043 = vmatprep.subr.bf16.mxu0 0
        %3044 = vmatpush2.bf16.msra.mxu0 0
        %3045 = vmatprep.subr.bf16.mxu0 0
        %3046 = vmatpush2.bf16.msra.mxu0 0
        %3047 = vmatprep.subr.bf16.mxu0 0
        %3048 = vmatpush2.bf16.msra.mxu0 0
        %3049 = vmatprep.subr.bf16.mxu0 0
        %3050 = vmatpush2.bf16.msra.mxu0 0
        %3051 = vmatprep.subr.bf16.mxu0 0
        %3052 = vmatpush2.bf16.msra.mxu0 0
        %3053 = vmatprep.subr.bf16.mxu0 0
        %3054 = vmatpush2.bf16.msra.mxu0 0
        %3055 = vmatprep.subr.bf16.mxu0 0
        %3056 = vmatpush2.bf16.msra.mxu0 0
        %3057 = vmatprep.subr.bf16.mxu0 0
        %3058 = vmatpush2.bf16.msra.mxu0 0
        %3059 = vmatprep.mubr.bf16.mxu0 0
        %3060 = vmatmul.mubr.bf16.gmra.mxu0 %v3016
        %v3061 = vpop.f32.mrf.mxu0
        %v3062 = vadd.f32 0.0, %v3061
        %v3063 = vpop.f32.mrf.mxu0
        %v3064 = vpop.f32.mrf.mxu0
        %v3065 = vadd.f32 0.0, %v3064
        %v3066 = vpop.f32.mrf.mxu0
        %3067 = vmatprep.mubr.bf16.mxu0 0
        %3068 = vmatmul.mubr.bf16.gmra.mxu0 %v3019
        %v3069 = vpop.f32.mrf.mxu0
        %v3070 = vadd.f32 0.0, %v3069
        %v3071 = vpop.f32.mrf.mxu0
        %v3072 = vpop.f32.mrf.mxu0
        %v3073 = vadd.f32 0.0, %v3072
        %v3074 = vpop.f32.mrf.mxu0
        %3075 = vmatprep.mubr.bf16.mxu0 0
        %3076 = vmatmul.mubr.bf16.gmra.mxu0 %v3022
        %v3077 = vpop.f32.mrf.mxu0
        %v3078 = vadd.f32 0.0, %v3077
        %v3079 = vpop.f32.mrf.mxu0
        %v3080 = vpop.f32.mrf.mxu0
        %v3081 = vadd.f32 0.0, %v3080
        %v3082 = vpop.f32.mrf.mxu0
        %3083 = vmatprep.mubr.bf16.mxu0 0
        %3084 = vmatmul.mubr.bf16.gmra.mxu0 %v3025
        %v3085 = vpop.f32.mrf.mxu0
        %v3086 = vadd.f32 0.0, %v3085
        %v3087 = vpop.f32.mrf.mxu0
        %v3088 = vpop.f32.mrf.mxu0
        %v3089 = vadd.f32 0.0, %v3088
        %v3090 = vpop.f32.mrf.mxu0
        %3091 = vdwg.mxu0
        %v3093 = vsel %vm2136, %v2857, 0
        %v3096 = vsel %vm2136, %v2858, 0
        %v3099 = vsel %vm2136, %v2859, 0
        %v3102 = vsel %vm2136, %v2860, 0
        %3104 = vmatprep.subr.bf16.mxu0 0
        %3105 = vmatpush1.bf16.msra.mxu0 0
        %3106 = vmatprep.subr.bf16.mxu0 0
        %3107 = vmatpush1.bf16.msra.mxu0 0
        %3108 = vmatprep.subr.bf16.mxu0 0
        %3109 = vmatpush1.bf16.msra.mxu0 0
        %3110 = vmatprep.subr.bf16.mxu0 0
        %3111 = vmatpush1.bf16.msra.mxu0 0
        %3112 = vmatprep.subr.bf16.mxu0 0
        %3113 = vmatpush1.bf16.msra.mxu0 %v2127
        %3114 = vmatprep.subr.bf16.mxu0 0
        %3115 = vmatpush1.bf16.msra.mxu0 %v2126
        %3116 = vmatprep.subr.bf16.mxu0 0
        %3117 = vmatpush1.bf16.msra.mxu0 %v2125
        %3118 = vmatprep.subr.bf16.mxu0 0
        %3119 = vmatpush1.bf16.msra.mxu0 %v2124
        %3120 = vmatprep.subr.bf16.mxu0 0
        %3121 = vmatpush2.bf16.msra.mxu0 0
        %3122 = vmatprep.subr.bf16.mxu0 0
        %3123 = vmatpush2.bf16.msra.mxu0 0
        %3124 = vmatprep.subr.bf16.mxu0 0
        %3125 = vmatpush2.bf16.msra.mxu0 0
        %3126 = vmatprep.subr.bf16.mxu0 0
        %3127 = vmatpush2.bf16.msra.mxu0 0
        %3128 = vmatprep.subr.bf16.mxu0 0
        %3129 = vmatpush2.bf16.msra.mxu0 0
        %3130 = vmatprep.subr.bf16.mxu0 0
        %3131 = vmatpush2.bf16.msra.mxu0 0
        %3132 = vmatprep.subr.bf16.mxu0 0
        %3133 = vmatpush2.bf16.msra.mxu0 0
        %3134 = vmatprep.subr.bf16.mxu0 0
        %3135 = vmatpush2.bf16.msra.mxu0 0
        %3136 = vmatprep.mubr.bf16.mxu0 0
        %3137 = vmatmul.mubr.bf16.gmra.mxu0 %v3093
        %v3138 = vpop.f32.mrf.mxu0
        %v3139 = vadd.f32 0.0, %v3138
        %v3140 = vpop.f32.mrf.mxu0
        %v3141 = vpop.f32.mrf.mxu0
        %v3142 = vadd.f32 0.0, %v3141
        %v3143 = vpop.f32.mrf.mxu0
        %3144 = vmatprep.mubr.bf16.mxu0 0
        %3145 = vmatmul.mubr.bf16.gmra.mxu0 %v3096
        %v3146 = vpop.f32.mrf.mxu0
        %v3147 = vadd.f32 0.0, %v3146
        %v3148 = vpop.f32.mrf.mxu0
        %v3149 = vpop.f32.mrf.mxu0
        %v3150 = vadd.f32 0.0, %v3149
        %v3151 = vpop.f32.mrf.mxu0
        %3152 = vmatprep.mubr.bf16.mxu0 0
        %3153 = vmatmul.mubr.bf16.gmra.mxu0 %v3099
        %v3154 = vpop.f32.mrf.mxu0
        %v3155 = vadd.f32 0.0, %v3154
        %v3156 = vpop.f32.mrf.mxu0
        %v3157 = vpop.f32.mrf.mxu0
        %v3158 = vadd.f32 0.0, %v3157
        %v3159 = vpop.f32.mrf.mxu0
        %3160 = vmatprep.mubr.bf16.mxu0 0
        %3161 = vmatmul.mubr.bf16.gmra.mxu0 %v3102
        %v3162 = vpop.f32.mrf.mxu0
        %v3163 = vadd.f32 0.0, %v3162
        %v3164 = vpop.f32.mrf.mxu0
        %v3165 = vpop.f32.mrf.mxu0
        %v3166 = vadd.f32 0.0, %v3165
        %v3167 = vpop.f32.mrf.mxu0
        %3168 = vdwg.mxu0
        %v3169 = vpack.c.bf16 %v2911, %v2908
        %v3170 = vpack.c.bf16 %v2919, %v2916
        %v3171 = vpack.c.bf16 %v2927, %v2924
        %v3172 = vpack.c.bf16 %v2935, %v2932
        %v3173 = vpack.c.bf16 %v2988, %v2985
        %v3174 = vpack.c.bf16 %v2996, %v2993
        %v3175 = vpack.c.bf16 %v3004, %v3001
        %v3176 = vpack.c.bf16 %v3012, %v3009
        %v3177 = vpack.c.bf16 %v3065, %v3062
        %v3178 = vpack.c.bf16 %v3073, %v3070
        %v3179 = vpack.c.bf16 %v3081, %v3078
        %v3180 = vpack.c.bf16 %v3089, %v3086
        %v3181 = vpack.c.bf16 %v3142, %v3139
        %v3182 = vpack.c.bf16 %v3150, %v3147
        %v3183 = vpack.c.bf16 %v3158, %v3155
        %v3184 = vpack.c.bf16 %v3166, %v3163
        %v3185 = vld [vmem:[%s671] sm:$0xff]
        %v3186 = vld [vmem:[%s671 + $0x8] sm:$0xff]
        %v3187 = vld [vmem:[%s671 + $0x10] sm:$0xff]
        %v3188 = vld [vmem:[%s671 + $0x18] sm:$0xff]
        %v3189 = vld [vmem:[%s671 + $0x20] sm:$0xff]
        %v3190 = vld [vmem:[%s671 + $0x28] sm:$0xff]
        %v3191 = vld [vmem:[%s671 + $0x30] sm:$0xff]
        %v3192 = vld [vmem:[%s671 + $0x38] sm:$0xff]
        %v3193 = vld [vmem:[%s671 + $0x40] sm:$0xff]
        %v3194 = vld [vmem:[%s671 + $0x48] sm:$0xff]
        %v3195 = vld [vmem:[%s671 + $0x50] sm:$0xff]
        %v3196 = vld [vmem:[%s671 + $0x58] sm:$0xff]
        %v3197 = vld [vmem:[%s671 + $0x60] sm:$0xff]
        %v3198 = vld [vmem:[%s671 + $0x68] sm:$0xff]
        %v3199 = vld [vmem:[%s671 + $0x70] sm:$0xff]
        %v3200 = vld [vmem:[%s671 + $0x78] sm:$0xff]
        %v3201 = vld [vmem:[%s671 + $0x80] sm:$0xff]
        %v3202 = vld [vmem:[%s671 + $0x88] sm:$0xff]
        %v3203 = vld [vmem:[%s671 + $0x90] sm:$0xff]
        %v3204 = vld [vmem:[%s671 + $0x98] sm:$0xff]
        %v3205 = vld [vmem:[%s671 + $0xa0] sm:$0xff]
        %v3206 = vld [vmem:[%s671 + $0xa8] sm:$0xff]
        %v3207 = vld [vmem:[%s671 + $0xb0] sm:$0xff]
        %v3208 = vld [vmem:[%s671 + $0xb8] sm:$0xff]
        %v3209 = vld [vmem:[%s671 + $0xc0] sm:$0xff]
        %v3210 = vld [vmem:[%s671 + $0xc8] sm:$0xff]
        %v3211 = vld [vmem:[%s671 + $0xd0] sm:$0xff]
        %v3212 = vld [vmem:[%s671 + $0xd8] sm:$0xff]
        %v3213 = vld [vmem:[%s671 + $0xe0] sm:$0xff]
        %v3214 = vld [vmem:[%s671 + $0xe8] sm:$0xff]
        %v3215 = vld [vmem:[%s671 + $0xf0] sm:$0xff]
        %v3216 = vld [vmem:[%s671 + $0xf8] sm:$0xff]
        %v3225 = vunpack.c.l.b16 %v3185
        %v3226 = vunpack.c.h.b16 %v3185
        %v3227 = vunpack.c.l.b16 %v3186
        %v3228 = vunpack.c.h.b16 %v3186
        %v3229 = vunpack.c.l.b16 %v3187
        %v3230 = vunpack.c.h.b16 %v3187
        %v3231 = vunpack.c.l.b16 %v3188
        %v3232 = vunpack.c.h.b16 %v3188
        %v3233 = vunpack.c.l.b16 %v3189
        %v3234 = vunpack.c.h.b16 %v3189
        %v3235 = vunpack.c.l.b16 %v3190
        %v3236 = vunpack.c.h.b16 %v3190
        %v3237 = vunpack.c.l.b16 %v3191
        %v3238 = vunpack.c.h.b16 %v3191
        %v3239 = vunpack.c.l.b16 %v3192
        %v3240 = vunpack.c.h.b16 %v3192
        %v3241 = vpack.c.b16 %v3227, %v3225
        %v3242 = vpack.c.b16 %v3228, %v3226
        %v3243 = vpack.c.b16 %v3231, %v3229
        %v3244 = vpack.c.b16 %v3232, %v3230
        %v3245 = vpack.c.b16 %v3235, %v3233
        %v3246 = vpack.c.b16 %v3236, %v3234
        %v3247 = vpack.c.b16 %v3239, %v3237
        %v3248 = vpack.c.b16 %v3240, %v3238
        %v3258 = vsel %vm2136, %v3169, 0
        %v3261 = vsel %vm2136, %v3170, 0
        %v3264 = vsel %vm2136, %v3171, 0
        %v3267 = vsel %vm2136, %v3172, 0
        %3269 = vmatprep.subr.bf16.mxu0 0
        %3270 = vmatpush1.bf16.msra.mxu0 0
        %3271 = vmatprep.subr.bf16.mxu0 0
        %3272 = vmatpush1.bf16.msra.mxu0 0
        %3273 = vmatprep.subr.bf16.mxu0 0
        %3274 = vmatpush1.bf16.msra.mxu0 0
        %3275 = vmatprep.subr.bf16.mxu0 0
        %3276 = vmatpush1.bf16.msra.mxu0 0
        %3277 = vmatprep.subr.bf16.mxu0 %v3248
        %3278 = vmatpush1.bf16.msra.mxu0 %v3247
        %3279 = vmatprep.subr.bf16.mxu0 %v3246
        %3280 = vmatpush1.bf16.msra.mxu0 %v3245
        %3281 = vmatprep.subr.bf16.mxu0 %v3244
        %3282 = vmatpush1.bf16.msra.mxu0 %v3243
        %3283 = vmatprep.subr.bf16.mxu0 %v3242
        %3284 = vmatpush1.bf16.msra.mxu0 %v3241
        %3285 = vmatprep.subr.bf16.mxu0 0
        %3286 = vmatpush2.bf16.msra.mxu0 0
        %3287 = vmatprep.subr.bf16.mxu0 0
        %3288 = vmatpush2.bf16.msra.mxu0 0
        %3289 = vmatprep.subr.bf16.mxu0 0
        %3290 = vmatpush2.bf16.msra.mxu0 0
        %3291 = vmatprep.subr.bf16.mxu0 0
        %3292 = vmatpush2.bf16.msra.mxu0 0
        %3293 = vmatprep.subr.bf16.mxu0 0
        %3294 = vmatpush2.bf16.msra.mxu0 0
        %3295 = vmatprep.subr.bf16.mxu0 0
        %3296 = vmatpush2.bf16.msra.mxu0 0
        %3297 = vmatprep.subr.bf16.mxu0 0
        %3298 = vmatpush2.bf16.msra.mxu0 0
        %3299 = vmatprep.subr.bf16.mxu0 0
        %3300 = vmatpush2.bf16.msra.mxu0 0
        %3301 = vmatprep.mubr.bf16.mxu0 0
        %3302 = vmatmul.mubr.bf16.gmra.mxu0 %v3258
        %v3303 = vpop.f32.mrf.mxu0
        %v3304 = vadd.f32 0.0, %v3303
        %v3305 = vpop.f32.mrf.mxu0
        %v3306 = vadd.f32 0.0, %v3305
        %v3307 = vpop.f32.mrf.mxu0
        %v3308 = vadd.f32 0.0, %v3307
        %v3309 = vpop.f32.mrf.mxu0
        %v3310 = vadd.f32 0.0, %v3309
        %3311 = vmatprep.mubr.bf16.mxu0 0
        %3312 = vmatmul.mubr.bf16.gmra.mxu0 %v3261
        %v3313 = vpop.f32.mrf.mxu0
        %v3314 = vadd.f32 0.0, %v3313
        %v3315 = vpop.f32.mrf.mxu0
        %v3316 = vadd.f32 0.0, %v3315
        %v3317 = vpop.f32.mrf.mxu0
        %v3318 = vadd.f32 0.0, %v3317
        %v3319 = vpop.f32.mrf.mxu0
        %v3320 = vadd.f32 0.0, %v3319
        %3321 = vmatprep.mubr.bf16.mxu0 0
        %3322 = vmatmul.mubr.bf16.gmra.mxu0 %v3264
        %v3323 = vpop.f32.mrf.mxu0
        %v3324 = vadd.f32 0.0, %v3323
        %v3325 = vpop.f32.mrf.mxu0
        %v3326 = vadd.f32 0.0, %v3325
        %v3327 = vpop.f32.mrf.mxu0
        %v3328 = vadd.f32 0.0, %v3327
        %v3329 = vpop.f32.mrf.mxu0
        %v3330 = vadd.f32 0.0, %v3329
        %3331 = vmatprep.mubr.bf16.mxu0 0
        %3332 = vmatmul.mubr.bf16.gmra.mxu0 %v3267
        %v3333 = vpop.f32.mrf.mxu0
        %v3334 = vadd.f32 0.0, %v3333
        %v3335 = vpop.f32.mrf.mxu0
        %v3336 = vadd.f32 0.0, %v3335
        %v3337 = vpop.f32.mrf.mxu0
        %v3338 = vadd.f32 0.0, %v3337
        %v3339 = vpop.f32.mrf.mxu0
        %v3340 = vadd.f32 0.0, %v3339
        %3341 = vdwg.mxu0
        %v3350 = vunpack.c.l.b16 %v3193
        %v3351 = vunpack.c.h.b16 %v3193
        %v3352 = vunpack.c.l.b16 %v3194
        %v3353 = vunpack.c.h.b16 %v3194
        %v3354 = vunpack.c.l.b16 %v3195
        %v3355 = vunpack.c.h.b16 %v3195
        %v3356 = vunpack.c.l.b16 %v3196
        %v3357 = vunpack.c.h.b16 %v3196
        %v3358 = vunpack.c.l.b16 %v3197
        %v3359 = vunpack.c.h.b16 %v3197
        %v3360 = vunpack.c.l.b16 %v3198
        %v3361 = vunpack.c.h.b16 %v3198
        %v3362 = vunpack.c.l.b16 %v3199
        %v3363 = vunpack.c.h.b16 %v3199
        %v3364 = vunpack.c.l.b16 %v3200
        %v3365 = vunpack.c.h.b16 %v3200
        %v3366 = vpack.c.b16 %v3352, %v3350
        %v3367 = vpack.c.b16 %v3353, %v3351
        %v3368 = vpack.c.b16 %v3356, %v3354
        %v3369 = vpack.c.b16 %v3357, %v3355
        %v3370 = vpack.c.b16 %v3360, %v3358
        %v3371 = vpack.c.b16 %v3361, %v3359
        %v3372 = vpack.c.b16 %v3364, %v3362
        %v3373 = vpack.c.b16 %v3365, %v3363
        %v3383 = vsel %vm2136, %v3173, 0
        %v3386 = vsel %vm2136, %v3174, 0
        %v3389 = vsel %vm2136, %v3175, 0
        %v3392 = vsel %vm2136, %v3176, 0
        %3394 = vmatprep.subr.bf16.mxu0 0
        %3395 = vmatpush1.bf16.msra.mxu0 0
        %3396 = vmatprep.subr.bf16.mxu0 0
        %3397 = vmatpush1.bf16.msra.mxu0 0
        %3398 = vmatprep.subr.bf16.mxu0 0
        %3399 = vmatpush1.bf16.msra.mxu0 0
        %3400 = vmatprep.subr.bf16.mxu0 0
        %3401 = vmatpush1.bf16.msra.mxu0 0
        %3402 = vmatprep.subr.bf16.mxu0 %v3373
        %3403 = vmatpush1.bf16.msra.mxu0 %v3372
        %3404 = vmatprep.subr.bf16.mxu0 %v3371
        %3405 = vmatpush1.bf16.msra.mxu0 %v3370
        %3406 = vmatprep.subr.bf16.mxu0 %v3369
        %3407 = vmatpush1.bf16.msra.mxu0 %v3368
        %3408 = vmatprep.subr.bf16.mxu0 %v3367
        %3409 = vmatpush1.bf16.msra.mxu0 %v3366
        %3410 = vmatprep.subr.bf16.mxu0 0
        %3411 = vmatpush2.bf16.msra.mxu0 0
        %3412 = vmatprep.subr.bf16.mxu0 0
        %3413 = vmatpush2.bf16.msra.mxu0 0
        %3414 = vmatprep.subr.bf16.mxu0 0
        %3415 = vmatpush2.bf16.msra.mxu0 0
        %3416 = vmatprep.subr.bf16.mxu0 0
        %3417 = vmatpush2.bf16.msra.mxu0 0
        %3418 = vmatprep.subr.bf16.mxu0 0
        %3419 = vmatpush2.bf16.msra.mxu0 0
        %3420 = vmatprep.subr.bf16.mxu0 0
        %3421 = vmatpush2.bf16.msra.mxu0 0
        %3422 = vmatprep.subr.bf16.mxu0 0
        %3423 = vmatpush2.bf16.msra.mxu0 0
        %3424 = vmatprep.subr.bf16.mxu0 0
        %3425 = vmatpush2.bf16.msra.mxu0 0
        %3426 = vmatprep.mubr.bf16.mxu0 0
        %3427 = vmatmul.mubr.bf16.gmra.mxu0 %v3383
        %v3428 = vpop.f32.mrf.mxu0
        %v3429 = vadd.f32 0.0, %v3428
        %v3430 = vpop.f32.mrf.mxu0
        %v3431 = vadd.f32 0.0, %v3430
        %v3432 = vpop.f32.mrf.mxu0
        %v3433 = vadd.f32 0.0, %v3432
        %v3434 = vpop.f32.mrf.mxu0
        %v3435 = vadd.f32 0.0, %v3434
        %3436 = vmatprep.mubr.bf16.mxu0 0
        %3437 = vmatmul.mubr.bf16.gmra.mxu0 %v3386
        %v3438 = vpop.f32.mrf.mxu0
        %v3439 = vadd.f32 0.0, %v3438
        %v3440 = vpop.f32.mrf.mxu0
        %v3441 = vadd.f32 0.0, %v3440
        %v3442 = vpop.f32.mrf.mxu0
        %v3443 = vadd.f32 0.0, %v3442
        %v3444 = vpop.f32.mrf.mxu0
        %v3445 = vadd.f32 0.0, %v3444
        %3446 = vmatprep.mubr.bf16.mxu0 0
        %3447 = vmatmul.mubr.bf16.gmra.mxu0 %v3389
        %v3448 = vpop.f32.mrf.mxu0
        %v3449 = vadd.f32 0.0, %v3448
        %v3450 = vpop.f32.mrf.mxu0
        %v3451 = vadd.f32 0.0, %v3450
        %v3452 = vpop.f32.mrf.mxu0
        %v3453 = vadd.f32 0.0, %v3452
        %v3454 = vpop.f32.mrf.mxu0
        %v3455 = vadd.f32 0.0, %v3454
        %3456 = vmatprep.mubr.bf16.mxu0 0
        %3457 = vmatmul.mubr.bf16.gmra.mxu0 %v3392
        %v3458 = vpop.f32.mrf.mxu0
        %v3459 = vadd.f32 0.0, %v3458
        %v3460 = vpop.f32.mrf.mxu0
        %v3461 = vadd.f32 0.0, %v3460
        %v3462 = vpop.f32.mrf.mxu0
        %v3463 = vadd.f32 0.0, %v3462
        %v3464 = vpop.f32.mrf.mxu0
        %v3465 = vadd.f32 0.0, %v3464
        %3466 = vdwg.mxu0
        %v3475 = vunpack.c.l.b16 %v3201
        %v3476 = vunpack.c.h.b16 %v3201
        %v3477 = vunpack.c.l.b16 %v3202
        %v3478 = vunpack.c.h.b16 %v3202
        %v3479 = vunpack.c.l.b16 %v3203
        %v3480 = vunpack.c.h.b16 %v3203
        %v3481 = vunpack.c.l.b16 %v3204
        %v3482 = vunpack.c.h.b16 %v3204
        %v3483 = vunpack.c.l.b16 %v3205
        %v3484 = vunpack.c.h.b16 %v3205
        %v3485 = vunpack.c.l.b16 %v3206
        %v3486 = vunpack.c.h.b16 %v3206
        %v3487 = vunpack.c.l.b16 %v3207
        %v3488 = vunpack.c.h.b16 %v3207
        %v3489 = vunpack.c.l.b16 %v3208
        %v3490 = vunpack.c.h.b16 %v3208
        %v3491 = vpack.c.b16 %v3477, %v3475
        %v3492 = vpack.c.b16 %v3478, %v3476
        %v3493 = vpack.c.b16 %v3481, %v3479
        %v3494 = vpack.c.b16 %v3482, %v3480
        %v3495 = vpack.c.b16 %v3485, %v3483
        %v3496 = vpack.c.b16 %v3486, %v3484
        %v3497 = vpack.c.b16 %v3489, %v3487
        %v3498 = vpack.c.b16 %v3490, %v3488
        %v3508 = vsel %vm2136, %v3177, 0
        %v3511 = vsel %vm2136, %v3178, 0
        %v3514 = vsel %vm2136, %v3179, 0
        %v3517 = vsel %vm2136, %v3180, 0
        %3519 = vmatprep.subr.bf16.mxu0 0
        %3520 = vmatpush1.bf16.msra.mxu0 0
        %3521 = vmatprep.subr.bf16.mxu0 0
        %3522 = vmatpush1.bf16.msra.mxu0 0
        %3523 = vmatprep.subr.bf16.mxu0 0
        %3524 = vmatpush1.bf16.msra.mxu0 0
        %3525 = vmatprep.subr.bf16.mxu0 0
        %3526 = vmatpush1.bf16.msra.mxu0 0
        %3527 = vmatprep.subr.bf16.mxu0 %v3498
        %3528 = vmatpush1.bf16.msra.mxu0 %v3497
        %3529 = vmatprep.subr.bf16.mxu0 %v3496
        %3530 = vmatpush1.bf16.msra.mxu0 %v3495
        %3531 = vmatprep.subr.bf16.mxu0 %v3494
        %3532 = vmatpush1.bf16.msra.mxu0 %v3493
        %3533 = vmatprep.subr.bf16.mxu0 %v3492
        %3534 = vmatpush1.bf16.msra.mxu0 %v3491
        %3535 = vmatprep.subr.bf16.mxu0 0
        %3536 = vmatpush2.bf16.msra.mxu0 0
        %3537 = vmatprep.subr.bf16.mxu0 0
        %3538 = vmatpush2.bf16.msra.mxu0 0
        %3539 = vmatprep.subr.bf16.mxu0 0
        %3540 = vmatpush2.bf16.msra.mxu0 0
        %3541 = vmatprep.subr.bf16.mxu0 0
        %3542 = vmatpush2.bf16.msra.mxu0 0
        %3543 = vmatprep.subr.bf16.mxu0 0
        %3544 = vmatpush2.bf16.msra.mxu0 0
        %3545 = vmatprep.subr.bf16.mxu0 0
        %3546 = vmatpush2.bf16.msra.mxu0 0
        %3547 = vmatprep.subr.bf16.mxu0 0
        %3548 = vmatpush2.bf16.msra.mxu0 0
        %3549 = vmatprep.subr.bf16.mxu0 0
        %3550 = vmatpush2.bf16.msra.mxu0 0
        %3551 = vmatprep.mubr.bf16.mxu0 0
        %3552 = vmatmul.mubr.bf16.gmra.mxu0 %v3508
        %v3553 = vpop.f32.mrf.mxu0
        %v3554 = vadd.f32 0.0, %v3553
        %v3555 = vpop.f32.mrf.mxu0
        %v3556 = vadd.f32 0.0, %v3555
        %v3557 = vpop.f32.mrf.mxu0
        %v3558 = vadd.f32 0.0, %v3557
        %v3559 = vpop.f32.mrf.mxu0
        %v3560 = vadd.f32 0.0, %v3559
        %3561 = vmatprep.mubr.bf16.mxu0 0
        %3562 = vmatmul.mubr.bf16.gmra.mxu0 %v3511
        %v3563 = vpop.f32.mrf.mxu0
        %v3564 = vadd.f32 0.0, %v3563
        %v3565 = vpop.f32.mrf.mxu0
        %v3566 = vadd.f32 0.0, %v3565
        %v3567 = vpop.f32.mrf.mxu0
        %v3568 = vadd.f32 0.0, %v3567
        %v3569 = vpop.f32.mrf.mxu0
        %v3570 = vadd.f32 0.0, %v3569
        %3571 = vmatprep.mubr.bf16.mxu0 0
        %3572 = vmatmul.mubr.bf16.gmra.mxu0 %v3514
        %v3573 = vpop.f32.mrf.mxu0
        %v3574 = vadd.f32 0.0, %v3573
        %v3575 = vpop.f32.mrf.mxu0
        %v3576 = vadd.f32 0.0, %v3575
        %v3577 = vpop.f32.mrf.mxu0
        %v3578 = vadd.f32 0.0, %v3577
        %v3579 = vpop.f32.mrf.mxu0
        %v3580 = vadd.f32 0.0, %v3579
        %3581 = vmatprep.mubr.bf16.mxu0 0
        %3582 = vmatmul.mubr.bf16.gmra.mxu0 %v3517
        %v3583 = vpop.f32.mrf.mxu0
        %v3584 = vadd.f32 0.0, %v3583
        %v3585 = vpop.f32.mrf.mxu0
        %v3586 = vadd.f32 0.0, %v3585
        %v3587 = vpop.f32.mrf.mxu0
        %v3588 = vadd.f32 0.0, %v3587
        %v3589 = vpop.f32.mrf.mxu0
        %v3590 = vadd.f32 0.0, %v3589
        %3591 = vdwg.mxu0
        %v3600 = vunpack.c.l.b16 %v3209
        %v3601 = vunpack.c.h.b16 %v3209
        %v3602 = vunpack.c.l.b16 %v3210
        %v3603 = vunpack.c.h.b16 %v3210
        %v3604 = vunpack.c.l.b16 %v3211
        %v3605 = vunpack.c.h.b16 %v3211
        %v3606 = vunpack.c.l.b16 %v3212
        %v3607 = vunpack.c.h.b16 %v3212
        %v3608 = vunpack.c.l.b16 %v3213
        %v3609 = vunpack.c.h.b16 %v3213
        %v3610 = vunpack.c.l.b16 %v3214
        %v3611 = vunpack.c.h.b16 %v3214
        %v3612 = vunpack.c.l.b16 %v3215
        %v3613 = vunpack.c.h.b16 %v3215
        %v3614 = vunpack.c.l.b16 %v3216
        %v3615 = vunpack.c.h.b16 %v3216
        %v3616 = vpack.c.b16 %v3602, %v3600
        %v3617 = vpack.c.b16 %v3603, %v3601
        %v3618 = vpack.c.b16 %v3606, %v3604
        %v3619 = vpack.c.b16 %v3607, %v3605
        %v3620 = vpack.c.b16 %v3610, %v3608
        %v3621 = vpack.c.b16 %v3611, %v3609
        %v3622 = vpack.c.b16 %v3614, %v3612
        %v3623 = vpack.c.b16 %v3615, %v3613
        %v3633 = vsel %vm2136, %v3181, 0
        %v3636 = vsel %vm2136, %v3182, 0
        %v3639 = vsel %vm2136, %v3183, 0
        %v3642 = vsel %vm2136, %v3184, 0
        %3644 = vmatprep.subr.bf16.mxu0 0
        %3645 = vmatpush1.bf16.msra.mxu0 0
        %3646 = vmatprep.subr.bf16.mxu0 0
        %3647 = vmatpush1.bf16.msra.mxu0 0
        %3648 = vmatprep.subr.bf16.mxu0 0
        %3649 = vmatpush1.bf16.msra.mxu0 0
        %3650 = vmatprep.subr.bf16.mxu0 0
        %3651 = vmatpush1.bf16.msra.mxu0 0
        %3652 = vmatprep.subr.bf16.mxu0 %v3623
        %3653 = vmatpush1.bf16.msra.mxu0 %v3622
        %3654 = vmatprep.subr.bf16.mxu0 %v3621
        %3655 = vmatpush1.bf16.msra.mxu0 %v3620
        %3656 = vmatprep.subr.bf16.mxu0 %v3619
        %3657 = vmatpush1.bf16.msra.mxu0 %v3618
        %3658 = vmatprep.subr.bf16.mxu0 %v3617
        %3659 = vmatpush1.bf16.msra.mxu0 %v3616
        %3660 = vmatprep.subr.bf16.mxu0 0
        %3661 = vmatpush2.bf16.msra.mxu0 0
        %3662 = vmatprep.subr.bf16.mxu0 0
        %3663 = vmatpush2.bf16.msra.mxu0 0
        %3664 = vmatprep.subr.bf16.mxu0 0
        %3665 = vmatpush2.bf16.msra.mxu0 0
        %3666 = vmatprep.subr.bf16.mxu0 0
        %3667 = vmatpush2.bf16.msra.mxu0 0
        %3668 = vmatprep.subr.bf16.mxu0 0
        %3669 = vmatpush2.bf16.msra.mxu0 0
        %3670 = vmatprep.subr.bf16.mxu0 0
        %3671 = vmatpush2.bf16.msra.mxu0 0
        %3672 = vmatprep.subr.bf16.mxu0 0
        %3673 = vmatpush2.bf16.msra.mxu0 0
        %3674 = vmatprep.subr.bf16.mxu0 0
        %3675 = vmatpush2.bf16.msra.mxu0 0
        %3676 = vmatprep.mubr.bf16.mxu0 0
        %3677 = vmatmul.mubr.bf16.gmra.mxu0 %v3633
        %v3678 = vpop.f32.mrf.mxu0
        %v3679 = vadd.f32 0.0, %v3678
        %v3680 = vpop.f32.mrf.mxu0
        %v3681 = vadd.f32 0.0, %v3680
        %v3682 = vpop.f32.mrf.mxu0
        %v3683 = vadd.f32 0.0, %v3682
        %v3684 = vpop.f32.mrf.mxu0
        %v3685 = vadd.f32 0.0, %v3684
        %3686 = vmatprep.mubr.bf16.mxu0 0
        %3687 = vmatmul.mubr.bf16.gmra.mxu0 %v3636
        %v3688 = vpop.f32.mrf.mxu0
        %v3689 = vadd.f32 0.0, %v3688
        %v3690 = vpop.f32.mrf.mxu0
        %v3691 = vadd.f32 0.0, %v3690
        %v3692 = vpop.f32.mrf.mxu0
        %v3693 = vadd.f32 0.0, %v3692
        %v3694 = vpop.f32.mrf.mxu0
        %v3695 = vadd.f32 0.0, %v3694
        %3696 = vmatprep.mubr.bf16.mxu0 0
        %3697 = vmatmul.mubr.bf16.gmra.mxu0 %v3639
        %v3698 = vpop.f32.mrf.mxu0
        %v3699 = vadd.f32 0.0, %v3698
        %v3700 = vpop.f32.mrf.mxu0
        %v3701 = vadd.f32 0.0, %v3700
        %v3702 = vpop.f32.mrf.mxu0
        %v3703 = vadd.f32 0.0, %v3702
        %v3704 = vpop.f32.mrf.mxu0
        %v3705 = vadd.f32 0.0, %v3704
        %3706 = vmatprep.mubr.bf16.mxu0 0
        %3707 = vmatmul.mubr.bf16.gmra.mxu0 %v3642
        %v3708 = vpop.f32.mrf.mxu0
        %v3709 = vadd.f32 0.0, %v3708
        %v3710 = vpop.f32.mrf.mxu0
        %v3711 = vadd.f32 0.0, %v3710
        %v3712 = vpop.f32.mrf.mxu0
        %v3713 = vadd.f32 0.0, %v3712
        %v3714 = vpop.f32.mrf.mxu0
        %v3715 = vadd.f32 0.0, %v3714
        %3716 = vdwg.mxu0
        %v3717 = vadd.f32 %v3304, %v3429
        %v3718 = vadd.f32 %v3717, %v3554
        %v3719 = vadd.f32 %v3718, %v3679
        %v3720 = vadd.f32 %v3306, %v3431
        %v3721 = vadd.f32 %v3720, %v3556
        %v3722 = vadd.f32 %v3721, %v3681
        %v3723 = vadd.f32 %v3308, %v3433
        %v3724 = vadd.f32 %v3723, %v3558
        %v3725 = vadd.f32 %v3724, %v3683
        %v3726 = vadd.f32 %v3310, %v3435
        %v3727 = vadd.f32 %v3726, %v3560
        %v3728 = vadd.f32 %v3727, %v3685
        %v3729 = vadd.f32 %v3314, %v3439
        %v3730 = vadd.f32 %v3729, %v3564
        %v3731 = vadd.f32 %v3730, %v3689
        %v3732 = vadd.f32 %v3316, %v3441
        %v3733 = vadd.f32 %v3732, %v3566
        %v3734 = vadd.f32 %v3733, %v3691
        %v3735 = vadd.f32 %v3318, %v3443
        %v3736 = vadd.f32 %v3735, %v3568
        %v3737 = vadd.f32 %v3736, %v3693
        %v3738 = vadd.f32 %v3320, %v3445
        %v3739 = vadd.f32 %v3738, %v3570
        %v3740 = vadd.f32 %v3739, %v3695
        %v3741 = vadd.f32 %v3324, %v3449
        %v3742 = vadd.f32 %v3741, %v3574
        %v3743 = vadd.f32 %v3742, %v3699
        %v3744 = vadd.f32 %v3326, %v3451
        %v3745 = vadd.f32 %v3744, %v3576
        %v3746 = vadd.f32 %v3745, %v3701
        %v3747 = vadd.f32 %v3328, %v3453
        %v3748 = vadd.f32 %v3747, %v3578
        %v3749 = vadd.f32 %v3748, %v3703
        %v3750 = vadd.f32 %v3330, %v3455
        %v3751 = vadd.f32 %v3750, %v3580
        %v3752 = vadd.f32 %v3751, %v3705
        %v3753 = vadd.f32 %v3334, %v3459
        %v3754 = vadd.f32 %v3753, %v3584
        %v3755 = vadd.f32 %v3754, %v3709
        %v3756 = vadd.f32 %v3336, %v3461
        %v3757 = vadd.f32 %v3756, %v3586
        %v3758 = vadd.f32 %v3757, %v3711
        %v3759 = vadd.f32 %v3338, %v3463
        %v3760 = vadd.f32 %v3759, %v3588
        %v3761 = vadd.f32 %v3760, %v3713
        %v3762 = vadd.f32 %v3340, %v3465
        %v3763 = vadd.f32 %v3762, %v3590
        %v3764 = vadd.f32 %v3763, %v3715
        %v3765 = vadd.f32 %v884, %v3719
        %v3766 = vadd.f32 %v885, %v3722
        %v3767 = vadd.f32 %v886, %v3725
        %v3768 = vadd.f32 %v887, %v3728
        %v3769 = vadd.f32 %v888, %v3731
        %v3770 = vadd.f32 %v889, %v3734
        %v3771 = vadd.f32 %v890, %v3737
        %v3772 = vadd.f32 %v891, %v3740
        %v3773 = vadd.f32 %v892, %v3743
        %v3774 = vadd.f32 %v893, %v3746
        %v3775 = vadd.f32 %v894, %v3749
        %v3776 = vadd.f32 %v895, %v3752
        %v3777 = vadd.f32 %v896, %v3755
        %v3778 = vadd.f32 %v897, %v3758
        %v3779 = vadd.f32 %v898, %v3761
        %v3780 = vadd.f32 %v899, %v3764
        %v3781 = vld [vmem:[%s680] sm:$0x3]
        %v3783 = vlaneseq
        %v3784 = vshrl.u32 %v3783, 7
        %v3785 = vsub.s32 0, %v3784
        %v3786 = vrot.slane %v3781, %v3785
        %v3787 = vlaneseq
        %v3788 = vshrl.u32 %v3787, 7
        %v3789 = vsub.s32 1, %v3788
        %v3790 = vrot.slane %v3781, %v3789
        %v3793 = vadd.f32 %v3765, %v3786
        %v3794 = vadd.f32 %v3766, %v3790
        %v3795 = vadd.f32 %v3767, %v3786
        %v3796 = vadd.f32 %v3768, %v3790
        %v3797 = vadd.f32 %v3769, %v3786
        %v3798 = vadd.f32 %v3770, %v3790
        %v3799 = vadd.f32 %v3771, %v3786
        %v3800 = vadd.f32 %v3772, %v3790
        %v3801 = vadd.f32 %v3773, %v3786
        %v3802 = vadd.f32 %v3774, %v3790
        %v3803 = vadd.f32 %v3775, %v3786
        %v3804 = vadd.f32 %v3776, %v3790
        %v3805 = vadd.f32 %v3777, %v3786
        %v3806 = vadd.f32 %v3778, %v3790
        %v3807 = vadd.f32 %v3779, %v3786
        %v3808 = vadd.f32 %v3780, %v3790
        %v3809 = vld [vmem:[%s689] sm:$0x3]
        %v3810 = vld [vmem:[%s698] sm:$0x3]
        %v3811 = vadd.f32 %v3793, %v3794
        %3812 = vadd.xlane.f32.xlu0 %v3811
        %v3813 = vpop.xlane.xlu0 %3812
        %v3814 = vadd.f32 %v3795, %v3796
        %3815 = vadd.xlane.f32.xlu0 %v3814
        %v3816 = vpop.xlane.xlu0 %3815
        %v3817 = vadd.f32 %v3797, %v3798
        %3818 = vadd.xlane.f32.xlu0 %v3817
        %v3819 = vpop.xlane.xlu0 %3818
        %v3820 = vadd.f32 %v3799, %v3800
        %3821 = vadd.xlane.f32.xlu0 %v3820
        %v3822 = vpop.xlane.xlu0 %3821
        %v3823 = vadd.f32 %v3801, %v3802
        %3824 = vadd.xlane.f32.xlu0 %v3823
        %v3825 = vpop.xlane.xlu0 %3824
        %v3826 = vadd.f32 %v3803, %v3804
        %3827 = vadd.xlane.f32.xlu0 %v3826
        %v3828 = vpop.xlane.xlu0 %3827
        %v3829 = vadd.f32 %v3805, %v3806
        %3830 = vadd.xlane.f32.xlu0 %v3829
        %v3831 = vpop.xlane.xlu0 %3830
        %v3832 = vadd.f32 %v3807, %v3808
        %3833 = vadd.xlane.f32.xlu0 %v3832
        %v3834 = vpop.xlane.xlu0 %3833
        %v3835 = vmul.f32 %v3813, %v926
        %v3836 = vmul.f32 %v3816, %v926
        %v3837 = vmul.f32 %v3819, %v926
        %v3838 = vmul.f32 %v3822, %v926
        %v3839 = vmul.f32 %v3825, %v926
        %v3840 = vmul.f32 %v3828, %v926
        %v3841 = vmul.f32 %v3831, %v926
        %v3842 = vmul.f32 %v3834, %v926
        %v3843 = vsub.f32 %v3793, %v3835
        %v3844 = vsub.f32 %v3794, %v3835
        %v3845 = vsub.f32 %v3795, %v3836
        %v3846 = vsub.f32 %v3796, %v3836
        %v3847 = vsub.f32 %v3797, %v3837
        %v3848 = vsub.f32 %v3798, %v3837
        %v3849 = vsub.f32 %v3799, %v3838
        %v3850 = vsub.f32 %v3800, %v3838
        %v3851 = vsub.f32 %v3801, %v3839
        %v3852 = vsub.f32 %v3802, %v3839
        %v3853 = vsub.f32 %v3803, %v3840
        %v3854 = vsub.f32 %v3804, %v3840
        %v3855 = vsub.f32 %v3805, %v3841
        %v3856 = vsub.f32 %v3806, %v3841
        %v3857 = vsub.f32 %v3807, %v3842
        %v3858 = vsub.f32 %v3808, %v3842
        %v3859 = vmul.f32 %v3843, %v3843
        %v3860 = vmul.f32 %v3844, %v3844
        %v3861 = vmul.f32 %v3845, %v3845
        %v3862 = vmul.f32 %v3846, %v3846
        %v3863 = vmul.f32 %v3847, %v3847
        %v3864 = vmul.f32 %v3848, %v3848
        %v3865 = vmul.f32 %v3849, %v3849
        %v3866 = vmul.f32 %v3850, %v3850
        %v3867 = vmul.f32 %v3851, %v3851
        %v3868 = vmul.f32 %v3852, %v3852
        %v3869 = vmul.f32 %v3853, %v3853
        %v3870 = vmul.f32 %v3854, %v3854
        %v3871 = vmul.f32 %v3855, %v3855
        %v3872 = vmul.f32 %v3856, %v3856
        %v3873 = vmul.f32 %v3857, %v3857
        %v3874 = vmul.f32 %v3858, %v3858
        %v3875 = vadd.f32 %v3859, %v3860
        %3876 = vadd.xlane.f32.xlu0 %v3875
        %v3877 = vpop.xlane.xlu0 %3876
        %v3878 = vadd.f32 %v3861, %v3862
        %3879 = vadd.xlane.f32.xlu0 %v3878
        %v3880 = vpop.xlane.xlu0 %3879
        %v3881 = vadd.f32 %v3863, %v3864
        %3882 = vadd.xlane.f32.xlu0 %v3881
        %v3883 = vpop.xlane.xlu0 %3882
        %v3884 = vadd.f32 %v3865, %v3866
        %3885 = vadd.xlane.f32.xlu0 %v3884
        %v3886 = vpop.xlane.xlu0 %3885
        %v3887 = vadd.f32 %v3867, %v3868
        %3888 = vadd.xlane.f32.xlu0 %v3887
        %v3889 = vpop.xlane.xlu0 %3888
        %v3890 = vadd.f32 %v3869, %v3870
        %3891 = vadd.xlane.f32.xlu0 %v3890
        %v3892 = vpop.xlane.xlu0 %3891
        %v3893 = vadd.f32 %v3871, %v3872
        %3894 = vadd.xlane.f32.xlu0 %v3893
        %v3895 = vpop.xlane.xlu0 %3894
        %v3896 = vadd.f32 %v3873, %v3874
        %3897 = vadd.xlane.f32.xlu0 %v3896
        %v3898 = vpop.xlane.xlu0 %3897
        %v3899 = vmul.f32 %v3877, %v926
        %v3900 = vmul.f32 %v3880, %v926
        %v3901 = vmul.f32 %v3883, %v926
        %v3902 = vmul.f32 %v3886, %v926
        %v3903 = vmul.f32 %v3889, %v926
        %v3904 = vmul.f32 %v3892, %v926
        %v3905 = vmul.f32 %v3895, %v926
        %v3906 = vmul.f32 %v3898, %v926
        %v3907 = vadd.f32 %v3899, 1e-05
        %v3908 = vadd.f32 %v3900, 1e-05
        %v3909 = vadd.f32 %v3901, 1e-05
        %v3910 = vadd.f32 %v3902, 1e-05
        %v3911 = vadd.f32 %v3903, 1e-05
        %v3912 = vadd.f32 %v3904, 1e-05
        %v3913 = vadd.f32 %v3905, 1e-05
        %v3914 = vadd.f32 %v3906, 1e-05
        %v3915 = vrsqrt.pop %v3907
        %v3916 = vrsqrt.pop %v3908
        %v3917 = vrsqrt.pop %v3909
        %v3918 = vrsqrt.pop %v3910
        %v3919 = vrsqrt.pop %v3911
        %v3920 = vrsqrt.pop %v3912
        %v3921 = vrsqrt.pop %v3913
        %v3922 = vrsqrt.pop %v3914
        %v3923 = vmul.f32 %v3843, %v3915
        %v3924 = vmul.f32 %v3844, %v3915
        %v3925 = vmul.f32 %v3845, %v3916
        %v3926 = vmul.f32 %v3846, %v3916
        %v3927 = vmul.f32 %v3847, %v3917
        %v3928 = vmul.f32 %v3848, %v3917
        %v3929 = vmul.f32 %v3849, %v3918
        %v3930 = vmul.f32 %v3850, %v3918
        %v3931 = vmul.f32 %v3851, %v3919
        %v3932 = vmul.f32 %v3852, %v3919
        %v3933 = vmul.f32 %v3853, %v3920
        %v3934 = vmul.f32 %v3854, %v3920
        %v3935 = vmul.f32 %v3855, %v3921
        %v3936 = vmul.f32 %v3856, %v3921
        %v3937 = vmul.f32 %v3857, %v3922
        %v3938 = vmul.f32 %v3858, %v3922
        %v3940 = vlaneseq
        %v3941 = vshrl.u32 %v3940, 7
        %v3942 = vsub.s32 0, %v3941
        %v3943 = vrot.slane %v3809, %v3942
        %v3944 = vlaneseq
        %v3945 = vshrl.u32 %v3944, 7
        %v3946 = vsub.s32 1, %v3945
        %v3947 = vrot.slane %v3809, %v3946
        %v3950 = vmul.f32 %v3923, %v3943
        %v3951 = vmul.f32 %v3924, %v3947
        %v3952 = vmul.f32 %v3925, %v3943
        %v3953 = vmul.f32 %v3926, %v3947
        %v3954 = vmul.f32 %v3927, %v3943
        %v3955 = vmul.f32 %v3928, %v3947
        %v3956 = vmul.f32 %v3929, %v3943
        %v3957 = vmul.f32 %v3930, %v3947
        %v3958 = vmul.f32 %v3931, %v3943
        %v3959 = vmul.f32 %v3932, %v3947
        %v3960 = vmul.f32 %v3933, %v3943
        %v3961 = vmul.f32 %v3934, %v3947
        %v3962 = vmul.f32 %v3935, %v3943
        %v3963 = vmul.f32 %v3936, %v3947
        %v3964 = vmul.f32 %v3937, %v3943
        %v3965 = vmul.f32 %v3938, %v3947
        %v3967 = vlaneseq
        %v3968 = vshrl.u32 %v3967, 7
        %v3969 = vsub.s32 0, %v3968
        %v3970 = vrot.slane %v3810, %v3969
        %v3971 = vlaneseq
        %v3972 = vshrl.u32 %v3971, 7
        %v3973 = vsub.s32 1, %v3972
        %v3974 = vrot.slane %v3810, %v3973
        %v3977 = vadd.f32 %v3950, %v3970
        %v3978 = vadd.f32 %v3951, %v3974
        %v3979 = vadd.f32 %v3952, %v3970
        %v3980 = vadd.f32 %v3953, %v3974
        %v3981 = vadd.f32 %v3954, %v3970
        %v3982 = vadd.f32 %v3955, %v3974
        %v3983 = vadd.f32 %v3956, %v3970
        %v3984 = vadd.f32 %v3957, %v3974
        %v3985 = vadd.f32 %v3958, %v3970
        %v3986 = vadd.f32 %v3959, %v3974
        %v3987 = vadd.f32 %v3960, %v3970
        %v3988 = vadd.f32 %v3961, %v3974
        %v3989 = vadd.f32 %v3962, %v3970
        %v3990 = vadd.f32 %v3963, %v3974
        %v3991 = vadd.f32 %v3964, %v3970
        %v3992 = vadd.f32 %v3965, %v3974
        %v3993 = vpack.c.bf16 %v3979, %v3977
        %v3994 = vpack.c.bf16 %v3980, %v3978
        %v3995 = vpack.c.bf16 %v3983, %v3981
        %v3996 = vpack.c.bf16 %v3984, %v3982
        %v3997 = vpack.c.bf16 %v3987, %v3985
        %v3998 = vpack.c.bf16 %v3988, %v3986
        %v3999 = vpack.c.bf16 %v3991, %v3989
        %v4000 = vpack.c.bf16 %v3992, %v3990
        %v4001 = vld [vmem:[%s707] sm:$0xff]
        %v4002 = vld [vmem:[%s707 + $0x8] sm:$0xff]
        %v4003 = vld [vmem:[%s707 + $0x10] sm:$0xff]
        %v4004 = vld [vmem:[%s707 + $0x18] sm:$0xff]
        %v4005 = vld [vmem:[%s707 + $0x20] sm:$0xff]
        %v4006 = vld [vmem:[%s707 + $0x28] sm:$0xff]
        %v4007 = vld [vmem:[%s707 + $0x30] sm:$0xff]
        %v4008 = vld [vmem:[%s707 + $0x38] sm:$0xff]
        %v4009 = vld [vmem:[%s707 + $0x40] sm:$0xff]
        %v4010 = vld [vmem:[%s707 + $0x48] sm:$0xff]
        %v4011 = vld [vmem:[%s707 + $0x50] sm:$0xff]
        %v4012 = vld [vmem:[%s707 + $0x58] sm:$0xff]
        %v4013 = vld [vmem:[%s707 + $0x60] sm:$0xff]
        %v4014 = vld [vmem:[%s707 + $0x68] sm:$0xff]
        %v4015 = vld [vmem:[%s707 + $0x70] sm:$0xff]
        %v4016 = vld [vmem:[%s707 + $0x78] sm:$0xff]
        %v4017 = vld [vmem:[%s707 + $0x80] sm:$0xff]
        %v4018 = vld [vmem:[%s707 + $0x88] sm:$0xff]
        %v4019 = vld [vmem:[%s707 + $0x90] sm:$0xff]
        %v4020 = vld [vmem:[%s707 + $0x98] sm:$0xff]
        %v4021 = vld [vmem:[%s707 + $0xa0] sm:$0xff]
        %v4022 = vld [vmem:[%s707 + $0xa8] sm:$0xff]
        %v4023 = vld [vmem:[%s707 + $0xb0] sm:$0xff]
        %v4024 = vld [vmem:[%s707 + $0xb8] sm:$0xff]
        %v4025 = vld [vmem:[%s707 + $0xc0] sm:$0xff]
        %v4026 = vld [vmem:[%s707 + $0xc8] sm:$0xff]
        %v4027 = vld [vmem:[%s707 + $0xd0] sm:$0xff]
        %v4028 = vld [vmem:[%s707 + $0xd8] sm:$0xff]
        %v4029 = vld [vmem:[%s707 + $0xe0] sm:$0xff]
        %v4030 = vld [vmem:[%s707 + $0xe8] sm:$0xff]
        %v4031 = vld [vmem:[%s707 + $0xf0] sm:$0xff]
        %v4032 = vld [vmem:[%s707 + $0xf8] sm:$0xff]
        %v4033 = vld [vmem:[%s707 + $0x100] sm:$0xff]
        %v4034 = vld [vmem:[%s707 + $0x108] sm:$0xff]
        %v4035 = vld [vmem:[%s707 + $0x110] sm:$0xff]
        %v4036 = vld [vmem:[%s707 + $0x118] sm:$0xff]
        %v4037 = vld [vmem:[%s707 + $0x120] sm:$0xff]
        %v4038 = vld [vmem:[%s707 + $0x128] sm:$0xff]
        %v4039 = vld [vmem:[%s707 + $0x130] sm:$0xff]
        %v4040 = vld [vmem:[%s707 + $0x138] sm:$0xff]
        %v4041 = vld [vmem:[%s707 + $0x140] sm:$0xff]
        %v4042 = vld [vmem:[%s707 + $0x148] sm:$0xff]
        %v4043 = vld [vmem:[%s707 + $0x150] sm:$0xff]
        %v4044 = vld [vmem:[%s707 + $0x158] sm:$0xff]
        %v4045 = vld [vmem:[%s707 + $0x160] sm:$0xff]
        %v4046 = vld [vmem:[%s707 + $0x168] sm:$0xff]
        %v4047 = vld [vmem:[%s707 + $0x170] sm:$0xff]
        %v4048 = vld [vmem:[%s707 + $0x178] sm:$0xff]
        %v4049 = vld [vmem:[%s707 + $0x180] sm:$0xff]
        %v4050 = vld [vmem:[%s707 + $0x188] sm:$0xff]
        %v4051 = vld [vmem:[%s707 + $0x190] sm:$0xff]
        %v4052 = vld [vmem:[%s707 + $0x198] sm:$0xff]
        %v4053 = vld [vmem:[%s707 + $0x1a0] sm:$0xff]
        %v4054 = vld [vmem:[%s707 + $0x1a8] sm:$0xff]
        %v4055 = vld [vmem:[%s707 + $0x1b0] sm:$0xff]
        %v4056 = vld [vmem:[%s707 + $0x1b8] sm:$0xff]
        %v4057 = vld [vmem:[%s707 + $0x1c0] sm:$0xff]
        %v4058 = vld [vmem:[%s707 + $0x1c8] sm:$0xff]
        %v4059 = vld [vmem:[%s707 + $0x1d0] sm:$0xff]
        %v4060 = vld [vmem:[%s707 + $0x1d8] sm:$0xff]
        %v4061 = vld [vmem:[%s707 + $0x1e0] sm:$0xff]
        %v4062 = vld [vmem:[%s707 + $0x1e8] sm:$0xff]
        %v4063 = vld [vmem:[%s707 + $0x1f0] sm:$0xff]
        %v4064 = vld [vmem:[%s707 + $0x1f8] sm:$0xff]
        %v4065 = vld [vmem:[%s707 + $0x200] sm:$0xff]
        %v4066 = vld [vmem:[%s707 + $0x208] sm:$0xff]
        %v4067 = vld [vmem:[%s707 + $0x210] sm:$0xff]
        %v4068 = vld [vmem:[%s707 + $0x218] sm:$0xff]
        %v4069 = vld [vmem:[%s707 + $0x220] sm:$0xff]
        %v4070 = vld [vmem:[%s707 + $0x228] sm:$0xff]
        %v4071 = vld [vmem:[%s707 + $0x230] sm:$0xff]
        %v4072 = vld [vmem:[%s707 + $0x238] sm:$0xff]
        %v4073 = vld [vmem:[%s707 + $0x240] sm:$0xff]
        %v4074 = vld [vmem:[%s707 + $0x248] sm:$0xff]
        %v4075 = vld [vmem:[%s707 + $0x250] sm:$0xff]
        %v4076 = vld [vmem:[%s707 + $0x258] sm:$0xff]
        %v4077 = vld [vmem:[%s707 + $0x260] sm:$0xff]
        %v4078 = vld [vmem:[%s707 + $0x268] sm:$0xff]
        %v4079 = vld [vmem:[%s707 + $0x270] sm:$0xff]
        %v4080 = vld [vmem:[%s707 + $0x278] sm:$0xff]
        %v4081 = vld [vmem:[%s707 + $0x280] sm:$0xff]
        %v4082 = vld [vmem:[%s707 + $0x288] sm:$0xff]
        %v4083 = vld [vmem:[%s707 + $0x290] sm:$0xff]
        %v4084 = vld [vmem:[%s707 + $0x298] sm:$0xff]
        %v4085 = vld [vmem:[%s707 + $0x2a0] sm:$0xff]
        %v4086 = vld [vmem:[%s707 + $0x2a8] sm:$0xff]
        %v4087 = vld [vmem:[%s707 + $0x2b0] sm:$0xff]
        %v4088 = vld [vmem:[%s707 + $0x2b8] sm:$0xff]
        %v4089 = vld [vmem:[%s707 + $0x2c0] sm:$0xff]
        %v4090 = vld [vmem:[%s707 + $0x2c8] sm:$0xff]
        %v4091 = vld [vmem:[%s707 + $0x2d0] sm:$0xff]
        %v4092 = vld [vmem:[%s707 + $0x2d8] sm:$0xff]
        %v4093 = vld [vmem:[%s707 + $0x2e0] sm:$0xff]
        %v4094 = vld [vmem:[%s707 + $0x2e8] sm:$0xff]
        %v4095 = vld [vmem:[%s707 + $0x2f0] sm:$0xff]
        %v4096 = vld [vmem:[%s707 + $0x2f8] sm:$0xff]
        %v4097 = vld [vmem:[%s707 + $0x300] sm:$0xff]
        %v4098 = vld [vmem:[%s707 + $0x308] sm:$0xff]
        %v4099 = vld [vmem:[%s707 + $0x310] sm:$0xff]
        %v4100 = vld [vmem:[%s707 + $0x318] sm:$0xff]
        %v4101 = vld [vmem:[%s707 + $0x320] sm:$0xff]
        %v4102 = vld [vmem:[%s707 + $0x328] sm:$0xff]
        %v4103 = vld [vmem:[%s707 + $0x330] sm:$0xff]
        %v4104 = vld [vmem:[%s707 + $0x338] sm:$0xff]
        %v4105 = vld [vmem:[%s707 + $0x340] sm:$0xff]
        %v4106 = vld [vmem:[%s707 + $0x348] sm:$0xff]
        %v4107 = vld [vmem:[%s707 + $0x350] sm:$0xff]
        %v4108 = vld [vmem:[%s707 + $0x358] sm:$0xff]
        %v4109 = vld [vmem:[%s707 + $0x360] sm:$0xff]
        %v4110 = vld [vmem:[%s707 + $0x368] sm:$0xff]
        %v4111 = vld [vmem:[%s707 + $0x370] sm:$0xff]
        %v4112 = vld [vmem:[%s707 + $0x378] sm:$0xff]
        %v4113 = vld [vmem:[%s707 + $0x380] sm:$0xff]
        %v4114 = vld [vmem:[%s707 + $0x388] sm:$0xff]
        %v4115 = vld [vmem:[%s707 + $0x390] sm:$0xff]
        %v4116 = vld [vmem:[%s707 + $0x398] sm:$0xff]
        %v4117 = vld [vmem:[%s707 + $0x3a0] sm:$0xff]
        %v4118 = vld [vmem:[%s707 + $0x3a8] sm:$0xff]
        %v4119 = vld [vmem:[%s707 + $0x3b0] sm:$0xff]
        %v4120 = vld [vmem:[%s707 + $0x3b8] sm:$0xff]
        %v4121 = vld [vmem:[%s707 + $0x3c0] sm:$0xff]
        %v4122 = vld [vmem:[%s707 + $0x3c8] sm:$0xff]
        %v4123 = vld [vmem:[%s707 + $0x3d0] sm:$0xff]
        %v4124 = vld [vmem:[%s707 + $0x3d8] sm:$0xff]
        %v4125 = vld [vmem:[%s707 + $0x3e0] sm:$0xff]
        %v4126 = vld [vmem:[%s707 + $0x3e8] sm:$0xff]
        %v4127 = vld [vmem:[%s707 + $0x3f0] sm:$0xff]
        %v4128 = vld [vmem:[%s707 + $0x3f8] sm:$0xff]
        %v4129 = vld [vmem:[%s716] sm:$0xff]
        %v4131 = vlaneseq
        %v4132 = vshrl.u32 %v4131, 7
        %v4133 = vsub.s32 0, %v4132
        %v4134 = vrot.slane %v4129, %v4133
        %v4135 = vlaneseq
        %v4136 = vshrl.u32 %v4135, 7
        %v4137 = vsub.s32 1, %v4136
        %v4138 = vrot.slane %v4129, %v4137
        %v4139 = vlaneseq
        %v4140 = vshrl.u32 %v4139, 7
        %v4141 = vsub.s32 2, %v4140
        %v4142 = vrot.slane %v4129, %v4141
        %v4143 = vlaneseq
        %v4144 = vshrl.u32 %v4143, 7
        %v4145 = vsub.s32 3, %v4144
        %v4146 = vrot.slane %v4129, %v4145
        %v4147 = vlaneseq
        %v4148 = vshrl.u32 %v4147, 7
        %v4149 = vsub.s32 4, %v4148
        %v4150 = vrot.slane %v4129, %v4149
        %v4151 = vlaneseq
        %v4152 = vshrl.u32 %v4151, 7
        %v4153 = vsub.s32 5, %v4152
        %v4154 = vrot.slane %v4129, %v4153
        %v4155 = vlaneseq
        %v4156 = vshrl.u32 %v4155, 7
        %v4157 = vsub.s32 6, %v4156
        %v4158 = vrot.slane %v4129, %v4157
        %v4159 = vlaneseq
        %v4160 = vshrl.u32 %v4159, 7
        %v4161 = vsub.s32 7, %v4160
        %v4162 = vrot.slane %v4129, %v4161
        %v4299 = vunpack.c.l.b16 %v4001
        %v4300 = vunpack.c.h.b16 %v4001
        %v4301 = vunpack.c.l.b16 %v4002
        %v4302 = vunpack.c.h.b16 %v4002
        %v4303 = vunpack.c.l.b16 %v4003
        %v4304 = vunpack.c.h.b16 %v4003
        %v4305 = vunpack.c.l.b16 %v4004
        %v4306 = vunpack.c.h.b16 %v4004
        %v4307 = vunpack.c.l.b16 %v4005
        %v4308 = vunpack.c.h.b16 %v4005
        %v4309 = vunpack.c.l.b16 %v4006
        %v4310 = vunpack.c.h.b16 %v4006
        %v4311 = vunpack.c.l.b16 %v4007
        %v4312 = vunpack.c.h.b16 %v4007
        %v4313 = vunpack.c.l.b16 %v4008
        %v4314 = vunpack.c.h.b16 %v4008
        %v4315 = vunpack.c.l.b16 %v4009
        %v4316 = vunpack.c.h.b16 %v4009
        %v4317 = vunpack.c.l.b16 %v4010
        %v4318 = vunpack.c.h.b16 %v4010
        %v4319 = vunpack.c.l.b16 %v4011
        %v4320 = vunpack.c.h.b16 %v4011
        %v4321 = vunpack.c.l.b16 %v4012
        %v4322 = vunpack.c.h.b16 %v4012
        %v4323 = vunpack.c.l.b16 %v4013
        %v4324 = vunpack.c.h.b16 %v4013
        %v4325 = vunpack.c.l.b16 %v4014
        %v4326 = vunpack.c.h.b16 %v4014
        %v4327 = vunpack.c.l.b16 %v4015
        %v4328 = vunpack.c.h.b16 %v4015
        %v4329 = vunpack.c.l.b16 %v4016
        %v4330 = vunpack.c.h.b16 %v4016
        %v4331 = vunpack.c.l.b16 %v4017
        %v4332 = vunpack.c.h.b16 %v4017
        %v4333 = vunpack.c.l.b16 %v4018
        %v4334 = vunpack.c.h.b16 %v4018
        %v4335 = vunpack.c.l.b16 %v4019
        %v4336 = vunpack.c.h.b16 %v4019
        %v4337 = vunpack.c.l.b16 %v4020
        %v4338 = vunpack.c.h.b16 %v4020
        %v4339 = vunpack.c.l.b16 %v4021
        %v4340 = vunpack.c.h.b16 %v4021
        %v4341 = vunpack.c.l.b16 %v4022
        %v4342 = vunpack.c.h.b16 %v4022
        %v4343 = vunpack.c.l.b16 %v4023
        %v4344 = vunpack.c.h.b16 %v4023
        %v4345 = vunpack.c.l.b16 %v4024
        %v4346 = vunpack.c.h.b16 %v4024
        %v4347 = vunpack.c.l.b16 %v4025
        %v4348 = vunpack.c.h.b16 %v4025
        %v4349 = vunpack.c.l.b16 %v4026
        %v4350 = vunpack.c.h.b16 %v4026
        %v4351 = vunpack.c.l.b16 %v4027
        %v4352 = vunpack.c.h.b16 %v4027
        %v4353 = vunpack.c.l.b16 %v4028
        %v4354 = vunpack.c.h.b16 %v4028
        %v4355 = vunpack.c.l.b16 %v4029
        %v4356 = vunpack.c.h.b16 %v4029
        %v4357 = vunpack.c.l.b16 %v4030
        %v4358 = vunpack.c.h.b16 %v4030
        %v4359 = vunpack.c.l.b16 %v4031
        %v4360 = vunpack.c.h.b16 %v4031
        %v4361 = vunpack.c.l.b16 %v4032
        %v4362 = vunpack.c.h.b16 %v4032
        %v4363 = vunpack.c.l.b16 %v4033
        %v4364 = vunpack.c.h.b16 %v4033
        %v4365 = vunpack.c.l.b16 %v4034
        %v4366 = vunpack.c.h.b16 %v4034
        %v4367 = vunpack.c.l.b16 %v4035
        %v4368 = vunpack.c.h.b16 %v4035
        %v4369 = vunpack.c.l.b16 %v4036
        %v4370 = vunpack.c.h.b16 %v4036
        %v4371 = vunpack.c.l.b16 %v4037
        %v4372 = vunpack.c.h.b16 %v4037
        %v4373 = vunpack.c.l.b16 %v4038
        %v4374 = vunpack.c.h.b16 %v4038
        %v4375 = vunpack.c.l.b16 %v4039
        %v4376 = vunpack.c.h.b16 %v4039
        %v4377 = vunpack.c.l.b16 %v4040
        %v4378 = vunpack.c.h.b16 %v4040
        %v4379 = vunpack.c.l.b16 %v4041
        %v4380 = vunpack.c.h.b16 %v4041
        %v4381 = vunpack.c.l.b16 %v4042
        %v4382 = vunpack.c.h.b16 %v4042
        %v4383 = vunpack.c.l.b16 %v4043
        %v4384 = vunpack.c.h.b16 %v4043
        %v4385 = vunpack.c.l.b16 %v4044
        %v4386 = vunpack.c.h.b16 %v4044
        %v4387 = vunpack.c.l.b16 %v4045
        %v4388 = vunpack.c.h.b16 %v4045
        %v4389 = vunpack.c.l.b16 %v4046
        %v4390 = vunpack.c.h.b16 %v4046
        %v4391 = vunpack.c.l.b16 %v4047
        %v4392 = vunpack.c.h.b16 %v4047
        %v4393 = vunpack.c.l.b16 %v4048
        %v4394 = vunpack.c.h.b16 %v4048
        %v4395 = vunpack.c.l.b16 %v4049
        %v4396 = vunpack.c.h.b16 %v4049
        %v4397 = vunpack.c.l.b16 %v4050
        %v4398 = vunpack.c.h.b16 %v4050
        %v4399 = vunpack.c.l.b16 %v4051
        %v4400 = vunpack.c.h.b16 %v4051
        %v4401 = vunpack.c.l.b16 %v4052
        %v4402 = vunpack.c.h.b16 %v4052
        %v4403 = vunpack.c.l.b16 %v4053
        %v4404 = vunpack.c.h.b16 %v4053
        %v4405 = vunpack.c.l.b16 %v4054
        %v4406 = vunpack.c.h.b16 %v4054
        %v4407 = vunpack.c.l.b16 %v4055
        %v4408 = vunpack.c.h.b16 %v4055
        %v4409 = vunpack.c.l.b16 %v4056
        %v4410 = vunpack.c.h.b16 %v4056
        %v4411 = vunpack.c.l.b16 %v4057
        %v4412 = vunpack.c.h.b16 %v4057
        %v4413 = vunpack.c.l.b16 %v4058
        %v4414 = vunpack.c.h.b16 %v4058
        %v4415 = vunpack.c.l.b16 %v4059
        %v4416 = vunpack.c.h.b16 %v4059
        %v4417 = vunpack.c.l.b16 %v4060
        %v4418 = vunpack.c.h.b16 %v4060
        %v4419 = vunpack.c.l.b16 %v4061
        %v4420 = vunpack.c.h.b16 %v4061
        %v4421 = vunpack.c.l.b16 %v4062
        %v4422 = vunpack.c.h.b16 %v4062
        %v4423 = vunpack.c.l.b16 %v4063
        %v4424 = vunpack.c.h.b16 %v4063
        %v4425 = vunpack.c.l.b16 %v4064
        %v4426 = vunpack.c.h.b16 %v4064
        %v4427 = vunpack.c.l.b16 %v4065
        %v4428 = vunpack.c.h.b16 %v4065
        %v4429 = vunpack.c.l.b16 %v4066
        %v4430 = vunpack.c.h.b16 %v4066
        %v4431 = vunpack.c.l.b16 %v4067
        %v4432 = vunpack.c.h.b16 %v4067
        %v4433 = vunpack.c.l.b16 %v4068
        %v4434 = vunpack.c.h.b16 %v4068
        %v4435 = vunpack.c.l.b16 %v4069
        %v4436 = vunpack.c.h.b16 %v4069
        %v4437 = vunpack.c.l.b16 %v4070
        %v4438 = vunpack.c.h.b16 %v4070
        %v4439 = vunpack.c.l.b16 %v4071
        %v4440 = vunpack.c.h.b16 %v4071
        %v4441 = vunpack.c.l.b16 %v4072
        %v4442 = vunpack.c.h.b16 %v4072
        %v4443 = vunpack.c.l.b16 %v4073
        %v4444 = vunpack.c.h.b16 %v4073
        %v4445 = vunpack.c.l.b16 %v4074
        %v4446 = vunpack.c.h.b16 %v4074
        %v4447 = vunpack.c.l.b16 %v4075
        %v4448 = vunpack.c.h.b16 %v4075
        %v4449 = vunpack.c.l.b16 %v4076
        %v4450 = vunpack.c.h.b16 %v4076
        %v4451 = vunpack.c.l.b16 %v4077
        %v4452 = vunpack.c.h.b16 %v4077
        %v4453 = vunpack.c.l.b16 %v4078
        %v4454 = vunpack.c.h.b16 %v4078
        %v4455 = vunpack.c.l.b16 %v4079
        %v4456 = vunpack.c.h.b16 %v4079
        %v4457 = vunpack.c.l.b16 %v4080
        %v4458 = vunpack.c.h.b16 %v4080
        %v4459 = vunpack.c.l.b16 %v4081
        %v4460 = vunpack.c.h.b16 %v4081
        %v4461 = vunpack.c.l.b16 %v4082
        %v4462 = vunpack.c.h.b16 %v4082
        %v4463 = vunpack.c.l.b16 %v4083
        %v4464 = vunpack.c.h.b16 %v4083
        %v4465 = vunpack.c.l.b16 %v4084
        %v4466 = vunpack.c.h.b16 %v4084
        %v4467 = vunpack.c.l.b16 %v4085
        %v4468 = vunpack.c.h.b16 %v4085
        %v4469 = vunpack.c.l.b16 %v4086
        %v4470 = vunpack.c.h.b16 %v4086
        %v4471 = vunpack.c.l.b16 %v4087
        %v4472 = vunpack.c.h.b16 %v4087
        %v4473 = vunpack.c.l.b16 %v4088
        %v4474 = vunpack.c.h.b16 %v4088
        %v4475 = vunpack.c.l.b16 %v4089
        %v4476 = vunpack.c.h.b16 %v4089
        %v4477 = vunpack.c.l.b16 %v4090
        %v4478 = vunpack.c.h.b16 %v4090
        %v4479 = vunpack.c.l.b16 %v4091
        %v4480 = vunpack.c.h.b16 %v4091
        %v4481 = vunpack.c.l.b16 %v4092
        %v4482 = vunpack.c.h.b16 %v4092
        %v4483 = vunpack.c.l.b16 %v4093
        %v4484 = vunpack.c.h.b16 %v4093
        %v4485 = vunpack.c.l.b16 %v4094
        %v4486 = vunpack.c.h.b16 %v4094
        %v4487 = vunpack.c.l.b16 %v4095
        %v4488 = vunpack.c.h.b16 %v4095
        %v4489 = vunpack.c.l.b16 %v4096
        %v4490 = vunpack.c.h.b16 %v4096
        %v4491 = vunpack.c.l.b16 %v4097
        %v4492 = vunpack.c.h.b16 %v4097
        %v4493 = vunpack.c.l.b16 %v4098
        %v4494 = vunpack.c.h.b16 %v4098
        %v4495 = vunpack.c.l.b16 %v4099
        %v4496 = vunpack.c.h.b16 %v4099
        %v4497 = vunpack.c.l.b16 %v4100
        %v4498 = vunpack.c.h.b16 %v4100
        %v4499 = vunpack.c.l.b16 %v4101
        %v4500 = vunpack.c.h.b16 %v4101
        %v4501 = vunpack.c.l.b16 %v4102
        %v4502 = vunpack.c.h.b16 %v4102
        %v4503 = vunpack.c.l.b16 %v4103
        %v4504 = vunpack.c.h.b16 %v4103
        %v4505 = vunpack.c.l.b16 %v4104
        %v4506 = vunpack.c.h.b16 %v4104
        %v4507 = vunpack.c.l.b16 %v4105
        %v4508 = vunpack.c.h.b16 %v4105
        %v4509 = vunpack.c.l.b16 %v4106
        %v4510 = vunpack.c.h.b16 %v4106
        %v4511 = vunpack.c.l.b16 %v4107
        %v4512 = vunpack.c.h.b16 %v4107
        %v4513 = vunpack.c.l.b16 %v4108
        %v4514 = vunpack.c.h.b16 %v4108
        %v4515 = vunpack.c.l.b16 %v4109
        %v4516 = vunpack.c.h.b16 %v4109
        %v4517 = vunpack.c.l.b16 %v4110
        %v4518 = vunpack.c.h.b16 %v4110
        %v4519 = vunpack.c.l.b16 %v4111
        %v4520 = vunpack.c.h.b16 %v4111
        %v4521 = vunpack.c.l.b16 %v4112
        %v4522 = vunpack.c.h.b16 %v4112
        %v4523 = vunpack.c.l.b16 %v4113
        %v4524 = vunpack.c.h.b16 %v4113
        %v4525 = vunpack.c.l.b16 %v4114
        %v4526 = vunpack.c.h.b16 %v4114
        %v4527 = vunpack.c.l.b16 %v4115
        %v4528 = vunpack.c.h.b16 %v4115
        %v4529 = vunpack.c.l.b16 %v4116
        %v4530 = vunpack.c.h.b16 %v4116
        %v4531 = vunpack.c.l.b16 %v4117
        %v4532 = vunpack.c.h.b16 %v4117
        %v4533 = vunpack.c.l.b16 %v4118
        %v4534 = vunpack.c.h.b16 %v4118
        %v4535 = vunpack.c.l.b16 %v4119
        %v4536 = vunpack.c.h.b16 %v4119
        %v4537 = vunpack.c.l.b16 %v4120
        %v4538 = vunpack.c.h.b16 %v4120
        %v4539 = vunpack.c.l.b16 %v4121
        %v4540 = vunpack.c.h.b16 %v4121
        %v4541 = vunpack.c.l.b16 %v4122
        %v4542 = vunpack.c.h.b16 %v4122
        %v4543 = vunpack.c.l.b16 %v4123
        %v4544 = vunpack.c.h.b16 %v4123
        %v4545 = vunpack.c.l.b16 %v4124
        %v4546 = vunpack.c.h.b16 %v4124
        %v4547 = vunpack.c.l.b16 %v4125
        %v4548 = vunpack.c.h.b16 %v4125
        %v4549 = vunpack.c.l.b16 %v4126
        %v4550 = vunpack.c.h.b16 %v4126
        %v4551 = vunpack.c.l.b16 %v4127
        %v4552 = vunpack.c.h.b16 %v4127
        %v4553 = vunpack.c.l.b16 %v4128
        %v4554 = vunpack.c.h.b16 %v4128
        %v4555 = vpack.c.b16 %v4307, %v4299
        %v4556 = vpack.c.b16 %v4308, %v4300
        %v4557 = vpack.c.b16 %v4309, %v4301
        %v4558 = vpack.c.b16 %v4310, %v4302
        %v4559 = vpack.c.b16 %v4311, %v4303
        %v4560 = vpack.c.b16 %v4312, %v4304
        %v4561 = vpack.c.b16 %v4313, %v4305
        %v4562 = vpack.c.b16 %v4314, %v4306
        %v4563 = vpack.c.b16 %v4323, %v4315
        %v4564 = vpack.c.b16 %v4324, %v4316
        %v4565 = vpack.c.b16 %v4325, %v4317
        %v4566 = vpack.c.b16 %v4326, %v4318
        %v4567 = vpack.c.b16 %v4327, %v4319
        %v4568 = vpack.c.b16 %v4328, %v4320
        %v4569 = vpack.c.b16 %v4329, %v4321
        %v4570 = vpack.c.b16 %v4330, %v4322
        %v4571 = vpack.c.b16 %v4339, %v4331
        %v4572 = vpack.c.b16 %v4340, %v4332
        %v4573 = vpack.c.b16 %v4341, %v4333
        %v4574 = vpack.c.b16 %v4342, %v4334
        %v4575 = vpack.c.b16 %v4343, %v4335
        %v4576 = vpack.c.b16 %v4344, %v4336
        %v4577 = vpack.c.b16 %v4345, %v4337
        %v4578 = vpack.c.b16 %v4346, %v4338
        %v4579 = vpack.c.b16 %v4355, %v4347
        %v4580 = vpack.c.b16 %v4356, %v4348
        %v4581 = vpack.c.b16 %v4357, %v4349
        %v4582 = vpack.c.b16 %v4358, %v4350
        %v4583 = vpack.c.b16 %v4359, %v4351
        %v4584 = vpack.c.b16 %v4360, %v4352
        %v4585 = vpack.c.b16 %v4361, %v4353
        %v4586 = vpack.c.b16 %v4362, %v4354
        %v4587 = vpack.c.b16 %v4371, %v4363
        %v4588 = vpack.c.b16 %v4372, %v4364
        %v4589 = vpack.c.b16 %v4373, %v4365
        %v4590 = vpack.c.b16 %v4374, %v4366
        %v4591 = vpack.c.b16 %v4375, %v4367
        %v4592 = vpack.c.b16 %v4376, %v4368
        %v4593 = vpack.c.b16 %v4377, %v4369
        %v4594 = vpack.c.b16 %v4378, %v4370
        %v4595 = vpack.c.b16 %v4387, %v4379
        %v4596 = vpack.c.b16 %v4388, %v4380
        %v4597 = vpack.c.b16 %v4389, %v4381
        %v4598 = vpack.c.b16 %v4390, %v4382
        %v4599 = vpack.c.b16 %v4391, %v4383
        %v4600 = vpack.c.b16 %v4392, %v4384
        %v4601 = vpack.c.b16 %v4393, %v4385
        %v4602 = vpack.c.b16 %v4394, %v4386
        %v4603 = vpack.c.b16 %v4403, %v4395
        %v4604 = vpack.c.b16 %v4404, %v4396
        %v4605 = vpack.c.b16 %v4405, %v4397
        %v4606 = vpack.c.b16 %v4406, %v4398
        %v4607 = vpack.c.b16 %v4407, %v4399
        %v4608 = vpack.c.b16 %v4408, %v4400
        %v4609 = vpack.c.b16 %v4409, %v4401
        %v4610 = vpack.c.b16 %v4410, %v4402
        %v4611 = vpack.c.b16 %v4419, %v4411
        %v4612 = vpack.c.b16 %v4420, %v4412
        %v4613 = vpack.c.b16 %v4421, %v4413
        %v4614 = vpack.c.b16 %v4422, %v4414
        %v4615 = vpack.c.b16 %v4423, %v4415
        %v4616 = vpack.c.b16 %v4424, %v4416
        %v4617 = vpack.c.b16 %v4425, %v4417
        %v4618 = vpack.c.b16 %v4426, %v4418
        %v4619 = vpack.c.b16 %v4435, %v4427
        %v4620 = vpack.c.b16 %v4436, %v4428
        %v4621 = vpack.c.b16 %v4437, %v4429
        %v4622 = vpack.c.b16 %v4438, %v4430
        %v4623 = vpack.c.b16 %v4439, %v4431
        %v4624 = vpack.c.b16 %v4440, %v4432
        %v4625 = vpack.c.b16 %v4441, %v4433
        %v4626 = vpack.c.b16 %v4442, %v4434
        %v4627 = vpack.c.b16 %v4451, %v4443
        %v4628 = vpack.c.b16 %v4452, %v4444
        %v4629 = vpack.c.b16 %v4453, %v4445
        %v4630 = vpack.c.b16 %v4454, %v4446
        %v4631 = vpack.c.b16 %v4455, %v4447
        %v4632 = vpack.c.b16 %v4456, %v4448
        %v4633 = vpack.c.b16 %v4457, %v4449
        %v4634 = vpack.c.b16 %v4458, %v4450
        %v4635 = vpack.c.b16 %v4467, %v4459
        %v4636 = vpack.c.b16 %v4468, %v4460
        %v4637 = vpack.c.b16 %v4469, %v4461
        %v4638 = vpack.c.b16 %v4470, %v4462
        %v4639 = vpack.c.b16 %v4471, %v4463
        %v4640 = vpack.c.b16 %v4472, %v4464
        %v4641 = vpack.c.b16 %v4473, %v4465
        %v4642 = vpack.c.b16 %v4474, %v4466
        %v4643 = vpack.c.b16 %v4483, %v4475
        %v4644 = vpack.c.b16 %v4484, %v4476
        %v4645 = vpack.c.b16 %v4485, %v4477
        %v4646 = vpack.c.b16 %v4486, %v4478
        %v4647 = vpack.c.b16 %v4487, %v4479
        %v4648 = vpack.c.b16 %v4488, %v4480
        %v4649 = vpack.c.b16 %v4489, %v4481
        %v4650 = vpack.c.b16 %v4490, %v4482
        %v4651 = vpack.c.b16 %v4499, %v4491
        %v4652 = vpack.c.b16 %v4500, %v4492
        %v4653 = vpack.c.b16 %v4501, %v4493
        %v4654 = vpack.c.b16 %v4502, %v4494
        %v4655 = vpack.c.b16 %v4503, %v4495
        %v4656 = vpack.c.b16 %v4504, %v4496
        %v4657 = vpack.c.b16 %v4505, %v4497
        %v4658 = vpack.c.b16 %v4506, %v4498
        %v4659 = vpack.c.b16 %v4515, %v4507
        %v4660 = vpack.c.b16 %v4516, %v4508
        %v4661 = vpack.c.b16 %v4517, %v4509
        %v4662 = vpack.c.b16 %v4518, %v4510
        %v4663 = vpack.c.b16 %v4519, %v4511
        %v4664 = vpack.c.b16 %v4520, %v4512
        %v4665 = vpack.c.b16 %v4521, %v4513
        %v4666 = vpack.c.b16 %v4522, %v4514
        %v4667 = vpack.c.b16 %v4531, %v4523
        %v4668 = vpack.c.b16 %v4532, %v4524
        %v4669 = vpack.c.b16 %v4533, %v4525
        %v4670 = vpack.c.b16 %v4534, %v4526
        %v4671 = vpack.c.b16 %v4535, %v4527
        %v4672 = vpack.c.b16 %v4536, %v4528
        %v4673 = vpack.c.b16 %v4537, %v4529
        %v4674 = vpack.c.b16 %v4538, %v4530
        %v4675 = vpack.c.b16 %v4547, %v4539
        %v4676 = vpack.c.b16 %v4548, %v4540
        %v4677 = vpack.c.b16 %v4549, %v4541
        %v4678 = vpack.c.b16 %v4550, %v4542
        %v4679 = vpack.c.b16 %v4551, %v4543
        %v4680 = vpack.c.b16 %v4552, %v4544
        %v4681 = vpack.c.b16 %v4553, %v4545
        %v4682 = vpack.c.b16 %v4554, %v4546
        %4811 = vmatprep.subr.bf16.mxu0 %v4612
        %4812 = vmatpush1.bf16.msra.mxu0 %v4611
        %4813 = vmatprep.subr.bf16.mxu0 %v4604
        %4814 = vmatpush1.bf16.msra.mxu0 %v4603
        %4815 = vmatprep.subr.bf16.mxu0 %v4596
        %4816 = vmatpush1.bf16.msra.mxu0 %v4595
        %4817 = vmatprep.subr.bf16.mxu0 %v4588
        %4818 = vmatpush1.bf16.msra.mxu0 %v4587
        %4819 = vmatprep.subr.bf16.mxu0 %v4580
        %4820 = vmatpush1.bf16.msra.mxu0 %v4579
        %4821 = vmatprep.subr.bf16.mxu0 %v4572
        %4822 = vmatpush1.bf16.msra.mxu0 %v4571
        %4823 = vmatprep.subr.bf16.mxu0 %v4564
        %4824 = vmatpush1.bf16.msra.mxu0 %v4563
        %4825 = vmatprep.subr.bf16.mxu0 %v4556
        %4826 = vmatpush1.bf16.msra.mxu0 %v4555
        %4827 = vmatprep.subr.bf16.mxu0 %v4676
        %4828 = vmatpush2.bf16.msra.mxu0 %v4675
        %4829 = vmatprep.subr.bf16.mxu0 %v4668
        %4830 = vmatpush2.bf16.msra.mxu0 %v4667
        %4831 = vmatprep.subr.bf16.mxu0 %v4660
        %4832 = vmatpush2.bf16.msra.mxu0 %v4659
        %4833 = vmatprep.subr.bf16.mxu0 %v4652
        %4834 = vmatpush2.bf16.msra.mxu0 %v4651
        %4835 = vmatprep.subr.bf16.mxu0 %v4644
        %4836 = vmatpush2.bf16.msra.mxu0 %v4643
        %4837 = vmatprep.subr.bf16.mxu0 %v4636
        %4838 = vmatpush2.bf16.msra.mxu0 %v4635
        %4839 = vmatprep.subr.bf16.mxu0 %v4628
        %4840 = vmatpush2.bf16.msra.mxu0 %v4627
        %4841 = vmatprep.subr.bf16.mxu0 %v4620
        %4842 = vmatpush2.bf16.msra.mxu0 %v4619
        %4843 = vmatprep.mubr.bf16.mxu0 %v3994
        %4844 = vmatmul.mubr.bf16.gmra.mxu0 %v3993
        %v4845 = vpop.f32.mrf.mxu0
        %v4846 = vadd.f32 %v4134, %v4845
        %v4847 = vpop.f32.mrf.mxu0
        %v4848 = vadd.f32 %v4138, %v4847
        %v4849 = vpop.f32.mrf.mxu0
        %v4850 = vadd.f32 %v4134, %v4849
        %v4851 = vpop.f32.mrf.mxu0
        %v4852 = vadd.f32 %v4138, %v4851
        %4853 = vmatprep.mubr.bf16.mxu0 %v3996
        %4854 = vmatmul.mubr.bf16.gmra.mxu0 %v3995
        %v4855 = vpop.f32.mrf.mxu0
        %v4856 = vadd.f32 %v4134, %v4855
        %v4857 = vpop.f32.mrf.mxu0
        %v4858 = vadd.f32 %v4138, %v4857
        %v4859 = vpop.f32.mrf.mxu0
        %v4860 = vadd.f32 %v4134, %v4859
        %v4861 = vpop.f32.mrf.mxu0
        %v4862 = vadd.f32 %v4138, %v4861
        %4863 = vmatprep.mubr.bf16.mxu0 %v3998
        %4864 = vmatmul.mubr.bf16.gmra.mxu0 %v3997
        %v4865 = vpop.f32.mrf.mxu0
        %v4866 = vadd.f32 %v4134, %v4865
        %v4867 = vpop.f32.mrf.mxu0
        %v4868 = vadd.f32 %v4138, %v4867
        %v4869 = vpop.f32.mrf.mxu0
        %v4870 = vadd.f32 %v4134, %v4869
        %v4871 = vpop.f32.mrf.mxu0
        %v4872 = vadd.f32 %v4138, %v4871
        %4873 = vmatprep.mubr.bf16.mxu0 %v4000
        %4874 = vmatmul.mubr.bf16.gmra.mxu0 %v3999
        %v4875 = vpop.f32.mrf.mxu0
        %v4876 = vadd.f32 %v4134, %v4875
        %v4877 = vpop.f32.mrf.mxu0
        %v4878 = vadd.f32 %v4138, %v4877
        %v4879 = vpop.f32.mrf.mxu0
        %v4880 = vadd.f32 %v4134, %v4879
        %v4881 = vpop.f32.mrf.mxu0
        %v4882 = vadd.f32 %v4138, %v4881
        %4883 = vdwg.mxu0
        %4884 = vmatprep.subr.bf16.mxu0 %v4614
        %4885 = vmatpush1.bf16.msra.mxu0 %v4613
        %4886 = vmatprep.subr.bf16.mxu0 %v4606
        %4887 = vmatpush1.bf16.msra.mxu0 %v4605
        %4888 = vmatprep.subr.bf16.mxu0 %v4598
        %4889 = vmatpush1.bf16.msra.mxu0 %v4597
        %4890 = vmatprep.subr.bf16.mxu0 %v4590
        %4891 = vmatpush1.bf16.msra.mxu0 %v4589
        %4892 = vmatprep.subr.bf16.mxu0 %v4582
        %4893 = vmatpush1.bf16.msra.mxu0 %v4581
        %4894 = vmatprep.subr.bf16.mxu0 %v4574
        %4895 = vmatpush1.bf16.msra.mxu0 %v4573
        %4896 = vmatprep.subr.bf16.mxu0 %v4566
        %4897 = vmatpush1.bf16.msra.mxu0 %v4565
        %4898 = vmatprep.subr.bf16.mxu0 %v4558
        %4899 = vmatpush1.bf16.msra.mxu0 %v4557
        %4900 = vmatprep.subr.bf16.mxu0 %v4678
        %4901 = vmatpush2.bf16.msra.mxu0 %v4677
        %4902 = vmatprep.subr.bf16.mxu0 %v4670
        %4903 = vmatpush2.bf16.msra.mxu0 %v4669
        %4904 = vmatprep.subr.bf16.mxu0 %v4662
        %4905 = vmatpush2.bf16.msra.mxu0 %v4661
        %4906 = vmatprep.subr.bf16.mxu0 %v4654
        %4907 = vmatpush2.bf16.msra.mxu0 %v4653
        %4908 = vmatprep.subr.bf16.mxu0 %v4646
        %4909 = vmatpush2.bf16.msra.mxu0 %v4645
        %4910 = vmatprep.subr.bf16.mxu0 %v4638
        %4911 = vmatpush2.bf16.msra.mxu0 %v4637
        %4912 = vmatprep.subr.bf16.mxu0 %v4630
        %4913 = vmatpush2.bf16.msra.mxu0 %v4629
        %4914 = vmatprep.subr.bf16.mxu0 %v4622
        %4915 = vmatpush2.bf16.msra.mxu0 %v4621
        %4916 = vmatprep.mubr.bf16.mxu0 %v3994
        %4917 = vmatmul.mubr.bf16.gmra.mxu0 %v3993
        %v4918 = vpop.f32.mrf.mxu0
        %v4919 = vadd.f32 %v4142, %v4918
        %v4920 = vpop.f32.mrf.mxu0
        %v4921 = vadd.f32 %v4146, %v4920
        %v4922 = vpop.f32.mrf.mxu0
        %v4923 = vadd.f32 %v4142, %v4922
        %v4924 = vpop.f32.mrf.mxu0
        %v4925 = vadd.f32 %v4146, %v4924
        %4926 = vmatprep.mubr.bf16.mxu0 %v3996
        %4927 = vmatmul.mubr.bf16.gmra.mxu0 %v3995
        %v4928 = vpop.f32.mrf.mxu0
        %v4929 = vadd.f32 %v4142, %v4928
        %v4930 = vpop.f32.mrf.mxu0
        %v4931 = vadd.f32 %v4146, %v4930
        %v4932 = vpop.f32.mrf.mxu0
        %v4933 = vadd.f32 %v4142, %v4932
        %v4934 = vpop.f32.mrf.mxu0
        %v4935 = vadd.f32 %v4146, %v4934
        %4936 = vmatprep.mubr.bf16.mxu0 %v3998
        %4937 = vmatmul.mubr.bf16.gmra.mxu0 %v3997
        %v4938 = vpop.f32.mrf.mxu0
        %v4939 = vadd.f32 %v4142, %v4938
        %v4940 = vpop.f32.mrf.mxu0
        %v4941 = vadd.f32 %v4146, %v4940
        %v4942 = vpop.f32.mrf.mxu0
        %v4943 = vadd.f32 %v4142, %v4942
        %v4944 = vpop.f32.mrf.mxu0
        %v4945 = vadd.f32 %v4146, %v4944
        %4946 = vmatprep.mubr.bf16.mxu0 %v4000
        %4947 = vmatmul.mubr.bf16.gmra.mxu0 %v3999
        %v4948 = vpop.f32.mrf.mxu0
        %v4949 = vadd.f32 %v4142, %v4948
        %v4950 = vpop.f32.mrf.mxu0
        %v4951 = vadd.f32 %v4146, %v4950
        %v4952 = vpop.f32.mrf.mxu0
        %v4953 = vadd.f32 %v4142, %v4952
        %v4954 = vpop.f32.mrf.mxu0
        %v4955 = vadd.f32 %v4146, %v4954
        %4956 = vdwg.mxu0
        %4957 = vmatprep.subr.bf16.mxu0 %v4616
        %4958 = vmatpush1.bf16.msra.mxu0 %v4615
        %4959 = vmatprep.subr.bf16.mxu0 %v4608
        %4960 = vmatpush1.bf16.msra.mxu0 %v4607
        %4961 = vmatprep.subr.bf16.mxu0 %v4600
        %4962 = vmatpush1.bf16.msra.mxu0 %v4599
        %4963 = vmatprep.subr.bf16.mxu0 %v4592
        %4964 = vmatpush1.bf16.msra.mxu0 %v4591
        %4965 = vmatprep.subr.bf16.mxu0 %v4584
        %4966 = vmatpush1.bf16.msra.mxu0 %v4583
        %4967 = vmatprep.subr.bf16.mxu0 %v4576
        %4968 = vmatpush1.bf16.msra.mxu0 %v4575
        %4969 = vmatprep.subr.bf16.mxu0 %v4568
        %4970 = vmatpush1.bf16.msra.mxu0 %v4567
        %4971 = vmatprep.subr.bf16.mxu0 %v4560
        %4972 = vmatpush1.bf16.msra.mxu0 %v4559
        %4973 = vmatprep.subr.bf16.mxu0 %v4680
        %4974 = vmatpush2.bf16.msra.mxu0 %v4679
        %4975 = vmatprep.subr.bf16.mxu0 %v4672
        %4976 = vmatpush2.bf16.msra.mxu0 %v4671
        %4977 = vmatprep.subr.bf16.mxu0 %v4664
        %4978 = vmatpush2.bf16.msra.mxu0 %v4663
        %4979 = vmatprep.subr.bf16.mxu0 %v4656
        %4980 = vmatpush2.bf16.msra.mxu0 %v4655
        %4981 = vmatprep.subr.bf16.mxu0 %v4648
        %4982 = vmatpush2.bf16.msra.mxu0 %v4647
        %4983 = vmatprep.subr.bf16.mxu0 %v4640
        %4984 = vmatpush2.bf16.msra.mxu0 %v4639
        %4985 = vmatprep.subr.bf16.mxu0 %v4632
        %4986 = vmatpush2.bf16.msra.mxu0 %v4631
        %4987 = vmatprep.subr.bf16.mxu0 %v4624
        %4988 = vmatpush2.bf16.msra.mxu0 %v4623
        %4989 = vmatprep.mubr.bf16.mxu0 %v3994
        %4990 = vmatmul.mubr.bf16.gmra.mxu0 %v3993
        %v4991 = vpop.f32.mrf.mxu0
        %v4992 = vadd.f32 %v4150, %v4991
        %v4993 = vpop.f32.mrf.mxu0
        %v4994 = vadd.f32 %v4154, %v4993
        %v4995 = vpop.f32.mrf.mxu0
        %v4996 = vadd.f32 %v4150, %v4995
        %v4997 = vpop.f32.mrf.mxu0
        %v4998 = vadd.f32 %v4154, %v4997
        %4999 = vmatprep.mubr.bf16.mxu0 %v3996
        %5000 = vmatmul.mubr.bf16.gmra.mxu0 %v3995
        %v5001 = vpop.f32.mrf.mxu0
        %v5002 = vadd.f32 %v4150, %v5001
        %v5003 = vpop.f32.mrf.mxu0
        %v5004 = vadd.f32 %v4154, %v5003
        %v5005 = vpop.f32.mrf.mxu0
        %v5006 = vadd.f32 %v4150, %v5005
        %v5007 = vpop.f32.mrf.mxu0
        %v5008 = vadd.f32 %v4154, %v5007
        %5009 = vmatprep.mubr.bf16.mxu0 %v3998
        %5010 = vmatmul.mubr.bf16.gmra.mxu0 %v3997
        %v5011 = vpop.f32.mrf.mxu0
        %v5012 = vadd.f32 %v4150, %v5011
        %v5013 = vpop.f32.mrf.mxu0
        %v5014 = vadd.f32 %v4154, %v5013
        %v5015 = vpop.f32.mrf.mxu0
        %v5016 = vadd.f32 %v4150, %v5015
        %v5017 = vpop.f32.mrf.mxu0
        %v5018 = vadd.f32 %v4154, %v5017
        %5019 = vmatprep.mubr.bf16.mxu0 %v4000
        %5020 = vmatmul.mubr.bf16.gmra.mxu0 %v3999
        %v5021 = vpop.f32.mrf.mxu0
        %v5022 = vadd.f32 %v4150, %v5021
        %v5023 = vpop.f32.mrf.mxu0
        %v5024 = vadd.f32 %v4154, %v5023
        %v5025 = vpop.f32.mrf.mxu0
        %v5026 = vadd.f32 %v4150, %v5025
        %v5027 = vpop.f32.mrf.mxu0
        %v5028 = vadd.f32 %v4154, %v5027
        %5029 = vdwg.mxu0
        %5030 = vmatprep.subr.bf16.mxu0 %v4618
        %5031 = vmatpush1.bf16.msra.mxu0 %v4617
        %5032 = vmatprep.subr.bf16.mxu0 %v4610
        %5033 = vmatpush1.bf16.msra.mxu0 %v4609
        %5034 = vmatprep.subr.bf16.mxu0 %v4602
        %5035 = vmatpush1.bf16.msra.mxu0 %v4601
        %5036 = vmatprep.subr.bf16.mxu0 %v4594
        %5037 = vmatpush1.bf16.msra.mxu0 %v4593
        %5038 = vmatprep.subr.bf16.mxu0 %v4586
        %5039 = vmatpush1.bf16.msra.mxu0 %v4585
        %5040 = vmatprep.subr.bf16.mxu0 %v4578
        %5041 = vmatpush1.bf16.msra.mxu0 %v4577
        %5042 = vmatprep.subr.bf16.mxu0 %v4570
        %5043 = vmatpush1.bf16.msra.mxu0 %v4569
        %5044 = vmatprep.subr.bf16.mxu0 %v4562
        %5045 = vmatpush1.bf16.msra.mxu0 %v4561
        %5046 = vmatprep.subr.bf16.mxu0 %v4682
        %5047 = vmatpush2.bf16.msra.mxu0 %v4681
        %5048 = vmatprep.subr.bf16.mxu0 %v4674
        %5049 = vmatpush2.bf16.msra.mxu0 %v4673
        %5050 = vmatprep.subr.bf16.mxu0 %v4666
        %5051 = vmatpush2.bf16.msra.mxu0 %v4665
        %5052 = vmatprep.subr.bf16.mxu0 %v4658
        %5053 = vmatpush2.bf16.msra.mxu0 %v4657
        %5054 = vmatprep.subr.bf16.mxu0 %v4650
        %5055 = vmatpush2.bf16.msra.mxu0 %v4649
        %5056 = vmatprep.subr.bf16.mxu0 %v4642
        %5057 = vmatpush2.bf16.msra.mxu0 %v4641
        %5058 = vmatprep.subr.bf16.mxu0 %v4634
        %5059 = vmatpush2.bf16.msra.mxu0 %v4633
        %5060 = vmatprep.subr.bf16.mxu0 %v4626
        %5061 = vmatpush2.bf16.msra.mxu0 %v4625
        %5062 = vmatprep.mubr.bf16.mxu0 %v3994
        %5063 = vmatmul.mubr.bf16.gmra.mxu0 %v3993
        %v5064 = vpop.f32.mrf.mxu0
        %v5065 = vadd.f32 %v4158, %v5064
        %v5066 = vpop.f32.mrf.mxu0
        %v5067 = vadd.f32 %v4162, %v5066
        %v5068 = vpop.f32.mrf.mxu0
        %v5069 = vadd.f32 %v4158, %v5068
        %v5070 = vpop.f32.mrf.mxu0
        %v5071 = vadd.f32 %v4162, %v5070
        %5072 = vmatprep.mubr.bf16.mxu0 %v3996
        %5073 = vmatmul.mubr.bf16.gmra.mxu0 %v3995
        %v5074 = vpop.f32.mrf.mxu0
        %v5075 = vadd.f32 %v4158, %v5074
        %v5076 = vpop.f32.mrf.mxu0
        %v5077 = vadd.f32 %v4162, %v5076
        %v5078 = vpop.f32.mrf.mxu0
        %v5079 = vadd.f32 %v4158, %v5078
        %v5080 = vpop.f32.mrf.mxu0
        %v5081 = vadd.f32 %v4162, %v5080
        %5082 = vmatprep.mubr.bf16.mxu0 %v3998
        %5083 = vmatmul.mubr.bf16.gmra.mxu0 %v3997
        %v5084 = vpop.f32.mrf.mxu0
        %v5085 = vadd.f32 %v4158, %v5084
        %v5086 = vpop.f32.mrf.mxu0
        %v5087 = vadd.f32 %v4162, %v5086
        %v5088 = vpop.f32.mrf.mxu0
        %v5089 = vadd.f32 %v4158, %v5088
        %v5090 = vpop.f32.mrf.mxu0
        %v5091 = vadd.f32 %v4162, %v5090
        %5092 = vmatprep.mubr.bf16.mxu0 %v4000
        %5093 = vmatmul.mubr.bf16.gmra.mxu0 %v3999
        %v5094 = vpop.f32.mrf.mxu0
        %v5095 = vadd.f32 %v4158, %v5094
        %v5096 = vpop.f32.mrf.mxu0
        %v5097 = vadd.f32 %v4162, %v5096
        %v5098 = vpop.f32.mrf.mxu0
        %v5099 = vadd.f32 %v4158, %v5098
        %v5100 = vpop.f32.mrf.mxu0
        %v5101 = vadd.f32 %v4162, %v5100
        %5102 = vdwg.mxu0
        %v5103 = vmax.f32 %v4846, 0.0
        %v5104 = vmax.f32 %v4848, 0.0
        %v5105 = vmax.f32 %v4919, 0.0
        %v5106 = vmax.f32 %v4921, 0.0
        %v5107 = vmax.f32 %v4992, 0.0
        %v5108 = vmax.f32 %v4994, 0.0
        %v5109 = vmax.f32 %v5065, 0.0
        %v5110 = vmax.f32 %v5067, 0.0
        %v5111 = vmax.f32 %v4850, 0.0
        %v5112 = vmax.f32 %v4852, 0.0
        %v5113 = vmax.f32 %v4923, 0.0
        %v5114 = vmax.f32 %v4925, 0.0
        %v5115 = vmax.f32 %v4996, 0.0
        %v5116 = vmax.f32 %v4998, 0.0
        %v5117 = vmax.f32 %v5069, 0.0
        %v5118 = vmax.f32 %v5071, 0.0
        %v5119 = vmax.f32 %v4856, 0.0
        %v5120 = vmax.f32 %v4858, 0.0
        %v5121 = vmax.f32 %v4929, 0.0
        %v5122 = vmax.f32 %v4931, 0.0
        %v5123 = vmax.f32 %v5002, 0.0
        %v5124 = vmax.f32 %v5004, 0.0
        %v5125 = vmax.f32 %v5075, 0.0
        %v5126 = vmax.f32 %v5077, 0.0
        %v5127 = vmax.f32 %v4860, 0.0
        %v5128 = vmax.f32 %v4862, 0.0
        %v5129 = vmax.f32 %v4933, 0.0
        %v5130 = vmax.f32 %v4935, 0.0
        %v5131 = vmax.f32 %v5006, 0.0
        %v5132 = vmax.f32 %v5008, 0.0
        %v5133 = vmax.f32 %v5079, 0.0
        %v5134 = vmax.f32 %v5081, 0.0
        %v5135 = vmax.f32 %v4866, 0.0
        %v5136 = vmax.f32 %v4868, 0.0
        %v5137 = vmax.f32 %v4939, 0.0
        %v5138 = vmax.f32 %v4941, 0.0
        %v5139 = vmax.f32 %v5012, 0.0
        %v5140 = vmax.f32 %v5014, 0.0
        %v5141 = vmax.f32 %v5085, 0.0
        %v5142 = vmax.f32 %v5087, 0.0
        %v5143 = vmax.f32 %v4870, 0.0
        %v5144 = vmax.f32 %v4872, 0.0
        %v5145 = vmax.f32 %v4943, 0.0
        %v5146 = vmax.f32 %v4945, 0.0
        %v5147 = vmax.f32 %v5016, 0.0
        %v5148 = vmax.f32 %v5018, 0.0
        %v5149 = vmax.f32 %v5089, 0.0
        %v5150 = vmax.f32 %v5091, 0.0
        %v5151 = vmax.f32 %v4876, 0.0
        %v5152 = vmax.f32 %v4878, 0.0
        %v5153 = vmax.f32 %v4949, 0.0
        %v5154 = vmax.f32 %v4951, 0.0
        %v5155 = vmax.f32 %v5022, 0.0
        %v5156 = vmax.f32 %v5024, 0.0
        %v5157 = vmax.f32 %v5095, 0.0
        %v5158 = vmax.f32 %v5097, 0.0
        %v5159 = vmax.f32 %v4880, 0.0
        %v5160 = vmax.f32 %v4882, 0.0
        %v5161 = vmax.f32 %v4953, 0.0
        %v5162 = vmax.f32 %v4955, 0.0
        %v5163 = vmax.f32 %v5026, 0.0
        %v5164 = vmax.f32 %v5028, 0.0
        %v5165 = vmax.f32 %v5099, 0.0
        %v5166 = vmax.f32 %v5101, 0.0
        %v5167 = vpack.c.bf16 %v5111, %v5103
        %v5168 = vpack.c.bf16 %v5112, %v5104
        %v5169 = vpack.c.bf16 %v5113, %v5105
        %v5170 = vpack.c.bf16 %v5114, %v5106
        %v5171 = vpack.c.bf16 %v5115, %v5107
        %v5172 = vpack.c.bf16 %v5116, %v5108
        %v5173 = vpack.c.bf16 %v5117, %v5109
        %v5174 = vpack.c.bf16 %v5118, %v5110
        %v5175 = vpack.c.bf16 %v5127, %v5119
        %v5176 = vpack.c.bf16 %v5128, %v5120
        %v5177 = vpack.c.bf16 %v5129, %v5121
        %v5178 = vpack.c.bf16 %v5130, %v5122
        %v5179 = vpack.c.bf16 %v5131, %v5123
        %v5180 = vpack.c.bf16 %v5132, %v5124
        %v5181 = vpack.c.bf16 %v5133, %v5125
        %v5182 = vpack.c.bf16 %v5134, %v5126
        %v5183 = vpack.c.bf16 %v5143, %v5135
        %v5184 = vpack.c.bf16 %v5144, %v5136
        %v5185 = vpack.c.bf16 %v5145, %v5137
        %v5186 = vpack.c.bf16 %v5146, %v5138
        %v5187 = vpack.c.bf16 %v5147, %v5139
        %v5188 = vpack.c.bf16 %v5148, %v5140
        %v5189 = vpack.c.bf16 %v5149, %v5141
        %v5190 = vpack.c.bf16 %v5150, %v5142
        %v5191 = vpack.c.bf16 %v5159, %v5151
        %v5192 = vpack.c.bf16 %v5160, %v5152
        %v5193 = vpack.c.bf16 %v5161, %v5153
        %v5194 = vpack.c.bf16 %v5162, %v5154
        %v5195 = vpack.c.bf16 %v5163, %v5155
        %v5196 = vpack.c.bf16 %v5164, %v5156
        %v5197 = vpack.c.bf16 %v5165, %v5157
        %v5198 = vpack.c.bf16 %v5166, %v5158
        %v5199 = vld [vmem:[%s725] sm:$0xff]
        %v5200 = vld [vmem:[%s725 + $0x8] sm:$0xff]
        %v5201 = vld [vmem:[%s725 + $0x10] sm:$0xff]
        %v5202 = vld [vmem:[%s725 + $0x18] sm:$0xff]
        %v5203 = vld [vmem:[%s725 + $0x20] sm:$0xff]
        %v5204 = vld [vmem:[%s725 + $0x28] sm:$0xff]
        %v5205 = vld [vmem:[%s725 + $0x30] sm:$0xff]
        %v5206 = vld [vmem:[%s725 + $0x38] sm:$0xff]
        %v5207 = vld [vmem:[%s725 + $0x40] sm:$0xff]
        %v5208 = vld [vmem:[%s725 + $0x48] sm:$0xff]
        %v5209 = vld [vmem:[%s725 + $0x50] sm:$0xff]
        %v5210 = vld [vmem:[%s725 + $0x58] sm:$0xff]
        %v5211 = vld [vmem:[%s725 + $0x60] sm:$0xff]
        %v5212 = vld [vmem:[%s725 + $0x68] sm:$0xff]
        %v5213 = vld [vmem:[%s725 + $0x70] sm:$0xff]
        %v5214 = vld [vmem:[%s725 + $0x78] sm:$0xff]
        %v5215 = vld [vmem:[%s725 + $0x80] sm:$0xff]
        %v5216 = vld [vmem:[%s725 + $0x88] sm:$0xff]
        %v5217 = vld [vmem:[%s725 + $0x90] sm:$0xff]
        %v5218 = vld [vmem:[%s725 + $0x98] sm:$0xff]
        %v5219 = vld [vmem:[%s725 + $0xa0] sm:$0xff]
        %v5220 = vld [vmem:[%s725 + $0xa8] sm:$0xff]
        %v5221 = vld [vmem:[%s725 + $0xb0] sm:$0xff]
        %v5222 = vld [vmem:[%s725 + $0xb8] sm:$0xff]
        %v5223 = vld [vmem:[%s725 + $0xc0] sm:$0xff]
        %v5224 = vld [vmem:[%s725 + $0xc8] sm:$0xff]
        %v5225 = vld [vmem:[%s725 + $0xd0] sm:$0xff]
        %v5226 = vld [vmem:[%s725 + $0xd8] sm:$0xff]
        %v5227 = vld [vmem:[%s725 + $0xe0] sm:$0xff]
        %v5228 = vld [vmem:[%s725 + $0xe8] sm:$0xff]
        %v5229 = vld [vmem:[%s725 + $0xf0] sm:$0xff]
        %v5230 = vld [vmem:[%s725 + $0xf8] sm:$0xff]
        %v5231 = vld [vmem:[%s725 + $0x100] sm:$0xff]
        %v5232 = vld [vmem:[%s725 + $0x108] sm:$0xff]
        %v5233 = vld [vmem:[%s725 + $0x110] sm:$0xff]
        %v5234 = vld [vmem:[%s725 + $0x118] sm:$0xff]
        %v5235 = vld [vmem:[%s725 + $0x120] sm:$0xff]
        %v5236 = vld [vmem:[%s725 + $0x128] sm:$0xff]
        %v5237 = vld [vmem:[%s725 + $0x130] sm:$0xff]
        %v5238 = vld [vmem:[%s725 + $0x138] sm:$0xff]
        %v5239 = vld [vmem:[%s725 + $0x140] sm:$0xff]
        %v5240 = vld [vmem:[%s725 + $0x148] sm:$0xff]
        %v5241 = vld [vmem:[%s725 + $0x150] sm:$0xff]
        %v5242 = vld [vmem:[%s725 + $0x158] sm:$0xff]
        %v5243 = vld [vmem:[%s725 + $0x160] sm:$0xff]
        %v5244 = vld [vmem:[%s725 + $0x168] sm:$0xff]
        %v5245 = vld [vmem:[%s725 + $0x170] sm:$0xff]
        %v5246 = vld [vmem:[%s725 + $0x178] sm:$0xff]
        %v5247 = vld [vmem:[%s725 + $0x180] sm:$0xff]
        %v5248 = vld [vmem:[%s725 + $0x188] sm:$0xff]
        %v5249 = vld [vmem:[%s725 + $0x190] sm:$0xff]
        %v5250 = vld [vmem:[%s725 + $0x198] sm:$0xff]
        %v5251 = vld [vmem:[%s725 + $0x1a0] sm:$0xff]
        %v5252 = vld [vmem:[%s725 + $0x1a8] sm:$0xff]
        %v5253 = vld [vmem:[%s725 + $0x1b0] sm:$0xff]
        %v5254 = vld [vmem:[%s725 + $0x1b8] sm:$0xff]
        %v5255 = vld [vmem:[%s725 + $0x1c0] sm:$0xff]
        %v5256 = vld [vmem:[%s725 + $0x1c8] sm:$0xff]
        %v5257 = vld [vmem:[%s725 + $0x1d0] sm:$0xff]
        %v5258 = vld [vmem:[%s725 + $0x1d8] sm:$0xff]
        %v5259 = vld [vmem:[%s725 + $0x1e0] sm:$0xff]
        %v5260 = vld [vmem:[%s725 + $0x1e8] sm:$0xff]
        %v5261 = vld [vmem:[%s725 + $0x1f0] sm:$0xff]
        %v5262 = vld [vmem:[%s725 + $0x1f8] sm:$0xff]
        %v5263 = vld [vmem:[%s725 + $0x200] sm:$0xff]
        %v5264 = vld [vmem:[%s725 + $0x208] sm:$0xff]
        %v5265 = vld [vmem:[%s725 + $0x210] sm:$0xff]
        %v5266 = vld [vmem:[%s725 + $0x218] sm:$0xff]
        %v5267 = vld [vmem:[%s725 + $0x220] sm:$0xff]
        %v5268 = vld [vmem:[%s725 + $0x228] sm:$0xff]
        %v5269 = vld [vmem:[%s725 + $0x230] sm:$0xff]
        %v5270 = vld [vmem:[%s725 + $0x238] sm:$0xff]
        %v5271 = vld [vmem:[%s725 + $0x240] sm:$0xff]
        %v5272 = vld [vmem:[%s725 + $0x248] sm:$0xff]
        %v5273 = vld [vmem:[%s725 + $0x250] sm:$0xff]
        %v5274 = vld [vmem:[%s725 + $0x258] sm:$0xff]
        %v5275 = vld [vmem:[%s725 + $0x260] sm:$0xff]
        %v5276 = vld [vmem:[%s725 + $0x268] sm:$0xff]
        %v5277 = vld [vmem:[%s725 + $0x270] sm:$0xff]
        %v5278 = vld [vmem:[%s725 + $0x278] sm:$0xff]
        %v5279 = vld [vmem:[%s725 + $0x280] sm:$0xff]
        %v5280 = vld [vmem:[%s725 + $0x288] sm:$0xff]
        %v5281 = vld [vmem:[%s725 + $0x290] sm:$0xff]
        %v5282 = vld [vmem:[%s725 + $0x298] sm:$0xff]
        %v5283 = vld [vmem:[%s725 + $0x2a0] sm:$0xff]
        %v5284 = vld [vmem:[%s725 + $0x2a8] sm:$0xff]
        %v5285 = vld [vmem:[%s725 + $0x2b0] sm:$0xff]
        %v5286 = vld [vmem:[%s725 + $0x2b8] sm:$0xff]
        %v5287 = vld [vmem:[%s725 + $0x2c0] sm:$0xff]
        %v5288 = vld [vmem:[%s725 + $0x2c8] sm:$0xff]
        %v5289 = vld [vmem:[%s725 + $0x2d0] sm:$0xff]
        %v5290 = vld [vmem:[%s725 + $0x2d8] sm:$0xff]
        %v5291 = vld [vmem:[%s725 + $0x2e0] sm:$0xff]
        %v5292 = vld [vmem:[%s725 + $0x2e8] sm:$0xff]
        %v5293 = vld [vmem:[%s725 + $0x2f0] sm:$0xff]
        %v5294 = vld [vmem:[%s725 + $0x2f8] sm:$0xff]
        %v5295 = vld [vmem:[%s725 + $0x300] sm:$0xff]
        %v5296 = vld [vmem:[%s725 + $0x308] sm:$0xff]
        %v5297 = vld [vmem:[%s725 + $0x310] sm:$0xff]
        %v5298 = vld [vmem:[%s725 + $0x318] sm:$0xff]
        %v5299 = vld [vmem:[%s725 + $0x320] sm:$0xff]
        %v5300 = vld [vmem:[%s725 + $0x328] sm:$0xff]
        %v5301 = vld [vmem:[%s725 + $0x330] sm:$0xff]
        %v5302 = vld [vmem:[%s725 + $0x338] sm:$0xff]
        %v5303 = vld [vmem:[%s725 + $0x340] sm:$0xff]
        %v5304 = vld [vmem:[%s725 + $0x348] sm:$0xff]
        %v5305 = vld [vmem:[%s725 + $0x350] sm:$0xff]
        %v5306 = vld [vmem:[%s725 + $0x358] sm:$0xff]
        %v5307 = vld [vmem:[%s725 + $0x360] sm:$0xff]
        %v5308 = vld [vmem:[%s725 + $0x368] sm:$0xff]
        %v5309 = vld [vmem:[%s725 + $0x370] sm:$0xff]
        %v5310 = vld [vmem:[%s725 + $0x378] sm:$0xff]
        %v5311 = vld [vmem:[%s725 + $0x380] sm:$0xff]
        %v5312 = vld [vmem:[%s725 + $0x388] sm:$0xff]
        %v5313 = vld [vmem:[%s725 + $0x390] sm:$0xff]
        %v5314 = vld [vmem:[%s725 + $0x398] sm:$0xff]
        %v5315 = vld [vmem:[%s725 + $0x3a0] sm:$0xff]
        %v5316 = vld [vmem:[%s725 + $0x3a8] sm:$0xff]
        %v5317 = vld [vmem:[%s725 + $0x3b0] sm:$0xff]
        %v5318 = vld [vmem:[%s725 + $0x3b8] sm:$0xff]
        %v5319 = vld [vmem:[%s725 + $0x3c0] sm:$0xff]
        %v5320 = vld [vmem:[%s725 + $0x3c8] sm:$0xff]
        %v5321 = vld [vmem:[%s725 + $0x3d0] sm:$0xff]
        %v5322 = vld [vmem:[%s725 + $0x3d8] sm:$0xff]
        %v5323 = vld [vmem:[%s725 + $0x3e0] sm:$0xff]
        %v5324 = vld [vmem:[%s725 + $0x3e8] sm:$0xff]
        %v5325 = vld [vmem:[%s725 + $0x3f0] sm:$0xff]
        %v5326 = vld [vmem:[%s725 + $0x3f8] sm:$0xff]
        %v5327 = vld [vmem:[%s734] sm:$0x3]
        %v5329 = vlaneseq
        %v5330 = vshrl.u32 %v5329, 7
        %v5331 = vsub.s32 0, %v5330
        %v5332 = vrot.slane %v5327, %v5331
        %v5333 = vlaneseq
        %v5334 = vshrl.u32 %v5333, 7
        %v5335 = vsub.s32 1, %v5334
        %v5336 = vrot.slane %v5327, %v5335
        %v5467 = vunpack.c.l.b16 %v5199
        %v5468 = vunpack.c.h.b16 %v5199
        %v5469 = vunpack.c.l.b16 %v5200
        %v5470 = vunpack.c.h.b16 %v5200
        %v5471 = vunpack.c.l.b16 %v5201
        %v5472 = vunpack.c.h.b16 %v5201
        %v5473 = vunpack.c.l.b16 %v5202
        %v5474 = vunpack.c.h.b16 %v5202
        %v5475 = vunpack.c.l.b16 %v5203
        %v5476 = vunpack.c.h.b16 %v5203
        %v5477 = vunpack.c.l.b16 %v5204
        %v5478 = vunpack.c.h.b16 %v5204
        %v5479 = vunpack.c.l.b16 %v5205
        %v5480 = vunpack.c.h.b16 %v5205
        %v5481 = vunpack.c.l.b16 %v5206
        %v5482 = vunpack.c.h.b16 %v5206
        %v5483 = vunpack.c.l.b16 %v5207
        %v5484 = vunpack.c.h.b16 %v5207
        %v5485 = vunpack.c.l.b16 %v5208
        %v5486 = vunpack.c.h.b16 %v5208
        %v5487 = vunpack.c.l.b16 %v5209
        %v5488 = vunpack.c.h.b16 %v5209
        %v5489 = vunpack.c.l.b16 %v5210
        %v5490 = vunpack.c.h.b16 %v5210
        %v5491 = vunpack.c.l.b16 %v5211
        %v5492 = vunpack.c.h.b16 %v5211
        %v5493 = vunpack.c.l.b16 %v5212
        %v5494 = vunpack.c.h.b16 %v5212
        %v5495 = vunpack.c.l.b16 %v5213
        %v5496 = vunpack.c.h.b16 %v5213
        %v5497 = vunpack.c.l.b16 %v5214
        %v5498 = vunpack.c.h.b16 %v5214
        %v5499 = vunpack.c.l.b16 %v5215
        %v5500 = vunpack.c.h.b16 %v5215
        %v5501 = vunpack.c.l.b16 %v5216
        %v5502 = vunpack.c.h.b16 %v5216
        %v5503 = vunpack.c.l.b16 %v5217
        %v5504 = vunpack.c.h.b16 %v5217
        %v5505 = vunpack.c.l.b16 %v5218
        %v5506 = vunpack.c.h.b16 %v5218
        %v5507 = vunpack.c.l.b16 %v5219
        %v5508 = vunpack.c.h.b16 %v5219
        %v5509 = vunpack.c.l.b16 %v5220
        %v5510 = vunpack.c.h.b16 %v5220
        %v5511 = vunpack.c.l.b16 %v5221
        %v5512 = vunpack.c.h.b16 %v5221
        %v5513 = vunpack.c.l.b16 %v5222
        %v5514 = vunpack.c.h.b16 %v5222
        %v5515 = vunpack.c.l.b16 %v5223
        %v5516 = vunpack.c.h.b16 %v5223
        %v5517 = vunpack.c.l.b16 %v5224
        %v5518 = vunpack.c.h.b16 %v5224
        %v5519 = vunpack.c.l.b16 %v5225
        %v5520 = vunpack.c.h.b16 %v5225
        %v5521 = vunpack.c.l.b16 %v5226
        %v5522 = vunpack.c.h.b16 %v5226
        %v5523 = vunpack.c.l.b16 %v5227
        %v5524 = vunpack.c.h.b16 %v5227
        %v5525 = vunpack.c.l.b16 %v5228
        %v5526 = vunpack.c.h.b16 %v5228
        %v5527 = vunpack.c.l.b16 %v5229
        %v5528 = vunpack.c.h.b16 %v5229
        %v5529 = vunpack.c.l.b16 %v5230
        %v5530 = vunpack.c.h.b16 %v5230
        %v5531 = vunpack.c.l.b16 %v5231
        %v5532 = vunpack.c.h.b16 %v5231
        %v5533 = vunpack.c.l.b16 %v5232
        %v5534 = vunpack.c.h.b16 %v5232
        %v5535 = vunpack.c.l.b16 %v5233
        %v5536 = vunpack.c.h.b16 %v5233
        %v5537 = vunpack.c.l.b16 %v5234
        %v5538 = vunpack.c.h.b16 %v5234
        %v5539 = vunpack.c.l.b16 %v5235
        %v5540 = vunpack.c.h.b16 %v5235
        %v5541 = vunpack.c.l.b16 %v5236
        %v5542 = vunpack.c.h.b16 %v5236
        %v5543 = vunpack.c.l.b16 %v5237
        %v5544 = vunpack.c.h.b16 %v5237
        %v5545 = vunpack.c.l.b16 %v5238
        %v5546 = vunpack.c.h.b16 %v5238
        %v5547 = vunpack.c.l.b16 %v5239
        %v5548 = vunpack.c.h.b16 %v5239
        %v5549 = vunpack.c.l.b16 %v5240
        %v5550 = vunpack.c.h.b16 %v5240
        %v5551 = vunpack.c.l.b16 %v5241
        %v5552 = vunpack.c.h.b16 %v5241
        %v5553 = vunpack.c.l.b16 %v5242
        %v5554 = vunpack.c.h.b16 %v5242
        %v5555 = vunpack.c.l.b16 %v5243
        %v5556 = vunpack.c.h.b16 %v5243
        %v5557 = vunpack.c.l.b16 %v5244
        %v5558 = vunpack.c.h.b16 %v5244
        %v5559 = vunpack.c.l.b16 %v5245
        %v5560 = vunpack.c.h.b16 %v5245
        %v5561 = vunpack.c.l.b16 %v5246
        %v5562 = vunpack.c.h.b16 %v5246
        %v5563 = vunpack.c.l.b16 %v5247
        %v5564 = vunpack.c.h.b16 %v5247
        %v5565 = vunpack.c.l.b16 %v5248
        %v5566 = vunpack.c.h.b16 %v5248
        %v5567 = vunpack.c.l.b16 %v5249
        %v5568 = vunpack.c.h.b16 %v5249
        %v5569 = vunpack.c.l.b16 %v5250
        %v5570 = vunpack.c.h.b16 %v5250
        %v5571 = vunpack.c.l.b16 %v5251
        %v5572 = vunpack.c.h.b16 %v5251
        %v5573 = vunpack.c.l.b16 %v5252
        %v5574 = vunpack.c.h.b16 %v5252
        %v5575 = vunpack.c.l.b16 %v5253
        %v5576 = vunpack.c.h.b16 %v5253
        %v5577 = vunpack.c.l.b16 %v5254
        %v5578 = vunpack.c.h.b16 %v5254
        %v5579 = vunpack.c.l.b16 %v5255
        %v5580 = vunpack.c.h.b16 %v5255
        %v5581 = vunpack.c.l.b16 %v5256
        %v5582 = vunpack.c.h.b16 %v5256
        %v5583 = vunpack.c.l.b16 %v5257
        %v5584 = vunpack.c.h.b16 %v5257
        %v5585 = vunpack.c.l.b16 %v5258
        %v5586 = vunpack.c.h.b16 %v5258
        %v5587 = vunpack.c.l.b16 %v5259
        %v5588 = vunpack.c.h.b16 %v5259
        %v5589 = vunpack.c.l.b16 %v5260
        %v5590 = vunpack.c.h.b16 %v5260
        %v5591 = vunpack.c.l.b16 %v5261
        %v5592 = vunpack.c.h.b16 %v5261
        %v5593 = vunpack.c.l.b16 %v5262
        %v5594 = vunpack.c.h.b16 %v5262
        %v5595 = vunpack.c.l.b16 %v5263
        %v5596 = vunpack.c.h.b16 %v5263
        %v5597 = vunpack.c.l.b16 %v5264
        %v5598 = vunpack.c.h.b16 %v5264
        %v5599 = vunpack.c.l.b16 %v5265
        %v5600 = vunpack.c.h.b16 %v5265
        %v5601 = vunpack.c.l.b16 %v5266
        %v5602 = vunpack.c.h.b16 %v5266
        %v5603 = vunpack.c.l.b16 %v5267
        %v5604 = vunpack.c.h.b16 %v5267
        %v5605 = vunpack.c.l.b16 %v5268
        %v5606 = vunpack.c.h.b16 %v5268
        %v5607 = vunpack.c.l.b16 %v5269
        %v5608 = vunpack.c.h.b16 %v5269
        %v5609 = vunpack.c.l.b16 %v5270
        %v5610 = vunpack.c.h.b16 %v5270
        %v5611 = vunpack.c.l.b16 %v5271
        %v5612 = vunpack.c.h.b16 %v5271
        %v5613 = vunpack.c.l.b16 %v5272
        %v5614 = vunpack.c.h.b16 %v5272
        %v5615 = vunpack.c.l.b16 %v5273
        %v5616 = vunpack.c.h.b16 %v5273
        %v5617 = vunpack.c.l.b16 %v5274
        %v5618 = vunpack.c.h.b16 %v5274
        %v5619 = vunpack.c.l.b16 %v5275
        %v5620 = vunpack.c.h.b16 %v5275
        %v5621 = vunpack.c.l.b16 %v5276
        %v5622 = vunpack.c.h.b16 %v5276
        %v5623 = vunpack.c.l.b16 %v5277
        %v5624 = vunpack.c.h.b16 %v5277
        %v5625 = vunpack.c.l.b16 %v5278
        %v5626 = vunpack.c.h.b16 %v5278
        %v5627 = vunpack.c.l.b16 %v5279
        %v5628 = vunpack.c.h.b16 %v5279
        %v5629 = vunpack.c.l.b16 %v5280
        %v5630 = vunpack.c.h.b16 %v5280
        %v5631 = vunpack.c.l.b16 %v5281
        %v5632 = vunpack.c.h.b16 %v5281
        %v5633 = vunpack.c.l.b16 %v5282
        %v5634 = vunpack.c.h.b16 %v5282
        %v5635 = vunpack.c.l.b16 %v5283
        %v5636 = vunpack.c.h.b16 %v5283
        %v5637 = vunpack.c.l.b16 %v5284
        %v5638 = vunpack.c.h.b16 %v5284
        %v5639 = vunpack.c.l.b16 %v5285
        %v5640 = vunpack.c.h.b16 %v5285
        %v5641 = vunpack.c.l.b16 %v5286
        %v5642 = vunpack.c.h.b16 %v5286
        %v5643 = vunpack.c.l.b16 %v5287
        %v5644 = vunpack.c.h.b16 %v5287
        %v5645 = vunpack.c.l.b16 %v5288
        %v5646 = vunpack.c.h.b16 %v5288
        %v5647 = vunpack.c.l.b16 %v5289
        %v5648 = vunpack.c.h.b16 %v5289
        %v5649 = vunpack.c.l.b16 %v5290
        %v5650 = vunpack.c.h.b16 %v5290
        %v5651 = vunpack.c.l.b16 %v5291
        %v5652 = vunpack.c.h.b16 %v5291
        %v5653 = vunpack.c.l.b16 %v5292
        %v5654 = vunpack.c.h.b16 %v5292
        %v5655 = vunpack.c.l.b16 %v5293
        %v5656 = vunpack.c.h.b16 %v5293
        %v5657 = vunpack.c.l.b16 %v5294
        %v5658 = vunpack.c.h.b16 %v5294
        %v5659 = vunpack.c.l.b16 %v5295
        %v5660 = vunpack.c.h.b16 %v5295
        %v5661 = vunpack.c.l.b16 %v5296
        %v5662 = vunpack.c.h.b16 %v5296
        %v5663 = vunpack.c.l.b16 %v5297
        %v5664 = vunpack.c.h.b16 %v5297
        %v5665 = vunpack.c.l.b16 %v5298
        %v5666 = vunpack.c.h.b16 %v5298
        %v5667 = vunpack.c.l.b16 %v5299
        %v5668 = vunpack.c.h.b16 %v5299
        %v5669 = vunpack.c.l.b16 %v5300
        %v5670 = vunpack.c.h.b16 %v5300
        %v5671 = vunpack.c.l.b16 %v5301
        %v5672 = vunpack.c.h.b16 %v5301
        %v5673 = vunpack.c.l.b16 %v5302
        %v5674 = vunpack.c.h.b16 %v5302
        %v5675 = vunpack.c.l.b16 %v5303
        %v5676 = vunpack.c.h.b16 %v5303
        %v5677 = vunpack.c.l.b16 %v5304
        %v5678 = vunpack.c.h.b16 %v5304
        %v5679 = vunpack.c.l.b16 %v5305
        %v5680 = vunpack.c.h.b16 %v5305
        %v5681 = vunpack.c.l.b16 %v5306
        %v5682 = vunpack.c.h.b16 %v5306
        %v5683 = vunpack.c.l.b16 %v5307
        %v5684 = vunpack.c.h.b16 %v5307
        %v5685 = vunpack.c.l.b16 %v5308
        %v5686 = vunpack.c.h.b16 %v5308
        %v5687 = vunpack.c.l.b16 %v5309
        %v5688 = vunpack.c.h.b16 %v5309
        %v5689 = vunpack.c.l.b16 %v5310
        %v5690 = vunpack.c.h.b16 %v5310
        %v5691 = vunpack.c.l.b16 %v5311
        %v5692 = vunpack.c.h.b16 %v5311
        %v5693 = vunpack.c.l.b16 %v5312
        %v5694 = vunpack.c.h.b16 %v5312
        %v5695 = vunpack.c.l.b16 %v5313
        %v5696 = vunpack.c.h.b16 %v5313
        %v5697 = vunpack.c.l.b16 %v5314
        %v5698 = vunpack.c.h.b16 %v5314
        %v5699 = vunpack.c.l.b16 %v5315
        %v5700 = vunpack.c.h.b16 %v5315
        %v5701 = vunpack.c.l.b16 %v5316
        %v5702 = vunpack.c.h.b16 %v5316
        %v5703 = vunpack.c.l.b16 %v5317
        %v5704 = vunpack.c.h.b16 %v5317
        %v5705 = vunpack.c.l.b16 %v5318
        %v5706 = vunpack.c.h.b16 %v5318
        %v5707 = vunpack.c.l.b16 %v5319
        %v5708 = vunpack.c.h.b16 %v5319
        %v5709 = vunpack.c.l.b16 %v5320
        %v5710 = vunpack.c.h.b16 %v5320
        %v5711 = vunpack.c.l.b16 %v5321
        %v5712 = vunpack.c.h.b16 %v5321
        %v5713 = vunpack.c.l.b16 %v5322
        %v5714 = vunpack.c.h.b16 %v5322
        %v5715 = vunpack.c.l.b16 %v5323
        %v5716 = vunpack.c.h.b16 %v5323
        %v5717 = vunpack.c.l.b16 %v5324
        %v5718 = vunpack.c.h.b16 %v5324
        %v5719 = vunpack.c.l.b16 %v5325
        %v5720 = vunpack.c.h.b16 %v5325
        %v5721 = vunpack.c.l.b16 %v5326
        %v5722 = vunpack.c.h.b16 %v5326
        %v5723 = vpack.c.b16 %v5469, %v5467
        %v5724 = vpack.c.b16 %v5470, %v5468
        %v5725 = vpack.c.b16 %v5473, %v5471
        %v5726 = vpack.c.b16 %v5474, %v5472
        %v5727 = vpack.c.b16 %v5477, %v5475
        %v5728 = vpack.c.b16 %v5478, %v5476
        %v5729 = vpack.c.b16 %v5481, %v5479
        %v5730 = vpack.c.b16 %v5482, %v5480
        %v5731 = vpack.c.b16 %v5485, %v5483
        %v5732 = vpack.c.b16 %v5486, %v5484
        %v5733 = vpack.c.b16 %v5489, %v5487
        %v5734 = vpack.c.b16 %v5490, %v5488
        %v5735 = vpack.c.b16 %v5493, %v5491
        %v5736 = vpack.c.b16 %v5494, %v5492
        %v5737 = vpack.c.b16 %v5497, %v5495
        %v5738 = vpack.c.b16 %v5498, %v5496
        %v5739 = vpack.c.b16 %v5501, %v5499
        %v5740 = vpack.c.b16 %v5502, %v5500
        %v5741 = vpack.c.b16 %v5505, %v5503
        %v5742 = vpack.c.b16 %v5506, %v5504
        %v5743 = vpack.c.b16 %v5509, %v5507
        %v5744 = vpack.c.b16 %v5510, %v5508
        %v5745 = vpack.c.b16 %v5513, %v5511
        %v5746 = vpack.c.b16 %v5514, %v5512
        %v5747 = vpack.c.b16 %v5517, %v5515
        %v5748 = vpack.c.b16 %v5518, %v5516
        %v5749 = vpack.c.b16 %v5521, %v5519
        %v5750 = vpack.c.b16 %v5522, %v5520
        %v5751 = vpack.c.b16 %v5525, %v5523
        %v5752 = vpack.c.b16 %v5526, %v5524
        %v5753 = vpack.c.b16 %v5529, %v5527
        %v5754 = vpack.c.b16 %v5530, %v5528
        %v5755 = vpack.c.b16 %v5533, %v5531
        %v5756 = vpack.c.b16 %v5534, %v5532
        %v5757 = vpack.c.b16 %v5537, %v5535
        %v5758 = vpack.c.b16 %v5538, %v5536
        %v5759 = vpack.c.b16 %v5541, %v5539
        %v5760 = vpack.c.b16 %v5542, %v5540
        %v5761 = vpack.c.b16 %v5545, %v5543
        %v5762 = vpack.c.b16 %v5546, %v5544
        %v5763 = vpack.c.b16 %v5549, %v5547
        %v5764 = vpack.c.b16 %v5550, %v5548
        %v5765 = vpack.c.b16 %v5553, %v5551
        %v5766 = vpack.c.b16 %v5554, %v5552
        %v5767 = vpack.c.b16 %v5557, %v5555
        %v5768 = vpack.c.b16 %v5558, %v5556
        %v5769 = vpack.c.b16 %v5561, %v5559
        %v5770 = vpack.c.b16 %v5562, %v5560
        %v5771 = vpack.c.b16 %v5565, %v5563
        %v5772 = vpack.c.b16 %v5566, %v5564
        %v5773 = vpack.c.b16 %v5569, %v5567
        %v5774 = vpack.c.b16 %v5570, %v5568
        %v5775 = vpack.c.b16 %v5573, %v5571
        %v5776 = vpack.c.b16 %v5574, %v5572
        %v5777 = vpack.c.b16 %v5577, %v5575
        %v5778 = vpack.c.b16 %v5578, %v5576
        %v5779 = vpack.c.b16 %v5581, %v5579
        %v5780 = vpack.c.b16 %v5582, %v5580
        %v5781 = vpack.c.b16 %v5585, %v5583
        %v5782 = vpack.c.b16 %v5586, %v5584
        %v5783 = vpack.c.b16 %v5589, %v5587
        %v5784 = vpack.c.b16 %v5590, %v5588
        %v5785 = vpack.c.b16 %v5593, %v5591
        %v5786 = vpack.c.b16 %v5594, %v5592
        %v5787 = vpack.c.b16 %v5597, %v5595
        %v5788 = vpack.c.b16 %v5598, %v5596
        %v5789 = vpack.c.b16 %v5601, %v5599
        %v5790 = vpack.c.b16 %v5602, %v5600
        %v5791 = vpack.c.b16 %v5605, %v5603
        %v5792 = vpack.c.b16 %v5606, %v5604
        %v5793 = vpack.c.b16 %v5609, %v5607
        %v5794 = vpack.c.b16 %v5610, %v5608
        %v5795 = vpack.c.b16 %v5613, %v5611
        %v5796 = vpack.c.b16 %v5614, %v5612
        %v5797 = vpack.c.b16 %v5617, %v5615
        %v5798 = vpack.c.b16 %v5618, %v5616
        %v5799 = vpack.c.b16 %v5621, %v5619
        %v5800 = vpack.c.b16 %v5622, %v5620
        %v5801 = vpack.c.b16 %v5625, %v5623
        %v5802 = vpack.c.b16 %v5626, %v5624
        %v5803 = vpack.c.b16 %v5629, %v5627
        %v5804 = vpack.c.b16 %v5630, %v5628
        %v5805 = vpack.c.b16 %v5633, %v5631
        %v5806 = vpack.c.b16 %v5634, %v5632
        %v5807 = vpack.c.b16 %v5637, %v5635
        %v5808 = vpack.c.b16 %v5638, %v5636
        %v5809 = vpack.c.b16 %v5641, %v5639
        %v5810 = vpack.c.b16 %v5642, %v5640
        %v5811 = vpack.c.b16 %v5645, %v5643
        %v5812 = vpack.c.b16 %v5646, %v5644
        %v5813 = vpack.c.b16 %v5649, %v5647
        %v5814 = vpack.c.b16 %v5650, %v5648
        %v5815 = vpack.c.b16 %v5653, %v5651
        %v5816 = vpack.c.b16 %v5654, %v5652
        %v5817 = vpack.c.b16 %v5657, %v5655
        %v5818 = vpack.c.b16 %v5658, %v5656
        %v5819 = vpack.c.b16 %v5661, %v5659
        %v5820 = vpack.c.b16 %v5662, %v5660
        %v5821 = vpack.c.b16 %v5665, %v5663
        %v5822 = vpack.c.b16 %v5666, %v5664
        %v5823 = vpack.c.b16 %v5669, %v5667
        %v5824 = vpack.c.b16 %v5670, %v5668
        %v5825 = vpack.c.b16 %v5673, %v5671
        %v5826 = vpack.c.b16 %v5674, %v5672
        %v5827 = vpack.c.b16 %v5677, %v5675
        %v5828 = vpack.c.b16 %v5678, %v5676
        %v5829 = vpack.c.b16 %v5681, %v5679
        %v5830 = vpack.c.b16 %v5682, %v5680
        %v5831 = vpack.c.b16 %v5685, %v5683
        %v5832 = vpack.c.b16 %v5686, %v5684
        %v5833 = vpack.c.b16 %v5689, %v5687
        %v5834 = vpack.c.b16 %v5690, %v5688
        %v5835 = vpack.c.b16 %v5693, %v5691
        %v5836 = vpack.c.b16 %v5694, %v5692
        %v5837 = vpack.c.b16 %v5697, %v5695
        %v5838 = vpack.c.b16 %v5698, %v5696
        %v5839 = vpack.c.b16 %v5701, %v5699
        %v5840 = vpack.c.b16 %v5702, %v5700
        %v5841 = vpack.c.b16 %v5705, %v5703
        %v5842 = vpack.c.b16 %v5706, %v5704
        %v5843 = vpack.c.b16 %v5709, %v5707
        %v5844 = vpack.c.b16 %v5710, %v5708
        %v5845 = vpack.c.b16 %v5713, %v5711
        %v5846 = vpack.c.b16 %v5714, %v5712
        %v5847 = vpack.c.b16 %v5717, %v5715
        %v5848 = vpack.c.b16 %v5718, %v5716
        %v5849 = vpack.c.b16 %v5721, %v5719
        %v5850 = vpack.c.b16 %v5722, %v5720
        %5979 = vmatprep.subr.bf16.mxu0 %v5738
        %5980 = vmatpush1.bf16.msra.mxu0 %v5737
        %5981 = vmatprep.subr.bf16.mxu0 %v5736
        %5982 = vmatpush1.bf16.msra.mxu0 %v5735
        %5983 = vmatprep.subr.bf16.mxu0 %v5734
        %5984 = vmatpush1.bf16.msra.mxu0 %v5733
        %5985 = vmatprep.subr.bf16.mxu0 %v5732
        %5986 = vmatpush1.bf16.msra.mxu0 %v5731
        %5987 = vmatprep.subr.bf16.mxu0 %v5730
        %5988 = vmatpush1.bf16.msra.mxu0 %v5729
        %5989 = vmatprep.subr.bf16.mxu0 %v5728
        %5990 = vmatpush1.bf16.msra.mxu0 %v5727
        %5991 = vmatprep.subr.bf16.mxu0 %v5726
        %5992 = vmatpush1.bf16.msra.mxu0 %v5725
        %5993 = vmatprep.subr.bf16.mxu0 %v5724
        %5994 = vmatpush1.bf16.msra.mxu0 %v5723
        %5995 = vmatprep.subr.bf16.mxu0 %v5754
        %5996 = vmatpush2.bf16.msra.mxu0 %v5753
        %5997 = vmatprep.subr.bf16.mxu0 %v5752
        %5998 = vmatpush2.bf16.msra.mxu0 %v5751
        %5999 = vmatprep.subr.bf16.mxu0 %v5750
        %6000 = vmatpush2.bf16.msra.mxu0 %v5749
        %6001 = vmatprep.subr.bf16.mxu0 %v5748
        %6002 = vmatpush2.bf16.msra.mxu0 %v5747
        %6003 = vmatprep.subr.bf16.mxu0 %v5746
        %6004 = vmatpush2.bf16.msra.mxu0 %v5745
        %6005 = vmatprep.subr.bf16.mxu0 %v5744
        %6006 = vmatpush2.bf16.msra.mxu0 %v5743
        %6007 = vmatprep.subr.bf16.mxu0 %v5742
        %6008 = vmatpush2.bf16.msra.mxu0 %v5741
        %6009 = vmatprep.subr.bf16.mxu0 %v5740
        %6010 = vmatpush2.bf16.msra.mxu0 %v5739
        %6011 = vmatprep.mubr.bf16.mxu0 %v5168
        %6012 = vmatmul.mubr.bf16.gmra.mxu0 %v5167
        %v6013 = vpop.f32.mrf.mxu0
        %v6014 = vadd.f32 %v5332, %v6013
        %v6015 = vpop.f32.mrf.mxu0
        %v6016 = vadd.f32 %v5336, %v6015
        %v6017 = vpop.f32.mrf.mxu0
        %v6018 = vadd.f32 %v5332, %v6017
        %v6019 = vpop.f32.mrf.mxu0
        %v6020 = vadd.f32 %v5336, %v6019
        %6021 = vmatprep.mubr.bf16.mxu0 %v5176
        %6022 = vmatmul.mubr.bf16.gmra.mxu0 %v5175
        %v6023 = vpop.f32.mrf.mxu0
        %v6024 = vadd.f32 %v5332, %v6023
        %v6025 = vpop.f32.mrf.mxu0
        %v6026 = vadd.f32 %v5336, %v6025
        %v6027 = vpop.f32.mrf.mxu0
        %v6028 = vadd.f32 %v5332, %v6027
        %v6029 = vpop.f32.mrf.mxu0
        %v6030 = vadd.f32 %v5336, %v6029
        %6031 = vmatprep.mubr.bf16.mxu0 %v5184
        %6032 = vmatmul.mubr.bf16.gmra.mxu0 %v5183
        %v6033 = vpop.f32.mrf.mxu0
        %v6034 = vadd.f32 %v5332, %v6033
        %v6035 = vpop.f32.mrf.mxu0
        %v6036 = vadd.f32 %v5336, %v6035
        %v6037 = vpop.f32.mrf.mxu0
        %v6038 = vadd.f32 %v5332, %v6037
        %v6039 = vpop.f32.mrf.mxu0
        %v6040 = vadd.f32 %v5336, %v6039
        %6041 = vmatprep.mubr.bf16.mxu0 %v5192
        %6042 = vmatmul.mubr.bf16.gmra.mxu0 %v5191
        %v6043 = vpop.f32.mrf.mxu0
        %v6044 = vadd.f32 %v5332, %v6043
        %v6045 = vpop.f32.mrf.mxu0
        %v6046 = vadd.f32 %v5336, %v6045
        %v6047 = vpop.f32.mrf.mxu0
        %v6048 = vadd.f32 %v5332, %v6047
        %v6049 = vpop.f32.mrf.mxu0
        %v6050 = vadd.f32 %v5336, %v6049
        %6051 = vdwg.mxu0
        %6052 = vmatprep.subr.bf16.mxu0 %v5770
        %6053 = vmatpush1.bf16.msra.mxu0 %v5769
        %6054 = vmatprep.subr.bf16.mxu0 %v5768
        %6055 = vmatpush1.bf16.msra.mxu0 %v5767
        %6056 = vmatprep.subr.bf16.mxu0 %v5766
        %6057 = vmatpush1.bf16.msra.mxu0 %v5765
        %6058 = vmatprep.subr.bf16.mxu0 %v5764
        %6059 = vmatpush1.bf16.msra.mxu0 %v5763
        %6060 = vmatprep.subr.bf16.mxu0 %v5762
        %6061 = vmatpush1.bf16.msra.mxu0 %v5761
        %6062 = vmatprep.subr.bf16.mxu0 %v5760
        %6063 = vmatpush1.bf16.msra.mxu0 %v5759
        %6064 = vmatprep.subr.bf16.mxu0 %v5758
        %6065 = vmatpush1.bf16.msra.mxu0 %v5757
        %6066 = vmatprep.subr.bf16.mxu0 %v5756
        %6067 = vmatpush1.bf16.msra.mxu0 %v5755
        %6068 = vmatprep.subr.bf16.mxu0 %v5786
        %6069 = vmatpush2.bf16.msra.mxu0 %v5785
        %6070 = vmatprep.subr.bf16.mxu0 %v5784
        %6071 = vmatpush2.bf16.msra.mxu0 %v5783
        %6072 = vmatprep.subr.bf16.mxu0 %v5782
        %6073 = vmatpush2.bf16.msra.mxu0 %v5781
        %6074 = vmatprep.subr.bf16.mxu0 %v5780
        %6075 = vmatpush2.bf16.msra.mxu0 %v5779
        %6076 = vmatprep.subr.bf16.mxu0 %v5778
        %6077 = vmatpush2.bf16.msra.mxu0 %v5777
        %6078 = vmatprep.subr.bf16.mxu0 %v5776
        %6079 = vmatpush2.bf16.msra.mxu0 %v5775
        %6080 = vmatprep.subr.bf16.mxu0 %v5774
        %6081 = vmatpush2.bf16.msra.mxu0 %v5773
        %6082 = vmatprep.subr.bf16.mxu0 %v5772
        %6083 = vmatpush2.bf16.msra.mxu0 %v5771
        %6084 = vmatprep.mubr.bf16.mxu0 %v5170
        %6085 = vmatmul.mubr.bf16.gmra.mxu0 %v5169
        %v6086 = vpop.f32.mrf.mxu0
        %v6087 = vadd.f32 %v6014, %v6086
        %v6088 = vpop.f32.mrf.mxu0
        %v6089 = vadd.f32 %v6016, %v6088
        %v6090 = vpop.f32.mrf.mxu0
        %v6091 = vadd.f32 %v6018, %v6090
        %v6092 = vpop.f32.mrf.mxu0
        %v6093 = vadd.f32 %v6020, %v6092
        %6094 = vmatprep.mubr.bf16.mxu0 %v5178
        %6095 = vmatmul.mubr.bf16.gmra.mxu0 %v5177
        %v6096 = vpop.f32.mrf.mxu0
        %v6097 = vadd.f32 %v6024, %v6096
        %v6098 = vpop.f32.mrf.mxu0
        %v6099 = vadd.f32 %v6026, %v6098
        %v6100 = vpop.f32.mrf.mxu0
        %v6101 = vadd.f32 %v6028, %v6100
        %v6102 = vpop.f32.mrf.mxu0
        %v6103 = vadd.f32 %v6030, %v6102
        %6104 = vmatprep.mubr.bf16.mxu0 %v5186
        %6105 = vmatmul.mubr.bf16.gmra.mxu0 %v5185
        %v6106 = vpop.f32.mrf.mxu0
        %v6107 = vadd.f32 %v6034, %v6106
        %v6108 = vpop.f32.mrf.mxu0
        %v6109 = vadd.f32 %v6036, %v6108
        %v6110 = vpop.f32.mrf.mxu0
        %v6111 = vadd.f32 %v6038, %v6110
        %v6112 = vpop.f32.mrf.mxu0
        %v6113 = vadd.f32 %v6040, %v6112
        %6114 = vmatprep.mubr.bf16.mxu0 %v5194
        %6115 = vmatmul.mubr.bf16.gmra.mxu0 %v5193
        %v6116 = vpop.f32.mrf.mxu0
        %v6117 = vadd.f32 %v6044, %v6116
        %v6118 = vpop.f32.mrf.mxu0
        %v6119 = vadd.f32 %v6046, %v6118
        %v6120 = vpop.f32.mrf.mxu0
        %v6121 = vadd.f32 %v6048, %v6120
        %v6122 = vpop.f32.mrf.mxu0
        %v6123 = vadd.f32 %v6050, %v6122
        %6124 = vdwg.mxu0
        %6125 = vmatprep.subr.bf16.mxu0 %v5802
        %6126 = vmatpush1.bf16.msra.mxu0 %v5801
        %6127 = vmatprep.subr.bf16.mxu0 %v5800
        %6128 = vmatpush1.bf16.msra.mxu0 %v5799
        %6129 = vmatprep.subr.bf16.mxu0 %v5798
        %6130 = vmatpush1.bf16.msra.mxu0 %v5797
        %6131 = vmatprep.subr.bf16.mxu0 %v5796
        %6132 = vmatpush1.bf16.msra.mxu0 %v5795
        %6133 = vmatprep.subr.bf16.mxu0 %v5794
        %6134 = vmatpush1.bf16.msra.mxu0 %v5793
        %6135 = vmatprep.subr.bf16.mxu0 %v5792
        %6136 = vmatpush1.bf16.msra.mxu0 %v5791
        %6137 = vmatprep.subr.bf16.mxu0 %v5790
        %6138 = vmatpush1.bf16.msra.mxu0 %v5789
        %6139 = vmatprep.subr.bf16.mxu0 %v5788
        %6140 = vmatpush1.bf16.msra.mxu0 %v5787
        %6141 = vmatprep.subr.bf16.mxu0 %v5818
        %6142 = vmatpush2.bf16.msra.mxu0 %v5817
        %6143 = vmatprep.subr.bf16.mxu0 %v5816
        %6144 = vmatpush2.bf16.msra.mxu0 %v5815
        %6145 = vmatprep.subr.bf16.mxu0 %v5814
        %6146 = vmatpush2.bf16.msra.mxu0 %v5813
        %6147 = vmatprep.subr.bf16.mxu0 %v5812
        %6148 = vmatpush2.bf16.msra.mxu0 %v5811
        %6149 = vmatprep.subr.bf16.mxu0 %v5810
        %6150 = vmatpush2.bf16.msra.mxu0 %v5809
        %6151 = vmatprep.subr.bf16.mxu0 %v5808
        %6152 = vmatpush2.bf16.msra.mxu0 %v5807
        %6153 = vmatprep.subr.bf16.mxu0 %v5806
        %6154 = vmatpush2.bf16.msra.mxu0 %v5805
        %6155 = vmatprep.subr.bf16.mxu0 %v5804
        %6156 = vmatpush2.bf16.msra.mxu0 %v5803
        %6157 = vmatprep.mubr.bf16.mxu0 %v5172
        %6158 = vmatmul.mubr.bf16.gmra.mxu0 %v5171
        %v6159 = vpop.f32.mrf.mxu0
        %v6160 = vadd.f32 %v6087, %v6159
        %v6161 = vpop.f32.mrf.mxu0
        %v6162 = vadd.f32 %v6089, %v6161
        %v6163 = vpop.f32.mrf.mxu0
        %v6164 = vadd.f32 %v6091, %v6163
        %v6165 = vpop.f32.mrf.mxu0
        %v6166 = vadd.f32 %v6093, %v6165
        %6167 = vmatprep.mubr.bf16.mxu0 %v5180
        %6168 = vmatmul.mubr.bf16.gmra.mxu0 %v5179
        %v6169 = vpop.f32.mrf.mxu0
        %v6170 = vadd.f32 %v6097, %v6169
        %v6171 = vpop.f32.mrf.mxu0
        %v6172 = vadd.f32 %v6099, %v6171
        %v6173 = vpop.f32.mrf.mxu0
        %v6174 = vadd.f32 %v6101, %v6173
        %v6175 = vpop.f32.mrf.mxu0
        %v6176 = vadd.f32 %v6103, %v6175
        %6177 = vmatprep.mubr.bf16.mxu0 %v5188
        %6178 = vmatmul.mubr.bf16.gmra.mxu0 %v5187
        %v6179 = vpop.f32.mrf.mxu0
        %v6180 = vadd.f32 %v6107, %v6179
        %v6181 = vpop.f32.mrf.mxu0
        %v6182 = vadd.f32 %v6109, %v6181
        %v6183 = vpop.f32.mrf.mxu0
        %v6184 = vadd.f32 %v6111, %v6183
        %v6185 = vpop.f32.mrf.mxu0
        %v6186 = vadd.f32 %v6113, %v6185
        %6187 = vmatprep.mubr.bf16.mxu0 %v5196
        %6188 = vmatmul.mubr.bf16.gmra.mxu0 %v5195
        %v6189 = vpop.f32.mrf.mxu0
        %v6190 = vadd.f32 %v6117, %v6189
        %v6191 = vpop.f32.mrf.mxu0
        %v6192 = vadd.f32 %v6119, %v6191
        %v6193 = vpop.f32.mrf.mxu0
        %v6194 = vadd.f32 %v6121, %v6193
        %v6195 = vpop.f32.mrf.mxu0
        %v6196 = vadd.f32 %v6123, %v6195
        %6197 = vdwg.mxu0
        %6198 = vmatprep.subr.bf16.mxu0 %v5834
        %6199 = vmatpush1.bf16.msra.mxu0 %v5833
        %6200 = vmatprep.subr.bf16.mxu0 %v5832
        %6201 = vmatpush1.bf16.msra.mxu0 %v5831
        %6202 = vmatprep.subr.bf16.mxu0 %v5830
        %6203 = vmatpush1.bf16.msra.mxu0 %v5829
        %6204 = vmatprep.subr.bf16.mxu0 %v5828
        %6205 = vmatpush1.bf16.msra.mxu0 %v5827
        %6206 = vmatprep.subr.bf16.mxu0 %v5826
        %6207 = vmatpush1.bf16.msra.mxu0 %v5825
        %6208 = vmatprep.subr.bf16.mxu0 %v5824
        %6209 = vmatpush1.bf16.msra.mxu0 %v5823
        %6210 = vmatprep.subr.bf16.mxu0 %v5822
        %6211 = vmatpush1.bf16.msra.mxu0 %v5821
        %6212 = vmatprep.subr.bf16.mxu0 %v5820
        %6213 = vmatpush1.bf16.msra.mxu0 %v5819
        %6214 = vmatprep.subr.bf16.mxu0 %v5850
        %6215 = vmatpush2.bf16.msra.mxu0 %v5849
        %6216 = vmatprep.subr.bf16.mxu0 %v5848
        %6217 = vmatpush2.bf16.msra.mxu0 %v5847
        %6218 = vmatprep.subr.bf16.mxu0 %v5846
        %6219 = vmatpush2.bf16.msra.mxu0 %v5845
        %6220 = vmatprep.subr.bf16.mxu0 %v5844
        %6221 = vmatpush2.bf16.msra.mxu0 %v5843
        %6222 = vmatprep.subr.bf16.mxu0 %v5842
        %6223 = vmatpush2.bf16.msra.mxu0 %v5841
        %6224 = vmatprep.subr.bf16.mxu0 %v5840
        %6225 = vmatpush2.bf16.msra.mxu0 %v5839
        %6226 = vmatprep.subr.bf16.mxu0 %v5838
        %6227 = vmatpush2.bf16.msra.mxu0 %v5837
        %6228 = vmatprep.subr.bf16.mxu0 %v5836
        %6229 = vmatpush2.bf16.msra.mxu0 %v5835
        %6230 = vmatprep.mubr.bf16.mxu0 %v5174
        %6231 = vmatmul.mubr.bf16.gmra.mxu0 %v5173
        %v6232 = vpop.f32.mrf.mxu0
        %v6233 = vadd.f32 %v6160, %v6232
        %v6234 = vpop.f32.mrf.mxu0
        %v6235 = vadd.f32 %v6162, %v6234
        %v6236 = vpop.f32.mrf.mxu0
        %v6237 = vadd.f32 %v6164, %v6236
        %v6238 = vpop.f32.mrf.mxu0
        %v6239 = vadd.f32 %v6166, %v6238
        %6240 = vmatprep.mubr.bf16.mxu0 %v5182
        %6241 = vmatmul.mubr.bf16.gmra.mxu0 %v5181
        %v6242 = vpop.f32.mrf.mxu0
        %v6243 = vadd.f32 %v6170, %v6242
        %v6244 = vpop.f32.mrf.mxu0
        %v6245 = vadd.f32 %v6172, %v6244
        %v6246 = vpop.f32.mrf.mxu0
        %v6247 = vadd.f32 %v6174, %v6246
        %v6248 = vpop.f32.mrf.mxu0
        %v6249 = vadd.f32 %v6176, %v6248
        %6250 = vmatprep.mubr.bf16.mxu0 %v5190
        %6251 = vmatmul.mubr.bf16.gmra.mxu0 %v5189
        %v6252 = vpop.f32.mrf.mxu0
        %v6253 = vadd.f32 %v6180, %v6252
        %v6254 = vpop.f32.mrf.mxu0
        %v6255 = vadd.f32 %v6182, %v6254
        %v6256 = vpop.f32.mrf.mxu0
        %v6257 = vadd.f32 %v6184, %v6256
        %v6258 = vpop.f32.mrf.mxu0
        %v6259 = vadd.f32 %v6186, %v6258
        %6260 = vmatprep.mubr.bf16.mxu0 %v5198
        %6261 = vmatmul.mubr.bf16.gmra.mxu0 %v5197
        %v6262 = vpop.f32.mrf.mxu0
        %v6263 = vadd.f32 %v6190, %v6262
        %v6264 = vpop.f32.mrf.mxu0
        %v6265 = vadd.f32 %v6192, %v6264
        %v6266 = vpop.f32.mrf.mxu0
        %v6267 = vadd.f32 %v6194, %v6266
        %v6268 = vpop.f32.mrf.mxu0
        %v6269 = vadd.f32 %v6196, %v6268
        %6270 = vdwg.mxu0
        %v6271 = vadd.f32 %v3793, %v6233
        %v6272 = vadd.f32 %v3794, %v6235
        %v6273 = vadd.f32 %v3795, %v6237
        %v6274 = vadd.f32 %v3796, %v6239
        %v6275 = vadd.f32 %v3797, %v6243
        %v6276 = vadd.f32 %v3798, %v6245
        %v6277 = vadd.f32 %v3799, %v6247
        %v6278 = vadd.f32 %v3800, %v6249
        %v6279 = vadd.f32 %v3801, %v6253
        %v6280 = vadd.f32 %v3802, %v6255
        %v6281 = vadd.f32 %v3803, %v6257
        %v6282 = vadd.f32 %v3804, %v6259
        %v6283 = vadd.f32 %v3805, %v6263
        %v6284 = vadd.f32 %v3806, %v6265
        %v6285 = vadd.f32 %v3807, %v6267
        %v6286 = vadd.f32 %v3808, %v6269
        %6287 = vst [vmem:[%s846] sm:$0xff] %v6271
        %6288 = vst [vmem:[%s846 + $0x8] sm:$0xff] %v6272
        %6289 = vst [vmem:[%s846 + $0x10] sm:$0xff] %v6273
        %6290 = vst [vmem:[%s846 + $0x18] sm:$0xff] %v6274
        %6291 = vst [vmem:[%s846 + $0x20] sm:$0xff] %v6275
        %6292 = vst [vmem:[%s846 + $0x28] sm:$0xff] %v6276
        %6293 = vst [vmem:[%s846 + $0x30] sm:$0xff] %v6277
        %6294 = vst [vmem:[%s846 + $0x38] sm:$0xff] %v6278
        %6295 = vst [vmem:[%s846 + $0x40] sm:$0xff] %v6279
        %6296 = vst [vmem:[%s846 + $0x48] sm:$0xff] %v6280
        %6297 = vst [vmem:[%s846 + $0x50] sm:$0xff] %v6281
        %6298 = vst [vmem:[%s846 + $0x58] sm:$0xff] %v6282
        %6299 = vst [vmem:[%s846 + $0x60] sm:$0xff] %v6283
        %6300 = vst [vmem:[%s846 + $0x68] sm:$0xff] %v6284
        %6301 = vst [vmem:[%s846 + $0x70] sm:$0xff] %v6285
        %6302 = vst [vmem:[%s846 + $0x78] sm:$0xff] %v6286
        %p6303 = scmp.lt.s32.totalorder %s46, 1
        %s6304 = scalar_select %p6303, %s46, 1
        %s6305 = smul.addr %s6304, 16
        %s6306 = smul.addr %s6305, 8
        %s6307 = scalar_lea.vmem %s13, %s6306
        // Predicated region
        $region117: #{gpt_forward.2} parent=71 // pred_check
          %p6308 = pneg %p405
        $region118: #{gpt_forward.2} parent=71 // pred_check_branch
          %6310 = sbr.rel (%p6308) target = $region120
        $region119: #{gpt_forward.2} parent=71 // pred_region
          _
        $region120: #{gpt_forward.2} parent=71 // pred_fallthru
          _
      $region72: #{gpt_forward.2} parent=5 // pred_fallthru
        _
      %p6311 = scmp.le.s32.totalorder 2, %s37
      // Predicated region
      $region121: #{gpt_forward.2} parent=5 // pred_check
        %p6312 = pneg %p6311
      $region122: #{gpt_forward.2} parent=5 // pred_check_branch
        %6314 = sbr.rel (%p6312) target = $region124
      $region123: #{gpt_forward.2} parent=5 // pred_region
        %s6315 = ssub.s32 %s37, 2
        // Predicated region
        $region125: #{gpt_forward.2} parent=123 // pred_check
          %p6316 = pneg %p411
        $region126: #{gpt_forward.2} parent=123 // pred_check_branch
          %6318 = sbr.rel (%p6316) target = $region128
        $region127: #{gpt_forward.2} parent=123 // pred_region
          %p6319 = scmp.lt.s32.totalorder %s48, 1
          %s6320 = scalar_select %p6319, %s48, 1
          %s6321 = smul.addr %s6320, 16
          %s6322 = smul.addr %s6321, 8
          %s6323 = scalar_lea.vmem %s13, %s6322
        $region128: #{gpt_forward.2} parent=123 // pred_fallthru
          _
      $region124: #{gpt_forward.2} parent=5 // pred_fallthru
        _
    $region6: #{gpt_forward.2} parent=1 // loop_footer
      %s41 = sadd.s32 1, %s37
    $region7: #{gpt_forward.2} parent=1 // loop_footer_branch
      %36 = sbr.rel target = $region3
    $region8: #{gpt_forward.2} parent=1 // loop_exit
      _
    %6324 = vsyncpa [#allocation3], 1
    %s6325 = scalar_lea.sflag [#allocation3], 1
    %6326 = vsyncpa %s6325, 1
    %6327 = vsyncpa [#allocation5], 1
    %s6328 = scalar_lea.sflag [#allocation5], 1
    %6329 = vsyncpa %s6328, 1
    %6330 = vsyncpa [#allocation8], 1
    %s6331 = scalar_lea.sflag [#allocation8], 1
    %6332 = vsyncpa %s6331, 1
    %6333 = vsyncpa [#allocation11], 1
    %s6334 = scalar_lea.sflag [#allocation11], 1
    %6335 = vsyncpa %s6334, 1
    %6336 = vsyncpa [#allocation14], 1
    %s6337 = scalar_lea.sflag [#allocation14], 1
    %6338 = vsyncpa %s6337, 1
    %6339 = vsyncpa [#allocation17], 1
    %s6340 = scalar_lea.sflag [#allocation17], 1
    %6341 = vsyncpa %s6340, 1

</llo_original>
